<compile_context>
chip_gen: v7x
topology: tpu7x:2x2x1
jax: 0.10.0
libtpu: 0.0.40
codegen_flags: <defaults>
</compile_context>

<pallas_src>
import jax
import jax.numpy as jnp
from jax.experimental import pallas as pl
from jax.experimental.pallas import tpu as pltpu

BN_EPS = 1e-5
C1, C2, C3 = 64, 128, 1024   # conv output channels (fixed by the module)
F1, F2 = 512, 256            # fc output dims       (fixed by the module)
CONV3_CHUNK = 256            # conv3 output-channel chunk (divides C3)


def _round_up(x, m):
    return (x + m - 1) // m * m


# -----------------------------------------------------------------------------
# Pallas kernel: one grid step == (TB batch elements) x (one point tile).
# -----------------------------------------------------------------------------
def tnet_kernel(
    x_ref,                       # [TB, NT, D_PAD]     bf16
    w1_ref, t1_ref,              # [D_PAD, 64] bf16,   [1, 64]   f32
    w2_ref, t2_ref,              # [64, 128]   bf16,   [1, 128]  f32
    w3_ref, t3_ref,              # [128, 1024] bf16,   [1, 1024] f32
    wf1_ref, tf1_ref,            # [1024, 512] bf16,   [1, 512]  f32
    wf2_ref, tf2_ref,            # [512, 256]  bf16,   [1, 256]  f32
    ww_ref,                      # [256, DD_PAD] bf16
    iden_ref,                    # [1, DD_PAD] f32
    o_ref,                       # [TB, DD_PAD] f32
    acc_ref,                     # [TB, 1024] f32 scratch: running max of RAW conv3 logits
):
    k = pl.program_id(1)
    nk = pl.num_programs(1)

    @pl.when(k == 0)
    def _():
        acc_ref[...] = jnp.full_like(acc_ref, -jnp.inf)

    tb, nt, dp = x_ref.shape
    x = x_ref[...].reshape(tb * nt, dp)                           # bf16 [TB*NT, D_PAD]

    # conv1/conv2: bf16 matmul (f32 accumulate) + folded-BN shift + ReLU.
    h = jnp.dot(x, w1_ref[...], preferred_element_type=jnp.float32)
    h = jnp.maximum(h + t1_ref[...], 0.0).astype(jnp.bfloat16)

    h = jnp.dot(h, w2_ref[...], preferred_element_type=jnp.float32)
    h = jnp.maximum(h + t2_ref[...], 0.0).astype(jnp.bfloat16)    # [TB*NT, 128]

    # conv3, channel-chunked and fused with the point-max.  The bias+ReLU are
    # deferred to the finalize block (exact: ReLU monotone, t3 per-channel
    # constant), so only raw logit maxima are accumulated and the live f32
    # intermediate is one [TB*NT, CONV3_CHUNK] chunk at a time.
    ck = CONV3_CHUNK
    for c in range(C3 // ck):
        lo, hi = c * ck, (c + 1) * ck
        z = jnp.dot(h, w3_ref[:, lo:hi], preferred_element_type=jnp.float32)
        tile_max = jnp.max(z.reshape(tb, nt, ck), axis=1)          # [TB, ck]
        acc_ref[:, lo:hi] = jnp.maximum(acc_ref[:, lo:hi], tile_max)

    # finalize: conv3 bias+ReLU, fc1/fc2, weight + identity — after last tile.
    @pl.when(k == nk - 1)
    def _():
        g = jnp.maximum(acc_ref[...] + t3_ref[...], 0.0).astype(jnp.bfloat16)

        f = jnp.dot(g, wf1_ref[...], preferred_element_type=jnp.float32)
        f = jnp.maximum(f + tf1_ref[...], 0.0).astype(jnp.bfloat16)

        f = jnp.dot(f, wf2_ref[...], preferred_element_type=jnp.float32)
        f = jnp.maximum(f + tf2_ref[...], 0.0).astype(jnp.bfloat16)

        out = jnp.dot(f, ww_ref[...], preferred_element_type=jnp.float32)
        o_ref[...] = out + iden_ref[...]                          # [TB, DD_PAD]


# -----------------------------------------------------------------------------
# Wrapper: padding, bf16 casts, BlockSpecs, pallas_call.
# -----------------------------------------------------------------------------
def tnet_forward(x, params, *, tb=8, nt=256):
    """x: [B, d, n] float32  ->  [B, d, d] float32.

    On v5e/v6e (128 MiB VMEM) nt=512 / tb=16 with a larger vmem_limit is a
    reasonable upgrade; keep the defaults on v7x (64 MiB VMEM).
    """
    B, d, n = x.shape
    dd = d * d
    d_pad = _round_up(max(d, 8), 8)            # pad tiny K of the first conv
    dd_pad = _round_up(max(dd, 128), 128)      # lane-dense output

    nt = min(nt, _round_up(n, 8))              # point-tile size
    n_pad = _round_up(n, nt)

    # Adaptive batch tile: never pad a small batch up to 8 (would waste 75% of
    # the MXU work for B=2).  Block == full batch dim is layout-legal.
    if B < tb:
        tb = B
        b_pad = B
    else:
        b_pad = _round_up(B, tb)

    f32, bf16 = jnp.float32, jnp.bfloat16

    # ---- activations: [B, d, n] -> [b_pad, n_pad, d_pad] bf16 -------------
    # TODO(synk): d_pad=8 minor dim lane-pads the x VMEM buffers ~16x and uses
    # short-stride DMA rows; packing 16 points into a 128-lane minor dim would
    # shave VMEM/DMA overhead at the cost of an in-kernel repack.
    xt = jnp.transpose(x, (0, 2, 1))                              # [B, n, d]
    if n_pad != n:   # edge-replicate points: does not change the max
        xt = jnp.pad(xt, ((0, 0), (0, n_pad - n), (0, 0)), mode="edge")
    if d_pad != d:   # zero channels match zero rows added to w1
        xt = jnp.pad(xt, ((0, 0), (0, 0), (0, d_pad - d)))
    if b_pad != B:   # zero batch rows are sliced off afterwards
        xt = jnp.pad(xt, ((0, b_pad - B), (0, 0), (0, 0)))
    xt = xt.astype(bf16)

    # ---- weights (BN scale already folded in), bf16 for the MXU -----------
    # TODO(synk): conv3 dominates FLOPs with K=128 (half of a 256-wide MXU);
    # int8 (v5e/v6e) or fp8 (v7x) operands would roughly double it if the
    # accuracy budget allows.
    w1 = jnp.zeros((d_pad, C1), f32).at[:d].set(params["w1"]).astype(bf16)
    w2 = params["w2"].astype(bf16)
    w3 = params["w3"].astype(bf16)
    wf1 = params["wf1"].astype(bf16)
    wf2 = params["wf2"].astype(bf16)
    ww = jnp.zeros((F2, dd_pad), f32).at[:, :dd].set(params["ww"]).astype(bf16)

    iden = jnp.zeros((1, dd_pad), f32).at[0, :dd].set(
        jnp.eye(d, dtype=f32).reshape(dd))

    ops = [
        xt,
        w1, params["t1"], w2, params["t2"], w3, params["t3"],
        wf1, params["tf1"], wf2, params["tf2"],
        ww, iden,
    ]

    def rep_spec(a):
        nd = a.ndim
        # Weight / shift arrays are replicated across the whole grid (constant
        # block index -> no re-DMA).
        # TODO(synk): single-buffer these via pipeline_mode=pl.Buffered(1)
        # once universally supported, freeing ~1.6 MB of VMEM headroom.
        return pl.BlockSpec(a.shape, lambda b, k: (0,) * nd)

    in_specs = [pl.BlockSpec((tb, nt, d_pad), lambda b, k: (b, k, 0))]
    in_specs += [rep_spec(a) for a in ops[1:]]

    grid = (b_pad // tb, n_pad // nt)
    # TODO(synk): for v7x megacore with tiny batches (grid[0]==1) split the
    # point axis across the two TensorCores with a final cross-core max.

    out = pl.pallas_call(
        tnet_kernel,
        out_shape=jax.ShapeDtypeStruct((b_pad, dd_pad), jnp.float32),
        grid_spec=pltpu.PrefetchScalarGridSpec(
            num_scalar_prefetch=0,
            grid=grid,
            in_specs=in_specs,
            out_specs=pl.BlockSpec((tb, dd_pad), lambda b, k: (b, 0)),
            scratch_shapes=[pltpu.VMEM((tb, C3), jnp.float32)],
        ),
        compiler_params=pltpu.CompilerParams(
            dimension_semantics=("parallel", "arbitrary"),
            # Comfortable for the chunked conv3 at the default tiles; raise to
            # 64-96 MiB on v5e/v6e if nt/tb are increased.
            vmem_limit_bytes=32 * 1024 * 1024,
        ),
    )(*ops)

    return out[:B, :dd].reshape(B, d, d)


# -----------------------------------------------------------------------------
# Deterministic parameter construction (synthetic; no checkpoint loading).
# -----------------------------------------------------------------------------
def fold_bn(w, b, gamma, beta, mean, var):
    """Fold eval-mode BN + bias: layer(x) = (x @ w_folded) + shift (pre-ReLU)."""
    sc = gamma / jnp.sqrt(var + BN_EPS)                  # [out]
    w_folded = jnp.transpose(w) * sc[None, :]            # [in, out]
    shift = ((b - mean) * sc + beta)[None, :]            # [1, out]
    return w_folded, shift


def make_params(key, d):
    conv_channels = [(d, C1), (C1, C2), (C2, C3)]
    fc_dims = [(C3, F1), (F1, F2)]
    keys = iter(jax.random.split(key, 64))

    def nk():
        return next(keys)

    def bn_params(c):
        gamma = 1.0 + 0.1 * jax.random.normal(nk(), (c,), jnp.float32)
        beta = 0.1 * jax.random.normal(nk(), (c,), jnp.float32)
        mean = 0.1 * jax.random.normal(nk(), (c,), jnp.float32)
        var = 1.0 + 0.1 * jnp.abs(jax.random.normal(nk(), (c,), jnp.float32))
        return gamma, beta, mean, var

    params = {}
    for idx, (cin, cout) in enumerate(conv_channels, start=1):
        w = 0.1 * jax.random.normal(nk(), (cout, cin), jnp.float32)
        b = 0.1 * jax.random.normal(nk(), (cout,), jnp.float32)
        params[f"w{idx}"], params[f"t{idx}"] = fold_bn(w, b, *bn_params(cout))

    for idx, (cin, cout) in enumerate(fc_dims, start=1):
        w = 0.1 * jax.random.normal(nk(), (cout, cin), jnp.float32)
        b = 0.1 * jax.random.normal(nk(), (cout,), jnp.float32)
        params[f"wf{idx}"], params[f"tf{idx}"] = fold_bn(w, b, *bn_params(cout))

    ww = 0.1 * jax.random.normal(nk(), (d * d, F2), jnp.float32)
    params["ww"] = jnp.transpose(ww)                     # [256, d*d]
    return params


# -----------------------------------------------------------------------------
# Pure-JAX reference mirroring the kernel's bf16-matmul / f32-accumulate math.
# -----------------------------------------------------------------------------
def tnet_reference(x, params):
    B, d, n = x.shape
    dd = d * d
    f32, bf16 = jnp.float32, jnp.bfloat16

    h = jnp.transpose(x, (0, 2, 1))                      # [B, n, d]
    for i in (1, 2, 3):
        w = params[f"w{i}"].astype(bf16)
        h = jnp.einsum("bnc,ck->bnk", h.astype(bf16), w,
                       preferred_element_type=f32)
        h = jnp.maximum(h + params[f"t{i}"], 0.0)
    g = jnp.max(h, axis=1)                               # [B, 1024] f32

    f = g
    for i in (1, 2):
        w = params[f"wf{i}"].astype(bf16)
        f = jnp.dot(f.astype(bf16), w, preferred_element_type=f32)
        f = jnp.maximum(f + params[f"tf{i}"], 0.0)

    out = jnp.dot(f.astype(bf16), params["ww"].astype(bf16),
                  preferred_element_type=f32)
    out = out + jnp.eye(d, dtype=f32).reshape(1, dd)
    return out.reshape(B, d, d)


if __name__ == "__main__":
    key = jax.random.PRNGKey(0)
    k_x, k_p = jax.random.split(key)

    B, d, n = 2, 4, 512   # x: [-1, d, n]  (1024/512/256 channels fixed by module)
    x = jax.random.normal(k_x, (B, d, n), jnp.float32)
    params = make_params(k_p, d)

    y = tnet_forward(x, params)
    y = jax.block_until_ready(y)

    y_ref = tnet_reference(x, params)
    assert y.shape == (B, d, d)
    max_err = float(jnp.max(jnp.abs(y - y_ref)))
    assert jnp.allclose(y, y_ref, atol=3e-2, rtol=3e-2), (
        f"mismatch vs reference (max abs err {max_err})")

    print("KERNEL_OK")
</pallas_src>

<mosaic_0001>
module attributes {stable_mosaic.version = 11 : i64} {
  func.func @tnet_kernel(%arg0: i32, %arg1: i32, %arg2: memref<2x256x8xbf16, #tpu.memory_space<vmem>>, %arg3: memref<8x64xbf16, #tpu.memory_space<vmem>>, %arg4: memref<1x64xf32, #tpu.memory_space<vmem>>, %arg5: memref<64x128xbf16, #tpu.memory_space<vmem>>, %arg6: memref<1x128xf32, #tpu.memory_space<vmem>>, %arg7: memref<128x1024xbf16, #tpu.memory_space<vmem>>, %arg8: memref<1x1024xf32, #tpu.memory_space<vmem>>, %arg9: memref<1024x512xbf16, #tpu.memory_space<vmem>>, %arg10: memref<1x512xf32, #tpu.memory_space<vmem>>, %arg11: memref<512x256xbf16, #tpu.memory_space<vmem>>, %arg12: memref<1x256xf32, #tpu.memory_space<vmem>>, %arg13: memref<256x128xbf16, #tpu.memory_space<vmem>>, %arg14: memref<1x128xf32, #tpu.memory_space<vmem>>, %arg15: memref<2x128xf32, #tpu.memory_space<vmem>>, %arg16: memref<2x1024xf32, #tpu.memory_space<vmem>>) attributes {dimension_semantics = [#tpu.dimension_semantics<parallel>, #tpu.dimension_semantics<arbitrary>], iteration_bounds = array<i64: 1, 2>, scalar_prefetch = 0 : i64, scratch_operands = 1 : i64, tpu.core_type = #tpu.core_type<tc>, window_params = [{transform_indices = @transform_0, window_bounds = array<i64: 2, 256, 8>}, {pipeline_mode = #tpu.pipeline_mode<synchronous>, transform_indices = @transform_1, window_bounds = array<i64: 8, 64>}, {pipeline_mode = #tpu.pipeline_mode<synchronous>, transform_indices = @transform_2, window_bounds = array<i64: 1, 64>}, {pipeline_mode = #tpu.pipeline_mode<synchronous>, transform_indices = @transform_3, window_bounds = array<i64: 64, 128>}, {pipeline_mode = #tpu.pipeline_mode<synchronous>, transform_indices = @transform_4, window_bounds = array<i64: 1, 128>}, {pipeline_mode = #tpu.pipeline_mode<synchronous>, transform_indices = @transform_5, window_bounds = array<i64: 128, 1024>}, {pipeline_mode = #tpu.pipeline_mode<synchronous>, transform_indices = @transform_6, window_bounds = array<i64: 1, 1024>}, {pipeline_mode = #tpu.pipeline_mode<synchronous>, transform_indices = @transform_7, window_bounds = array<i64: 1024, 512>}, {pipeline_mode = #tpu.pipeline_mode<synchronous>, transform_indices = @transform_8, window_bounds = array<i64: 1, 512>}, {pipeline_mode = #tpu.pipeline_mode<synchronous>, transform_indices = @transform_9, window_bounds = array<i64: 512, 256>}, {pipeline_mode = #tpu.pipeline_mode<synchronous>, transform_indices = @transform_10, window_bounds = array<i64: 1, 256>}, {pipeline_mode = #tpu.pipeline_mode<synchronous>, transform_indices = @transform_11, window_bounds = array<i64: 256, 128>}, {pipeline_mode = #tpu.pipeline_mode<synchronous>, transform_indices = @transform_12, window_bounds = array<i64: 1, 128>}, {transform_indices = @transform_13, window_bounds = array<i64: 2, 128>}]} {
    %c0_i32 = arith.constant 0 : i32
    %0 = arith.cmpi eq, %arg1, %c0_i32 : i32
    %1 = arith.extui %0 : i1 to i32
    %c0_i32_0 = arith.constant 0 : i32
    %2 = arith.cmpi ne, %1, %c0_i32_0 : i32
    scf.if %2 {
      %cst_44 = arith.constant 0xFF800000 : f32
      %52 = vector.broadcast %cst_44 : f32 to vector<2x1024xf32>
      %c0_45 = arith.constant 0 : index
      %c0_46 = arith.constant 0 : index
      %53 = vector.load %arg16[%c0_45, %c0_46] : memref<2x1024xf32, #tpu.memory_space<vmem>>, vector<2x1024xf32>
      tpu.vector_store %arg16[%c0_45, %c0_46], %52 {strides = array<i32>} : memref<2x1024xf32, #tpu.memory_space<vmem>>, vector<2x1024xf32>,
    } else {
    }
    %c0 = arith.constant 0 : index
    %c0_1 = arith.constant 0 : index
    %c0_2 = arith.constant 0 : index
    %3 = vector.load %arg2[%c0, %c0_1, %c0_2] : memref<2x256x8xbf16, #tpu.memory_space<vmem>>, vector<2x256x8xbf16>
    %4 = vector.shape_cast %3 : vector<2x256x8xbf16> to vector<512x8xbf16>
    %c0_3 = arith.constant 0 : index
    %c0_4 = arith.constant 0 : index
    %5 = vector.load %arg3[%c0_3, %c0_4] : memref<8x64xbf16, #tpu.memory_space<vmem>>, vector<8x64xbf16>
    %cst = arith.constant dense<0.000000e+00> : vector<512x64xf32>
    %6 = tpu.matmul %4, %5, %cst {dimension_numbers = #tpu.dot_dimension_numbers<[1], [0], [0], [1], [0, 0, 1, 1], [], []>} : vector<512x8xbf16>, vector<8x64xbf16>, vector<512x64xf32> -> vector<512x64xf32>
    %c0_5 = arith.constant 0 : index
    %c0_6 = arith.constant 0 : index
    %7 = vector.load %arg4[%c0_5, %c0_6] : memref<1x64xf32, #tpu.memory_space<vmem>>, vector<1x64xf32>
    %8 = vector.broadcast %7 : vector<1x64xf32> to vector<512x64xf32>
    %9 = arith.addf %6, %8 : vector<512x64xf32>
    %cst_7 = arith.constant 0.000000e+00 : f32
    %10 = vector.broadcast %cst_7 : f32 to vector<512x64xf32>
    %11 = arith.maximumf %9, %10 : vector<512x64xf32>
    %12 = arith.truncf %11 : vector<512x64xf32> to vector<512x64xbf16>
    %c0_8 = arith.constant 0 : index
    %c0_9 = arith.constant 0 : index
    %13 = vector.load %arg5[%c0_8, %c0_9] : memref<64x128xbf16, #tpu.memory_space<vmem>>, vector<64x128xbf16>
    %cst_10 = arith.constant dense<0.000000e+00> : vector<512x128xf32>
    %14 = tpu.matmul %12, %13, %cst_10 {dimension_numbers = #tpu.dot_dimension_numbers<[1], [0], [0], [1], [0, 0, 1, 1], [], []>} : vector<512x64xbf16>, vector<64x128xbf16>, vector<512x128xf32> -> vector<512x128xf32>
    %c0_11 = arith.constant 0 : index
    %c0_12 = arith.constant 0 : index
    %15 = vector.load %arg6[%c0_11, %c0_12] : memref<1x128xf32, #tpu.memory_space<vmem>>, vector<1x128xf32>
    %16 = vector.broadcast %15 : vector<1x128xf32> to vector<512x128xf32>
    %17 = arith.addf %14, %16 : vector<512x128xf32>
    %cst_13 = arith.constant 0.000000e+00 : f32
    %18 = vector.broadcast %cst_13 : f32 to vector<512x128xf32>
    %19 = arith.maximumf %17, %18 : vector<512x128xf32>
    %20 = arith.truncf %19 : vector<512x128xf32> to vector<512x128xbf16>
    %c0_14 = arith.constant 0 : index
    %c0_15 = arith.constant 0 : index
    %21 = vector.load %arg7[%c0_14, %c0_15] : memref<128x1024xbf16, #tpu.memory_space<vmem>>, vector<128x256xbf16>
    %cst_16 = arith.constant dense<0.000000e+00> : vector<512x256xf32>
    %22 = tpu.matmul %20, %21, %cst_16 {dimension_numbers = #tpu.dot_dimension_numbers<[1], [0], [0], [1], [0, 0, 1, 1], [], []>} : vector<512x128xbf16>, vector<128x256xbf16>, vector<512x256xf32> -> vector<512x256xf32>
    %23 = vector.shape_cast %22 : vector<512x256xf32> to vector<2x256x256xf32>
    %cst_17 = arith.constant dense<0xFF800000> : vector<2x256xf32>
    %24 = vector.multi_reduction <maximumf>, %23, %cst_17 [1] : vector<2x256x256xf32> to vector<2x256xf32>
    %c0_18 = arith.constant 0 : index
    %c0_19 = arith.constant 0 : index
    %25 = vector.load %arg16[%c0_18, %c0_19] : memref<2x1024xf32, #tpu.memory_space<vmem>>, vector<2x256xf32>
    %26 = arith.maximumf %25, %24 : vector<2x256xf32>
    %c0_20 = arith.constant 0 : index
    %c0_21 = arith.constant 0 : index
    %27 = vector.load %arg16[%c0_20, %c0_21] : memref<2x1024xf32, #tpu.memory_space<vmem>>, vector<2x256xf32>
    tpu.vector_store %arg16[%c0_20, %c0_21], %26 {strides = array<i32>} : memref<2x1024xf32, #tpu.memory_space<vmem>>, vector<2x256xf32>,
    %c0_22 = arith.constant 0 : index
    %c256 = arith.constant 256 : index
    %28 = vector.load %arg7[%c0_22, %c256] : memref<128x1024xbf16, #tpu.memory_space<vmem>>, vector<128x256xbf16>
    %cst_23 = arith.constant dense<0.000000e+00> : vector<512x256xf32>
    %29 = tpu.matmul %20, %28, %cst_23 {dimension_numbers = #tpu.dot_dimension_numbers<[1], [0], [0], [1], [0, 0, 1, 1], [], []>} : vector<512x128xbf16>, vector<128x256xbf16>, vector<512x256xf32> -> vector<512x256xf32>
    %30 = vector.shape_cast %29 : vector<512x256xf32> to vector<2x256x256xf32>
    %cst_24 = arith.constant dense<0xFF800000> : vector<2x256xf32>
    %31 = vector.multi_reduction <maximumf>, %30, %cst_24 [1] : vector<2x256x256xf32> to vector<2x256xf32>
    %c0_25 = arith.constant 0 : index
    %c256_26 = arith.constant 256 : index
    %32 = vector.load %arg16[%c0_25, %c256_26] : memref<2x1024xf32, #tpu.memory_space<vmem>>, vector<2x256xf32>
    %33 = arith.maximumf %32, %31 : vector<2x256xf32>
    %c0_27 = arith.constant 0 : index
    %c256_28 = arith.constant 256 : index
    %34 = vector.load %arg16[%c0_27, %c256_28] : memref<2x1024xf32, #tpu.memory_space<vmem>>, vector<2x256xf32>
    tpu.vector_store %arg16[%c0_27, %c256_28], %33 {strides = array<i32>} : memref<2x1024xf32, #tpu.memory_space<vmem>>, vector<2x256xf32>,
    %c0_29 = arith.constant 0 : index
    %c512 = arith.constant 512 : index
    %35 = vector.load %arg7[%c0_29, %c512] : memref<128x1024xbf16, #tpu.memory_space<vmem>>, vector<128x256xbf16>
    %cst_30 = arith.constant dense<0.000000e+00> : vector<512x256xf32>
    %36 = tpu.matmul %20, %35, %cst_30 {dimension_numbers = #tpu.dot_dimension_numbers<[1], [0], [0], [1], [0, 0, 1, 1], [], []>} : vector<512x128xbf16>, vector<128x256xbf16>, vector<512x256xf32> -> vector<512x256xf32>
    %37 = vector.shape_cast %36 : vector<512x256xf32> to vector<2x256x256xf32>
    %cst_31 = arith.constant dense<0xFF800000> : vector<2x256xf32>
    %38 = vector.multi_reduction <maximumf>, %37, %cst_31 [1] : vector<2x256x256xf32> to vector<2x256xf32>
    %c0_32 = arith.constant 0 : index
    %c512_33 = arith.constant 512 : index
    %39 = vector.load %arg16[%c0_32, %c512_33] : memref<2x1024xf32, #tpu.memory_space<vmem>>, vector<2x256xf32>
    %40 = arith.maximumf %39, %38 : vector<2x256xf32>
    %c0_34 = arith.constant 0 : index
    %c512_35 = arith.constant 512 : index
    %41 = vector.load %arg16[%c0_34, %c512_35] : memref<2x1024xf32, #tpu.memory_space<vmem>>, vector<2x256xf32>
    tpu.vector_store %arg16[%c0_34, %c512_35], %40 {strides = array<i32>} : memref<2x1024xf32, #tpu.memory_space<vmem>>, vector<2x256xf32>,
    %c0_36 = arith.constant 0 : index
    %c768 = arith.constant 768 : index
    %42 = vector.load %arg7[%c0_36, %c768] : memref<128x1024xbf16, #tpu.memory_space<vmem>>, vector<128x256xbf16>
    %cst_37 = arith.constant dense<0.000000e+00> : vector<512x256xf32>
    %43 = tpu.matmul %20, %42, %cst_37 {dimension_numbers = #tpu.dot_dimension_numbers<[1], [0], [0], [1], [0, 0, 1, 1], [], []>} : vector<512x128xbf16>, vector<128x256xbf16>, vector<512x256xf32> -> vector<512x256xf32>
    %44 = vector.shape_cast %43 : vector<512x256xf32> to vector<2x256x256xf32>
    %cst_38 = arith.constant dense<0xFF800000> : vector<2x256xf32>
    %45 = vector.multi_reduction <maximumf>, %44, %cst_38 [1] : vector<2x256x256xf32> to vector<2x256xf32>
    %c0_39 = arith.constant 0 : index
    %c768_40 = arith.constant 768 : index
    %46 = vector.load %arg16[%c0_39, %c768_40] : memref<2x1024xf32, #tpu.memory_space<vmem>>, vector<2x256xf32>
    %47 = arith.maximumf %46, %45 : vector<2x256xf32>
    %c0_41 = arith.constant 0 : index
    %c768_42 = arith.constant 768 : index
    %48 = vector.load %arg16[%c0_41, %c768_42] : memref<2x1024xf32, #tpu.memory_space<vmem>>, vector<2x256xf32>
    tpu.vector_store %arg16[%c0_41, %c768_42], %47 {strides = array<i32>} : memref<2x1024xf32, #tpu.memory_space<vmem>>, vector<2x256xf32>,
    %c1_i32 = arith.constant 1 : i32
    %49 = arith.cmpi eq, %arg1, %c1_i32 : i32
    %50 = arith.extui %49 : i1 to i32
    %c0_i32_43 = arith.constant 0 : i32
    %51 = arith.cmpi ne, %50, %c0_i32_43 : i32
    scf.if %51 {
      %c0_44 = arith.constant 0 : index
      %c0_45 = arith.constant 0 : index
      %52 = vector.load %arg16[%c0_44, %c0_45] : memref<2x1024xf32, #tpu.memory_space<vmem>>, vector<2x1024xf32>
      %c0_46 = arith.constant 0 : index
      %c0_47 = arith.constant 0 : index
      %53 = vector.load %arg8[%c0_46, %c0_47] : memref<1x1024xf32, #tpu.memory_space<vmem>>, vector<1x1024xf32>
      %54 = vector.broadcast %53 : vector<1x1024xf32> to vector<2x1024xf32>
      %55 = arith.addf %52, %54 : vector<2x1024xf32>
      %cst_48 = arith.constant 0.000000e+00 : f32
      %56 = vector.broadcast %cst_48 : f32 to vector<2x1024xf32>
      %57 = arith.maximumf %55, %56 : vector<2x1024xf32>
      %58 = arith.truncf %57 : vector<2x1024xf32> to vector<2x1024xbf16>
      %c0_49 = arith.constant 0 : index
      %c0_50 = arith.constant 0 : index
      %59 = vector.load %arg9[%c0_49, %c0_50] : memref<1024x512xbf16, #tpu.memory_space<vmem>>, vector<1024x512xbf16>
      %cst_51 = arith.constant dense<0.000000e+00> : vector<2x512xf32>
      %60 = tpu.matmul %58, %59, %cst_51 {dimension_numbers = #tpu.dot_dimension_numbers<[1], [0], [0], [1], [0, 0, 1, 1], [], []>} : vector<2x1024xbf16>, vector<1024x512xbf16>, vector<2x512xf32> -> vector<2x512xf32>
      %c0_52 = arith.constant 0 : index
      %c0_53 = arith.constant 0 : index
      %61 = vector.load %arg10[%c0_52, %c0_53] : memref<1x512xf32, #tpu.memory_space<vmem>>, vector<1x512xf32>
      %62 = vector.broadcast %61 : vector<1x512xf32> to vector<2x512xf32>
      %63 = arith.addf %60, %62 : vector<2x512xf32>
      %cst_54 = arith.constant 0.000000e+00 : f32
      %64 = vector.broadcast %cst_54 : f32 to vector<2x512xf32>
      %65 = arith.maximumf %63, %64 : vector<2x512xf32>
      %66 = arith.truncf %65 : vector<2x512xf32> to vector<2x512xbf16>
      %c0_55 = arith.constant 0 : index
      %c0_56 = arith.constant 0 : index
      %67 = vector.load %arg11[%c0_55, %c0_56] : memref<512x256xbf16, #tpu.memory_space<vmem>>, vector<512x256xbf16>
      %cst_57 = arith.constant dense<0.000000e+00> : vector<2x256xf32>
      %68 = tpu.matmul %66, %67, %cst_57 {dimension_numbers = #tpu.dot_dimension_numbers<[1], [0], [0], [1], [0, 0, 1, 1], [], []>} : vector<2x512xbf16>, vector<512x256xbf16>, vector<2x256xf32> -> vector<2x256xf32>
      %c0_58 = arith.constant 0 : index
      %c0_59 = arith.constant 0 : index
      %69 = vector.load %arg12[%c0_58, %c0_59] : memref<1x256xf32, #tpu.memory_space<vmem>>, vector<1x256xf32>
      %70 = vector.broadcast %69 : vector<1x256xf32> to vector<2x256xf32>
      %71 = arith.addf %68, %70 : vector<2x256xf32>
      %cst_60 = arith.constant 0.000000e+00 : f32
      %72 = vector.broadcast %cst_60 : f32 to vector<2x256xf32>
      %73 = arith.maximumf %71, %72 : vector<2x256xf32>
      %74 = arith.truncf %73 : vector<2x256xf32> to vector<2x256xbf16>
      %c0_61 = arith.constant 0 : index
      %c0_62 = arith.constant 0 : index
      %75 = vector.load %arg13[%c0_61, %c0_62] : memref<256x128xbf16, #tpu.memory_space<vmem>>, vector<256x128xbf16>
      %cst_63 = arith.constant dense<0.000000e+00> : vector<2x128xf32>
      %76 = tpu.matmul %74, %75, %cst_63 {dimension_numbers = #tpu.dot_dimension_numbers<[1], [0], [0], [1], [0, 0, 1, 1], [], []>} : vector<2x256xbf16>, vector<256x128xbf16>, vector<2x128xf32> -> vector<2x128xf32>
      %c0_64 = arith.constant 0 : index
      %c0_65 = arith.constant 0 : index
      %77 = vector.load %arg14[%c0_64, %c0_65] : memref<1x128xf32, #tpu.memory_space<vmem>>, vector<1x128xf32>
      %78 = vector.broadcast %77 : vector<1x128xf32> to vector<2x128xf32>
      %79 = arith.addf %76, %78 : vector<2x128xf32>
      %c0_66 = arith.constant 0 : index
      %c0_67 = arith.constant 0 : index
      %80 = vector.load %arg15[%c0_66, %c0_67] : memref<2x128xf32, #tpu.memory_space<vmem>>, vector<2x128xf32>
      tpu.vector_store %arg15[%c0_66, %c0_67], %79 {strides = array<i32>} : memref<2x128xf32, #tpu.memory_space<vmem>>, vector<2x128xf32>,
    } else {
    }
    return
  }
  func.func @transform_0(%arg0: i32, %arg1: i32) -> (i32, i32, i32) {
    %c0_i32 = arith.constant 0 : i32
    %c0_i32_0 = arith.constant 0 : i32
    return %arg0, %arg1, %c0_i32 : i32, i32, i32
  }
  func.func @transform_1(%arg0: i32, %arg1: i32) -> (i32, i32) {
    %c0_i32 = arith.constant 0 : i32
    %c0_i32_0 = arith.constant 0 : i32
    %c0_i32_1 = arith.constant 0 : i32
    return %c0_i32, %c0_i32_0 : i32, i32
  }
  func.func @transform_2(%arg0: i32, %arg1: i32) -> (i32, i32) {
    %c0_i32 = arith.constant 0 : i32
    %c0_i32_0 = arith.constant 0 : i32
    %c0_i32_1 = arith.constant 0 : i32
    return %c0_i32, %c0_i32_0 : i32, i32
  }
  func.func @transform_3(%arg0: i32, %arg1: i32) -> (i32, i32) {
    %c0_i32 = arith.constant 0 : i32
    %c0_i32_0 = arith.constant 0 : i32
    %c0_i32_1 = arith.constant 0 : i32
    return %c0_i32, %c0_i32_0 : i32, i32
  }
  func.func @transform_4(%arg0: i32, %arg1: i32) -> (i32, i32) {
    %c0_i32 = arith.constant 0 : i32
    %c0_i32_0 = arith.constant 0 : i32
    %c0_i32_1 = arith.constant 0 : i32
    return %c0_i32, %c0_i32_0 : i32, i32
  }
  func.func @transform_5(%arg0: i32, %arg1: i32) -> (i32, i32) {
    %c0_i32 = arith.constant 0 : i32
    %c0_i32_0 = arith.constant 0 : i32
    %c0_i32_1 = arith.constant 0 : i32
    return %c0_i32, %c0_i32_0 : i32, i32
  }
  func.func @transform_6(%arg0: i32, %arg1: i32) -> (i32, i32) {
    %c0_i32 = arith.constant 0 : i32
    %c0_i32_0 = arith.constant 0 : i32
    %c0_i32_1 = arith.constant 0 : i32
    return %c0_i32, %c0_i32_0 : i32, i32
  }
  func.func @transform_7(%arg0: i32, %arg1: i32) -> (i32, i32) {
    %c0_i32 = arith.constant 0 : i32
    %c0_i32_0 = arith.constant 0 : i32
    %c0_i32_1 = arith.constant 0 : i32
    return %c0_i32, %c0_i32_0 : i32, i32
  }
  func.func @transform_8(%arg0: i32, %arg1: i32) -> (i32, i32) {
    %c0_i32 = arith.constant 0 : i32
    %c0_i32_0 = arith.constant 0 : i32
    %c0_i32_1 = arith.constant 0 : i32
    return %c0_i32, %c0_i32_0 : i32, i32
  }
  func.func @transform_9(%arg0: i32, %arg1: i32) -> (i32, i32) {
    %c0_i32 = arith.constant 0 : i32
    %c0_i32_0 = arith.constant 0 : i32
    %c0_i32_1 = arith.constant 0 : i32
    return %c0_i32, %c0_i32_0 : i32, i32
  }
  func.func @transform_10(%arg0: i32, %arg1: i32) -> (i32, i32) {
    %c0_i32 = arith.constant 0 : i32
    %c0_i32_0 = arith.constant 0 : i32
    %c0_i32_1 = arith.constant 0 : i32
    return %c0_i32, %c0_i32_0 : i32, i32
  }
  func.func @transform_11(%arg0: i32, %arg1: i32) -> (i32, i32) {
    %c0_i32 = arith.constant 0 : i32
    %c0_i32_0 = arith.constant 0 : i32
    %c0_i32_1 = arith.constant 0 : i32
    return %c0_i32, %c0_i32_0 : i32, i32
  }
  func.func @transform_12(%arg0: i32, %arg1: i32) -> (i32, i32) {
    %c0_i32 = arith.constant 0 : i32
    %c0_i32_0 = arith.constant 0 : i32
    %c0_i32_1 = arith.constant 0 : i32
    return %c0_i32, %c0_i32_0 : i32, i32
  }
  func.func @transform_13(%arg0: i32, %arg1: i32) -> (i32, i32) {
    %c0_i32 = arith.constant 0 : i32
    %c0_i32_0 = arith.constant 0 : i32
    return %arg0, %c0_i32 : i32, i32
  }
}

</mosaic_0001>

<llo_original>
// kernel: tpu_custom_call.1
$region0: #{tpu_custom_call.1}
  #allocation0 [shape = 'u32[]', space=smem, size = 0x4, offset = 0x4, fixed_abs, tag = 'smem constant byte address 0x4 - core index']
  #allocation1 [shape = 'u32[144,128]{1,0:T(1,128)}', space=vmem, size = 0x12000, scoped, tag = 'internal scratch']
  #allocation2 [shape = 'f32[2,1024]{1,0:T(2,128)}', space=vmem, size = 0x2000, scoped, tag = 'scratch operand']
  %s0 = inlined_call_operand.vmem [shape: bf16[2,512,8], index: 0, kind: input, shape index: {}]
  %s1 = inlined_call_operand.vmem [shape: bf16[8,64], index: 1, kind: input, shape index: {}]
  %s2 = inlined_call_operand.hbm [shape: f32[1,64], index: 2, kind: input, shape index: {}]
  %s3 = inlined_call_operand.vmem [shape: bf16[64,128], index: 3, kind: input, shape index: {}]
  %s4 = inlined_call_operand.hbm [shape: f32[1,128], index: 4, kind: input, shape index: {}]
  %s5 = inlined_call_operand.vmem [shape: bf16[128,1024], index: 5, kind: input, shape index: {}]
  %s6 = inlined_call_operand.vmem [shape: f32[1,1024], index: 6, kind: input, shape index: {}]
  %s7 = inlined_call_operand.hbm [shape: bf16[1024,512], index: 7, kind: input, shape index: {}]
  %s8 = inlined_call_operand.vmem [shape: f32[1,512], index: 8, kind: input, shape index: {}]
  %s9 = inlined_call_operand.hbm [shape: bf16[512,256], index: 9, kind: input, shape index: {}]
  %s10 = inlined_call_operand.vmem [shape: f32[1,256], index: 10, kind: input, shape index: {}]
  %s11 = inlined_call_operand.hbm [shape: bf16[256,128], index: 11, kind: input, shape index: {}]
  %s12 = inlined_call_operand.vmem [shape: f32[1,128], index: 12, kind: input, shape index: {}]
  %s13 = inlined_call_operand.hbm [shape: f32[2,128], index: 13, kind: output, shape index: {}]
  %s14 = sld [smem:[#allocation0]]
  $region154: #{tpu_custom_call.1} parent=0
    _
  %s16 = ssub.s32 1, %s14
  %s17 = scalar_select 0, %s16, %s14
  $region1: #{tpu_custom_call.1} parent=0
    #allocation3 [shape = 'u8[262144]{0}', space=vmem, size = 0x40000, scoped, tag = 'input window, operand 0']
    #allocation4 [shape = 'u8[512]{0}', space=vmem, size = 0x400, scoped, tag = 'input window, operand 2, single buffered']
    #allocation5 [shape = 's32[2]{0}', space=sflag, size = 0x8, scoped, tag = 'scoped memory for tpu_custom_call.1']
    #allocation6 [shape = 's32[2]{0}', space=sflag, size = 0x8, scoped, tag = 'scoped memory for tpu_custom_call.1']
    #allocation7 [shape = 'u8[512]{0}', space=vmem, size = 0x400, scoped, tag = 'input window, operand 4, single buffered']
    #allocation8 [shape = 's32[1]{0}', space=sflag, size = 0x4, scoped, tag = 'scoped memory for tpu_custom_call.1']
    #allocation9 [shape = 'u8[1048576]{0}', space=vmem, size = 0x100000, scoped, tag = 'input window, operand 7, single buffered']
    #allocation10 [shape = 'u8[262144]{0}', space=vmem, size = 0x40000, scoped, tag = 'input window, operand 9, single buffered']
    #allocation11 [shape = 's32[1]{0}', space=sflag, size = 0x4, scoped, tag = 'scoped memory for tpu_custom_call.1']
    #allocation12 [shape = 'u8[65536]{0}', space=vmem, size = 0x10000, scoped, tag = 'input window, operand 11, single buffered']
    #allocation13 [shape = 'u8[1024]{0}', space=vmem, size = 0x400, scoped, tag = 'output window, operand 0, single buffered']
    %18 = vsyncpa [#allocation5], 0
    %19 = vsyncpa [#allocation8], 0
    %20 = vsyncpa [#allocation11], 0
    %21 = vsyncpa [#allocation6], 0
    loop: start=0, step=1, limit=4
    $region2: #{tpu_custom_call.1} parent=1 // loop_pre_header
      _
    $region3: #{tpu_custom_call.1} parent=1 // loop_header
      %s23 = sphi 0, %s27
      %p24 = scmp.ge.s32.totalorder %s23, 4
      %s30 = sphi 0, %s42
      %s31 = sphi 0, %s38
      %s32 = sphi 0, %s30
      %s33 = sphi 0, %s31
      %s34 = sphi 0, %s32
      %s35 = sphi 0, %s33
      %s47 = sphi 0, %s49
      %s50 = sphi 0, %s47
      %s51 = sphi 0, %s50
      %s67 = sphi 0, %s51
      %s71 = sphi 0, %s71
      %s73 = sphi 0, %s71
      %s74 = sphi 0, %s73
      %s88 = sphi 0, %s74
      %s92 = sphi 0, %s92
      %s94 = sphi 0, %s92
      %s95 = sphi 0, %s94
      %s109 = sphi 0, %s95
      %s113 = sphi 0, %s113
      %s115 = sphi 0, %s113
      %s116 = sphi 0, %s115
      %s130 = sphi 0, %s116
      %s134 = sphi 0, %s134
      %s136 = sphi 0, %s134
      %s137 = sphi 0, %s136
      %s151 = sphi 0, %s137
      %s155 = sphi 0, %s155
      %s157 = sphi 0, %s155
      %s158 = sphi 0, %s157
      %s172 = sphi 0, %s158
      %s176 = sphi 0, %s176
      %s178 = sphi 0, %s176
      %s179 = sphi 0, %s178
      %s193 = sphi 0, %s179
      %s197 = sphi 0, %s197
      %s199 = sphi 0, %s197
      %s200 = sphi 0, %s199
      %s214 = sphi 0, %s200
      %s218 = sphi 0, %s218
      %s220 = sphi 0, %s218
      %s221 = sphi 0, %s220
      %s235 = sphi 0, %s221
      %s239 = sphi 0, %s239
      %s241 = sphi 0, %s239
      %s242 = sphi 0, %s241
      %s256 = sphi 0, %s242
      %s260 = sphi 0, %s260
      %s262 = sphi 0, %s260
      %s263 = sphi 0, %s262
      %s277 = sphi 0, %s263
      %s281 = sphi 0, %s281
      %s283 = sphi 0, %s281
      %s284 = sphi 0, %s283
      %s298 = sphi 0, %s284
      %s302 = sphi 0, %s302
      %s304 = sphi 0, %s302
      %s305 = sphi 0, %s304
      %s319 = sphi 0, %s305
      %s325 = sphi 0, %s327
      %s328 = sphi 0, %s325
      %s329 = sphi 0, %s328
      %s345 = sphi 0, %s329
    $region4: #{tpu_custom_call.1} parent=1 // loop_header_branch
      %26 = sbr.rel (%p24) target = $region8
    $region5: #{tpu_custom_call.1} parent=1 // loop_body
      %s28 = ssub.s32 %s23, 1
      %s29 = ssub.s32 %s23, 2
      %s36 = sadd.s32 1, %s31
      %p37 = scmp.ge.s32.totalorder %s36, 2
      %s38 = scalar_select %p37, 0, %s36
      %s39 = sadd.s32 1, %s30
      %s40 = scalar_select %p37, %s39, %s30
      %p41 = scmp.ge.s32.totalorder %s40, 1
      %s42 = scalar_select %p41, 0, %s40
      %s43 = ssub.s32 %s30, %s42
      %s44 = ssub.s32 %s31, %s38
      %s45 = sor.u32 %s43, %s44
      %p46 = scmp.eq.s32.totalorder %s45, 0
      %s48 = sadd.s32 %s47, 1
      %s49 = scalar_select %p46, %s47, %s48
      %p52 = pneg %p46
      %p53 = scmp.eq.s32.totalorder %s23, 1
      %p54 = por %p52, %p53
      %p55 = scmp.ne.s32.totalorder %s47, %s50
      %p56 = scmp.eq.s32.totalorder %s23, 0
      %p57 = por %p55, %p56
      %p58 = scmp.ne.s32.totalorder %s47, %s50
      %p59 = scmp.eq.s32.totalorder %s28, 1
      %p60 = por %p58, %p59
      %p61 = scmp.ne.s32.totalorder %s50, %s51
      %p62 = scmp.eq.s32.totalorder %s28, 0
      %p63 = por %p61, %p62
      %p64 = scmp.ne.s32.totalorder %s50, %s51
      %p65 = scmp.eq.s32.totalorder %s29, 1
      %p66 = por %p64, %p65
      %p68 = scmp.ne.s32.totalorder %s51, %s67
      %p69 = scmp.eq.s32.totalorder %s29, 0
      %p70 = por %p68, %p69
      %s72 = sadd.s32 %s71, 1
      %p75 = scmp.eq.s32.totalorder %s23, 1
      %p76 = scmp.ne.s32.totalorder %s71, %s73
      %p77 = scmp.eq.s32.totalorder %s23, 0
      %p78 = por %p76, %p77
      %p79 = scmp.ne.s32.totalorder %s71, %s73
      %p80 = scmp.eq.s32.totalorder %s28, 1
      %p81 = por %p79, %p80
      %p82 = scmp.ne.s32.totalorder %s73, %s74
      %p83 = scmp.eq.s32.totalorder %s28, 0
      %p84 = por %p82, %p83
      %p85 = scmp.ne.s32.totalorder %s73, %s74
      %p86 = scmp.eq.s32.totalorder %s29, 1
      %p87 = por %p85, %p86
      %p89 = scmp.ne.s32.totalorder %s74, %s88
      %p90 = scmp.eq.s32.totalorder %s29, 0
      %p91 = por %p89, %p90
      %s93 = sadd.s32 %s92, 1
      %p96 = scmp.eq.s32.totalorder %s23, 1
      %p97 = scmp.ne.s32.totalorder %s92, %s94
      %p98 = scmp.eq.s32.totalorder %s23, 0
      %p99 = por %p97, %p98
      %p100 = scmp.ne.s32.totalorder %s92, %s94
      %p101 = scmp.eq.s32.totalorder %s28, 1
      %p102 = por %p100, %p101
      %p103 = scmp.ne.s32.totalorder %s94, %s95
      %p104 = scmp.eq.s32.totalorder %s28, 0
      %p105 = por %p103, %p104
      %p106 = scmp.ne.s32.totalorder %s94, %s95
      %p107 = scmp.eq.s32.totalorder %s29, 1
      %p108 = por %p106, %p107
      %p110 = scmp.ne.s32.totalorder %s95, %s109
      %p111 = scmp.eq.s32.totalorder %s29, 0
      %p112 = por %p110, %p111
      %s114 = sadd.s32 %s113, 1
      %p117 = scmp.eq.s32.totalorder %s23, 1
      %p118 = scmp.ne.s32.totalorder %s113, %s115
      %p119 = scmp.eq.s32.totalorder %s23, 0
      %p120 = por %p118, %p119
      %p121 = scmp.ne.s32.totalorder %s113, %s115
      %p122 = scmp.eq.s32.totalorder %s28, 1
      %p123 = por %p121, %p122
      %p124 = scmp.ne.s32.totalorder %s115, %s116
      %p125 = scmp.eq.s32.totalorder %s28, 0
      %p126 = por %p124, %p125
      %p127 = scmp.ne.s32.totalorder %s115, %s116
      %p128 = scmp.eq.s32.totalorder %s29, 1
      %p129 = por %p127, %p128
      %p131 = scmp.ne.s32.totalorder %s116, %s130
      %p132 = scmp.eq.s32.totalorder %s29, 0
      %p133 = por %p131, %p132
      %s135 = sadd.s32 %s134, 1
      %p138 = scmp.eq.s32.totalorder %s23, 1
      %p139 = scmp.ne.s32.totalorder %s134, %s136
      %p140 = scmp.eq.s32.totalorder %s23, 0
      %p141 = por %p139, %p140
      %p142 = scmp.ne.s32.totalorder %s134, %s136
      %p143 = scmp.eq.s32.totalorder %s28, 1
      %p144 = por %p142, %p143
      %p145 = scmp.ne.s32.totalorder %s136, %s137
      %p146 = scmp.eq.s32.totalorder %s28, 0
      %p147 = por %p145, %p146
      %p148 = scmp.ne.s32.totalorder %s136, %s137
      %p149 = scmp.eq.s32.totalorder %s29, 1
      %p150 = por %p148, %p149
      %p152 = scmp.ne.s32.totalorder %s137, %s151
      %p153 = scmp.eq.s32.totalorder %s29, 0
      %p154 = por %p152, %p153
      %s156 = sadd.s32 %s155, 1
      %p159 = scmp.eq.s32.totalorder %s23, 1
      %p160 = scmp.ne.s32.totalorder %s155, %s157
      %p161 = scmp.eq.s32.totalorder %s23, 0
      %p162 = por %p160, %p161
      %p163 = scmp.ne.s32.totalorder %s155, %s157
      %p164 = scmp.eq.s32.totalorder %s28, 1
      %p165 = por %p163, %p164
      %p166 = scmp.ne.s32.totalorder %s157, %s158
      %p167 = scmp.eq.s32.totalorder %s28, 0
      %p168 = por %p166, %p167
      %p169 = scmp.ne.s32.totalorder %s157, %s158
      %p170 = scmp.eq.s32.totalorder %s29, 1
      %p171 = por %p169, %p170
      %p173 = scmp.ne.s32.totalorder %s158, %s172
      %p174 = scmp.eq.s32.totalorder %s29, 0
      %p175 = por %p173, %p174
      %s177 = sadd.s32 %s176, 1
      %p180 = scmp.eq.s32.totalorder %s23, 1
      %p181 = scmp.ne.s32.totalorder %s176, %s178
      %p182 = scmp.eq.s32.totalorder %s23, 0
      %p183 = por %p181, %p182
      %p184 = scmp.ne.s32.totalorder %s176, %s178
      %p185 = scmp.eq.s32.totalorder %s28, 1
      %p186 = por %p184, %p185
      %p187 = scmp.ne.s32.totalorder %s178, %s179
      %p188 = scmp.eq.s32.totalorder %s28, 0
      %p189 = por %p187, %p188
      %p190 = scmp.ne.s32.totalorder %s178, %s179
      %p191 = scmp.eq.s32.totalorder %s29, 1
      %p192 = por %p190, %p191
      %p194 = scmp.ne.s32.totalorder %s179, %s193
      %p195 = scmp.eq.s32.totalorder %s29, 0
      %p196 = por %p194, %p195
      %s198 = sadd.s32 %s197, 1
      %p201 = scmp.eq.s32.totalorder %s23, 1
      %p202 = scmp.ne.s32.totalorder %s197, %s199
      %p203 = scmp.eq.s32.totalorder %s23, 0
      %p204 = por %p202, %p203
      %p205 = scmp.ne.s32.totalorder %s197, %s199
      %p206 = scmp.eq.s32.totalorder %s28, 1
      %p207 = por %p205, %p206
      %p208 = scmp.ne.s32.totalorder %s199, %s200
      %p209 = scmp.eq.s32.totalorder %s28, 0
      %p210 = por %p208, %p209
      %p211 = scmp.ne.s32.totalorder %s199, %s200
      %p212 = scmp.eq.s32.totalorder %s29, 1
      %p213 = por %p211, %p212
      %p215 = scmp.ne.s32.totalorder %s200, %s214
      %p216 = scmp.eq.s32.totalorder %s29, 0
      %p217 = por %p215, %p216
      %s219 = sadd.s32 %s218, 1
      %p222 = scmp.eq.s32.totalorder %s23, 1
      %p223 = scmp.ne.s32.totalorder %s218, %s220
      %p224 = scmp.eq.s32.totalorder %s23, 0
      %p225 = por %p223, %p224
      %p226 = scmp.ne.s32.totalorder %s218, %s220
      %p227 = scmp.eq.s32.totalorder %s28, 1
      %p228 = por %p226, %p227
      %p229 = scmp.ne.s32.totalorder %s220, %s221
      %p230 = scmp.eq.s32.totalorder %s28, 0
      %p231 = por %p229, %p230
      %p232 = scmp.ne.s32.totalorder %s220, %s221
      %p233 = scmp.eq.s32.totalorder %s29, 1
      %p234 = por %p232, %p233
      %p236 = scmp.ne.s32.totalorder %s221, %s235
      %p237 = scmp.eq.s32.totalorder %s29, 0
      %p238 = por %p236, %p237
      %s240 = sadd.s32 %s239, 1
      %p243 = scmp.eq.s32.totalorder %s23, 1
      %p244 = scmp.ne.s32.totalorder %s239, %s241
      %p245 = scmp.eq.s32.totalorder %s23, 0
      %p246 = por %p244, %p245
      %p247 = scmp.ne.s32.totalorder %s239, %s241
      %p248 = scmp.eq.s32.totalorder %s28, 1
      %p249 = por %p247, %p248
      %p250 = scmp.ne.s32.totalorder %s241, %s242
      %p251 = scmp.eq.s32.totalorder %s28, 0
      %p252 = por %p250, %p251
      %p253 = scmp.ne.s32.totalorder %s241, %s242
      %p254 = scmp.eq.s32.totalorder %s29, 1
      %p255 = por %p253, %p254
      %p257 = scmp.ne.s32.totalorder %s242, %s256
      %p258 = scmp.eq.s32.totalorder %s29, 0
      %p259 = por %p257, %p258
      %s261 = sadd.s32 %s260, 1
      %p264 = scmp.eq.s32.totalorder %s23, 1
      %p265 = scmp.ne.s32.totalorder %s260, %s262
      %p266 = scmp.eq.s32.totalorder %s23, 0
      %p267 = por %p265, %p266
      %p268 = scmp.ne.s32.totalorder %s260, %s262
      %p269 = scmp.eq.s32.totalorder %s28, 1
      %p270 = por %p268, %p269
      %p271 = scmp.ne.s32.totalorder %s262, %s263
      %p272 = scmp.eq.s32.totalorder %s28, 0
      %p273 = por %p271, %p272
      %p274 = scmp.ne.s32.totalorder %s262, %s263
      %p275 = scmp.eq.s32.totalorder %s29, 1
      %p276 = por %p274, %p275
      %p278 = scmp.ne.s32.totalorder %s263, %s277
      %p279 = scmp.eq.s32.totalorder %s29, 0
      %p280 = por %p278, %p279
      %s282 = sadd.s32 %s281, 1
      %p285 = scmp.eq.s32.totalorder %s23, 1
      %p286 = scmp.ne.s32.totalorder %s281, %s283
      %p287 = scmp.eq.s32.totalorder %s23, 0
      %p288 = por %p286, %p287
      %p289 = scmp.ne.s32.totalorder %s281, %s283
      %p290 = scmp.eq.s32.totalorder %s28, 1
      %p291 = por %p289, %p290
      %p292 = scmp.ne.s32.totalorder %s283, %s284
      %p293 = scmp.eq.s32.totalorder %s28, 0
      %p294 = por %p292, %p293
      %p295 = scmp.ne.s32.totalorder %s283, %s284
      %p296 = scmp.eq.s32.totalorder %s29, 1
      %p297 = por %p295, %p296
      %p299 = scmp.ne.s32.totalorder %s284, %s298
      %p300 = scmp.eq.s32.totalorder %s29, 0
      %p301 = por %p299, %p300
      %s303 = sadd.s32 %s302, 1
      %p306 = scmp.eq.s32.totalorder %s23, 1
      %p307 = scmp.ne.s32.totalorder %s302, %s304
      %p308 = scmp.eq.s32.totalorder %s23, 0
      %p309 = por %p307, %p308
      %p310 = scmp.ne.s32.totalorder %s302, %s304
      %p311 = scmp.eq.s32.totalorder %s28, 1
      %p312 = por %p310, %p311
      %p313 = scmp.ne.s32.totalorder %s304, %s305
      %p314 = scmp.eq.s32.totalorder %s28, 0
      %p315 = por %p313, %p314
      %p316 = scmp.ne.s32.totalorder %s304, %s305
      %p317 = scmp.eq.s32.totalorder %s29, 1
      %p318 = por %p316, %p317
      %p320 = scmp.ne.s32.totalorder %s305, %s319
      %p321 = scmp.eq.s32.totalorder %s29, 0
      %p322 = por %p320, %p321
      %s323 = ssub.s32 %s30, %s42
      %p324 = scmp.eq.s32.totalorder %s323, 0
      %s326 = sadd.s32 %s325, 1
      %s327 = scalar_select %p324, %s325, %s326
      %p330 = pneg %p324
      %p331 = scmp.eq.s32.totalorder %s23, 1
      %p332 = por %p330, %p331
      %p333 = scmp.ne.s32.totalorder %s325, %s328
      %p334 = scmp.eq.s32.totalorder %s23, 0
      %p335 = por %p333, %p334
      %p336 = scmp.ne.s32.totalorder %s325, %s328
      %p337 = scmp.eq.s32.totalorder %s28, 1
      %p338 = por %p336, %p337
      %p339 = scmp.ne.s32.totalorder %s328, %s329
      %p340 = scmp.eq.s32.totalorder %s28, 0
      %p341 = por %p339, %p340
      %p342 = scmp.ne.s32.totalorder %s328, %s329
      %p343 = scmp.eq.s32.totalorder %s29, 1
      %p344 = por %p342, %p343
      %p346 = scmp.ne.s32.totalorder %s329, %s345
      %p347 = scmp.eq.s32.totalorder %s29, 0
      %p348 = por %p346, %p347
      %p349 = scmp.le.s32.totalorder 1, %s23
      %p350 = scmp.lt.s32.totalorder %s23, 3
      %p351 = pnand %p349, %p350
      %p352 = pneg %p351
      // Predicated region
      $region9: #{tpu_custom_call.1} parent=5 // pred_check
        _
      $region10: #{tpu_custom_call.1} parent=5 // pred_check_branch
        %354 = sbr.rel (%p351) target = $region12
      $region11: #{tpu_custom_call.1} parent=5 // pred_region
        %s355 = ssub.s32 %s23, 1
        // Predicated region
        $region13: #{tpu_custom_call.1} parent=11 // pred_check
          %p356 = pneg %p84
        $region14: #{tpu_custom_call.1} parent=11 // pred_check_branch
          %358 = sbr.rel (%p356) target = $region16
        $region15: #{tpu_custom_call.1} parent=11 // pred_region
          _
        $region16: #{tpu_custom_call.1} parent=11 // pred_fallthru
          _
        // Predicated region
        $region17: #{tpu_custom_call.1} parent=11 // pred_check
          %p359 = pneg %p105
        $region18: #{tpu_custom_call.1} parent=11 // pred_check_branch
          %361 = sbr.rel (%p359) target = $region20
        $region19: #{tpu_custom_call.1} parent=11 // pred_region
          %s363 = ssub.s32 16, 16
          %364 = vsyncadd [#allocation5], %s363
          %s366 = sshll.u32 [#allocation4], 4
          %s367 = int_to_ptr.vmem [resolvable:$true] %s366
          %369 = dma.hbm_to_vmem [thread:$0]  %s2, 16, %s367, [#allocation5]
        $region20: #{tpu_custom_call.1} parent=11 // pred_fallthru
          _
        // Predicated region
        $region21: #{tpu_custom_call.1} parent=11 // pred_check
          %p370 = pneg %p126
        $region22: #{tpu_custom_call.1} parent=11 // pred_check_branch
          %372 = sbr.rel (%p370) target = $region24
        $region23: #{tpu_custom_call.1} parent=11 // pred_region
          _
        $region24: #{tpu_custom_call.1} parent=11 // pred_fallthru
          _
        // Predicated region
        $region25: #{tpu_custom_call.1} parent=11 // pred_check
          %p373 = pneg %p147
        $region26: #{tpu_custom_call.1} parent=11 // pred_check_branch
          %375 = sbr.rel (%p373) target = $region28
        $region27: #{tpu_custom_call.1} parent=11 // pred_region
          %s377 = ssub.s32 16, 16
          %378 = vsyncadd [#allocation8], %s377
          %s380 = sshll.u32 [#allocation7], 4
          %s381 = int_to_ptr.vmem [resolvable:$true] %s380
          %383 = dma.hbm_to_vmem [thread:$0]  %s4, 16, %s381, [#allocation8]
        $region28: #{tpu_custom_call.1} parent=11 // pred_fallthru
          _
        // Predicated region
        $region29: #{tpu_custom_call.1} parent=11 // pred_check
          %p384 = pneg %p168
        $region30: #{tpu_custom_call.1} parent=11 // pred_check_branch
          %386 = sbr.rel (%p384) target = $region32
        $region31: #{tpu_custom_call.1} parent=11 // pred_region
          _
        $region32: #{tpu_custom_call.1} parent=11 // pred_fallthru
          _
        // Predicated region
        $region33: #{tpu_custom_call.1} parent=11 // pred_check
          %p387 = pneg %p189
        $region34: #{tpu_custom_call.1} parent=11 // pred_check_branch
          %389 = sbr.rel (%p387) target = $region36
        $region35: #{tpu_custom_call.1} parent=11 // pred_region
          _
        $region36: #{tpu_custom_call.1} parent=11 // pred_fallthru
          _
        // Predicated region
        $region37: #{tpu_custom_call.1} parent=11 // pred_check
          %p390 = pneg %p210
        $region38: #{tpu_custom_call.1} parent=11 // pred_check_branch
          %392 = sbr.rel (%p390) target = $region40
        $region39: #{tpu_custom_call.1} parent=11 // pred_region
          %s394 = ssub.s32 32768, 32768
          %395 = vsyncadd [#allocation8], %s394
          %s396 = sshll.u32 [#allocation9], 4
          %s397 = int_to_ptr.vmem [resolvable:$true] %s396
          %402 = dma.hbm_to_vmem [thread:$0]  %s7, 32768, %s397, [#allocation8], 256, 256, 16
        $region40: #{tpu_custom_call.1} parent=11 // pred_fallthru
          _
        // Predicated region
        $region41: #{tpu_custom_call.1} parent=11 // pred_check
          %p403 = pneg %p231
        $region42: #{tpu_custom_call.1} parent=11 // pred_check_branch
          %405 = sbr.rel (%p403) target = $region44
        $region43: #{tpu_custom_call.1} parent=11 // pred_region
          _
        $region44: #{tpu_custom_call.1} parent=11 // pred_fallthru
          _
        // Predicated region
        $region45: #{tpu_custom_call.1} parent=11 // pred_check
          %p406 = pneg %p252
        $region46: #{tpu_custom_call.1} parent=11 // pred_check_branch
          %408 = sbr.rel (%p406) target = $region48
        $region47: #{tpu_custom_call.1} parent=11 // pred_region
          %s410 = ssub.s32 8192, 8192
          %411 = vsyncadd [#allocation11], %s410
          %s412 = sshll.u32 [#allocation10], 4
          %s413 = int_to_ptr.vmem [resolvable:$true] %s412
          %418 = dma.hbm_to_vmem [thread:$0]  %s9, 8192, %s413, [#allocation11], 128, 128, 8
        $region48: #{tpu_custom_call.1} parent=11 // pred_fallthru
          _
        // Predicated region
        $region49: #{tpu_custom_call.1} parent=11 // pred_check
          %p419 = pneg %p273
        $region50: #{tpu_custom_call.1} parent=11 // pred_check_branch
          %421 = sbr.rel (%p419) target = $region52
        $region51: #{tpu_custom_call.1} parent=11 // pred_region
          _
        $region52: #{tpu_custom_call.1} parent=11 // pred_fallthru
          _
        // Predicated region
        $region53: #{tpu_custom_call.1} parent=11 // pred_check
          %p422 = pneg %p294
        $region54: #{tpu_custom_call.1} parent=11 // pred_check_branch
          %424 = sbr.rel (%p422) target = $region56
        $region55: #{tpu_custom_call.1} parent=11 // pred_region
          %s426 = ssub.s32 2048, 2048
          %427 = vsyncadd [#allocation11], %s426
          %s428 = sshll.u32 [#allocation12], 4
          %s429 = int_to_ptr.vmem [resolvable:$true] %s428
          %434 = dma.hbm_to_vmem [thread:$0]  %s11, 2048, %s429, [#allocation11], 64, 64, 4
        $region56: #{tpu_custom_call.1} parent=11 // pred_fallthru
          _
        // Predicated region
        $region57: #{tpu_custom_call.1} parent=11 // pred_check
          %p435 = pneg %p315
        $region58: #{tpu_custom_call.1} parent=11 // pred_check_branch
          %437 = sbr.rel (%p435) target = $region60
        $region59: #{tpu_custom_call.1} parent=11 // pred_region
          _
        $region60: #{tpu_custom_call.1} parent=11 // pred_fallthru
          _
      $region12: #{tpu_custom_call.1} parent=5 // pred_fallthru
        _
      %p438 = scmp.lt.s32.totalorder %s23, 2
      // Predicated region
      $region61: #{tpu_custom_call.1} parent=5 // pred_check
        %p439 = pneg %p438
      $region62: #{tpu_custom_call.1} parent=5 // pred_check_branch
        %441 = sbr.rel (%p439) target = $region64
      $region63: #{tpu_custom_call.1} parent=5 // pred_region
        // Predicated region
        $region65: #{tpu_custom_call.1} parent=63 // pred_check
          %p442 = pneg %p57
        $region66: #{tpu_custom_call.1} parent=63 // pred_check_branch
          %444 = sbr.rel (%p442) target = $region68
        $region67: #{tpu_custom_call.1} parent=63 // pred_region
          %s445 = sand.u32 %s47, 1
          %s446 = sand.u32 %s47, 1
          %s447 = smul.addr %s446, 256
          %s448 = scalar_lea.vmem [#allocation3], %s447
          %s449 = smul.u32 2, %s30
          %s450 = smul.u32 32, %s31
          %s451 = smul.addr %s449, 64
          %s452 = sadd.s32 %s450, %s451
          %s453 = smul.addr %s452, 4
          %s454 = scalar_lea.vmem %s0, %s453
          // Predicated region
          $region69: #{tpu_custom_call.1} parent=67 // pred_check
            _
          $region70: #{tpu_custom_call.1} parent=67 // pred_check_branch
            %456 = sbr.rel (0) target = $region72
          $region71: #{tpu_custom_call.1} parent=67 // pred_region
            // Predicated region
            $region73: #{tpu_custom_call.1} parent=71 // pred_check
              _
            $region74: #{tpu_custom_call.1} parent=71 // pred_check_branch
              %458 = sbr.rel target = $region76
            $region75: #{tpu_custom_call.1} parent=71 // pred_region
              // Predicated region
              $region88: #{tpu_custom_call.1} parent=75 // pred_check
                _
              $region89: #{tpu_custom_call.1} parent=75 // pred_check_branch
                %599 = sbr.rel (0) target = $region91
              $region90: #{tpu_custom_call.1} parent=75 // pred_region
                loop: start=0, step=1, limit=1
                $region92: #{tpu_custom_call.1} parent=90 // loop_pre_header
                  _
                $region93: #{tpu_custom_call.1} parent=90 // loop_header
                  %s601 = sphi 0, %s605
                  %p602 = scmp.ge.s32.totalorder %s601, 1
                  %s606 = sphi %s454, %s454
                  %s607 = sphi %s448, %s448
                $region94: #{tpu_custom_call.1} parent=90 // loop_header_branch
                  %604 = sbr.rel (%p602) target = $region98
                $region95: #{tpu_custom_call.1} parent=90 // loop_body
                  _
                $region96: #{tpu_custom_call.1} parent=90 // loop_footer
                  %s605 = sadd.s32 1, %s601
                $region97: #{tpu_custom_call.1} parent=90 // loop_footer_branch
                  %600 = sbr.rel target = $region93
                $region98: #{tpu_custom_call.1} parent=90 // loop_exit
                  _
                loop: start=0, step=1, limit=1
                $region99: #{tpu_custom_call.1} parent=90 // loop_pre_header
                  _
                $region100: #{tpu_custom_call.1} parent=90 // loop_header
                  %s610 = sphi 0, %s614
                  %p611 = scmp.ge.s32.totalorder %s610, 1
                  %s615 = sphi %s454, %s454
                  %s616 = sphi %s448, %s448
                $region101: #{tpu_custom_call.1} parent=90 // loop_header_branch
                  %613 = sbr.rel (%p611) target = $region105
                $region102: #{tpu_custom_call.1} parent=90 // loop_body
                  %v617 = vld [vmem:[%s615] sm:$0xf]
                  %618 = vst [vmem:[%s616] sm:$0xf] %v617
                  %v619 = vld [vmem:[%s615 + $0x4] sm:$0xf]
                  %620 = vst [vmem:[%s616 + $0x4] sm:$0xf] %v619
                  %v621 = vld [vmem:[%s615 + $0x8] sm:$0xf]
                  %622 = vst [vmem:[%s616 + $0x8] sm:$0xf] %v621
                  %v623 = vld [vmem:[%s615 + $0xc] sm:$0xf]
                  %624 = vst [vmem:[%s616 + $0xc] sm:$0xf] %v623
                  %v625 = vld [vmem:[%s615 + $0x10] sm:$0xf]
                  %626 = vst [vmem:[%s616 + $0x10] sm:$0xf] %v625
                  %v627 = vld [vmem:[%s615 + $0x14] sm:$0xf]
                  %628 = vst [vmem:[%s616 + $0x14] sm:$0xf] %v627
                  %v629 = vld [vmem:[%s615 + $0x18] sm:$0xf]
                  %630 = vst [vmem:[%s616 + $0x18] sm:$0xf] %v629
                  %v631 = vld [vmem:[%s615 + $0x1c] sm:$0xf]
                  %632 = vst [vmem:[%s616 + $0x1c] sm:$0xf] %v631
                  %v633 = vld [vmem:[%s615 + $0x20] sm:$0xf]
                  %634 = vst [vmem:[%s616 + $0x20] sm:$0xf] %v633
                  %v635 = vld [vmem:[%s615 + $0x24] sm:$0xf]
                  %636 = vst [vmem:[%s616 + $0x24] sm:$0xf] %v635
                  %v637 = vld [vmem:[%s615 + $0x28] sm:$0xf]
                  %638 = vst [vmem:[%s616 + $0x28] sm:$0xf] %v637
                  %v639 = vld [vmem:[%s615 + $0x2c] sm:$0xf]
                  %640 = vst [vmem:[%s616 + $0x2c] sm:$0xf] %v639
                  %v641 = vld [vmem:[%s615 + $0x30] sm:$0xf]
                  %642 = vst [vmem:[%s616 + $0x30] sm:$0xf] %v641
                  %v643 = vld [vmem:[%s615 + $0x34] sm:$0xf]
                  %644 = vst [vmem:[%s616 + $0x34] sm:$0xf] %v643
                  %v645 = vld [vmem:[%s615 + $0x38] sm:$0xf]
                  %646 = vst [vmem:[%s616 + $0x38] sm:$0xf] %v645
                  %v647 = vld [vmem:[%s615 + $0x3c] sm:$0xf]
                  %648 = vst [vmem:[%s616 + $0x3c] sm:$0xf] %v647
                  %v649 = vld [vmem:[%s615 + $0x40] sm:$0xf]
                  %650 = vst [vmem:[%s616 + $0x40] sm:$0xf] %v649
                  %v651 = vld [vmem:[%s615 + $0x44] sm:$0xf]
                  %652 = vst [vmem:[%s616 + $0x44] sm:$0xf] %v651
                  %v653 = vld [vmem:[%s615 + $0x48] sm:$0xf]
                  %654 = vst [vmem:[%s616 + $0x48] sm:$0xf] %v653
                  %v655 = vld [vmem:[%s615 + $0x4c] sm:$0xf]
                  %656 = vst [vmem:[%s616 + $0x4c] sm:$0xf] %v655
                  %v657 = vld [vmem:[%s615 + $0x50] sm:$0xf]
                  %658 = vst [vmem:[%s616 + $0x50] sm:$0xf] %v657
                  %v659 = vld [vmem:[%s615 + $0x54] sm:$0xf]
                  %660 = vst [vmem:[%s616 + $0x54] sm:$0xf] %v659
                  %v661 = vld [vmem:[%s615 + $0x58] sm:$0xf]
                  %662 = vst [vmem:[%s616 + $0x58] sm:$0xf] %v661
                  %v663 = vld [vmem:[%s615 + $0x5c] sm:$0xf]
                  %664 = vst [vmem:[%s616 + $0x5c] sm:$0xf] %v663
                  %v665 = vld [vmem:[%s615 + $0x60] sm:$0xf]
                  %666 = vst [vmem:[%s616 + $0x60] sm:$0xf] %v665
                  %v667 = vld [vmem:[%s615 + $0x64] sm:$0xf]
                  %668 = vst [vmem:[%s616 + $0x64] sm:$0xf] %v667
                  %v669 = vld [vmem:[%s615 + $0x68] sm:$0xf]
                  %670 = vst [vmem:[%s616 + $0x68] sm:$0xf] %v669
                  %v671 = vld [vmem:[%s615 + $0x6c] sm:$0xf]
                  %672 = vst [vmem:[%s616 + $0x6c] sm:$0xf] %v671
                  %v673 = vld [vmem:[%s615 + $0x70] sm:$0xf]
                  %674 = vst [vmem:[%s616 + $0x70] sm:$0xf] %v673
                  %v675 = vld [vmem:[%s615 + $0x74] sm:$0xf]
                  %676 = vst [vmem:[%s616 + $0x74] sm:$0xf] %v675
                  %v677 = vld [vmem:[%s615 + $0x78] sm:$0xf]
                  %678 = vst [vmem:[%s616 + $0x78] sm:$0xf] %v677
                  %v679 = vld [vmem:[%s615 + $0x7c] sm:$0xf]
                  %680 = vst [vmem:[%s616 + $0x7c] sm:$0xf] %v679
                  %v681 = vld [vmem:[%s615 + $0x100] sm:$0xf]
                  %682 = vst [vmem:[%s616 + $0x80] sm:$0xf] %v681
                  %v683 = vld [vmem:[%s615 + $0x104] sm:$0xf]
                  %684 = vst [vmem:[%s616 + $0x84] sm:$0xf] %v683
                  %v685 = vld [vmem:[%s615 + $0x108] sm:$0xf]
                  %686 = vst [vmem:[%s616 + $0x88] sm:$0xf] %v685
                  %v687 = vld [vmem:[%s615 + $0x10c] sm:$0xf]
                  %688 = vst [vmem:[%s616 + $0x8c] sm:$0xf] %v687
                  %v689 = vld [vmem:[%s615 + $0x110] sm:$0xf]
                  %690 = vst [vmem:[%s616 + $0x90] sm:$0xf] %v689
                  %v691 = vld [vmem:[%s615 + $0x114] sm:$0xf]
                  %692 = vst [vmem:[%s616 + $0x94] sm:$0xf] %v691
                  %v693 = vld [vmem:[%s615 + $0x118] sm:$0xf]
                  %694 = vst [vmem:[%s616 + $0x98] sm:$0xf] %v693
                  %v695 = vld [vmem:[%s615 + $0x11c] sm:$0xf]
                  %696 = vst [vmem:[%s616 + $0x9c] sm:$0xf] %v695
                  %v697 = vld [vmem:[%s615 + $0x120] sm:$0xf]
                  %698 = vst [vmem:[%s616 + $0xa0] sm:$0xf] %v697
                  %v699 = vld [vmem:[%s615 + $0x124] sm:$0xf]
                  %700 = vst [vmem:[%s616 + $0xa4] sm:$0xf] %v699
                  %v701 = vld [vmem:[%s615 + $0x128] sm:$0xf]
                  %702 = vst [vmem:[%s616 + $0xa8] sm:$0xf] %v701
                  %v703 = vld [vmem:[%s615 + $0x12c] sm:$0xf]
                  %704 = vst [vmem:[%s616 + $0xac] sm:$0xf] %v703
                  %v705 = vld [vmem:[%s615 + $0x130] sm:$0xf]
                  %706 = vst [vmem:[%s616 + $0xb0] sm:$0xf] %v705
                  %v707 = vld [vmem:[%s615 + $0x134] sm:$0xf]
                  %708 = vst [vmem:[%s616 + $0xb4] sm:$0xf] %v707
                  %v709 = vld [vmem:[%s615 + $0x138] sm:$0xf]
                  %710 = vst [vmem:[%s616 + $0xb8] sm:$0xf] %v709
                  %v711 = vld [vmem:[%s615 + $0x13c] sm:$0xf]
                  %712 = vst [vmem:[%s616 + $0xbc] sm:$0xf] %v711
                  %v713 = vld [vmem:[%s615 + $0x140] sm:$0xf]
                  %714 = vst [vmem:[%s616 + $0xc0] sm:$0xf] %v713
                  %v715 = vld [vmem:[%s615 + $0x144] sm:$0xf]
                  %716 = vst [vmem:[%s616 + $0xc4] sm:$0xf] %v715
                  %v717 = vld [vmem:[%s615 + $0x148] sm:$0xf]
                  %718 = vst [vmem:[%s616 + $0xc8] sm:$0xf] %v717
                  %v719 = vld [vmem:[%s615 + $0x14c] sm:$0xf]
                  %720 = vst [vmem:[%s616 + $0xcc] sm:$0xf] %v719
                  %v721 = vld [vmem:[%s615 + $0x150] sm:$0xf]
                  %722 = vst [vmem:[%s616 + $0xd0] sm:$0xf] %v721
                  %v723 = vld [vmem:[%s615 + $0x154] sm:$0xf]
                  %724 = vst [vmem:[%s616 + $0xd4] sm:$0xf] %v723
                  %v725 = vld [vmem:[%s615 + $0x158] sm:$0xf]
                  %726 = vst [vmem:[%s616 + $0xd8] sm:$0xf] %v725
                  %v727 = vld [vmem:[%s615 + $0x15c] sm:$0xf]
                  %728 = vst [vmem:[%s616 + $0xdc] sm:$0xf] %v727
                  %v729 = vld [vmem:[%s615 + $0x160] sm:$0xf]
                  %730 = vst [vmem:[%s616 + $0xe0] sm:$0xf] %v729
                  %v731 = vld [vmem:[%s615 + $0x164] sm:$0xf]
                  %732 = vst [vmem:[%s616 + $0xe4] sm:$0xf] %v731
                  %v733 = vld [vmem:[%s615 + $0x168] sm:$0xf]
                  %734 = vst [vmem:[%s616 + $0xe8] sm:$0xf] %v733
                  %v735 = vld [vmem:[%s615 + $0x16c] sm:$0xf]
                  %736 = vst [vmem:[%s616 + $0xec] sm:$0xf] %v735
                  %v737 = vld [vmem:[%s615 + $0x170] sm:$0xf]
                  %738 = vst [vmem:[%s616 + $0xf0] sm:$0xf] %v737
                  %v739 = vld [vmem:[%s615 + $0x174] sm:$0xf]
                  %740 = vst [vmem:[%s616 + $0xf4] sm:$0xf] %v739
                  %v741 = vld [vmem:[%s615 + $0x178] sm:$0xf]
                  %742 = vst [vmem:[%s616 + $0xf8] sm:$0xf] %v741
                  %v743 = vld [vmem:[%s615 + $0x17c] sm:$0xf]
                  %744 = vst [vmem:[%s616 + $0xfc] sm:$0xf] %v743
                $region103: #{tpu_custom_call.1} parent=90 // loop_footer
                  %s614 = sadd.s32 1, %s610
                $region104: #{tpu_custom_call.1} parent=90 // loop_footer_branch
                  %609 = sbr.rel target = $region100
                $region105: #{tpu_custom_call.1} parent=90 // loop_exit
                  _
              $region91: #{tpu_custom_call.1} parent=75 // pred_fallthru
                _
            $region76: #{tpu_custom_call.1} parent=71 // pred_fallthru
              _
            // Predicated region
            $region77: #{tpu_custom_call.1} parent=71 // pred_check
              _
            $region78: #{tpu_custom_call.1} parent=71 // pred_check_branch
              %460 = sbr.rel (0) target = $region80
            $region79: #{tpu_custom_call.1} parent=71 // pred_region
              loop: start=0, step=1, limit=1
              $region81: #{tpu_custom_call.1} parent=79 // loop_pre_header
                _
              $region82: #{tpu_custom_call.1} parent=79 // loop_header
                %s463 = sphi 0, %s467
                %p464 = scmp.ge.s32.totalorder %s463, 1
                %s468 = sphi %s454, %s454
                %s469 = sphi %s448, %s448
              $region83: #{tpu_custom_call.1} parent=79 // loop_header_branch
                %466 = sbr.rel (%p464) target = $region87
              $region84: #{tpu_custom_call.1} parent=79 // loop_body
                %v470 = vld [vmem:[%s468] sm:$0xf]
                %471 = vst [vmem:[%s469] sm:$0xf] %v470
                %v472 = vld [vmem:[%s468 + $0x4] sm:$0xf]
                %473 = vst [vmem:[%s469 + $0x4] sm:$0xf] %v472
                %v474 = vld [vmem:[%s468 + $0x8] sm:$0xf]
                %475 = vst [vmem:[%s469 + $0x8] sm:$0xf] %v474
                %v476 = vld [vmem:[%s468 + $0xc] sm:$0xf]
                %477 = vst [vmem:[%s469 + $0xc] sm:$0xf] %v476
                %v478 = vld [vmem:[%s468 + $0x10] sm:$0xf]
                %479 = vst [vmem:[%s469 + $0x10] sm:$0xf] %v478
                %v480 = vld [vmem:[%s468 + $0x14] sm:$0xf]
                %481 = vst [vmem:[%s469 + $0x14] sm:$0xf] %v480
                %v482 = vld [vmem:[%s468 + $0x18] sm:$0xf]
                %483 = vst [vmem:[%s469 + $0x18] sm:$0xf] %v482
                %v484 = vld [vmem:[%s468 + $0x1c] sm:$0xf]
                %485 = vst [vmem:[%s469 + $0x1c] sm:$0xf] %v484
                %v486 = vld [vmem:[%s468 + $0x20] sm:$0xf]
                %487 = vst [vmem:[%s469 + $0x20] sm:$0xf] %v486
                %v488 = vld [vmem:[%s468 + $0x24] sm:$0xf]
                %489 = vst [vmem:[%s469 + $0x24] sm:$0xf] %v488
                %v490 = vld [vmem:[%s468 + $0x28] sm:$0xf]
                %491 = vst [vmem:[%s469 + $0x28] sm:$0xf] %v490
                %v492 = vld [vmem:[%s468 + $0x2c] sm:$0xf]
                %493 = vst [vmem:[%s469 + $0x2c] sm:$0xf] %v492
                %v494 = vld [vmem:[%s468 + $0x30] sm:$0xf]
                %495 = vst [vmem:[%s469 + $0x30] sm:$0xf] %v494
                %v496 = vld [vmem:[%s468 + $0x34] sm:$0xf]
                %497 = vst [vmem:[%s469 + $0x34] sm:$0xf] %v496
                %v498 = vld [vmem:[%s468 + $0x38] sm:$0xf]
                %499 = vst [vmem:[%s469 + $0x38] sm:$0xf] %v498
                %v500 = vld [vmem:[%s468 + $0x3c] sm:$0xf]
                %501 = vst [vmem:[%s469 + $0x3c] sm:$0xf] %v500
                %v502 = vld [vmem:[%s468 + $0x40] sm:$0xf]
                %503 = vst [vmem:[%s469 + $0x40] sm:$0xf] %v502
                %v504 = vld [vmem:[%s468 + $0x44] sm:$0xf]
                %505 = vst [vmem:[%s469 + $0x44] sm:$0xf] %v504
                %v506 = vld [vmem:[%s468 + $0x48] sm:$0xf]
                %507 = vst [vmem:[%s469 + $0x48] sm:$0xf] %v506
                %v508 = vld [vmem:[%s468 + $0x4c] sm:$0xf]
                %509 = vst [vmem:[%s469 + $0x4c] sm:$0xf] %v508
                %v510 = vld [vmem:[%s468 + $0x50] sm:$0xf]
                %511 = vst [vmem:[%s469 + $0x50] sm:$0xf] %v510
                %v512 = vld [vmem:[%s468 + $0x54] sm:$0xf]
                %513 = vst [vmem:[%s469 + $0x54] sm:$0xf] %v512
                %v514 = vld [vmem:[%s468 + $0x58] sm:$0xf]
                %515 = vst [vmem:[%s469 + $0x58] sm:$0xf] %v514
                %v516 = vld [vmem:[%s468 + $0x5c] sm:$0xf]
                %517 = vst [vmem:[%s469 + $0x5c] sm:$0xf] %v516
                %v518 = vld [vmem:[%s468 + $0x60] sm:$0xf]
                %519 = vst [vmem:[%s469 + $0x60] sm:$0xf] %v518
                %v520 = vld [vmem:[%s468 + $0x64] sm:$0xf]
                %521 = vst [vmem:[%s469 + $0x64] sm:$0xf] %v520
                %v522 = vld [vmem:[%s468 + $0x68] sm:$0xf]
                %523 = vst [vmem:[%s469 + $0x68] sm:$0xf] %v522
                %v524 = vld [vmem:[%s468 + $0x6c] sm:$0xf]
                %525 = vst [vmem:[%s469 + $0x6c] sm:$0xf] %v524
                %v526 = vld [vmem:[%s468 + $0x70] sm:$0xf]
                %527 = vst [vmem:[%s469 + $0x70] sm:$0xf] %v526
                %v528 = vld [vmem:[%s468 + $0x74] sm:$0xf]
                %529 = vst [vmem:[%s469 + $0x74] sm:$0xf] %v528
                %v530 = vld [vmem:[%s468 + $0x78] sm:$0xf]
                %531 = vst [vmem:[%s469 + $0x78] sm:$0xf] %v530
                %v532 = vld [vmem:[%s468 + $0x7c] sm:$0xf]
                %533 = vst [vmem:[%s469 + $0x7c] sm:$0xf] %v532
                %v534 = vld [vmem:[%s468 + $0x100] sm:$0xf]
                %535 = vst [vmem:[%s469 + $0x80] sm:$0xf] %v534
                %v536 = vld [vmem:[%s468 + $0x104] sm:$0xf]
                %537 = vst [vmem:[%s469 + $0x84] sm:$0xf] %v536
                %v538 = vld [vmem:[%s468 + $0x108] sm:$0xf]
                %539 = vst [vmem:[%s469 + $0x88] sm:$0xf] %v538
                %v540 = vld [vmem:[%s468 + $0x10c] sm:$0xf]
                %541 = vst [vmem:[%s469 + $0x8c] sm:$0xf] %v540
                %v542 = vld [vmem:[%s468 + $0x110] sm:$0xf]
                %543 = vst [vmem:[%s469 + $0x90] sm:$0xf] %v542
                %v544 = vld [vmem:[%s468 + $0x114] sm:$0xf]
                %545 = vst [vmem:[%s469 + $0x94] sm:$0xf] %v544
                %v546 = vld [vmem:[%s468 + $0x118] sm:$0xf]
                %547 = vst [vmem:[%s469 + $0x98] sm:$0xf] %v546
                %v548 = vld [vmem:[%s468 + $0x11c] sm:$0xf]
                %549 = vst [vmem:[%s469 + $0x9c] sm:$0xf] %v548
                %v550 = vld [vmem:[%s468 + $0x120] sm:$0xf]
                %551 = vst [vmem:[%s469 + $0xa0] sm:$0xf] %v550
                %v552 = vld [vmem:[%s468 + $0x124] sm:$0xf]
                %553 = vst [vmem:[%s469 + $0xa4] sm:$0xf] %v552
                %v554 = vld [vmem:[%s468 + $0x128] sm:$0xf]
                %555 = vst [vmem:[%s469 + $0xa8] sm:$0xf] %v554
                %v556 = vld [vmem:[%s468 + $0x12c] sm:$0xf]
                %557 = vst [vmem:[%s469 + $0xac] sm:$0xf] %v556
                %v558 = vld [vmem:[%s468 + $0x130] sm:$0xf]
                %559 = vst [vmem:[%s469 + $0xb0] sm:$0xf] %v558
                %v560 = vld [vmem:[%s468 + $0x134] sm:$0xf]
                %561 = vst [vmem:[%s469 + $0xb4] sm:$0xf] %v560
                %v562 = vld [vmem:[%s468 + $0x138] sm:$0xf]
                %563 = vst [vmem:[%s469 + $0xb8] sm:$0xf] %v562
                %v564 = vld [vmem:[%s468 + $0x13c] sm:$0xf]
                %565 = vst [vmem:[%s469 + $0xbc] sm:$0xf] %v564
                %v566 = vld [vmem:[%s468 + $0x140] sm:$0xf]
                %567 = vst [vmem:[%s469 + $0xc0] sm:$0xf] %v566
                %v568 = vld [vmem:[%s468 + $0x144] sm:$0xf]
                %569 = vst [vmem:[%s469 + $0xc4] sm:$0xf] %v568
                %v570 = vld [vmem:[%s468 + $0x148] sm:$0xf]
                %571 = vst [vmem:[%s469 + $0xc8] sm:$0xf] %v570
                %v572 = vld [vmem:[%s468 + $0x14c] sm:$0xf]
                %573 = vst [vmem:[%s469 + $0xcc] sm:$0xf] %v572
                %v574 = vld [vmem:[%s468 + $0x150] sm:$0xf]
                %575 = vst [vmem:[%s469 + $0xd0] sm:$0xf] %v574
                %v576 = vld [vmem:[%s468 + $0x154] sm:$0xf]
                %577 = vst [vmem:[%s469 + $0xd4] sm:$0xf] %v576
                %v578 = vld [vmem:[%s468 + $0x158] sm:$0xf]
                %579 = vst [vmem:[%s469 + $0xd8] sm:$0xf] %v578
                %v580 = vld [vmem:[%s468 + $0x15c] sm:$0xf]
                %581 = vst [vmem:[%s469 + $0xdc] sm:$0xf] %v580
                %v582 = vld [vmem:[%s468 + $0x160] sm:$0xf]
                %583 = vst [vmem:[%s469 + $0xe0] sm:$0xf] %v582
                %v584 = vld [vmem:[%s468 + $0x164] sm:$0xf]
                %585 = vst [vmem:[%s469 + $0xe4] sm:$0xf] %v584
                %v586 = vld [vmem:[%s468 + $0x168] sm:$0xf]
                %587 = vst [vmem:[%s469 + $0xe8] sm:$0xf] %v586
                %v588 = vld [vmem:[%s468 + $0x16c] sm:$0xf]
                %589 = vst [vmem:[%s469 + $0xec] sm:$0xf] %v588
                %v590 = vld [vmem:[%s468 + $0x170] sm:$0xf]
                %591 = vst [vmem:[%s469 + $0xf0] sm:$0xf] %v590
                %v592 = vld [vmem:[%s468 + $0x174] sm:$0xf]
                %593 = vst [vmem:[%s469 + $0xf4] sm:$0xf] %v592
                %v594 = vld [vmem:[%s468 + $0x178] sm:$0xf]
                %595 = vst [vmem:[%s469 + $0xf8] sm:$0xf] %v594
                %v596 = vld [vmem:[%s468 + $0x17c] sm:$0xf]
                %597 = vst [vmem:[%s469 + $0xfc] sm:$0xf] %v596
              $region85: #{tpu_custom_call.1} parent=79 // loop_footer
                %s467 = sadd.s32 1, %s463
              $region86: #{tpu_custom_call.1} parent=79 // loop_footer_branch
                %462 = sbr.rel target = $region82
              $region87: #{tpu_custom_call.1} parent=79 // loop_exit
                _
            $region80: #{tpu_custom_call.1} parent=71 // pred_fallthru
              _
          $region72: #{tpu_custom_call.1} parent=67 // pred_fallthru
            _
          %745 = vnop
        $region68: #{tpu_custom_call.1} parent=63 // pred_fallthru
          _
      $region64: #{tpu_custom_call.1} parent=5 // pred_fallthru
        _
      %p746 = scmp.le.s32.totalorder 1, %s23
      %p747 = scmp.lt.s32.totalorder %s23, 3
      %p748 = pnand %p746, %p747
      %p749 = pneg %p748
      // Predicated region
      $region106: #{tpu_custom_call.1} parent=5 // pred_check
        _
      $region107: #{tpu_custom_call.1} parent=5 // pred_check_branch
        %751 = sbr.rel (%p748) target = $region109
      $region108: #{tpu_custom_call.1} parent=5 // pred_region
        %s752 = ssub.s32 %s23, 1
        %s753 = sand.u32 %s50, 1
        %s754 = sand.u32 %s50, 1
        %s755 = smul.addr %s754, 256
        %s756 = scalar_lea.vmem [#allocation3], %s755
        // Predicated region
        $region110: #{tpu_custom_call.1} parent=108 // pred_check
          %p757 = pneg %p63
        $region111: #{tpu_custom_call.1} parent=108 // pred_check_branch
          %759 = sbr.rel (%p757) target = $region113
        $region112: #{tpu_custom_call.1} parent=108 // pred_region
          _
        $region113: #{tpu_custom_call.1} parent=108 // pred_fallthru
          _
        // Predicated region
        $region114: #{tpu_custom_call.1} parent=108 // pred_check
          %p760 = pneg %p105
        $region115: #{tpu_custom_call.1} parent=108 // pred_check_branch
          %762 = sbr.rel (%p760) target = $region117
        $region116: #{tpu_custom_call.1} parent=108 // pred_region
          %763 = dma.done [#allocation5], 16
        $region117: #{tpu_custom_call.1} parent=108 // pred_fallthru
          _
        // Predicated region
        $region118: #{tpu_custom_call.1} parent=108 // pred_check
          %p764 = pneg %p147
        $region119: #{tpu_custom_call.1} parent=108 // pred_check_branch
          %766 = sbr.rel (%p764) target = $region121
        $region120: #{tpu_custom_call.1} parent=108 // pred_region
          %767 = dma.done [#allocation8], 16
        $region121: #{tpu_custom_call.1} parent=108 // pred_fallthru
          _
        // Predicated region
        $region122: #{tpu_custom_call.1} parent=108 // pred_check
          %p768 = pneg %p210
        $region123: #{tpu_custom_call.1} parent=108 // pred_check_branch
          %770 = sbr.rel (%p768) target = $region125
        $region124: #{tpu_custom_call.1} parent=108 // pred_region
          %771 = dma.done [#allocation8], 32768
        $region125: #{tpu_custom_call.1} parent=108 // pred_fallthru
          _
        // Predicated region
        $region126: #{tpu_custom_call.1} parent=108 // pred_check
          %p772 = pneg %p252
        $region127: #{tpu_custom_call.1} parent=108 // pred_check_branch
          %774 = sbr.rel (%p772) target = $region129
        $region128: #{tpu_custom_call.1} parent=108 // pred_region
          %775 = dma.done [#allocation11], 8192
        $region129: #{tpu_custom_call.1} parent=108 // pred_fallthru
          _
        // Predicated region
        $region130: #{tpu_custom_call.1} parent=108 // pred_check
          %p776 = pneg %p294
        $region131: #{tpu_custom_call.1} parent=108 // pred_check_branch
          %778 = sbr.rel (%p776) target = $region133
        $region132: #{tpu_custom_call.1} parent=108 // pred_region
          %779 = dma.done [#allocation11], 2048
        $region133: #{tpu_custom_call.1} parent=108 // pred_fallthru
          _
        %s780 = sand.u32 %s50, 1
        %s781 = sand.u32 %s50, 1
        %s782 = smul.addr %s781, 256
        %s783 = scalar_lea.vmem [#allocation3], %s782
        %p784 = pneg %p63
        %p785 = pneg %p60
        %p786 = pneg %p84
        %p787 = pneg %p81
        %p788 = pneg %p105
        %p789 = pneg %p102
        %p790 = pneg %p126
        %p791 = pneg %p123
        %p792 = pneg %p147
        %p793 = pneg %p144
        %p794 = pneg %p168
        %p795 = pneg %p165
        %p796 = pneg %p189
        %p797 = pneg %p186
        %p798 = pneg %p210
        %p799 = pneg %p207
        %p800 = pneg %p231
        %p801 = pneg %p228
        %p802 = pneg %p252
        %p803 = pneg %p249
        %p804 = pneg %p273
        %p805 = pneg %p270
        %p806 = pneg %p294
        %p807 = pneg %p291
        %p808 = pneg %p315
        %p809 = pneg %p312
        %p810 = pneg %p341
        %p811 = pneg %p338
        %s812 = smul.u32 2, %s32
        %s813 = smul.u32 32, %s33
        %p815 = scmp.eq.s32.totalorder %s33, 0
        // Predicated region
        $region134: #{tpu_custom_call.1} parent=108 // pred_check
          %p816 = pneg %p815
        $region135: #{tpu_custom_call.1} parent=108 // pred_check_branch
          %818 = sbr.rel (%p816) target = $region137
        $region136: #{tpu_custom_call.1} parent=108 // pred_region
          %819 = vst [vmem:[#allocation2] sm:$0xff] -inf
          %820 = vst [vmem:[#allocation2 + $0x8] sm:$0xff] -inf
        $region137: #{tpu_custom_call.1} parent=108 // pred_fallthru
          _
        %v821 = vld [vmem:[%s756] sm:$0xf]
        %v822 = vld [vmem:[%s756 + $0x4] sm:$0xf]
        %v823 = vld [vmem:[%s756 + $0x8] sm:$0xf]
        %v824 = vld [vmem:[%s756 + $0xc] sm:$0xf]
        %v825 = vld [vmem:[%s756 + $0x10] sm:$0xf]
        %v826 = vld [vmem:[%s756 + $0x14] sm:$0xf]
        %v827 = vld [vmem:[%s756 + $0x18] sm:$0xf]
        %v828 = vld [vmem:[%s756 + $0x1c] sm:$0xf]
        %v829 = vld [vmem:[%s756 + $0x20] sm:$0xf]
        %v830 = vld [vmem:[%s756 + $0x24] sm:$0xf]
        %v831 = vld [vmem:[%s756 + $0x28] sm:$0xf]
        %v832 = vld [vmem:[%s756 + $0x2c] sm:$0xf]
        %v833 = vld [vmem:[%s756 + $0x30] sm:$0xf]
        %v834 = vld [vmem:[%s756 + $0x34] sm:$0xf]
        %v835 = vld [vmem:[%s756 + $0x38] sm:$0xf]
        %v836 = vld [vmem:[%s756 + $0x3c] sm:$0xf]
        %v837 = vld [vmem:[%s756 + $0x40] sm:$0xf]
        %v838 = vld [vmem:[%s756 + $0x44] sm:$0xf]
        %v839 = vld [vmem:[%s756 + $0x48] sm:$0xf]
        %v840 = vld [vmem:[%s756 + $0x4c] sm:$0xf]
        %v841 = vld [vmem:[%s756 + $0x50] sm:$0xf]
        %v842 = vld [vmem:[%s756 + $0x54] sm:$0xf]
        %v843 = vld [vmem:[%s756 + $0x58] sm:$0xf]
        %v844 = vld [vmem:[%s756 + $0x5c] sm:$0xf]
        %v845 = vld [vmem:[%s756 + $0x60] sm:$0xf]
        %v846 = vld [vmem:[%s756 + $0x64] sm:$0xf]
        %v847 = vld [vmem:[%s756 + $0x68] sm:$0xf]
        %v848 = vld [vmem:[%s756 + $0x6c] sm:$0xf]
        %v849 = vld [vmem:[%s756 + $0x70] sm:$0xf]
        %v850 = vld [vmem:[%s756 + $0x74] sm:$0xf]
        %v851 = vld [vmem:[%s756 + $0x78] sm:$0xf]
        %v852 = vld [vmem:[%s756 + $0x7c] sm:$0xf]
        %v853 = vld [vmem:[%s756 + $0x80] sm:$0xf]
        %v854 = vld [vmem:[%s756 + $0x84] sm:$0xf]
        %v855 = vld [vmem:[%s756 + $0x88] sm:$0xf]
        %v856 = vld [vmem:[%s756 + $0x8c] sm:$0xf]
        %v857 = vld [vmem:[%s756 + $0x90] sm:$0xf]
        %v858 = vld [vmem:[%s756 + $0x94] sm:$0xf]
        %v859 = vld [vmem:[%s756 + $0x98] sm:$0xf]
        %v860 = vld [vmem:[%s756 + $0x9c] sm:$0xf]
        %v861 = vld [vmem:[%s756 + $0xa0] sm:$0xf]
        %v862 = vld [vmem:[%s756 + $0xa4] sm:$0xf]
        %v863 = vld [vmem:[%s756 + $0xa8] sm:$0xf]
        %v864 = vld [vmem:[%s756 + $0xac] sm:$0xf]
        %v865 = vld [vmem:[%s756 + $0xb0] sm:$0xf]
        %v866 = vld [vmem:[%s756 + $0xb4] sm:$0xf]
        %v867 = vld [vmem:[%s756 + $0xb8] sm:$0xf]
        %v868 = vld [vmem:[%s756 + $0xbc] sm:$0xf]
        %v869 = vld [vmem:[%s756 + $0xc0] sm:$0xf]
        %v870 = vld [vmem:[%s756 + $0xc4] sm:$0xf]
        %v871 = vld [vmem:[%s756 + $0xc8] sm:$0xf]
        %v872 = vld [vmem:[%s756 + $0xcc] sm:$0xf]
        %v873 = vld [vmem:[%s756 + $0xd0] sm:$0xf]
        %v874 = vld [vmem:[%s756 + $0xd4] sm:$0xf]
        %v875 = vld [vmem:[%s756 + $0xd8] sm:$0xf]
        %v876 = vld [vmem:[%s756 + $0xdc] sm:$0xf]
        %v877 = vld [vmem:[%s756 + $0xe0] sm:$0xf]
        %v878 = vld [vmem:[%s756 + $0xe4] sm:$0xf]
        %v879 = vld [vmem:[%s756 + $0xe8] sm:$0xf]
        %v880 = vld [vmem:[%s756 + $0xec] sm:$0xf]
        %v881 = vld [vmem:[%s756 + $0xf0] sm:$0xf]
        %v882 = vld [vmem:[%s756 + $0xf4] sm:$0xf]
        %v883 = vld [vmem:[%s756 + $0xf8] sm:$0xf]
        %v884 = vld [vmem:[%s756 + $0xfc] sm:$0xf]
        %v885 = vld [vmem:[%s1] sm:$0xf]
        %v886 = vld [vmem:[#allocation4] sm:$0x1]
        %v888 = vlaneseq
        %v889 = vshrl.u32 %v888, 7
        %v890 = vsub.s32 0, %v889
        %v891 = vrot.slane %v886, %v890
        %v957 = vunpack.c.l.b16 %v821
        %v958 = vunpack.c.l.b16 %v822
        %v959 = vunpack.c.l.b16 %v823
        %v960 = vunpack.c.l.b16 %v824
        %v961 = vunpack.c.l.b16 %v825
        %v962 = vunpack.c.l.b16 %v826
        %v963 = vunpack.c.l.b16 %v827
        %v964 = vunpack.c.l.b16 %v828
        %v965 = vunpack.c.l.b16 %v829
        %v966 = vunpack.c.l.b16 %v830
        %v967 = vunpack.c.l.b16 %v831
        %v968 = vunpack.c.l.b16 %v832
        %v969 = vunpack.c.l.b16 %v833
        %v970 = vunpack.c.l.b16 %v834
        %v971 = vunpack.c.l.b16 %v835
        %v972 = vunpack.c.l.b16 %v836
        %v973 = vunpack.c.l.b16 %v837
        %v974 = vunpack.c.l.b16 %v838
        %v975 = vunpack.c.l.b16 %v839
        %v976 = vunpack.c.l.b16 %v840
        %v977 = vunpack.c.l.b16 %v841
        %v978 = vunpack.c.l.b16 %v842
        %v979 = vunpack.c.l.b16 %v843
        %v980 = vunpack.c.l.b16 %v844
        %v981 = vunpack.c.l.b16 %v845
        %v982 = vunpack.c.l.b16 %v846
        %v983 = vunpack.c.l.b16 %v847
        %v984 = vunpack.c.l.b16 %v848
        %v985 = vunpack.c.l.b16 %v849
        %v986 = vunpack.c.l.b16 %v850
        %v987 = vunpack.c.l.b16 %v851
        %v988 = vunpack.c.l.b16 %v852
        %v989 = vunpack.c.l.b16 %v853
        %v990 = vunpack.c.l.b16 %v854
        %v991 = vunpack.c.l.b16 %v855
        %v992 = vunpack.c.l.b16 %v856
        %v993 = vunpack.c.l.b16 %v857
        %v994 = vunpack.c.l.b16 %v858
        %v995 = vunpack.c.l.b16 %v859
        %v996 = vunpack.c.l.b16 %v860
        %v997 = vunpack.c.l.b16 %v861
        %v998 = vunpack.c.l.b16 %v862
        %v999 = vunpack.c.l.b16 %v863
        %v1000 = vunpack.c.l.b16 %v864
        %v1001 = vunpack.c.l.b16 %v865
        %v1002 = vunpack.c.l.b16 %v866
        %v1003 = vunpack.c.l.b16 %v867
        %v1004 = vunpack.c.l.b16 %v868
        %v1005 = vunpack.c.l.b16 %v869
        %v1006 = vunpack.c.l.b16 %v870
        %v1007 = vunpack.c.l.b16 %v871
        %v1008 = vunpack.c.l.b16 %v872
        %v1009 = vunpack.c.l.b16 %v873
        %v1010 = vunpack.c.l.b16 %v874
        %v1011 = vunpack.c.l.b16 %v875
        %v1012 = vunpack.c.l.b16 %v876
        %v1013 = vunpack.c.l.b16 %v877
        %v1014 = vunpack.c.l.b16 %v878
        %v1015 = vunpack.c.l.b16 %v879
        %v1016 = vunpack.c.l.b16 %v880
        %v1017 = vunpack.c.l.b16 %v881
        %v1018 = vunpack.c.l.b16 %v882
        %v1019 = vunpack.c.l.b16 %v883
        %v1020 = vunpack.c.l.b16 %v884
        %v1021 = vpack.c.b16 %v958, %v957
        %v1022 = vpack.c.b16 %v960, %v959
        %v1023 = vpack.c.b16 %v962, %v961
        %v1024 = vpack.c.b16 %v964, %v963
        %v1025 = vpack.c.b16 %v966, %v965
        %v1026 = vpack.c.b16 %v968, %v967
        %v1027 = vpack.c.b16 %v970, %v969
        %v1028 = vpack.c.b16 %v972, %v971
        %v1029 = vpack.c.b16 %v974, %v973
        %v1030 = vpack.c.b16 %v976, %v975
        %v1031 = vpack.c.b16 %v978, %v977
        %v1032 = vpack.c.b16 %v980, %v979
        %v1033 = vpack.c.b16 %v982, %v981
        %v1034 = vpack.c.b16 %v984, %v983
        %v1035 = vpack.c.b16 %v986, %v985
        %v1036 = vpack.c.b16 %v988, %v987
        %v1037 = vpack.c.b16 %v990, %v989
        %v1038 = vpack.c.b16 %v992, %v991
        %v1039 = vpack.c.b16 %v994, %v993
        %v1040 = vpack.c.b16 %v996, %v995
        %v1041 = vpack.c.b16 %v998, %v997
        %v1042 = vpack.c.b16 %v1000, %v999
        %v1043 = vpack.c.b16 %v1002, %v1001
        %v1044 = vpack.c.b16 %v1004, %v1003
        %v1045 = vpack.c.b16 %v1006, %v1005
        %v1046 = vpack.c.b16 %v1008, %v1007
        %v1047 = vpack.c.b16 %v1010, %v1009
        %v1048 = vpack.c.b16 %v1012, %v1011
        %v1049 = vpack.c.b16 %v1014, %v1013
        %v1050 = vpack.c.b16 %v1016, %v1015
        %v1051 = vpack.c.b16 %v1018, %v1017
        %v1052 = vpack.c.b16 %v1020, %v1019
        %vm1053 = vcmask 64512
        %v1055 = vsel %vm1053, %v1021, 0
        %v1058 = vsel %vm1053, %v1022, 0
        %v1061 = vsel %vm1053, %v1023, 0
        %v1064 = vsel %vm1053, %v1024, 0
        %v1067 = vsel %vm1053, %v1025, 0
        %v1070 = vsel %vm1053, %v1026, 0
        %v1073 = vsel %vm1053, %v1027, 0
        %v1076 = vsel %vm1053, %v1028, 0
        %v1079 = vsel %vm1053, %v1029, 0
        %v1082 = vsel %vm1053, %v1030, 0
        %v1085 = vsel %vm1053, %v1031, 0
        %v1088 = vsel %vm1053, %v1032, 0
        %v1091 = vsel %vm1053, %v1033, 0
        %v1094 = vsel %vm1053, %v1034, 0
        %v1097 = vsel %vm1053, %v1035, 0
        %v1100 = vsel %vm1053, %v1036, 0
        %v1103 = vsel %vm1053, %v1037, 0
        %v1106 = vsel %vm1053, %v1038, 0
        %v1109 = vsel %vm1053, %v1039, 0
        %v1112 = vsel %vm1053, %v1040, 0
        %v1115 = vsel %vm1053, %v1041, 0
        %v1118 = vsel %vm1053, %v1042, 0
        %v1121 = vsel %vm1053, %v1043, 0
        %v1124 = vsel %vm1053, %v1044, 0
        %v1127 = vsel %vm1053, %v1045, 0
        %v1130 = vsel %vm1053, %v1046, 0
        %v1133 = vsel %vm1053, %v1047, 0
        %v1136 = vsel %vm1053, %v1048, 0
        %v1139 = vsel %vm1053, %v1049, 0
        %v1142 = vsel %vm1053, %v1050, 0
        %v1145 = vsel %vm1053, %v1051, 0
        %v1148 = vsel %vm1053, %v1052, 0
        %vm1150 = vcmask 1043456
        %v1152 = vsel %vm1150, %v885, 0
        %1154 = vmatprep.subr.bf16.mxu0 0
        %1155 = vmatpush1.bf16.msra.mxu0 %v1152
        %1156 = vmatprep.subr.bf16.mxu0 0
        %1157 = vmatpush1.bf16.msra.mxu0 0
        %1158 = vmatprep.subr.bf16.mxu0 0
        %1159 = vmatpush1.bf16.msra.mxu0 0
        %1160 = vmatprep.subr.bf16.mxu0 0
        %1161 = vmatpush1.bf16.msra.mxu0 0
        %1162 = vmatprep.subr.bf16.mxu0 0
        %1163 = vmatpush1.bf16.msra.mxu0 0
        %1164 = vmatprep.subr.bf16.mxu0 0
        %1165 = vmatpush1.bf16.msra.mxu0 0
        %1166 = vmatprep.subr.bf16.mxu0 0
        %1167 = vmatpush1.bf16.msra.mxu0 0
        %1168 = vmatprep.subr.bf16.mxu0 0
        %1169 = vmatpush1.bf16.msra.mxu0 0
        %1170 = vmatprep.subr.bf16.mxu0 0
        %1171 = vmatpush1.bf16.msra.mxu0 0
        %1172 = vmatprep.subr.bf16.mxu0 0
        %1173 = vmatpush1.bf16.msra.mxu0 0
        %1174 = vmatprep.subr.bf16.mxu0 0
        %1175 = vmatpush1.bf16.msra.mxu0 0
        %1176 = vmatprep.subr.bf16.mxu0 0
        %1177 = vmatpush1.bf16.msra.mxu0 0
        %1178 = vmatprep.subr.bf16.mxu0 0
        %1179 = vmatpush1.bf16.msra.mxu0 0
        %1180 = vmatprep.subr.bf16.mxu0 0
        %1181 = vmatpush1.bf16.msra.mxu0 0
        %1182 = vmatprep.subr.bf16.mxu0 0
        %1183 = vmatpush1.bf16.msra.mxu0 0
        %1184 = vmatprep.subr.bf16.mxu0 0
        %1185 = vmatpush1.bf16.msra.mxu0 0
        %1186 = vmatprep.mubr.bf16.mxu0 0
        %1187 = vmatmul.mubr.bf16.gmra.mrb[0].mxu0 %v1055
        %v1188 = vpop.f32.mrb[0].mxu0
        %v1189 = vadd.f32 %v891, %v1188
        %v1190 = vpop.f32.mrb[0].mxu0
        %v1191 = vpop.f32.mrb[0].mxu0
        %v1192 = vadd.f32 %v891, %v1191
        %v1193 = vpop.f32.mrb[0].mxu0
        %1194 = vmatprep.mubr.bf16.mxu0 0
        %1195 = vmatmul.mubr.bf16.gmra.mrb[0].mxu0 %v1058
        %v1196 = vpop.f32.mrb[0].mxu0
        %v1197 = vadd.f32 %v891, %v1196
        %v1198 = vpop.f32.mrb[0].mxu0
        %v1199 = vpop.f32.mrb[0].mxu0
        %v1200 = vadd.f32 %v891, %v1199
        %v1201 = vpop.f32.mrb[0].mxu0
        %1202 = vmatprep.mubr.bf16.mxu0 0
        %1203 = vmatmul.mubr.bf16.gmra.mrb[0].mxu0 %v1061
        %v1204 = vpop.f32.mrb[0].mxu0
        %v1205 = vadd.f32 %v891, %v1204
        %v1206 = vpop.f32.mrb[0].mxu0
        %v1207 = vpop.f32.mrb[0].mxu0
        %v1208 = vadd.f32 %v891, %v1207
        %v1209 = vpop.f32.mrb[0].mxu0
        %1210 = vmatprep.mubr.bf16.mxu0 0
        %1211 = vmatmul.mubr.bf16.gmra.mrb[0].mxu0 %v1064
        %v1212 = vpop.f32.mrb[0].mxu0
        %v1213 = vadd.f32 %v891, %v1212
        %v1214 = vpop.f32.mrb[0].mxu0
        %v1215 = vpop.f32.mrb[0].mxu0
        %v1216 = vadd.f32 %v891, %v1215
        %v1217 = vpop.f32.mrb[0].mxu0
        %1218 = vmatprep.mubr.bf16.mxu0 0
        %1219 = vmatmul.mubr.bf16.gmra.mrb[0].mxu0 %v1067
        %v1220 = vpop.f32.mrb[0].mxu0
        %v1221 = vadd.f32 %v891, %v1220
        %v1222 = vpop.f32.mrb[0].mxu0
        %v1223 = vpop.f32.mrb[0].mxu0
        %v1224 = vadd.f32 %v891, %v1223
        %v1225 = vpop.f32.mrb[0].mxu0
        %1226 = vmatprep.mubr.bf16.mxu0 0
        %1227 = vmatmul.mubr.bf16.gmra.mrb[0].mxu0 %v1070
        %v1228 = vpop.f32.mrb[0].mxu0
        %v1229 = vadd.f32 %v891, %v1228
        %v1230 = vpop.f32.mrb[0].mxu0
        %v1231 = vpop.f32.mrb[0].mxu0
        %v1232 = vadd.f32 %v891, %v1231
        %v1233 = vpop.f32.mrb[0].mxu0
        %1234 = vmatprep.mubr.bf16.mxu0 0
        %1235 = vmatmul.mubr.bf16.gmra.mrb[0].mxu0 %v1073
        %v1236 = vpop.f32.mrb[0].mxu0
        %v1237 = vadd.f32 %v891, %v1236
        %v1238 = vpop.f32.mrb[0].mxu0
        %v1239 = vpop.f32.mrb[0].mxu0
        %v1240 = vadd.f32 %v891, %v1239
        %v1241 = vpop.f32.mrb[0].mxu0
        %1242 = vmatprep.mubr.bf16.mxu0 0
        %1243 = vmatmul.mubr.bf16.gmra.mrb[0].mxu0 %v1076
        %v1244 = vpop.f32.mrb[0].mxu0
        %v1245 = vadd.f32 %v891, %v1244
        %v1246 = vpop.f32.mrb[0].mxu0
        %v1247 = vpop.f32.mrb[0].mxu0
        %v1248 = vadd.f32 %v891, %v1247
        %v1249 = vpop.f32.mrb[0].mxu0
        %1250 = vmatprep.mubr.bf16.mxu0 0
        %1251 = vmatmul.mubr.bf16.gmra.mrb[0].mxu0 %v1079
        %v1252 = vpop.f32.mrb[0].mxu0
        %v1253 = vadd.f32 %v891, %v1252
        %v1254 = vpop.f32.mrb[0].mxu0
        %v1255 = vpop.f32.mrb[0].mxu0
        %v1256 = vadd.f32 %v891, %v1255
        %v1257 = vpop.f32.mrb[0].mxu0
        %1258 = vmatprep.mubr.bf16.mxu0 0
        %1259 = vmatmul.mubr.bf16.gmra.mrb[0].mxu0 %v1082
        %v1260 = vpop.f32.mrb[0].mxu0
        %v1261 = vadd.f32 %v891, %v1260
        %v1262 = vpop.f32.mrb[0].mxu0
        %v1263 = vpop.f32.mrb[0].mxu0
        %v1264 = vadd.f32 %v891, %v1263
        %v1265 = vpop.f32.mrb[0].mxu0
        %1266 = vmatprep.mubr.bf16.mxu0 0
        %1267 = vmatmul.mubr.bf16.gmra.mrb[0].mxu0 %v1085
        %v1268 = vpop.f32.mrb[0].mxu0
        %v1269 = vadd.f32 %v891, %v1268
        %v1270 = vpop.f32.mrb[0].mxu0
        %v1271 = vpop.f32.mrb[0].mxu0
        %v1272 = vadd.f32 %v891, %v1271
        %v1273 = vpop.f32.mrb[0].mxu0
        %1274 = vmatprep.mubr.bf16.mxu0 0
        %1275 = vmatmul.mubr.bf16.gmra.mrb[0].mxu0 %v1088
        %v1276 = vpop.f32.mrb[0].mxu0
        %v1277 = vadd.f32 %v891, %v1276
        %v1278 = vpop.f32.mrb[0].mxu0
        %v1279 = vpop.f32.mrb[0].mxu0
        %v1280 = vadd.f32 %v891, %v1279
        %v1281 = vpop.f32.mrb[0].mxu0
        %1282 = vmatprep.mubr.bf16.mxu0 0
        %1283 = vmatmul.mubr.bf16.gmra.mrb[0].mxu0 %v1091
        %v1284 = vpop.f32.mrb[0].mxu0
        %v1285 = vadd.f32 %v891, %v1284
        %v1286 = vpop.f32.mrb[0].mxu0
        %v1287 = vpop.f32.mrb[0].mxu0
        %v1288 = vadd.f32 %v891, %v1287
        %v1289 = vpop.f32.mrb[0].mxu0
        %1290 = vmatprep.mubr.bf16.mxu0 0
        %1291 = vmatmul.mubr.bf16.gmra.mrb[0].mxu0 %v1094
        %v1292 = vpop.f32.mrb[0].mxu0
        %v1293 = vadd.f32 %v891, %v1292
        %v1294 = vpop.f32.mrb[0].mxu0
        %v1295 = vpop.f32.mrb[0].mxu0
        %v1296 = vadd.f32 %v891, %v1295
        %v1297 = vpop.f32.mrb[0].mxu0
        %1298 = vmatprep.mubr.bf16.mxu0 0
        %1299 = vmatmul.mubr.bf16.gmra.mrb[0].mxu0 %v1097
        %v1300 = vpop.f32.mrb[0].mxu0
        %v1301 = vadd.f32 %v891, %v1300
        %v1302 = vpop.f32.mrb[0].mxu0
        %v1303 = vpop.f32.mrb[0].mxu0
        %v1304 = vadd.f32 %v891, %v1303
        %v1305 = vpop.f32.mrb[0].mxu0
        %1306 = vmatprep.mubr.bf16.mxu0 0
        %1307 = vmatmul.mubr.bf16.gmra.mrb[0].mxu0 %v1100
        %v1308 = vpop.f32.mrb[0].mxu0
        %v1309 = vadd.f32 %v891, %v1308
        %v1310 = vpop.f32.mrb[0].mxu0
        %v1311 = vpop.f32.mrb[0].mxu0
        %v1312 = vadd.f32 %v891, %v1311
        %v1313 = vpop.f32.mrb[0].mxu0
        %1314 = vmatprep.mubr.bf16.mxu0 0
        %1315 = vmatmul.mubr.bf16.gmra.mrb[0].mxu0 %v1103
        %v1316 = vpop.f32.mrb[0].mxu0
        %v1317 = vadd.f32 %v891, %v1316
        %v1318 = vpop.f32.mrb[0].mxu0
        %v1319 = vpop.f32.mrb[0].mxu0
        %v1320 = vadd.f32 %v891, %v1319
        %v1321 = vpop.f32.mrb[0].mxu0
        %1322 = vmatprep.mubr.bf16.mxu0 0
        %1323 = vmatmul.mubr.bf16.gmra.mrb[0].mxu0 %v1106
        %v1324 = vpop.f32.mrb[0].mxu0
        %v1325 = vadd.f32 %v891, %v1324
        %v1326 = vpop.f32.mrb[0].mxu0
        %v1327 = vpop.f32.mrb[0].mxu0
        %v1328 = vadd.f32 %v891, %v1327
        %v1329 = vpop.f32.mrb[0].mxu0
        %1330 = vmatprep.mubr.bf16.mxu0 0
        %1331 = vmatmul.mubr.bf16.gmra.mrb[0].mxu0 %v1109
        %v1332 = vpop.f32.mrb[0].mxu0
        %v1333 = vadd.f32 %v891, %v1332
        %v1334 = vpop.f32.mrb[0].mxu0
        %v1335 = vpop.f32.mrb[0].mxu0
        %v1336 = vadd.f32 %v891, %v1335
        %v1337 = vpop.f32.mrb[0].mxu0
        %1338 = vmatprep.mubr.bf16.mxu0 0
        %1339 = vmatmul.mubr.bf16.gmra.mrb[0].mxu0 %v1112
        %v1340 = vpop.f32.mrb[0].mxu0
        %v1341 = vadd.f32 %v891, %v1340
        %v1342 = vpop.f32.mrb[0].mxu0
        %v1343 = vpop.f32.mrb[0].mxu0
        %v1344 = vadd.f32 %v891, %v1343
        %v1345 = vpop.f32.mrb[0].mxu0
        %1346 = vmatprep.mubr.bf16.mxu0 0
        %1347 = vmatmul.mubr.bf16.gmra.mrb[0].mxu0 %v1115
        %v1348 = vpop.f32.mrb[0].mxu0
        %v1349 = vadd.f32 %v891, %v1348
        %v1350 = vpop.f32.mrb[0].mxu0
        %v1351 = vpop.f32.mrb[0].mxu0
        %v1352 = vadd.f32 %v891, %v1351
        %v1353 = vpop.f32.mrb[0].mxu0
        %1354 = vmatprep.mubr.bf16.mxu0 0
        %1355 = vmatmul.mubr.bf16.gmra.mrb[0].mxu0 %v1118
        %v1356 = vpop.f32.mrb[0].mxu0
        %v1357 = vadd.f32 %v891, %v1356
        %v1358 = vpop.f32.mrb[0].mxu0
        %v1359 = vpop.f32.mrb[0].mxu0
        %v1360 = vadd.f32 %v891, %v1359
        %v1361 = vpop.f32.mrb[0].mxu0
        %1362 = vmatprep.mubr.bf16.mxu0 0
        %1363 = vmatmul.mubr.bf16.gmra.mrb[0].mxu0 %v1121
        %v1364 = vpop.f32.mrb[0].mxu0
        %v1365 = vadd.f32 %v891, %v1364
        %v1366 = vpop.f32.mrb[0].mxu0
        %v1367 = vpop.f32.mrb[0].mxu0
        %v1368 = vadd.f32 %v891, %v1367
        %v1369 = vpop.f32.mrb[0].mxu0
        %1370 = vmatprep.mubr.bf16.mxu0 0
        %1371 = vmatmul.mubr.bf16.gmra.mrb[0].mxu0 %v1124
        %v1372 = vpop.f32.mrb[0].mxu0
        %v1373 = vadd.f32 %v891, %v1372
        %v1374 = vpop.f32.mrb[0].mxu0
        %v1375 = vpop.f32.mrb[0].mxu0
        %v1376 = vadd.f32 %v891, %v1375
        %v1377 = vpop.f32.mrb[0].mxu0
        %1378 = vmatprep.mubr.bf16.mxu0 0
        %1379 = vmatmul.mubr.bf16.gmra.mrb[0].mxu0 %v1127
        %v1380 = vpop.f32.mrb[0].mxu0
        %v1381 = vadd.f32 %v891, %v1380
        %v1382 = vpop.f32.mrb[0].mxu0
        %v1383 = vpop.f32.mrb[0].mxu0
        %v1384 = vadd.f32 %v891, %v1383
        %v1385 = vpop.f32.mrb[0].mxu0
        %1386 = vmatprep.mubr.bf16.mxu0 0
        %1387 = vmatmul.mubr.bf16.gmra.mrb[0].mxu0 %v1130
        %v1388 = vpop.f32.mrb[0].mxu0
        %v1389 = vadd.f32 %v891, %v1388
        %v1390 = vpop.f32.mrb[0].mxu0
        %v1391 = vpop.f32.mrb[0].mxu0
        %v1392 = vadd.f32 %v891, %v1391
        %v1393 = vpop.f32.mrb[0].mxu0
        %1394 = vmatprep.mubr.bf16.mxu0 0
        %1395 = vmatmul.mubr.bf16.gmra.mrb[0].mxu0 %v1133
        %v1396 = vpop.f32.mrb[0].mxu0
        %v1397 = vadd.f32 %v891, %v1396
        %v1398 = vpop.f32.mrb[0].mxu0
        %v1399 = vpop.f32.mrb[0].mxu0
        %v1400 = vadd.f32 %v891, %v1399
        %v1401 = vpop.f32.mrb[0].mxu0
        %1402 = vmatprep.mubr.bf16.mxu0 0
        %1403 = vmatmul.mubr.bf16.gmra.mrb[0].mxu0 %v1136
        %v1404 = vpop.f32.mrb[0].mxu0
        %v1405 = vadd.f32 %v891, %v1404
        %v1406 = vpop.f32.mrb[0].mxu0
        %v1407 = vpop.f32.mrb[0].mxu0
        %v1408 = vadd.f32 %v891, %v1407
        %v1409 = vpop.f32.mrb[0].mxu0
        %1410 = vmatprep.mubr.bf16.mxu0 0
        %1411 = vmatmul.mubr.bf16.gmra.mrb[0].mxu0 %v1139
        %v1412 = vpop.f32.mrb[0].mxu0
        %v1413 = vadd.f32 %v891, %v1412
        %v1414 = vpop.f32.mrb[0].mxu0
        %v1415 = vpop.f32.mrb[0].mxu0
        %v1416 = vadd.f32 %v891, %v1415
        %v1417 = vpop.f32.mrb[0].mxu0
        %1418 = vmatprep.mubr.bf16.mxu0 0
        %1419 = vmatmul.mubr.bf16.gmra.mrb[0].mxu0 %v1142
        %v1420 = vpop.f32.mrb[0].mxu0
        %v1421 = vadd.f32 %v891, %v1420
        %v1422 = vpop.f32.mrb[0].mxu0
        %v1423 = vpop.f32.mrb[0].mxu0
        %v1424 = vadd.f32 %v891, %v1423
        %v1425 = vpop.f32.mrb[0].mxu0
        %1426 = vmatprep.mubr.bf16.mxu0 0
        %1427 = vmatmul.mubr.bf16.gmra.mrb[0].mxu0 %v1145
        %v1428 = vpop.f32.mrb[0].mxu0
        %v1429 = vadd.f32 %v891, %v1428
        %v1430 = vpop.f32.mrb[0].mxu0
        %v1431 = vpop.f32.mrb[0].mxu0
        %v1432 = vadd.f32 %v891, %v1431
        %v1433 = vpop.f32.mrb[0].mxu0
        %1434 = vmatprep.mubr.bf16.mxu0 0
        %1435 = vmatmul.mubr.bf16.gmra.mrb[0].mxu0 %v1148
        %v1436 = vpop.f32.mrb[0].mxu0
        %v1437 = vadd.f32 %v891, %v1436
        %v1438 = vpop.f32.mrb[0].mxu0
        %v1439 = vpop.f32.mrb[0].mxu0
        %v1440 = vadd.f32 %v891, %v1439
        %v1441 = vpop.f32.mrb[0].mxu0
        %1442 = vdwg.mxu0
        %v1443 = vmax.f32 %v1189, 0.0
        %v1444 = vmax.f32 %v1192, 0.0
        %v1445 = vmax.f32 %v1197, 0.0
        %v1446 = vmax.f32 %v1200, 0.0
        %v1447 = vmax.f32 %v1205, 0.0
        %v1448 = vmax.f32 %v1208, 0.0
        %v1449 = vmax.f32 %v1213, 0.0
        %v1450 = vmax.f32 %v1216, 0.0
        %v1451 = vmax.f32 %v1221, 0.0
        %v1452 = vmax.f32 %v1224, 0.0
        %v1453 = vmax.f32 %v1229, 0.0
        %v1454 = vmax.f32 %v1232, 0.0
        %v1455 = vmax.f32 %v1237, 0.0
        %v1456 = vmax.f32 %v1240, 0.0
        %v1457 = vmax.f32 %v1245, 0.0
        %v1458 = vmax.f32 %v1248, 0.0
        %v1459 = vmax.f32 %v1253, 0.0
        %v1460 = vmax.f32 %v1256, 0.0
        %v1461 = vmax.f32 %v1261, 0.0
        %v1462 = vmax.f32 %v1264, 0.0
        %v1463 = vmax.f32 %v1269, 0.0
        %v1464 = vmax.f32 %v1272, 0.0
        %v1465 = vmax.f32 %v1277, 0.0
        %v1466 = vmax.f32 %v1280, 0.0
        %v1467 = vmax.f32 %v1285, 0.0
        %v1468 = vmax.f32 %v1288, 0.0
        %v1469 = vmax.f32 %v1293, 0.0
        %v1470 = vmax.f32 %v1296, 0.0
        %v1471 = vmax.f32 %v1301, 0.0
        %v1472 = vmax.f32 %v1304, 0.0
        %v1473 = vmax.f32 %v1309, 0.0
        %v1474 = vmax.f32 %v1312, 0.0
        %v1475 = vmax.f32 %v1317, 0.0
        %v1476 = vmax.f32 %v1320, 0.0
        %v1477 = vmax.f32 %v1325, 0.0
        %v1478 = vmax.f32 %v1328, 0.0
        %v1479 = vmax.f32 %v1333, 0.0
        %v1480 = vmax.f32 %v1336, 0.0
        %v1481 = vmax.f32 %v1341, 0.0
        %v1482 = vmax.f32 %v1344, 0.0
        %v1483 = vmax.f32 %v1349, 0.0
        %v1484 = vmax.f32 %v1352, 0.0
        %v1485 = vmax.f32 %v1357, 0.0
        %v1486 = vmax.f32 %v1360, 0.0
        %v1487 = vmax.f32 %v1365, 0.0
        %v1488 = vmax.f32 %v1368, 0.0
        %v1489 = vmax.f32 %v1373, 0.0
        %v1490 = vmax.f32 %v1376, 0.0
        %v1491 = vmax.f32 %v1381, 0.0
        %v1492 = vmax.f32 %v1384, 0.0
        %v1493 = vmax.f32 %v1389, 0.0
        %v1494 = vmax.f32 %v1392, 0.0
        %v1495 = vmax.f32 %v1397, 0.0
        %v1496 = vmax.f32 %v1400, 0.0
        %v1497 = vmax.f32 %v1405, 0.0
        %v1498 = vmax.f32 %v1408, 0.0
        %v1499 = vmax.f32 %v1413, 0.0
        %v1500 = vmax.f32 %v1416, 0.0
        %v1501 = vmax.f32 %v1421, 0.0
        %v1502 = vmax.f32 %v1424, 0.0
        %v1503 = vmax.f32 %v1429, 0.0
        %v1504 = vmax.f32 %v1432, 0.0
        %v1505 = vmax.f32 %v1437, 0.0
        %v1506 = vmax.f32 %v1440, 0.0
        %v1507 = vpack.c.bf16 %v1444, %v1443
        %v1508 = vpack.c.bf16 %v1446, %v1445
        %v1509 = vpack.c.bf16 %v1448, %v1447
        %v1510 = vpack.c.bf16 %v1450, %v1449
        %v1511 = vpack.c.bf16 %v1452, %v1451
        %v1512 = vpack.c.bf16 %v1454, %v1453
        %v1513 = vpack.c.bf16 %v1456, %v1455
        %v1514 = vpack.c.bf16 %v1458, %v1457
        %v1515 = vpack.c.bf16 %v1460, %v1459
        %v1516 = vpack.c.bf16 %v1462, %v1461
        %v1517 = vpack.c.bf16 %v1464, %v1463
        %v1518 = vpack.c.bf16 %v1466, %v1465
        %v1519 = vpack.c.bf16 %v1468, %v1467
        %v1520 = vpack.c.bf16 %v1470, %v1469
        %v1521 = vpack.c.bf16 %v1472, %v1471
        %v1522 = vpack.c.bf16 %v1474, %v1473
        %v1523 = vpack.c.bf16 %v1476, %v1475
        %v1524 = vpack.c.bf16 %v1478, %v1477
        %v1525 = vpack.c.bf16 %v1480, %v1479
        %v1526 = vpack.c.bf16 %v1482, %v1481
        %v1527 = vpack.c.bf16 %v1484, %v1483
        %v1528 = vpack.c.bf16 %v1486, %v1485
        %v1529 = vpack.c.bf16 %v1488, %v1487
        %v1530 = vpack.c.bf16 %v1490, %v1489
        %v1531 = vpack.c.bf16 %v1492, %v1491
        %v1532 = vpack.c.bf16 %v1494, %v1493
        %v1533 = vpack.c.bf16 %v1496, %v1495
        %v1534 = vpack.c.bf16 %v1498, %v1497
        %v1535 = vpack.c.bf16 %v1500, %v1499
        %v1536 = vpack.c.bf16 %v1502, %v1501
        %v1537 = vpack.c.bf16 %v1504, %v1503
        %v1538 = vpack.c.bf16 %v1506, %v1505
        %v1539 = vld [vmem:[%s3] sm:$0xf]
        %v1540 = vld [vmem:[%s3 + $0x4] sm:$0xf]
        %v1541 = vld [vmem:[%s3 + $0x8] sm:$0xf]
        %v1542 = vld [vmem:[%s3 + $0xc] sm:$0xf]
        %v1543 = vld [vmem:[%s3 + $0x10] sm:$0xf]
        %v1544 = vld [vmem:[%s3 + $0x14] sm:$0xf]
        %v1545 = vld [vmem:[%s3 + $0x18] sm:$0xf]
        %v1546 = vld [vmem:[%s3 + $0x1c] sm:$0xf]
        %v1547 = vld [vmem:[#allocation7] sm:$0x1]
        %v1549 = vlaneseq
        %v1550 = vshrl.u32 %v1549, 7
        %v1551 = vsub.s32 0, %v1550
        %v1552 = vrot.slane %v1547, %v1551
        %v1562 = vunpack.c.l.b16 %v1539
        %v1563 = vunpack.c.l.b16 %v1540
        %v1564 = vunpack.c.l.b16 %v1541
        %v1565 = vunpack.c.l.b16 %v1542
        %v1566 = vunpack.c.l.b16 %v1543
        %v1567 = vunpack.c.l.b16 %v1544
        %v1568 = vunpack.c.l.b16 %v1545
        %v1569 = vunpack.c.l.b16 %v1546
        %v1570 = vpack.c.b16 %v1563, %v1562
        %v1571 = vpack.c.b16 %v1565, %v1564
        %v1572 = vpack.c.b16 %v1567, %v1566
        %v1573 = vpack.c.b16 %v1569, %v1568
        %vm1578 = vcmask 523264
        %v1580 = vsel %vm1578, %v1507, 0
        %v1583 = vsel %vm1578, %v1508, 0
        %v1586 = vsel %vm1578, %v1509, 0
        %v1589 = vsel %vm1578, %v1510, 0
        %v1592 = vsel %vm1578, %v1511, 0
        %v1595 = vsel %vm1578, %v1512, 0
        %v1598 = vsel %vm1578, %v1513, 0
        %v1601 = vsel %vm1578, %v1514, 0
        %v1604 = vsel %vm1578, %v1515, 0
        %v1607 = vsel %vm1578, %v1516, 0
        %v1610 = vsel %vm1578, %v1517, 0
        %v1613 = vsel %vm1578, %v1518, 0
        %v1616 = vsel %vm1578, %v1519, 0
        %v1619 = vsel %vm1578, %v1520, 0
        %v1622 = vsel %vm1578, %v1521, 0
        %v1625 = vsel %vm1578, %v1522, 0
        %v1628 = vsel %vm1578, %v1523, 0
        %v1631 = vsel %vm1578, %v1524, 0
        %v1634 = vsel %vm1578, %v1525, 0
        %v1637 = vsel %vm1578, %v1526, 0
        %v1640 = vsel %vm1578, %v1527, 0
        %v1643 = vsel %vm1578, %v1528, 0
        %v1646 = vsel %vm1578, %v1529, 0
        %v1649 = vsel %vm1578, %v1530, 0
        %v1652 = vsel %vm1578, %v1531, 0
        %v1655 = vsel %vm1578, %v1532, 0
        %v1658 = vsel %vm1578, %v1533, 0
        %v1661 = vsel %vm1578, %v1534, 0
        %v1664 = vsel %vm1578, %v1535, 0
        %v1667 = vsel %vm1578, %v1536, 0
        %v1670 = vsel %vm1578, %v1537, 0
        %v1673 = vsel %vm1578, %v1538, 0
        %1675 = vmatprep.subr.bf16.mxu0 0
        %1676 = vmatpush1.bf16.msra.mxu0 %v1570
        %1677 = vmatprep.subr.bf16.mxu0 0
        %1678 = vmatpush1.bf16.msra.mxu0 %v1571
        %1679 = vmatprep.subr.bf16.mxu0 0
        %1680 = vmatpush1.bf16.msra.mxu0 %v1572
        %1681 = vmatprep.subr.bf16.mxu0 0
        %1682 = vmatpush1.bf16.msra.mxu0 %v1573
        %1683 = vmatprep.subr.bf16.mxu0 0
        %1684 = vmatpush1.bf16.msra.mxu0 0
        %1685 = vmatprep.subr.bf16.mxu0 0
        %1686 = vmatpush1.bf16.msra.mxu0 0
        %1687 = vmatprep.subr.bf16.mxu0 0
        %1688 = vmatpush1.bf16.msra.mxu0 0
        %1689 = vmatprep.subr.bf16.mxu0 0
        %1690 = vmatpush1.bf16.msra.mxu0 0
        %1691 = vmatprep.subr.bf16.mxu0 0
        %1692 = vmatpush1.bf16.msra.mxu0 0
        %1693 = vmatprep.subr.bf16.mxu0 0
        %1694 = vmatpush1.bf16.msra.mxu0 0
        %1695 = vmatprep.subr.bf16.mxu0 0
        %1696 = vmatpush1.bf16.msra.mxu0 0
        %1697 = vmatprep.subr.bf16.mxu0 0
        %1698 = vmatpush1.bf16.msra.mxu0 0
        %1699 = vmatprep.subr.bf16.mxu0 0
        %1700 = vmatpush1.bf16.msra.mxu0 0
        %1701 = vmatprep.subr.bf16.mxu0 0
        %1702 = vmatpush1.bf16.msra.mxu0 0
        %1703 = vmatprep.subr.bf16.mxu0 0
        %1704 = vmatpush1.bf16.msra.mxu0 0
        %1705 = vmatprep.subr.bf16.mxu0 0
        %1706 = vmatpush1.bf16.msra.mxu0 0
        %1707 = vmatprep.mubr.bf16.mxu0 0
        %1708 = vmatmul.mubr.bf16.gmra.mrb[0].mxu0 %v1580
        %v1709 = vpop.f32.mrb[0].mxu0
        %v1710 = vadd.f32 %v1552, %v1709
        %v1711 = vpop.f32.mrb[0].mxu0
        %v1712 = vpop.f32.mrb[0].mxu0
        %v1713 = vadd.f32 %v1552, %v1712
        %v1714 = vpop.f32.mrb[0].mxu0
        %1715 = vmatprep.mubr.bf16.mxu0 0
        %1716 = vmatmul.mubr.bf16.gmra.mrb[0].mxu0 %v1583
        %v1717 = vpop.f32.mrb[0].mxu0
        %v1718 = vadd.f32 %v1552, %v1717
        %v1719 = vpop.f32.mrb[0].mxu0
        %v1720 = vpop.f32.mrb[0].mxu0
        %v1721 = vadd.f32 %v1552, %v1720
        %v1722 = vpop.f32.mrb[0].mxu0
        %1723 = vmatprep.mubr.bf16.mxu0 0
        %1724 = vmatmul.mubr.bf16.gmra.mrb[0].mxu0 %v1586
        %v1725 = vpop.f32.mrb[0].mxu0
        %v1726 = vadd.f32 %v1552, %v1725
        %v1727 = vpop.f32.mrb[0].mxu0
        %v1728 = vpop.f32.mrb[0].mxu0
        %v1729 = vadd.f32 %v1552, %v1728
        %v1730 = vpop.f32.mrb[0].mxu0
        %1731 = vmatprep.mubr.bf16.mxu0 0
        %1732 = vmatmul.mubr.bf16.gmra.mrb[0].mxu0 %v1589
        %v1733 = vpop.f32.mrb[0].mxu0
        %v1734 = vadd.f32 %v1552, %v1733
        %v1735 = vpop.f32.mrb[0].mxu0
        %v1736 = vpop.f32.mrb[0].mxu0
        %v1737 = vadd.f32 %v1552, %v1736
        %v1738 = vpop.f32.mrb[0].mxu0
        %1739 = vmatprep.mubr.bf16.mxu0 0
        %1740 = vmatmul.mubr.bf16.gmra.mrb[0].mxu0 %v1592
        %v1741 = vpop.f32.mrb[0].mxu0
        %v1742 = vadd.f32 %v1552, %v1741
        %v1743 = vpop.f32.mrb[0].mxu0
        %v1744 = vpop.f32.mrb[0].mxu0
        %v1745 = vadd.f32 %v1552, %v1744
        %v1746 = vpop.f32.mrb[0].mxu0
        %1747 = vmatprep.mubr.bf16.mxu0 0
        %1748 = vmatmul.mubr.bf16.gmra.mrb[0].mxu0 %v1595
        %v1749 = vpop.f32.mrb[0].mxu0
        %v1750 = vadd.f32 %v1552, %v1749
        %v1751 = vpop.f32.mrb[0].mxu0
        %v1752 = vpop.f32.mrb[0].mxu0
        %v1753 = vadd.f32 %v1552, %v1752
        %v1754 = vpop.f32.mrb[0].mxu0
        %1755 = vmatprep.mubr.bf16.mxu0 0
        %1756 = vmatmul.mubr.bf16.gmra.mrb[0].mxu0 %v1598
        %v1757 = vpop.f32.mrb[0].mxu0
        %v1758 = vadd.f32 %v1552, %v1757
        %v1759 = vpop.f32.mrb[0].mxu0
        %v1760 = vpop.f32.mrb[0].mxu0
        %v1761 = vadd.f32 %v1552, %v1760
        %v1762 = vpop.f32.mrb[0].mxu0
        %1763 = vmatprep.mubr.bf16.mxu0 0
        %1764 = vmatmul.mubr.bf16.gmra.mrb[0].mxu0 %v1601
        %v1765 = vpop.f32.mrb[0].mxu0
        %v1766 = vadd.f32 %v1552, %v1765
        %v1767 = vpop.f32.mrb[0].mxu0
        %v1768 = vpop.f32.mrb[0].mxu0
        %v1769 = vadd.f32 %v1552, %v1768
        %v1770 = vpop.f32.mrb[0].mxu0
        %1771 = vmatprep.mubr.bf16.mxu0 0
        %1772 = vmatmul.mubr.bf16.gmra.mrb[0].mxu0 %v1604
        %v1773 = vpop.f32.mrb[0].mxu0
        %v1774 = vadd.f32 %v1552, %v1773
        %v1775 = vpop.f32.mrb[0].mxu0
        %v1776 = vpop.f32.mrb[0].mxu0
        %v1777 = vadd.f32 %v1552, %v1776
        %v1778 = vpop.f32.mrb[0].mxu0
        %1779 = vmatprep.mubr.bf16.mxu0 0
        %1780 = vmatmul.mubr.bf16.gmra.mrb[0].mxu0 %v1607
        %v1781 = vpop.f32.mrb[0].mxu0
        %v1782 = vadd.f32 %v1552, %v1781
        %v1783 = vpop.f32.mrb[0].mxu0
        %v1784 = vpop.f32.mrb[0].mxu0
        %v1785 = vadd.f32 %v1552, %v1784
        %v1786 = vpop.f32.mrb[0].mxu0
        %1787 = vmatprep.mubr.bf16.mxu0 0
        %1788 = vmatmul.mubr.bf16.gmra.mrb[0].mxu0 %v1610
        %v1789 = vpop.f32.mrb[0].mxu0
        %v1790 = vadd.f32 %v1552, %v1789
        %v1791 = vpop.f32.mrb[0].mxu0
        %v1792 = vpop.f32.mrb[0].mxu0
        %v1793 = vadd.f32 %v1552, %v1792
        %v1794 = vpop.f32.mrb[0].mxu0
        %1795 = vmatprep.mubr.bf16.mxu0 0
        %1796 = vmatmul.mubr.bf16.gmra.mrb[0].mxu0 %v1613
        %v1797 = vpop.f32.mrb[0].mxu0
        %v1798 = vadd.f32 %v1552, %v1797
        %v1799 = vpop.f32.mrb[0].mxu0
        %v1800 = vpop.f32.mrb[0].mxu0
        %v1801 = vadd.f32 %v1552, %v1800
        %v1802 = vpop.f32.mrb[0].mxu0
        %1803 = vmatprep.mubr.bf16.mxu0 0
        %1804 = vmatmul.mubr.bf16.gmra.mrb[0].mxu0 %v1616
        %v1805 = vpop.f32.mrb[0].mxu0
        %v1806 = vadd.f32 %v1552, %v1805
        %v1807 = vpop.f32.mrb[0].mxu0
        %v1808 = vpop.f32.mrb[0].mxu0
        %v1809 = vadd.f32 %v1552, %v1808
        %v1810 = vpop.f32.mrb[0].mxu0
        %1811 = vmatprep.mubr.bf16.mxu0 0
        %1812 = vmatmul.mubr.bf16.gmra.mrb[0].mxu0 %v1619
        %v1813 = vpop.f32.mrb[0].mxu0
        %v1814 = vadd.f32 %v1552, %v1813
        %v1815 = vpop.f32.mrb[0].mxu0
        %v1816 = vpop.f32.mrb[0].mxu0
        %v1817 = vadd.f32 %v1552, %v1816
        %v1818 = vpop.f32.mrb[0].mxu0
        %1819 = vmatprep.mubr.bf16.mxu0 0
        %1820 = vmatmul.mubr.bf16.gmra.mrb[0].mxu0 %v1622
        %v1821 = vpop.f32.mrb[0].mxu0
        %v1822 = vadd.f32 %v1552, %v1821
        %v1823 = vpop.f32.mrb[0].mxu0
        %v1824 = vpop.f32.mrb[0].mxu0
        %v1825 = vadd.f32 %v1552, %v1824
        %v1826 = vpop.f32.mrb[0].mxu0
        %1827 = vmatprep.mubr.bf16.mxu0 0
        %1828 = vmatmul.mubr.bf16.gmra.mrb[0].mxu0 %v1625
        %v1829 = vpop.f32.mrb[0].mxu0
        %v1830 = vadd.f32 %v1552, %v1829
        %v1831 = vpop.f32.mrb[0].mxu0
        %v1832 = vpop.f32.mrb[0].mxu0
        %v1833 = vadd.f32 %v1552, %v1832
        %v1834 = vpop.f32.mrb[0].mxu0
        %1835 = vmatprep.mubr.bf16.mxu0 0
        %1836 = vmatmul.mubr.bf16.gmra.mrb[0].mxu0 %v1628
        %v1837 = vpop.f32.mrb[0].mxu0
        %v1838 = vadd.f32 %v1552, %v1837
        %v1839 = vpop.f32.mrb[0].mxu0
        %v1840 = vpop.f32.mrb[0].mxu0
        %v1841 = vadd.f32 %v1552, %v1840
        %v1842 = vpop.f32.mrb[0].mxu0
        %1843 = vmatprep.mubr.bf16.mxu0 0
        %1844 = vmatmul.mubr.bf16.gmra.mrb[0].mxu0 %v1631
        %v1845 = vpop.f32.mrb[0].mxu0
        %v1846 = vadd.f32 %v1552, %v1845
        %v1847 = vpop.f32.mrb[0].mxu0
        %v1848 = vpop.f32.mrb[0].mxu0
        %v1849 = vadd.f32 %v1552, %v1848
        %v1850 = vpop.f32.mrb[0].mxu0
        %1851 = vmatprep.mubr.bf16.mxu0 0
        %1852 = vmatmul.mubr.bf16.gmra.mrb[0].mxu0 %v1634
        %v1853 = vpop.f32.mrb[0].mxu0
        %v1854 = vadd.f32 %v1552, %v1853
        %v1855 = vpop.f32.mrb[0].mxu0
        %v1856 = vpop.f32.mrb[0].mxu0
        %v1857 = vadd.f32 %v1552, %v1856
        %v1858 = vpop.f32.mrb[0].mxu0
        %1859 = vmatprep.mubr.bf16.mxu0 0
        %1860 = vmatmul.mubr.bf16.gmra.mrb[0].mxu0 %v1637
        %v1861 = vpop.f32.mrb[0].mxu0
        %v1862 = vadd.f32 %v1552, %v1861
        %v1863 = vpop.f32.mrb[0].mxu0
        %v1864 = vpop.f32.mrb[0].mxu0
        %v1865 = vadd.f32 %v1552, %v1864
        %v1866 = vpop.f32.mrb[0].mxu0
        %1867 = vmatprep.mubr.bf16.mxu0 0
        %1868 = vmatmul.mubr.bf16.gmra.mrb[0].mxu0 %v1640
        %v1869 = vpop.f32.mrb[0].mxu0
        %v1870 = vadd.f32 %v1552, %v1869
        %v1871 = vpop.f32.mrb[0].mxu0
        %v1872 = vpop.f32.mrb[0].mxu0
        %v1873 = vadd.f32 %v1552, %v1872
        %v1874 = vpop.f32.mrb[0].mxu0
        %1875 = vmatprep.mubr.bf16.mxu0 0
        %1876 = vmatmul.mubr.bf16.gmra.mrb[0].mxu0 %v1643
        %v1877 = vpop.f32.mrb[0].mxu0
        %v1878 = vadd.f32 %v1552, %v1877
        %v1879 = vpop.f32.mrb[0].mxu0
        %v1880 = vpop.f32.mrb[0].mxu0
        %v1881 = vadd.f32 %v1552, %v1880
        %v1882 = vpop.f32.mrb[0].mxu0
        %1883 = vmatprep.mubr.bf16.mxu0 0
        %1884 = vmatmul.mubr.bf16.gmra.mrb[0].mxu0 %v1646
        %v1885 = vpop.f32.mrb[0].mxu0
        %v1886 = vadd.f32 %v1552, %v1885
        %v1887 = vpop.f32.mrb[0].mxu0
        %v1888 = vpop.f32.mrb[0].mxu0
        %v1889 = vadd.f32 %v1552, %v1888
        %v1890 = vpop.f32.mrb[0].mxu0
        %1891 = vmatprep.mubr.bf16.mxu0 0
        %1892 = vmatmul.mubr.bf16.gmra.mrb[0].mxu0 %v1649
        %v1893 = vpop.f32.mrb[0].mxu0
        %v1894 = vadd.f32 %v1552, %v1893
        %v1895 = vpop.f32.mrb[0].mxu0
        %v1896 = vpop.f32.mrb[0].mxu0
        %v1897 = vadd.f32 %v1552, %v1896
        %v1898 = vpop.f32.mrb[0].mxu0
        %1899 = vmatprep.mubr.bf16.mxu0 0
        %1900 = vmatmul.mubr.bf16.gmra.mrb[0].mxu0 %v1652
        %v1901 = vpop.f32.mrb[0].mxu0
        %v1902 = vadd.f32 %v1552, %v1901
        %v1903 = vpop.f32.mrb[0].mxu0
        %v1904 = vpop.f32.mrb[0].mxu0
        %v1905 = vadd.f32 %v1552, %v1904
        %v1906 = vpop.f32.mrb[0].mxu0
        %1907 = vmatprep.mubr.bf16.mxu0 0
        %1908 = vmatmul.mubr.bf16.gmra.mrb[0].mxu0 %v1655
        %v1909 = vpop.f32.mrb[0].mxu0
        %v1910 = vadd.f32 %v1552, %v1909
        %v1911 = vpop.f32.mrb[0].mxu0
        %v1912 = vpop.f32.mrb[0].mxu0
        %v1913 = vadd.f32 %v1552, %v1912
        %v1914 = vpop.f32.mrb[0].mxu0
        %1915 = vmatprep.mubr.bf16.mxu0 0
        %1916 = vmatmul.mubr.bf16.gmra.mrb[0].mxu0 %v1658
        %v1917 = vpop.f32.mrb[0].mxu0
        %v1918 = vadd.f32 %v1552, %v1917
        %v1919 = vpop.f32.mrb[0].mxu0
        %v1920 = vpop.f32.mrb[0].mxu0
        %v1921 = vadd.f32 %v1552, %v1920
        %v1922 = vpop.f32.mrb[0].mxu0
        %1923 = vmatprep.mubr.bf16.mxu0 0
        %1924 = vmatmul.mubr.bf16.gmra.mrb[0].mxu0 %v1661
        %v1925 = vpop.f32.mrb[0].mxu0
        %v1926 = vadd.f32 %v1552, %v1925
        %v1927 = vpop.f32.mrb[0].mxu0
        %v1928 = vpop.f32.mrb[0].mxu0
        %v1929 = vadd.f32 %v1552, %v1928
        %v1930 = vpop.f32.mrb[0].mxu0
        %1931 = vmatprep.mubr.bf16.mxu0 0
        %1932 = vmatmul.mubr.bf16.gmra.mrb[0].mxu0 %v1664
        %v1933 = vpop.f32.mrb[0].mxu0
        %v1934 = vadd.f32 %v1552, %v1933
        %v1935 = vpop.f32.mrb[0].mxu0
        %v1936 = vpop.f32.mrb[0].mxu0
        %v1937 = vadd.f32 %v1552, %v1936
        %v1938 = vpop.f32.mrb[0].mxu0
        %1939 = vmatprep.mubr.bf16.mxu0 0
        %1940 = vmatmul.mubr.bf16.gmra.mrb[0].mxu0 %v1667
        %v1941 = vpop.f32.mrb[0].mxu0
        %v1942 = vadd.f32 %v1552, %v1941
        %v1943 = vpop.f32.mrb[0].mxu0
        %v1944 = vpop.f32.mrb[0].mxu0
        %v1945 = vadd.f32 %v1552, %v1944
        %v1946 = vpop.f32.mrb[0].mxu0
        %1947 = vmatprep.mubr.bf16.mxu0 0
        %1948 = vmatmul.mubr.bf16.gmra.mrb[0].mxu0 %v1670
        %v1949 = vpop.f32.mrb[0].mxu0
        %v1950 = vadd.f32 %v1552, %v1949
        %v1951 = vpop.f32.mrb[0].mxu0
        %v1952 = vpop.f32.mrb[0].mxu0
        %v1953 = vadd.f32 %v1552, %v1952
        %v1954 = vpop.f32.mrb[0].mxu0
        %1955 = vmatprep.mubr.bf16.mxu0 0
        %1956 = vmatmul.mubr.bf16.gmra.mrb[0].mxu0 %v1673
        %v1957 = vpop.f32.mrb[0].mxu0
        %v1958 = vadd.f32 %v1552, %v1957
        %v1959 = vpop.f32.mrb[0].mxu0
        %v1960 = vpop.f32.mrb[0].mxu0
        %v1961 = vadd.f32 %v1552, %v1960
        %v1962 = vpop.f32.mrb[0].mxu0
        %1963 = vdwg.mxu0
        %v1964 = vmax.f32 %v1710, 0.0
        %v1965 = vmax.f32 %v1713, 0.0
        %v1966 = vmax.f32 %v1718, 0.0
        %v1967 = vmax.f32 %v1721, 0.0
        %v1968 = vmax.f32 %v1726, 0.0
        %v1969 = vmax.f32 %v1729, 0.0
        %v1970 = vmax.f32 %v1734, 0.0
        %v1971 = vmax.f32 %v1737, 0.0
        %v1972 = vmax.f32 %v1742, 0.0
        %v1973 = vmax.f32 %v1745, 0.0
        %v1974 = vmax.f32 %v1750, 0.0
        %v1975 = vmax.f32 %v1753, 0.0
        %v1976 = vmax.f32 %v1758, 0.0
        %v1977 = vmax.f32 %v1761, 0.0
        %v1978 = vmax.f32 %v1766, 0.0
        %v1979 = vmax.f32 %v1769, 0.0
        %v1980 = vmax.f32 %v1774, 0.0
        %v1981 = vmax.f32 %v1777, 0.0
        %v1982 = vmax.f32 %v1782, 0.0
        %v1983 = vmax.f32 %v1785, 0.0
        %v1984 = vmax.f32 %v1790, 0.0
        %v1985 = vmax.f32 %v1793, 0.0
        %v1986 = vmax.f32 %v1798, 0.0
        %v1987 = vmax.f32 %v1801, 0.0
        %v1988 = vmax.f32 %v1806, 0.0
        %v1989 = vmax.f32 %v1809, 0.0
        %v1990 = vmax.f32 %v1814, 0.0
        %v1991 = vmax.f32 %v1817, 0.0
        %v1992 = vmax.f32 %v1822, 0.0
        %v1993 = vmax.f32 %v1825, 0.0
        %v1994 = vmax.f32 %v1830, 0.0
        %v1995 = vmax.f32 %v1833, 0.0
        %v1996 = vmax.f32 %v1838, 0.0
        %v1997 = vmax.f32 %v1841, 0.0
        %v1998 = vmax.f32 %v1846, 0.0
        %v1999 = vmax.f32 %v1849, 0.0
        %v2000 = vmax.f32 %v1854, 0.0
        %v2001 = vmax.f32 %v1857, 0.0
        %v2002 = vmax.f32 %v1862, 0.0
        %v2003 = vmax.f32 %v1865, 0.0
        %v2004 = vmax.f32 %v1870, 0.0
        %v2005 = vmax.f32 %v1873, 0.0
        %v2006 = vmax.f32 %v1878, 0.0
        %v2007 = vmax.f32 %v1881, 0.0
        %v2008 = vmax.f32 %v1886, 0.0
        %v2009 = vmax.f32 %v1889, 0.0
        %v2010 = vmax.f32 %v1894, 0.0
        %v2011 = vmax.f32 %v1897, 0.0
        %v2012 = vmax.f32 %v1902, 0.0
        %v2013 = vmax.f32 %v1905, 0.0
        %v2014 = vmax.f32 %v1910, 0.0
        %v2015 = vmax.f32 %v1913, 0.0
        %v2016 = vmax.f32 %v1918, 0.0
        %v2017 = vmax.f32 %v1921, 0.0
        %v2018 = vmax.f32 %v1926, 0.0
        %v2019 = vmax.f32 %v1929, 0.0
        %v2020 = vmax.f32 %v1934, 0.0
        %v2021 = vmax.f32 %v1937, 0.0
        %v2022 = vmax.f32 %v1942, 0.0
        %v2023 = vmax.f32 %v1945, 0.0
        %v2024 = vmax.f32 %v1950, 0.0
        %v2025 = vmax.f32 %v1953, 0.0
        %v2026 = vmax.f32 %v1958, 0.0
        %v2027 = vmax.f32 %v1961, 0.0
        %v2028 = vpack.c.bf16 %v1965, %v1964
        %v2029 = vpack.c.bf16 %v1967, %v1966
        %v2030 = vpack.c.bf16 %v1969, %v1968
        %v2031 = vpack.c.bf16 %v1971, %v1970
        %v2032 = vpack.c.bf16 %v1973, %v1972
        %v2033 = vpack.c.bf16 %v1975, %v1974
        %v2034 = vpack.c.bf16 %v1977, %v1976
        %v2035 = vpack.c.bf16 %v1979, %v1978
        %v2036 = vpack.c.bf16 %v1981, %v1980
        %v2037 = vpack.c.bf16 %v1983, %v1982
        %v2038 = vpack.c.bf16 %v1985, %v1984
        %v2039 = vpack.c.bf16 %v1987, %v1986
        %v2040 = vpack.c.bf16 %v1989, %v1988
        %v2041 = vpack.c.bf16 %v1991, %v1990
        %v2042 = vpack.c.bf16 %v1993, %v1992
        %v2043 = vpack.c.bf16 %v1995, %v1994
        %v2044 = vpack.c.bf16 %v1997, %v1996
        %v2045 = vpack.c.bf16 %v1999, %v1998
        %v2046 = vpack.c.bf16 %v2001, %v2000
        %v2047 = vpack.c.bf16 %v2003, %v2002
        %v2048 = vpack.c.bf16 %v2005, %v2004
        %v2049 = vpack.c.bf16 %v2007, %v2006
        %v2050 = vpack.c.bf16 %v2009, %v2008
        %v2051 = vpack.c.bf16 %v2011, %v2010
        %v2052 = vpack.c.bf16 %v2013, %v2012
        %v2053 = vpack.c.bf16 %v2015, %v2014
        %v2054 = vpack.c.bf16 %v2017, %v2016
        %v2055 = vpack.c.bf16 %v2019, %v2018
        %v2056 = vpack.c.bf16 %v2021, %v2020
        %v2057 = vpack.c.bf16 %v2023, %v2022
        %v2058 = vpack.c.bf16 %v2025, %v2024
        %v2059 = vpack.c.bf16 %v2027, %v2026
        %v2060 = vld [vmem:[%s5] sm:$0xff]
        %v2061 = vld [vmem:[%s5 + $0x20] sm:$0xff]
        %v2062 = vld [vmem:[%s5 + $0x40] sm:$0xff]
        %v2063 = vld [vmem:[%s5 + $0x60] sm:$0xff]
        %v2064 = vld [vmem:[%s5 + $0x80] sm:$0xff]
        %v2065 = vld [vmem:[%s5 + $0xa0] sm:$0xff]
        %v2066 = vld [vmem:[%s5 + $0xc0] sm:$0xff]
        %v2067 = vld [vmem:[%s5 + $0xe0] sm:$0xff]
        %v2068 = vld [vmem:[%s5 + $0x100] sm:$0xff]
        %v2069 = vld [vmem:[%s5 + $0x120] sm:$0xff]
        %v2070 = vld [vmem:[%s5 + $0x140] sm:$0xff]
        %v2071 = vld [vmem:[%s5 + $0x160] sm:$0xff]
        %v2072 = vld [vmem:[%s5 + $0x180] sm:$0xff]
        %v2073 = vld [vmem:[%s5 + $0x1a0] sm:$0xff]
        %v2074 = vld [vmem:[%s5 + $0x1c0] sm:$0xff]
        %v2075 = vld [vmem:[%s5 + $0x1e0] sm:$0xff]
        %v2092 = vunpack.c.l.b16 %v2060
        %v2093 = vunpack.c.h.b16 %v2060
        %v2094 = vunpack.c.l.b16 %v2061
        %v2095 = vunpack.c.h.b16 %v2061
        %v2096 = vunpack.c.l.b16 %v2062
        %v2097 = vunpack.c.h.b16 %v2062
        %v2098 = vunpack.c.l.b16 %v2063
        %v2099 = vunpack.c.h.b16 %v2063
        %v2100 = vunpack.c.l.b16 %v2064
        %v2101 = vunpack.c.h.b16 %v2064
        %v2102 = vunpack.c.l.b16 %v2065
        %v2103 = vunpack.c.h.b16 %v2065
        %v2104 = vunpack.c.l.b16 %v2066
        %v2105 = vunpack.c.h.b16 %v2066
        %v2106 = vunpack.c.l.b16 %v2067
        %v2107 = vunpack.c.h.b16 %v2067
        %v2108 = vunpack.c.l.b16 %v2068
        %v2109 = vunpack.c.h.b16 %v2068
        %v2110 = vunpack.c.l.b16 %v2069
        %v2111 = vunpack.c.h.b16 %v2069
        %v2112 = vunpack.c.l.b16 %v2070
        %v2113 = vunpack.c.h.b16 %v2070
        %v2114 = vunpack.c.l.b16 %v2071
        %v2115 = vunpack.c.h.b16 %v2071
        %v2116 = vunpack.c.l.b16 %v2072
        %v2117 = vunpack.c.h.b16 %v2072
        %v2118 = vunpack.c.l.b16 %v2073
        %v2119 = vunpack.c.h.b16 %v2073
        %v2120 = vunpack.c.l.b16 %v2074
        %v2121 = vunpack.c.h.b16 %v2074
        %v2122 = vunpack.c.l.b16 %v2075
        %v2123 = vunpack.c.h.b16 %v2075
        %v2124 = vpack.c.b16 %v2094, %v2092
        %v2125 = vpack.c.b16 %v2095, %v2093
        %v2126 = vpack.c.b16 %v2098, %v2096
        %v2127 = vpack.c.b16 %v2099, %v2097
        %v2128 = vpack.c.b16 %v2102, %v2100
        %v2129 = vpack.c.b16 %v2103, %v2101
        %v2130 = vpack.c.b16 %v2106, %v2104
        %v2131 = vpack.c.b16 %v2107, %v2105
        %v2132 = vpack.c.b16 %v2110, %v2108
        %v2133 = vpack.c.b16 %v2111, %v2109
        %v2134 = vpack.c.b16 %v2114, %v2112
        %v2135 = vpack.c.b16 %v2115, %v2113
        %v2136 = vpack.c.b16 %v2118, %v2116
        %v2137 = vpack.c.b16 %v2119, %v2117
        %v2138 = vpack.c.b16 %v2122, %v2120
        %v2139 = vpack.c.b16 %v2123, %v2121
        %2156 = vmatprep.subr.bf16.mxu0 %v2125
        %2157 = vmatpush1.bf16.msra.mxu0 %v2124
        %2158 = vmatprep.subr.bf16.mxu0 %v2127
        %2159 = vmatpush1.bf16.msra.mxu0 %v2126
        %2160 = vmatprep.subr.bf16.mxu0 %v2129
        %2161 = vmatpush1.bf16.msra.mxu0 %v2128
        %2162 = vmatprep.subr.bf16.mxu0 %v2131
        %2163 = vmatpush1.bf16.msra.mxu0 %v2130
        %2164 = vmatprep.subr.bf16.mxu0 %v2133
        %2165 = vmatpush1.bf16.msra.mxu0 %v2132
        %2166 = vmatprep.subr.bf16.mxu0 %v2135
        %2167 = vmatpush1.bf16.msra.mxu0 %v2134
        %2168 = vmatprep.subr.bf16.mxu0 %v2137
        %2169 = vmatpush1.bf16.msra.mxu0 %v2136
        %2170 = vmatprep.subr.bf16.mxu0 %v2139
        %2171 = vmatpush1.bf16.msra.mxu0 %v2138
        %2172 = vmatprep.subr.bf16.mxu0 0
        %2173 = vmatpush1.bf16.msra.mxu0 0
        %2174 = vmatprep.subr.bf16.mxu0 0
        %2175 = vmatpush1.bf16.msra.mxu0 0
        %2176 = vmatprep.subr.bf16.mxu0 0
        %2177 = vmatpush1.bf16.msra.mxu0 0
        %2178 = vmatprep.subr.bf16.mxu0 0
        %2179 = vmatpush1.bf16.msra.mxu0 0
        %2180 = vmatprep.subr.bf16.mxu0 0
        %2181 = vmatpush1.bf16.msra.mxu0 0
        %2182 = vmatprep.subr.bf16.mxu0 0
        %2183 = vmatpush1.bf16.msra.mxu0 0
        %2184 = vmatprep.subr.bf16.mxu0 0
        %2185 = vmatpush1.bf16.msra.mxu0 0
        %2186 = vmatprep.subr.bf16.mxu0 0
        %2187 = vmatpush1.bf16.msra.mxu0 0
        %2188 = vmatprep.mubr.bf16.mxu0 0
        %2189 = vmatmul.mubr.bf16.gmra.mrb[0].mxu0 %v2028
        %v2190 = vpop.f32.mrb[0].mxu0
        %v2191 = vadd.f32 0.0, %v2190
        %v2192 = vpop.f32.mrb[0].mxu0
        %v2193 = vadd.f32 0.0, %v2192
        %v2194 = vpop.f32.mrb[0].mxu0
        %v2195 = vadd.f32 0.0, %v2194
        %v2196 = vpop.f32.mrb[0].mxu0
        %v2197 = vadd.f32 0.0, %v2196
        %2198 = vmatprep.mubr.bf16.mxu0 0
        %2199 = vmatmul.mubr.bf16.gmra.mrb[0].mxu0 %v2029
        %v2200 = vpop.f32.mrb[0].mxu0
        %v2201 = vadd.f32 0.0, %v2200
        %v2202 = vpop.f32.mrb[0].mxu0
        %v2203 = vadd.f32 0.0, %v2202
        %v2204 = vpop.f32.mrb[0].mxu0
        %v2205 = vadd.f32 0.0, %v2204
        %v2206 = vpop.f32.mrb[0].mxu0
        %v2207 = vadd.f32 0.0, %v2206
        %2208 = vmatprep.mubr.bf16.mxu0 0
        %2209 = vmatmul.mubr.bf16.gmra.mrb[0].mxu0 %v2030
        %v2210 = vpop.f32.mrb[0].mxu0
        %v2211 = vadd.f32 0.0, %v2210
        %v2212 = vpop.f32.mrb[0].mxu0
        %v2213 = vadd.f32 0.0, %v2212
        %v2214 = vpop.f32.mrb[0].mxu0
        %v2215 = vadd.f32 0.0, %v2214
        %v2216 = vpop.f32.mrb[0].mxu0
        %v2217 = vadd.f32 0.0, %v2216
        %2218 = vmatprep.mubr.bf16.mxu0 0
        %2219 = vmatmul.mubr.bf16.gmra.mrb[0].mxu0 %v2031
        %v2220 = vpop.f32.mrb[0].mxu0
        %v2221 = vadd.f32 0.0, %v2220
        %v2222 = vpop.f32.mrb[0].mxu0
        %v2223 = vadd.f32 0.0, %v2222
        %v2224 = vpop.f32.mrb[0].mxu0
        %v2225 = vadd.f32 0.0, %v2224
        %v2226 = vpop.f32.mrb[0].mxu0
        %v2227 = vadd.f32 0.0, %v2226
        %2228 = vmatprep.mubr.bf16.mxu0 0
        %2229 = vmatmul.mubr.bf16.gmra.mrb[0].mxu0 %v2032
        %v2230 = vpop.f32.mrb[0].mxu0
        %v2231 = vadd.f32 0.0, %v2230
        %v2232 = vpop.f32.mrb[0].mxu0
        %v2233 = vadd.f32 0.0, %v2232
        %v2234 = vpop.f32.mrb[0].mxu0
        %v2235 = vadd.f32 0.0, %v2234
        %v2236 = vpop.f32.mrb[0].mxu0
        %v2237 = vadd.f32 0.0, %v2236
        %2238 = vmatprep.mubr.bf16.mxu0 0
        %2239 = vmatmul.mubr.bf16.gmra.mrb[0].mxu0 %v2033
        %v2240 = vpop.f32.mrb[0].mxu0
        %v2241 = vadd.f32 0.0, %v2240
        %v2242 = vpop.f32.mrb[0].mxu0
        %v2243 = vadd.f32 0.0, %v2242
        %v2244 = vpop.f32.mrb[0].mxu0
        %v2245 = vadd.f32 0.0, %v2244
        %v2246 = vpop.f32.mrb[0].mxu0
        %v2247 = vadd.f32 0.0, %v2246
        %2248 = vmatprep.mubr.bf16.mxu0 0
        %2249 = vmatmul.mubr.bf16.gmra.mrb[0].mxu0 %v2034
        %v2250 = vpop.f32.mrb[0].mxu0
        %v2251 = vadd.f32 0.0, %v2250
        %v2252 = vpop.f32.mrb[0].mxu0
        %v2253 = vadd.f32 0.0, %v2252
        %v2254 = vpop.f32.mrb[0].mxu0
        %v2255 = vadd.f32 0.0, %v2254
        %v2256 = vpop.f32.mrb[0].mxu0
        %v2257 = vadd.f32 0.0, %v2256
        %2258 = vmatprep.mubr.bf16.mxu0 0
        %2259 = vmatmul.mubr.bf16.gmra.mrb[0].mxu0 %v2035
        %v2260 = vpop.f32.mrb[0].mxu0
        %v2261 = vadd.f32 0.0, %v2260
        %v2262 = vpop.f32.mrb[0].mxu0
        %v2263 = vadd.f32 0.0, %v2262
        %v2264 = vpop.f32.mrb[0].mxu0
        %v2265 = vadd.f32 0.0, %v2264
        %v2266 = vpop.f32.mrb[0].mxu0
        %v2267 = vadd.f32 0.0, %v2266
        %2268 = vmatprep.mubr.bf16.mxu0 0
        %2269 = vmatmul.mubr.bf16.gmra.mrb[0].mxu0 %v2036
        %v2270 = vpop.f32.mrb[0].mxu0
        %v2271 = vadd.f32 0.0, %v2270
        %v2272 = vpop.f32.mrb[0].mxu0
        %v2273 = vadd.f32 0.0, %v2272
        %v2274 = vpop.f32.mrb[0].mxu0
        %v2275 = vadd.f32 0.0, %v2274
        %v2276 = vpop.f32.mrb[0].mxu0
        %v2277 = vadd.f32 0.0, %v2276
        %2278 = vmatprep.mubr.bf16.mxu0 0
        %2279 = vmatmul.mubr.bf16.gmra.mrb[0].mxu0 %v2037
        %v2280 = vpop.f32.mrb[0].mxu0
        %v2281 = vadd.f32 0.0, %v2280
        %v2282 = vpop.f32.mrb[0].mxu0
        %v2283 = vadd.f32 0.0, %v2282
        %v2284 = vpop.f32.mrb[0].mxu0
        %v2285 = vadd.f32 0.0, %v2284
        %v2286 = vpop.f32.mrb[0].mxu0
        %v2287 = vadd.f32 0.0, %v2286
        %2288 = vmatprep.mubr.bf16.mxu0 0
        %2289 = vmatmul.mubr.bf16.gmra.mrb[0].mxu0 %v2038
        %v2290 = vpop.f32.mrb[0].mxu0
        %v2291 = vadd.f32 0.0, %v2290
        %v2292 = vpop.f32.mrb[0].mxu0
        %v2293 = vadd.f32 0.0, %v2292
        %v2294 = vpop.f32.mrb[0].mxu0
        %v2295 = vadd.f32 0.0, %v2294
        %v2296 = vpop.f32.mrb[0].mxu0
        %v2297 = vadd.f32 0.0, %v2296
        %2298 = vmatprep.mubr.bf16.mxu0 0
        %2299 = vmatmul.mubr.bf16.gmra.mrb[0].mxu0 %v2039
        %v2300 = vpop.f32.mrb[0].mxu0
        %v2301 = vadd.f32 0.0, %v2300
        %v2302 = vpop.f32.mrb[0].mxu0
        %v2303 = vadd.f32 0.0, %v2302
        %v2304 = vpop.f32.mrb[0].mxu0
        %v2305 = vadd.f32 0.0, %v2304
        %v2306 = vpop.f32.mrb[0].mxu0
        %v2307 = vadd.f32 0.0, %v2306
        %2308 = vmatprep.mubr.bf16.mxu0 0
        %2309 = vmatmul.mubr.bf16.gmra.mrb[0].mxu0 %v2040
        %v2310 = vpop.f32.mrb[0].mxu0
        %v2311 = vadd.f32 0.0, %v2310
        %v2312 = vpop.f32.mrb[0].mxu0
        %v2313 = vadd.f32 0.0, %v2312
        %v2314 = vpop.f32.mrb[0].mxu0
        %v2315 = vadd.f32 0.0, %v2314
        %v2316 = vpop.f32.mrb[0].mxu0
        %v2317 = vadd.f32 0.0, %v2316
        %2318 = vmatprep.mubr.bf16.mxu0 0
        %2319 = vmatmul.mubr.bf16.gmra.mrb[0].mxu0 %v2041
        %v2320 = vpop.f32.mrb[0].mxu0
        %v2321 = vadd.f32 0.0, %v2320
        %v2322 = vpop.f32.mrb[0].mxu0
        %v2323 = vadd.f32 0.0, %v2322
        %v2324 = vpop.f32.mrb[0].mxu0
        %v2325 = vadd.f32 0.0, %v2324
        %v2326 = vpop.f32.mrb[0].mxu0
        %v2327 = vadd.f32 0.0, %v2326
        %2328 = vmatprep.mubr.bf16.mxu0 0
        %2329 = vmatmul.mubr.bf16.gmra.mrb[0].mxu0 %v2042
        %v2330 = vpop.f32.mrb[0].mxu0
        %v2331 = vadd.f32 0.0, %v2330
        %v2332 = vpop.f32.mrb[0].mxu0
        %v2333 = vadd.f32 0.0, %v2332
        %v2334 = vpop.f32.mrb[0].mxu0
        %v2335 = vadd.f32 0.0, %v2334
        %v2336 = vpop.f32.mrb[0].mxu0
        %v2337 = vadd.f32 0.0, %v2336
        %2338 = vmatprep.mubr.bf16.mxu0 0
        %2339 = vmatmul.mubr.bf16.gmra.mrb[0].mxu0 %v2043
        %v2340 = vpop.f32.mrb[0].mxu0
        %v2341 = vadd.f32 0.0, %v2340
        %v2342 = vpop.f32.mrb[0].mxu0
        %v2343 = vadd.f32 0.0, %v2342
        %v2344 = vpop.f32.mrb[0].mxu0
        %v2345 = vadd.f32 0.0, %v2344
        %v2346 = vpop.f32.mrb[0].mxu0
        %v2347 = vadd.f32 0.0, %v2346
        %2348 = vmatprep.mubr.bf16.mxu0 0
        %2349 = vmatmul.mubr.bf16.gmra.mrb[0].mxu0 %v2044
        %v2350 = vpop.f32.mrb[0].mxu0
        %v2351 = vadd.f32 0.0, %v2350
        %v2352 = vpop.f32.mrb[0].mxu0
        %v2353 = vadd.f32 0.0, %v2352
        %v2354 = vpop.f32.mrb[0].mxu0
        %v2355 = vadd.f32 0.0, %v2354
        %v2356 = vpop.f32.mrb[0].mxu0
        %v2357 = vadd.f32 0.0, %v2356
        %2358 = vmatprep.mubr.bf16.mxu0 0
        %2359 = vmatmul.mubr.bf16.gmra.mrb[0].mxu0 %v2045
        %v2360 = vpop.f32.mrb[0].mxu0
        %v2361 = vadd.f32 0.0, %v2360
        %v2362 = vpop.f32.mrb[0].mxu0
        %v2363 = vadd.f32 0.0, %v2362
        %v2364 = vpop.f32.mrb[0].mxu0
        %v2365 = vadd.f32 0.0, %v2364
        %v2366 = vpop.f32.mrb[0].mxu0
        %v2367 = vadd.f32 0.0, %v2366
        %2368 = vmatprep.mubr.bf16.mxu0 0
        %2369 = vmatmul.mubr.bf16.gmra.mrb[0].mxu0 %v2046
        %v2370 = vpop.f32.mrb[0].mxu0
        %v2371 = vadd.f32 0.0, %v2370
        %v2372 = vpop.f32.mrb[0].mxu0
        %v2373 = vadd.f32 0.0, %v2372
        %v2374 = vpop.f32.mrb[0].mxu0
        %v2375 = vadd.f32 0.0, %v2374
        %v2376 = vpop.f32.mrb[0].mxu0
        %v2377 = vadd.f32 0.0, %v2376
        %2378 = vmatprep.mubr.bf16.mxu0 0
        %2379 = vmatmul.mubr.bf16.gmra.mrb[0].mxu0 %v2047
        %v2380 = vpop.f32.mrb[0].mxu0
        %v2381 = vadd.f32 0.0, %v2380
        %v2382 = vpop.f32.mrb[0].mxu0
        %v2383 = vadd.f32 0.0, %v2382
        %v2384 = vpop.f32.mrb[0].mxu0
        %v2385 = vadd.f32 0.0, %v2384
        %v2386 = vpop.f32.mrb[0].mxu0
        %v2387 = vadd.f32 0.0, %v2386
        %2388 = vmatprep.mubr.bf16.mxu0 0
        %2389 = vmatmul.mubr.bf16.gmra.mrb[0].mxu0 %v2048
        %v2390 = vpop.f32.mrb[0].mxu0
        %v2391 = vadd.f32 0.0, %v2390
        %v2392 = vpop.f32.mrb[0].mxu0
        %v2393 = vadd.f32 0.0, %v2392
        %v2394 = vpop.f32.mrb[0].mxu0
        %v2395 = vadd.f32 0.0, %v2394
        %v2396 = vpop.f32.mrb[0].mxu0
        %v2397 = vadd.f32 0.0, %v2396
        %2398 = vmatprep.mubr.bf16.mxu0 0
        %2399 = vmatmul.mubr.bf16.gmra.mrb[0].mxu0 %v2049
        %v2400 = vpop.f32.mrb[0].mxu0
        %v2401 = vadd.f32 0.0, %v2400
        %v2402 = vpop.f32.mrb[0].mxu0
        %v2403 = vadd.f32 0.0, %v2402
        %v2404 = vpop.f32.mrb[0].mxu0
        %v2405 = vadd.f32 0.0, %v2404
        %v2406 = vpop.f32.mrb[0].mxu0
        %v2407 = vadd.f32 0.0, %v2406
        %2408 = vmatprep.mubr.bf16.mxu0 0
        %2409 = vmatmul.mubr.bf16.gmra.mrb[0].mxu0 %v2050
        %v2410 = vpop.f32.mrb[0].mxu0
        %v2411 = vadd.f32 0.0, %v2410
        %v2412 = vpop.f32.mrb[0].mxu0
        %v2413 = vadd.f32 0.0, %v2412
        %v2414 = vpop.f32.mrb[0].mxu0
        %v2415 = vadd.f32 0.0, %v2414
        %v2416 = vpop.f32.mrb[0].mxu0
        %v2417 = vadd.f32 0.0, %v2416
        %2418 = vmatprep.mubr.bf16.mxu0 0
        %2419 = vmatmul.mubr.bf16.gmra.mrb[0].mxu0 %v2051
        %v2420 = vpop.f32.mrb[0].mxu0
        %v2421 = vadd.f32 0.0, %v2420
        %v2422 = vpop.f32.mrb[0].mxu0
        %v2423 = vadd.f32 0.0, %v2422
        %v2424 = vpop.f32.mrb[0].mxu0
        %v2425 = vadd.f32 0.0, %v2424
        %v2426 = vpop.f32.mrb[0].mxu0
        %v2427 = vadd.f32 0.0, %v2426
        %2428 = vmatprep.mubr.bf16.mxu0 0
        %2429 = vmatmul.mubr.bf16.gmra.mrb[0].mxu0 %v2052
        %v2430 = vpop.f32.mrb[0].mxu0
        %v2431 = vadd.f32 0.0, %v2430
        %v2432 = vpop.f32.mrb[0].mxu0
        %v2433 = vadd.f32 0.0, %v2432
        %v2434 = vpop.f32.mrb[0].mxu0
        %v2435 = vadd.f32 0.0, %v2434
        %v2436 = vpop.f32.mrb[0].mxu0
        %v2437 = vadd.f32 0.0, %v2436
        %2438 = vmatprep.mubr.bf16.mxu0 0
        %2439 = vmatmul.mubr.bf16.gmra.mrb[0].mxu0 %v2053
        %v2440 = vpop.f32.mrb[0].mxu0
        %v2441 = vadd.f32 0.0, %v2440
        %v2442 = vpop.f32.mrb[0].mxu0
        %v2443 = vadd.f32 0.0, %v2442
        %v2444 = vpop.f32.mrb[0].mxu0
        %v2445 = vadd.f32 0.0, %v2444
        %v2446 = vpop.f32.mrb[0].mxu0
        %v2447 = vadd.f32 0.0, %v2446
        %2448 = vmatprep.mubr.bf16.mxu0 0
        %2449 = vmatmul.mubr.bf16.gmra.mrb[0].mxu0 %v2054
        %v2450 = vpop.f32.mrb[0].mxu0
        %v2451 = vadd.f32 0.0, %v2450
        %v2452 = vpop.f32.mrb[0].mxu0
        %v2453 = vadd.f32 0.0, %v2452
        %v2454 = vpop.f32.mrb[0].mxu0
        %v2455 = vadd.f32 0.0, %v2454
        %v2456 = vpop.f32.mrb[0].mxu0
        %v2457 = vadd.f32 0.0, %v2456
        %2458 = vmatprep.mubr.bf16.mxu0 0
        %2459 = vmatmul.mubr.bf16.gmra.mrb[0].mxu0 %v2055
        %v2460 = vpop.f32.mrb[0].mxu0
        %v2461 = vadd.f32 0.0, %v2460
        %v2462 = vpop.f32.mrb[0].mxu0
        %v2463 = vadd.f32 0.0, %v2462
        %v2464 = vpop.f32.mrb[0].mxu0
        %v2465 = vadd.f32 0.0, %v2464
        %v2466 = vpop.f32.mrb[0].mxu0
        %v2467 = vadd.f32 0.0, %v2466
        %2468 = vmatprep.mubr.bf16.mxu0 0
        %2469 = vmatmul.mubr.bf16.gmra.mrb[0].mxu0 %v2056
        %v2470 = vpop.f32.mrb[0].mxu0
        %v2471 = vadd.f32 0.0, %v2470
        %v2472 = vpop.f32.mrb[0].mxu0
        %v2473 = vadd.f32 0.0, %v2472
        %v2474 = vpop.f32.mrb[0].mxu0
        %v2475 = vadd.f32 0.0, %v2474
        %v2476 = vpop.f32.mrb[0].mxu0
        %v2477 = vadd.f32 0.0, %v2476
        %2478 = vmatprep.mubr.bf16.mxu0 0
        %2479 = vmatmul.mubr.bf16.gmra.mrb[0].mxu0 %v2057
        %v2480 = vpop.f32.mrb[0].mxu0
        %v2481 = vadd.f32 0.0, %v2480
        %v2482 = vpop.f32.mrb[0].mxu0
        %v2483 = vadd.f32 0.0, %v2482
        %v2484 = vpop.f32.mrb[0].mxu0
        %v2485 = vadd.f32 0.0, %v2484
        %v2486 = vpop.f32.mrb[0].mxu0
        %v2487 = vadd.f32 0.0, %v2486
        %2488 = vmatprep.mubr.bf16.mxu0 0
        %2489 = vmatmul.mubr.bf16.gmra.mrb[0].mxu0 %v2058
        %v2490 = vpop.f32.mrb[0].mxu0
        %v2491 = vadd.f32 0.0, %v2490
        %v2492 = vpop.f32.mrb[0].mxu0
        %v2493 = vadd.f32 0.0, %v2492
        %v2494 = vpop.f32.mrb[0].mxu0
        %v2495 = vadd.f32 0.0, %v2494
        %v2496 = vpop.f32.mrb[0].mxu0
        %v2497 = vadd.f32 0.0, %v2496
        %2498 = vmatprep.mubr.bf16.mxu0 0
        %2499 = vmatmul.mubr.bf16.gmra.mrb[0].mxu0 %v2059
        %v2500 = vpop.f32.mrb[0].mxu0
        %v2501 = vadd.f32 0.0, %v2500
        %v2502 = vpop.f32.mrb[0].mxu0
        %v2503 = vadd.f32 0.0, %v2502
        %v2504 = vpop.f32.mrb[0].mxu0
        %v2505 = vadd.f32 0.0, %v2504
        %v2506 = vpop.f32.mrb[0].mxu0
        %v2507 = vadd.f32 0.0, %v2506
        %2508 = vdwg.mxu0
        %v2509 = vmax.f32 %v2191, %v2195
        %v2510 = vmax.f32 %v2509, %v2201
        %v2511 = vmax.f32 %v2510, %v2205
        %v2512 = vmax.f32 %v2511, %v2211
        %v2513 = vmax.f32 %v2512, %v2215
        %v2514 = vmax.f32 %v2513, %v2221
        %v2515 = vmax.f32 %v2514, %v2225
        %v2516 = vmax.f32 %v2515, %v2231
        %v2517 = vmax.f32 %v2516, %v2235
        %v2518 = vmax.f32 %v2517, %v2241
        %v2519 = vmax.f32 %v2518, %v2245
        %v2520 = vmax.f32 %v2519, %v2251
        %v2521 = vmax.f32 %v2520, %v2255
        %v2522 = vmax.f32 %v2521, %v2261
        %v2523 = vmax.f32 %v2522, %v2265
        %v2524 = vmax.f32 %v2523, %v2271
        %v2525 = vmax.f32 %v2524, %v2275
        %v2526 = vmax.f32 %v2525, %v2281
        %v2527 = vmax.f32 %v2526, %v2285
        %v2528 = vmax.f32 %v2527, %v2291
        %v2529 = vmax.f32 %v2528, %v2295
        %v2530 = vmax.f32 %v2529, %v2301
        %v2531 = vmax.f32 %v2530, %v2305
        %v2532 = vmax.f32 %v2531, %v2311
        %v2533 = vmax.f32 %v2532, %v2315
        %v2534 = vmax.f32 %v2533, %v2321
        %v2535 = vmax.f32 %v2534, %v2325
        %v2536 = vmax.f32 %v2535, %v2331
        %v2537 = vmax.f32 %v2536, %v2335
        %v2538 = vmax.f32 %v2537, %v2341
        %v2539 = vmax.f32 %v2538, %v2345
        %v2540 = vrot.slane %v2539, 4
        %v2541 = vmax.f32 %v2539, %v2540
        %v2542 = vrot.slane %v2541, 2
        %v2543 = vmax.f32 %v2541, %v2542
        %v2544 = vrot.slane %v2543, 1
        %v2545 = vmax.f32 %v2543, %v2544
        %v2546 = vmax.f32 %v2193, %v2197
        %v2547 = vmax.f32 %v2546, %v2203
        %v2548 = vmax.f32 %v2547, %v2207
        %v2549 = vmax.f32 %v2548, %v2213
        %v2550 = vmax.f32 %v2549, %v2217
        %v2551 = vmax.f32 %v2550, %v2223
        %v2552 = vmax.f32 %v2551, %v2227
        %v2553 = vmax.f32 %v2552, %v2233
        %v2554 = vmax.f32 %v2553, %v2237
        %v2555 = vmax.f32 %v2554, %v2243
        %v2556 = vmax.f32 %v2555, %v2247
        %v2557 = vmax.f32 %v2556, %v2253
        %v2558 = vmax.f32 %v2557, %v2257
        %v2559 = vmax.f32 %v2558, %v2263
        %v2560 = vmax.f32 %v2559, %v2267
        %v2561 = vmax.f32 %v2560, %v2273
        %v2562 = vmax.f32 %v2561, %v2277
        %v2563 = vmax.f32 %v2562, %v2283
        %v2564 = vmax.f32 %v2563, %v2287
        %v2565 = vmax.f32 %v2564, %v2293
        %v2566 = vmax.f32 %v2565, %v2297
        %v2567 = vmax.f32 %v2566, %v2303
        %v2568 = vmax.f32 %v2567, %v2307
        %v2569 = vmax.f32 %v2568, %v2313
        %v2570 = vmax.f32 %v2569, %v2317
        %v2571 = vmax.f32 %v2570, %v2323
        %v2572 = vmax.f32 %v2571, %v2327
        %v2573 = vmax.f32 %v2572, %v2333
        %v2574 = vmax.f32 %v2573, %v2337
        %v2575 = vmax.f32 %v2574, %v2343
        %v2576 = vmax.f32 %v2575, %v2347
        %v2577 = vrot.slane %v2576, 4
        %v2578 = vmax.f32 %v2576, %v2577
        %v2579 = vrot.slane %v2578, 2
        %v2580 = vmax.f32 %v2578, %v2579
        %v2581 = vrot.slane %v2580, 1
        %v2582 = vmax.f32 %v2580, %v2581
        %v2583 = vmax.f32 %v2351, %v2355
        %v2584 = vmax.f32 %v2583, %v2361
        %v2585 = vmax.f32 %v2584, %v2365
        %v2586 = vmax.f32 %v2585, %v2371
        %v2587 = vmax.f32 %v2586, %v2375
        %v2588 = vmax.f32 %v2587, %v2381
        %v2589 = vmax.f32 %v2588, %v2385
        %v2590 = vmax.f32 %v2589, %v2391
        %v2591 = vmax.f32 %v2590, %v2395
        %v2592 = vmax.f32 %v2591, %v2401
        %v2593 = vmax.f32 %v2592, %v2405
        %v2594 = vmax.f32 %v2593, %v2411
        %v2595 = vmax.f32 %v2594, %v2415
        %v2596 = vmax.f32 %v2595, %v2421
        %v2597 = vmax.f32 %v2596, %v2425
        %v2598 = vmax.f32 %v2597, %v2431
        %v2599 = vmax.f32 %v2598, %v2435
        %v2600 = vmax.f32 %v2599, %v2441
        %v2601 = vmax.f32 %v2600, %v2445
        %v2602 = vmax.f32 %v2601, %v2451
        %v2603 = vmax.f32 %v2602, %v2455
        %v2604 = vmax.f32 %v2603, %v2461
        %v2605 = vmax.f32 %v2604, %v2465
        %v2606 = vmax.f32 %v2605, %v2471
        %v2607 = vmax.f32 %v2606, %v2475
        %v2608 = vmax.f32 %v2607, %v2481
        %v2609 = vmax.f32 %v2608, %v2485
        %v2610 = vmax.f32 %v2609, %v2491
        %v2611 = vmax.f32 %v2610, %v2495
        %v2612 = vmax.f32 %v2611, %v2501
        %v2613 = vmax.f32 %v2612, %v2505
        %v2614 = vrot.slane %v2613, 4
        %v2615 = vmax.f32 %v2613, %v2614
        %v2616 = vrot.slane %v2615, 2
        %v2617 = vmax.f32 %v2615, %v2616
        %v2618 = vrot.slane %v2617, 1
        %v2619 = vmax.f32 %v2617, %v2618
        %v2620 = vmax.f32 %v2353, %v2357
        %v2621 = vmax.f32 %v2620, %v2363
        %v2622 = vmax.f32 %v2621, %v2367
        %v2623 = vmax.f32 %v2622, %v2373
        %v2624 = vmax.f32 %v2623, %v2377
        %v2625 = vmax.f32 %v2624, %v2383
        %v2626 = vmax.f32 %v2625, %v2387
        %v2627 = vmax.f32 %v2626, %v2393
        %v2628 = vmax.f32 %v2627, %v2397
        %v2629 = vmax.f32 %v2628, %v2403
        %v2630 = vmax.f32 %v2629, %v2407
        %v2631 = vmax.f32 %v2630, %v2413
        %v2632 = vmax.f32 %v2631, %v2417
        %v2633 = vmax.f32 %v2632, %v2423
        %v2634 = vmax.f32 %v2633, %v2427
        %v2635 = vmax.f32 %v2634, %v2433
        %v2636 = vmax.f32 %v2635, %v2437
        %v2637 = vmax.f32 %v2636, %v2443
        %v2638 = vmax.f32 %v2637, %v2447
        %v2639 = vmax.f32 %v2638, %v2453
        %v2640 = vmax.f32 %v2639, %v2457
        %v2641 = vmax.f32 %v2640, %v2463
        %v2642 = vmax.f32 %v2641, %v2467
        %v2643 = vmax.f32 %v2642, %v2473
        %v2644 = vmax.f32 %v2643, %v2477
        %v2645 = vmax.f32 %v2644, %v2483
        %v2646 = vmax.f32 %v2645, %v2487
        %v2647 = vmax.f32 %v2646, %v2493
        %v2648 = vmax.f32 %v2647, %v2497
        %v2649 = vmax.f32 %v2648, %v2503
        %v2650 = vmax.f32 %v2649, %v2507
        %v2651 = vrot.slane %v2650, 4
        %v2652 = vmax.f32 %v2650, %v2651
        %v2653 = vrot.slane %v2652, 2
        %v2654 = vmax.f32 %v2652, %v2653
        %v2655 = vrot.slane %v2654, 1
        %v2656 = vmax.f32 %v2654, %v2655
        %v2657 = vld [vmem:[#allocation2] sm:$0xf]
        %v2662 = vcombine.low %v2545, %v2582
        %v2664 = vunpack.c.l.s4 1983009808
        %v2665 = vunpack.c.0.s8 %v2664
        %v2666 = vlaneseq
        %v2667 = vshrl.u32 %v2666, 7
        %v2668 = vsub.s32 %v2665, %v2667
        %v2669 = vrot.slane %v2662, %v2668
        %v2670 = vcombine.low %v2619, %v2656
        %v2672 = vunpack.c.l.s4 1983009808
        %v2673 = vunpack.c.0.s8 %v2672
        %v2674 = vlaneseq
        %v2675 = vshrl.u32 %v2674, 7
        %v2676 = vsub.s32 %v2673, %v2675
        %v2677 = vrot.slane %v2670, %v2676
        %vm2678 = vcmask 1044484
        %v2679 = vsel %vm2678, %v2669, %v2669
        %vm2680 = vcmask 1046534
        %v2681 = vsel %vm2680, %v2669, %v2679
        %v2682 = vrot.slane %v2677, 7
        %vm2683 = vcmask 1041409
        %v2684 = vsel %vm2683, %v2682, %v2681
        %vm2685 = vcmask 1043459
        %v2686 = vsel %vm2685, %v2682, %v2684
        %vm2687 = vcmask 1045509
        %v2688 = vsel %vm2687, %v2682, %v2686
        %vm2689 = vcmask 1047559
        %v2690 = vsel %vm2689, %v2682, %v2688
        %v2692 = vmax.f32 %v2657, %v2690
        %2693 = vst [vmem:[#allocation2] sm:$0xf] %v2692
        %v2694 = vld [vmem:[%s5 + $0x8] sm:$0xff]
        %v2695 = vld [vmem:[%s5 + $0x28] sm:$0xff]
        %v2696 = vld [vmem:[%s5 + $0x48] sm:$0xff]
        %v2697 = vld [vmem:[%s5 + $0x68] sm:$0xff]
        %v2698 = vld [vmem:[%s5 + $0x88] sm:$0xff]
        %v2699 = vld [vmem:[%s5 + $0xa8] sm:$0xff]
        %v2700 = vld [vmem:[%s5 + $0xc8] sm:$0xff]
        %v2701 = vld [vmem:[%s5 + $0xe8] sm:$0xff]
        %v2702 = vld [vmem:[%s5 + $0x108] sm:$0xff]
        %v2703 = vld [vmem:[%s5 + $0x128] sm:$0xff]
        %v2704 = vld [vmem:[%s5 + $0x148] sm:$0xff]
        %v2705 = vld [vmem:[%s5 + $0x168] sm:$0xff]
        %v2706 = vld [vmem:[%s5 + $0x188] sm:$0xff]
        %v2707 = vld [vmem:[%s5 + $0x1a8] sm:$0xff]
        %v2708 = vld [vmem:[%s5 + $0x1c8] sm:$0xff]
        %v2709 = vld [vmem:[%s5 + $0x1e8] sm:$0xff]
        %v2726 = vunpack.c.l.b16 %v2694
        %v2727 = vunpack.c.h.b16 %v2694
        %v2728 = vunpack.c.l.b16 %v2695
        %v2729 = vunpack.c.h.b16 %v2695
        %v2730 = vunpack.c.l.b16 %v2696
        %v2731 = vunpack.c.h.b16 %v2696
        %v2732 = vunpack.c.l.b16 %v2697
        %v2733 = vunpack.c.h.b16 %v2697
        %v2734 = vunpack.c.l.b16 %v2698
        %v2735 = vunpack.c.h.b16 %v2698
        %v2736 = vunpack.c.l.b16 %v2699
        %v2737 = vunpack.c.h.b16 %v2699
        %v2738 = vunpack.c.l.b16 %v2700
        %v2739 = vunpack.c.h.b16 %v2700
        %v2740 = vunpack.c.l.b16 %v2701
        %v2741 = vunpack.c.h.b16 %v2701
        %v2742 = vunpack.c.l.b16 %v2702
        %v2743 = vunpack.c.h.b16 %v2702
        %v2744 = vunpack.c.l.b16 %v2703
        %v2745 = vunpack.c.h.b16 %v2703
        %v2746 = vunpack.c.l.b16 %v2704
        %v2747 = vunpack.c.h.b16 %v2704
        %v2748 = vunpack.c.l.b16 %v2705
        %v2749 = vunpack.c.h.b16 %v2705
        %v2750 = vunpack.c.l.b16 %v2706
        %v2751 = vunpack.c.h.b16 %v2706
        %v2752 = vunpack.c.l.b16 %v2707
        %v2753 = vunpack.c.h.b16 %v2707
        %v2754 = vunpack.c.l.b16 %v2708
        %v2755 = vunpack.c.h.b16 %v2708
        %v2756 = vunpack.c.l.b16 %v2709
        %v2757 = vunpack.c.h.b16 %v2709
        %v2758 = vpack.c.b16 %v2728, %v2726
        %v2759 = vpack.c.b16 %v2729, %v2727
        %v2760 = vpack.c.b16 %v2732, %v2730
        %v2761 = vpack.c.b16 %v2733, %v2731
        %v2762 = vpack.c.b16 %v2736, %v2734
        %v2763 = vpack.c.b16 %v2737, %v2735
        %v2764 = vpack.c.b16 %v2740, %v2738
        %v2765 = vpack.c.b16 %v2741, %v2739
        %v2766 = vpack.c.b16 %v2744, %v2742
        %v2767 = vpack.c.b16 %v2745, %v2743
        %v2768 = vpack.c.b16 %v2748, %v2746
        %v2769 = vpack.c.b16 %v2749, %v2747
        %v2770 = vpack.c.b16 %v2752, %v2750
        %v2771 = vpack.c.b16 %v2753, %v2751
        %v2772 = vpack.c.b16 %v2756, %v2754
        %v2773 = vpack.c.b16 %v2757, %v2755
        %2790 = vmatprep.subr.bf16.mxu0 %v2759
        %2791 = vmatpush1.bf16.msra.mxu0 %v2758
        %2792 = vmatprep.subr.bf16.mxu0 %v2761
        %2793 = vmatpush1.bf16.msra.mxu0 %v2760
        %2794 = vmatprep.subr.bf16.mxu0 %v2763
        %2795 = vmatpush1.bf16.msra.mxu0 %v2762
        %2796 = vmatprep.subr.bf16.mxu0 %v2765
        %2797 = vmatpush1.bf16.msra.mxu0 %v2764
        %2798 = vmatprep.subr.bf16.mxu0 %v2767
        %2799 = vmatpush1.bf16.msra.mxu0 %v2766
        %2800 = vmatprep.subr.bf16.mxu0 %v2769
        %2801 = vmatpush1.bf16.msra.mxu0 %v2768
        %2802 = vmatprep.subr.bf16.mxu0 %v2771
        %2803 = vmatpush1.bf16.msra.mxu0 %v2770
        %2804 = vmatprep.subr.bf16.mxu0 %v2773
        %2805 = vmatpush1.bf16.msra.mxu0 %v2772
        %2806 = vmatprep.subr.bf16.mxu0 0
        %2807 = vmatpush1.bf16.msra.mxu0 0
        %2808 = vmatprep.subr.bf16.mxu0 0
        %2809 = vmatpush1.bf16.msra.mxu0 0
        %2810 = vmatprep.subr.bf16.mxu0 0
        %2811 = vmatpush1.bf16.msra.mxu0 0
        %2812 = vmatprep.subr.bf16.mxu0 0
        %2813 = vmatpush1.bf16.msra.mxu0 0
        %2814 = vmatprep.subr.bf16.mxu0 0
        %2815 = vmatpush1.bf16.msra.mxu0 0
        %2816 = vmatprep.subr.bf16.mxu0 0
        %2817 = vmatpush1.bf16.msra.mxu0 0
        %2818 = vmatprep.subr.bf16.mxu0 0
        %2819 = vmatpush1.bf16.msra.mxu0 0
        %2820 = vmatprep.subr.bf16.mxu0 0
        %2821 = vmatpush1.bf16.msra.mxu0 0
        %2822 = vmatprep.mubr.bf16.mxu0 0
        %2823 = vmatmul.mubr.bf16.gmra.mrb[0].mxu0 %v2028
        %v2824 = vpop.f32.mrb[0].mxu0
        %v2825 = vadd.f32 0.0, %v2824
        %v2826 = vpop.f32.mrb[0].mxu0
        %v2827 = vadd.f32 0.0, %v2826
        %v2828 = vpop.f32.mrb[0].mxu0
        %v2829 = vadd.f32 0.0, %v2828
        %v2830 = vpop.f32.mrb[0].mxu0
        %v2831 = vadd.f32 0.0, %v2830
        %2832 = vmatprep.mubr.bf16.mxu0 0
        %2833 = vmatmul.mubr.bf16.gmra.mrb[0].mxu0 %v2029
        %v2834 = vpop.f32.mrb[0].mxu0
        %v2835 = vadd.f32 0.0, %v2834
        %v2836 = vpop.f32.mrb[0].mxu0
        %v2837 = vadd.f32 0.0, %v2836
        %v2838 = vpop.f32.mrb[0].mxu0
        %v2839 = vadd.f32 0.0, %v2838
        %v2840 = vpop.f32.mrb[0].mxu0
        %v2841 = vadd.f32 0.0, %v2840
        %2842 = vmatprep.mubr.bf16.mxu0 0
        %2843 = vmatmul.mubr.bf16.gmra.mrb[0].mxu0 %v2030
        %v2844 = vpop.f32.mrb[0].mxu0
        %v2845 = vadd.f32 0.0, %v2844
        %v2846 = vpop.f32.mrb[0].mxu0
        %v2847 = vadd.f32 0.0, %v2846
        %v2848 = vpop.f32.mrb[0].mxu0
        %v2849 = vadd.f32 0.0, %v2848
        %v2850 = vpop.f32.mrb[0].mxu0
        %v2851 = vadd.f32 0.0, %v2850
        %2852 = vmatprep.mubr.bf16.mxu0 0
        %2853 = vmatmul.mubr.bf16.gmra.mrb[0].mxu0 %v2031
        %v2854 = vpop.f32.mrb[0].mxu0
        %v2855 = vadd.f32 0.0, %v2854
        %v2856 = vpop.f32.mrb[0].mxu0
        %v2857 = vadd.f32 0.0, %v2856
        %v2858 = vpop.f32.mrb[0].mxu0
        %v2859 = vadd.f32 0.0, %v2858
        %v2860 = vpop.f32.mrb[0].mxu0
        %v2861 = vadd.f32 0.0, %v2860
        %2862 = vmatprep.mubr.bf16.mxu0 0
        %2863 = vmatmul.mubr.bf16.gmra.mrb[0].mxu0 %v2032
        %v2864 = vpop.f32.mrb[0].mxu0
        %v2865 = vadd.f32 0.0, %v2864
        %v2866 = vpop.f32.mrb[0].mxu0
        %v2867 = vadd.f32 0.0, %v2866
        %v2868 = vpop.f32.mrb[0].mxu0
        %v2869 = vadd.f32 0.0, %v2868
        %v2870 = vpop.f32.mrb[0].mxu0
        %v2871 = vadd.f32 0.0, %v2870
        %2872 = vmatprep.mubr.bf16.mxu0 0
        %2873 = vmatmul.mubr.bf16.gmra.mrb[0].mxu0 %v2033
        %v2874 = vpop.f32.mrb[0].mxu0
        %v2875 = vadd.f32 0.0, %v2874
        %v2876 = vpop.f32.mrb[0].mxu0
        %v2877 = vadd.f32 0.0, %v2876
        %v2878 = vpop.f32.mrb[0].mxu0
        %v2879 = vadd.f32 0.0, %v2878
        %v2880 = vpop.f32.mrb[0].mxu0
        %v2881 = vadd.f32 0.0, %v2880
        %2882 = vmatprep.mubr.bf16.mxu0 0
        %2883 = vmatmul.mubr.bf16.gmra.mrb[0].mxu0 %v2034
        %v2884 = vpop.f32.mrb[0].mxu0
        %v2885 = vadd.f32 0.0, %v2884
        %v2886 = vpop.f32.mrb[0].mxu0
        %v2887 = vadd.f32 0.0, %v2886
        %v2888 = vpop.f32.mrb[0].mxu0
        %v2889 = vadd.f32 0.0, %v2888
        %v2890 = vpop.f32.mrb[0].mxu0
        %v2891 = vadd.f32 0.0, %v2890
        %2892 = vmatprep.mubr.bf16.mxu0 0
        %2893 = vmatmul.mubr.bf16.gmra.mrb[0].mxu0 %v2035
        %v2894 = vpop.f32.mrb[0].mxu0
        %v2895 = vadd.f32 0.0, %v2894
        %v2896 = vpop.f32.mrb[0].mxu0
        %v2897 = vadd.f32 0.0, %v2896
        %v2898 = vpop.f32.mrb[0].mxu0
        %v2899 = vadd.f32 0.0, %v2898
        %v2900 = vpop.f32.mrb[0].mxu0
        %v2901 = vadd.f32 0.0, %v2900
        %2902 = vmatprep.mubr.bf16.mxu0 0
        %2903 = vmatmul.mubr.bf16.gmra.mrb[0].mxu0 %v2036
        %v2904 = vpop.f32.mrb[0].mxu0
        %v2905 = vadd.f32 0.0, %v2904
        %v2906 = vpop.f32.mrb[0].mxu0
        %v2907 = vadd.f32 0.0, %v2906
        %v2908 = vpop.f32.mrb[0].mxu0
        %v2909 = vadd.f32 0.0, %v2908
        %v2910 = vpop.f32.mrb[0].mxu0
        %v2911 = vadd.f32 0.0, %v2910
        %2912 = vmatprep.mubr.bf16.mxu0 0
        %2913 = vmatmul.mubr.bf16.gmra.mrb[0].mxu0 %v2037
        %v2914 = vpop.f32.mrb[0].mxu0
        %v2915 = vadd.f32 0.0, %v2914
        %v2916 = vpop.f32.mrb[0].mxu0
        %v2917 = vadd.f32 0.0, %v2916
        %v2918 = vpop.f32.mrb[0].mxu0
        %v2919 = vadd.f32 0.0, %v2918
        %v2920 = vpop.f32.mrb[0].mxu0
        %v2921 = vadd.f32 0.0, %v2920
        %2922 = vmatprep.mubr.bf16.mxu0 0
        %2923 = vmatmul.mubr.bf16.gmra.mrb[0].mxu0 %v2038
        %v2924 = vpop.f32.mrb[0].mxu0
        %v2925 = vadd.f32 0.0, %v2924
        %v2926 = vpop.f32.mrb[0].mxu0
        %v2927 = vadd.f32 0.0, %v2926
        %v2928 = vpop.f32.mrb[0].mxu0
        %v2929 = vadd.f32 0.0, %v2928
        %v2930 = vpop.f32.mrb[0].mxu0
        %v2931 = vadd.f32 0.0, %v2930
        %2932 = vmatprep.mubr.bf16.mxu0 0
        %2933 = vmatmul.mubr.bf16.gmra.mrb[0].mxu0 %v2039
        %v2934 = vpop.f32.mrb[0].mxu0
        %v2935 = vadd.f32 0.0, %v2934
        %v2936 = vpop.f32.mrb[0].mxu0
        %v2937 = vadd.f32 0.0, %v2936
        %v2938 = vpop.f32.mrb[0].mxu0
        %v2939 = vadd.f32 0.0, %v2938
        %v2940 = vpop.f32.mrb[0].mxu0
        %v2941 = vadd.f32 0.0, %v2940
        %2942 = vmatprep.mubr.bf16.mxu0 0
        %2943 = vmatmul.mubr.bf16.gmra.mrb[0].mxu0 %v2040
        %v2944 = vpop.f32.mrb[0].mxu0
        %v2945 = vadd.f32 0.0, %v2944
        %v2946 = vpop.f32.mrb[0].mxu0
        %v2947 = vadd.f32 0.0, %v2946
        %v2948 = vpop.f32.mrb[0].mxu0
        %v2949 = vadd.f32 0.0, %v2948
        %v2950 = vpop.f32.mrb[0].mxu0
        %v2951 = vadd.f32 0.0, %v2950
        %2952 = vmatprep.mubr.bf16.mxu0 0
        %2953 = vmatmul.mubr.bf16.gmra.mrb[0].mxu0 %v2041
        %v2954 = vpop.f32.mrb[0].mxu0
        %v2955 = vadd.f32 0.0, %v2954
        %v2956 = vpop.f32.mrb[0].mxu0
        %v2957 = vadd.f32 0.0, %v2956
        %v2958 = vpop.f32.mrb[0].mxu0
        %v2959 = vadd.f32 0.0, %v2958
        %v2960 = vpop.f32.mrb[0].mxu0
        %v2961 = vadd.f32 0.0, %v2960
        %2962 = vmatprep.mubr.bf16.mxu0 0
        %2963 = vmatmul.mubr.bf16.gmra.mrb[0].mxu0 %v2042
        %v2964 = vpop.f32.mrb[0].mxu0
        %v2965 = vadd.f32 0.0, %v2964
        %v2966 = vpop.f32.mrb[0].mxu0
        %v2967 = vadd.f32 0.0, %v2966
        %v2968 = vpop.f32.mrb[0].mxu0
        %v2969 = vadd.f32 0.0, %v2968
        %v2970 = vpop.f32.mrb[0].mxu0
        %v2971 = vadd.f32 0.0, %v2970
        %2972 = vmatprep.mubr.bf16.mxu0 0
        %2973 = vmatmul.mubr.bf16.gmra.mrb[0].mxu0 %v2043
        %v2974 = vpop.f32.mrb[0].mxu0
        %v2975 = vadd.f32 0.0, %v2974
        %v2976 = vpop.f32.mrb[0].mxu0
        %v2977 = vadd.f32 0.0, %v2976
        %v2978 = vpop.f32.mrb[0].mxu0
        %v2979 = vadd.f32 0.0, %v2978
        %v2980 = vpop.f32.mrb[0].mxu0
        %v2981 = vadd.f32 0.0, %v2980
        %2982 = vmatprep.mubr.bf16.mxu0 0
        %2983 = vmatmul.mubr.bf16.gmra.mrb[0].mxu0 %v2044
        %v2984 = vpop.f32.mrb[0].mxu0
        %v2985 = vadd.f32 0.0, %v2984
        %v2986 = vpop.f32.mrb[0].mxu0
        %v2987 = vadd.f32 0.0, %v2986
        %v2988 = vpop.f32.mrb[0].mxu0
        %v2989 = vadd.f32 0.0, %v2988
        %v2990 = vpop.f32.mrb[0].mxu0
        %v2991 = vadd.f32 0.0, %v2990
        %2992 = vmatprep.mubr.bf16.mxu0 0
        %2993 = vmatmul.mubr.bf16.gmra.mrb[0].mxu0 %v2045
        %v2994 = vpop.f32.mrb[0].mxu0
        %v2995 = vadd.f32 0.0, %v2994
        %v2996 = vpop.f32.mrb[0].mxu0
        %v2997 = vadd.f32 0.0, %v2996
        %v2998 = vpop.f32.mrb[0].mxu0
        %v2999 = vadd.f32 0.0, %v2998
        %v3000 = vpop.f32.mrb[0].mxu0
        %v3001 = vadd.f32 0.0, %v3000
        %3002 = vmatprep.mubr.bf16.mxu0 0
        %3003 = vmatmul.mubr.bf16.gmra.mrb[0].mxu0 %v2046
        %v3004 = vpop.f32.mrb[0].mxu0
        %v3005 = vadd.f32 0.0, %v3004
        %v3006 = vpop.f32.mrb[0].mxu0
        %v3007 = vadd.f32 0.0, %v3006
        %v3008 = vpop.f32.mrb[0].mxu0
        %v3009 = vadd.f32 0.0, %v3008
        %v3010 = vpop.f32.mrb[0].mxu0
        %v3011 = vadd.f32 0.0, %v3010
        %3012 = vmatprep.mubr.bf16.mxu0 0
        %3013 = vmatmul.mubr.bf16.gmra.mrb[0].mxu0 %v2047
        %v3014 = vpop.f32.mrb[0].mxu0
        %v3015 = vadd.f32 0.0, %v3014
        %v3016 = vpop.f32.mrb[0].mxu0
        %v3017 = vadd.f32 0.0, %v3016
        %v3018 = vpop.f32.mrb[0].mxu0
        %v3019 = vadd.f32 0.0, %v3018
        %v3020 = vpop.f32.mrb[0].mxu0
        %v3021 = vadd.f32 0.0, %v3020
        %3022 = vmatprep.mubr.bf16.mxu0 0
        %3023 = vmatmul.mubr.bf16.gmra.mrb[0].mxu0 %v2048
        %v3024 = vpop.f32.mrb[0].mxu0
        %v3025 = vadd.f32 0.0, %v3024
        %v3026 = vpop.f32.mrb[0].mxu0
        %v3027 = vadd.f32 0.0, %v3026
        %v3028 = vpop.f32.mrb[0].mxu0
        %v3029 = vadd.f32 0.0, %v3028
        %v3030 = vpop.f32.mrb[0].mxu0
        %v3031 = vadd.f32 0.0, %v3030
        %3032 = vmatprep.mubr.bf16.mxu0 0
        %3033 = vmatmul.mubr.bf16.gmra.mrb[0].mxu0 %v2049
        %v3034 = vpop.f32.mrb[0].mxu0
        %v3035 = vadd.f32 0.0, %v3034
        %v3036 = vpop.f32.mrb[0].mxu0
        %v3037 = vadd.f32 0.0, %v3036
        %v3038 = vpop.f32.mrb[0].mxu0
        %v3039 = vadd.f32 0.0, %v3038
        %v3040 = vpop.f32.mrb[0].mxu0
        %v3041 = vadd.f32 0.0, %v3040
        %3042 = vmatprep.mubr.bf16.mxu0 0
        %3043 = vmatmul.mubr.bf16.gmra.mrb[0].mxu0 %v2050
        %v3044 = vpop.f32.mrb[0].mxu0
        %v3045 = vadd.f32 0.0, %v3044
        %v3046 = vpop.f32.mrb[0].mxu0
        %v3047 = vadd.f32 0.0, %v3046
        %v3048 = vpop.f32.mrb[0].mxu0
        %v3049 = vadd.f32 0.0, %v3048
        %v3050 = vpop.f32.mrb[0].mxu0
        %v3051 = vadd.f32 0.0, %v3050
        %3052 = vmatprep.mubr.bf16.mxu0 0
        %3053 = vmatmul.mubr.bf16.gmra.mrb[0].mxu0 %v2051
        %v3054 = vpop.f32.mrb[0].mxu0
        %v3055 = vadd.f32 0.0, %v3054
        %v3056 = vpop.f32.mrb[0].mxu0
        %v3057 = vadd.f32 0.0, %v3056
        %v3058 = vpop.f32.mrb[0].mxu0
        %v3059 = vadd.f32 0.0, %v3058
        %v3060 = vpop.f32.mrb[0].mxu0
        %v3061 = vadd.f32 0.0, %v3060
        %3062 = vmatprep.mubr.bf16.mxu0 0
        %3063 = vmatmul.mubr.bf16.gmra.mrb[0].mxu0 %v2052
        %v3064 = vpop.f32.mrb[0].mxu0
        %v3065 = vadd.f32 0.0, %v3064
        %v3066 = vpop.f32.mrb[0].mxu0
        %v3067 = vadd.f32 0.0, %v3066
        %v3068 = vpop.f32.mrb[0].mxu0
        %v3069 = vadd.f32 0.0, %v3068
        %v3070 = vpop.f32.mrb[0].mxu0
        %v3071 = vadd.f32 0.0, %v3070
        %3072 = vmatprep.mubr.bf16.mxu0 0
        %3073 = vmatmul.mubr.bf16.gmra.mrb[0].mxu0 %v2053
        %v3074 = vpop.f32.mrb[0].mxu0
        %v3075 = vadd.f32 0.0, %v3074
        %v3076 = vpop.f32.mrb[0].mxu0
        %v3077 = vadd.f32 0.0, %v3076
        %v3078 = vpop.f32.mrb[0].mxu0
        %v3079 = vadd.f32 0.0, %v3078
        %v3080 = vpop.f32.mrb[0].mxu0
        %v3081 = vadd.f32 0.0, %v3080
        %3082 = vmatprep.mubr.bf16.mxu0 0
        %3083 = vmatmul.mubr.bf16.gmra.mrb[0].mxu0 %v2054
        %v3084 = vpop.f32.mrb[0].mxu0
        %v3085 = vadd.f32 0.0, %v3084
        %v3086 = vpop.f32.mrb[0].mxu0
        %v3087 = vadd.f32 0.0, %v3086
        %v3088 = vpop.f32.mrb[0].mxu0
        %v3089 = vadd.f32 0.0, %v3088
        %v3090 = vpop.f32.mrb[0].mxu0
        %v3091 = vadd.f32 0.0, %v3090
        %3092 = vmatprep.mubr.bf16.mxu0 0
        %3093 = vmatmul.mubr.bf16.gmra.mrb[0].mxu0 %v2055
        %v3094 = vpop.f32.mrb[0].mxu0
        %v3095 = vadd.f32 0.0, %v3094
        %v3096 = vpop.f32.mrb[0].mxu0
        %v3097 = vadd.f32 0.0, %v3096
        %v3098 = vpop.f32.mrb[0].mxu0
        %v3099 = vadd.f32 0.0, %v3098
        %v3100 = vpop.f32.mrb[0].mxu0
        %v3101 = vadd.f32 0.0, %v3100
        %3102 = vmatprep.mubr.bf16.mxu0 0
        %3103 = vmatmul.mubr.bf16.gmra.mrb[0].mxu0 %v2056
        %v3104 = vpop.f32.mrb[0].mxu0
        %v3105 = vadd.f32 0.0, %v3104
        %v3106 = vpop.f32.mrb[0].mxu0
        %v3107 = vadd.f32 0.0, %v3106
        %v3108 = vpop.f32.mrb[0].mxu0
        %v3109 = vadd.f32 0.0, %v3108
        %v3110 = vpop.f32.mrb[0].mxu0
        %v3111 = vadd.f32 0.0, %v3110
        %3112 = vmatprep.mubr.bf16.mxu0 0
        %3113 = vmatmul.mubr.bf16.gmra.mrb[0].mxu0 %v2057
        %v3114 = vpop.f32.mrb[0].mxu0
        %v3115 = vadd.f32 0.0, %v3114
        %v3116 = vpop.f32.mrb[0].mxu0
        %v3117 = vadd.f32 0.0, %v3116
        %v3118 = vpop.f32.mrb[0].mxu0
        %v3119 = vadd.f32 0.0, %v3118
        %v3120 = vpop.f32.mrb[0].mxu0
        %v3121 = vadd.f32 0.0, %v3120
        %3122 = vmatprep.mubr.bf16.mxu0 0
        %3123 = vmatmul.mubr.bf16.gmra.mrb[0].mxu0 %v2058
        %v3124 = vpop.f32.mrb[0].mxu0
        %v3125 = vadd.f32 0.0, %v3124
        %v3126 = vpop.f32.mrb[0].mxu0
        %v3127 = vadd.f32 0.0, %v3126
        %v3128 = vpop.f32.mrb[0].mxu0
        %v3129 = vadd.f32 0.0, %v3128
        %v3130 = vpop.f32.mrb[0].mxu0
        %v3131 = vadd.f32 0.0, %v3130
        %3132 = vmatprep.mubr.bf16.mxu0 0
        %3133 = vmatmul.mubr.bf16.gmra.mrb[0].mxu0 %v2059
        %v3134 = vpop.f32.mrb[0].mxu0
        %v3135 = vadd.f32 0.0, %v3134
        %v3136 = vpop.f32.mrb[0].mxu0
        %v3137 = vadd.f32 0.0, %v3136
        %v3138 = vpop.f32.mrb[0].mxu0
        %v3139 = vadd.f32 0.0, %v3138
        %v3140 = vpop.f32.mrb[0].mxu0
        %v3141 = vadd.f32 0.0, %v3140
        %3142 = vdwg.mxu0
        %v3143 = vmax.f32 %v2825, %v2829
        %v3144 = vmax.f32 %v3143, %v2835
        %v3145 = vmax.f32 %v3144, %v2839
        %v3146 = vmax.f32 %v3145, %v2845
        %v3147 = vmax.f32 %v3146, %v2849
        %v3148 = vmax.f32 %v3147, %v2855
        %v3149 = vmax.f32 %v3148, %v2859
        %v3150 = vmax.f32 %v3149, %v2865
        %v3151 = vmax.f32 %v3150, %v2869
        %v3152 = vmax.f32 %v3151, %v2875
        %v3153 = vmax.f32 %v3152, %v2879
        %v3154 = vmax.f32 %v3153, %v2885
        %v3155 = vmax.f32 %v3154, %v2889
        %v3156 = vmax.f32 %v3155, %v2895
        %v3157 = vmax.f32 %v3156, %v2899
        %v3158 = vmax.f32 %v3157, %v2905
        %v3159 = vmax.f32 %v3158, %v2909
        %v3160 = vmax.f32 %v3159, %v2915
        %v3161 = vmax.f32 %v3160, %v2919
        %v3162 = vmax.f32 %v3161, %v2925
        %v3163 = vmax.f32 %v3162, %v2929
        %v3164 = vmax.f32 %v3163, %v2935
        %v3165 = vmax.f32 %v3164, %v2939
        %v3166 = vmax.f32 %v3165, %v2945
        %v3167 = vmax.f32 %v3166, %v2949
        %v3168 = vmax.f32 %v3167, %v2955
        %v3169 = vmax.f32 %v3168, %v2959
        %v3170 = vmax.f32 %v3169, %v2965
        %v3171 = vmax.f32 %v3170, %v2969
        %v3172 = vmax.f32 %v3171, %v2975
        %v3173 = vmax.f32 %v3172, %v2979
        %v3174 = vrot.slane %v3173, 4
        %v3175 = vmax.f32 %v3173, %v3174
        %v3176 = vrot.slane %v3175, 2
        %v3177 = vmax.f32 %v3175, %v3176
        %v3178 = vrot.slane %v3177, 1
        %v3179 = vmax.f32 %v3177, %v3178
        %v3180 = vmax.f32 %v2827, %v2831
        %v3181 = vmax.f32 %v3180, %v2837
        %v3182 = vmax.f32 %v3181, %v2841
        %v3183 = vmax.f32 %v3182, %v2847
        %v3184 = vmax.f32 %v3183, %v2851
        %v3185 = vmax.f32 %v3184, %v2857
        %v3186 = vmax.f32 %v3185, %v2861
        %v3187 = vmax.f32 %v3186, %v2867
        %v3188 = vmax.f32 %v3187, %v2871
        %v3189 = vmax.f32 %v3188, %v2877
        %v3190 = vmax.f32 %v3189, %v2881
        %v3191 = vmax.f32 %v3190, %v2887
        %v3192 = vmax.f32 %v3191, %v2891
        %v3193 = vmax.f32 %v3192, %v2897
        %v3194 = vmax.f32 %v3193, %v2901
        %v3195 = vmax.f32 %v3194, %v2907
        %v3196 = vmax.f32 %v3195, %v2911
        %v3197 = vmax.f32 %v3196, %v2917
        %v3198 = vmax.f32 %v3197, %v2921
        %v3199 = vmax.f32 %v3198, %v2927
        %v3200 = vmax.f32 %v3199, %v2931
        %v3201 = vmax.f32 %v3200, %v2937
        %v3202 = vmax.f32 %v3201, %v2941
        %v3203 = vmax.f32 %v3202, %v2947
        %v3204 = vmax.f32 %v3203, %v2951
        %v3205 = vmax.f32 %v3204, %v2957
        %v3206 = vmax.f32 %v3205, %v2961
        %v3207 = vmax.f32 %v3206, %v2967
        %v3208 = vmax.f32 %v3207, %v2971
        %v3209 = vmax.f32 %v3208, %v2977
        %v3210 = vmax.f32 %v3209, %v2981
        %v3211 = vrot.slane %v3210, 4
        %v3212 = vmax.f32 %v3210, %v3211
        %v3213 = vrot.slane %v3212, 2
        %v3214 = vmax.f32 %v3212, %v3213
        %v3215 = vrot.slane %v3214, 1
        %v3216 = vmax.f32 %v3214, %v3215
        %v3217 = vmax.f32 %v2985, %v2989
        %v3218 = vmax.f32 %v3217, %v2995
        %v3219 = vmax.f32 %v3218, %v2999
        %v3220 = vmax.f32 %v3219, %v3005
        %v3221 = vmax.f32 %v3220, %v3009
        %v3222 = vmax.f32 %v3221, %v3015
        %v3223 = vmax.f32 %v3222, %v3019
        %v3224 = vmax.f32 %v3223, %v3025
        %v3225 = vmax.f32 %v3224, %v3029
        %v3226 = vmax.f32 %v3225, %v3035
        %v3227 = vmax.f32 %v3226, %v3039
        %v3228 = vmax.f32 %v3227, %v3045
        %v3229 = vmax.f32 %v3228, %v3049
        %v3230 = vmax.f32 %v3229, %v3055
        %v3231 = vmax.f32 %v3230, %v3059
        %v3232 = vmax.f32 %v3231, %v3065
        %v3233 = vmax.f32 %v3232, %v3069
        %v3234 = vmax.f32 %v3233, %v3075
        %v3235 = vmax.f32 %v3234, %v3079
        %v3236 = vmax.f32 %v3235, %v3085
        %v3237 = vmax.f32 %v3236, %v3089
        %v3238 = vmax.f32 %v3237, %v3095
        %v3239 = vmax.f32 %v3238, %v3099
        %v3240 = vmax.f32 %v3239, %v3105
        %v3241 = vmax.f32 %v3240, %v3109
        %v3242 = vmax.f32 %v3241, %v3115
        %v3243 = vmax.f32 %v3242, %v3119
        %v3244 = vmax.f32 %v3243, %v3125
        %v3245 = vmax.f32 %v3244, %v3129
        %v3246 = vmax.f32 %v3245, %v3135
        %v3247 = vmax.f32 %v3246, %v3139
        %v3248 = vrot.slane %v3247, 4
        %v3249 = vmax.f32 %v3247, %v3248
        %v3250 = vrot.slane %v3249, 2
        %v3251 = vmax.f32 %v3249, %v3250
        %v3252 = vrot.slane %v3251, 1
        %v3253 = vmax.f32 %v3251, %v3252
        %v3254 = vmax.f32 %v2987, %v2991
        %v3255 = vmax.f32 %v3254, %v2997
        %v3256 = vmax.f32 %v3255, %v3001
        %v3257 = vmax.f32 %v3256, %v3007
        %v3258 = vmax.f32 %v3257, %v3011
        %v3259 = vmax.f32 %v3258, %v3017
        %v3260 = vmax.f32 %v3259, %v3021
        %v3261 = vmax.f32 %v3260, %v3027
        %v3262 = vmax.f32 %v3261, %v3031
        %v3263 = vmax.f32 %v3262, %v3037
        %v3264 = vmax.f32 %v3263, %v3041
        %v3265 = vmax.f32 %v3264, %v3047
        %v3266 = vmax.f32 %v3265, %v3051
        %v3267 = vmax.f32 %v3266, %v3057
        %v3268 = vmax.f32 %v3267, %v3061
        %v3269 = vmax.f32 %v3268, %v3067
        %v3270 = vmax.f32 %v3269, %v3071
        %v3271 = vmax.f32 %v3270, %v3077
        %v3272 = vmax.f32 %v3271, %v3081
        %v3273 = vmax.f32 %v3272, %v3087
        %v3274 = vmax.f32 %v3273, %v3091
        %v3275 = vmax.f32 %v3274, %v3097
        %v3276 = vmax.f32 %v3275, %v3101
        %v3277 = vmax.f32 %v3276, %v3107
        %v3278 = vmax.f32 %v3277, %v3111
        %v3279 = vmax.f32 %v3278, %v3117
        %v3280 = vmax.f32 %v3279, %v3121
        %v3281 = vmax.f32 %v3280, %v3127
        %v3282 = vmax.f32 %v3281, %v3131
        %v3283 = vmax.f32 %v3282, %v3137
        %v3284 = vmax.f32 %v3283, %v3141
        %v3285 = vrot.slane %v3284, 4
        %v3286 = vmax.f32 %v3284, %v3285
        %v3287 = vrot.slane %v3286, 2
        %v3288 = vmax.f32 %v3286, %v3287
        %v3289 = vrot.slane %v3288, 1
        %v3290 = vmax.f32 %v3288, %v3289
        %v3291 = vld [vmem:[#allocation2 + $0x4] sm:$0xf]
        %v3296 = vcombine.low %v3179, %v3216
        %v3298 = vunpack.c.l.s4 1983009808
        %v3299 = vunpack.c.0.s8 %v3298
        %v3300 = vlaneseq
        %v3301 = vshrl.u32 %v3300, 7
        %v3302 = vsub.s32 %v3299, %v3301
        %v3303 = vrot.slane %v3296, %v3302
        %v3304 = vcombine.low %v3253, %v3290
        %v3306 = vunpack.c.l.s4 1983009808
        %v3307 = vunpack.c.0.s8 %v3306
        %v3308 = vlaneseq
        %v3309 = vshrl.u32 %v3308, 7
        %v3310 = vsub.s32 %v3307, %v3309
        %v3311 = vrot.slane %v3304, %v3310
        %v3312 = vsel %vm2678, %v3303, %v3303
        %v3313 = vsel %vm2680, %v3303, %v3312
        %v3314 = vrot.slane %v3311, 7
        %v3315 = vsel %vm2683, %v3314, %v3313
        %v3316 = vsel %vm2685, %v3314, %v3315
        %v3317 = vsel %vm2687, %v3314, %v3316
        %v3318 = vsel %vm2689, %v3314, %v3317
        %v3320 = vmax.f32 %v3291, %v3318
        %3321 = vst [vmem:[#allocation2 + $0x4] sm:$0xf] %v3320
        %v3322 = vld [vmem:[%s5 + $0x10] sm:$0xff]
        %v3323 = vld [vmem:[%s5 + $0x30] sm:$0xff]
        %v3324 = vld [vmem:[%s5 + $0x50] sm:$0xff]
        %v3325 = vld [vmem:[%s5 + $0x70] sm:$0xff]
        %v3326 = vld [vmem:[%s5 + $0x90] sm:$0xff]
        %v3327 = vld [vmem:[%s5 + $0xb0] sm:$0xff]
        %v3328 = vld [vmem:[%s5 + $0xd0] sm:$0xff]
        %v3329 = vld [vmem:[%s5 + $0xf0] sm:$0xff]
        %v3330 = vld [vmem:[%s5 + $0x110] sm:$0xff]
        %v3331 = vld [vmem:[%s5 + $0x130] sm:$0xff]
        %v3332 = vld [vmem:[%s5 + $0x150] sm:$0xff]
        %v3333 = vld [vmem:[%s5 + $0x170] sm:$0xff]
        %v3334 = vld [vmem:[%s5 + $0x190] sm:$0xff]
        %v3335 = vld [vmem:[%s5 + $0x1b0] sm:$0xff]
        %v3336 = vld [vmem:[%s5 + $0x1d0] sm:$0xff]
        %v3337 = vld [vmem:[%s5 + $0x1f0] sm:$0xff]
        %v3354 = vunpack.c.l.b16 %v3322
        %v3355 = vunpack.c.h.b16 %v3322
        %v3356 = vunpack.c.l.b16 %v3323
        %v3357 = vunpack.c.h.b16 %v3323
        %v3358 = vunpack.c.l.b16 %v3324
        %v3359 = vunpack.c.h.b16 %v3324
        %v3360 = vunpack.c.l.b16 %v3325
        %v3361 = vunpack.c.h.b16 %v3325
        %v3362 = vunpack.c.l.b16 %v3326
        %v3363 = vunpack.c.h.b16 %v3326
        %v3364 = vunpack.c.l.b16 %v3327
        %v3365 = vunpack.c.h.b16 %v3327
        %v3366 = vunpack.c.l.b16 %v3328
        %v3367 = vunpack.c.h.b16 %v3328
        %v3368 = vunpack.c.l.b16 %v3329
        %v3369 = vunpack.c.h.b16 %v3329
        %v3370 = vunpack.c.l.b16 %v3330
        %v3371 = vunpack.c.h.b16 %v3330
        %v3372 = vunpack.c.l.b16 %v3331
        %v3373 = vunpack.c.h.b16 %v3331
        %v3374 = vunpack.c.l.b16 %v3332
        %v3375 = vunpack.c.h.b16 %v3332
        %v3376 = vunpack.c.l.b16 %v3333
        %v3377 = vunpack.c.h.b16 %v3333
        %v3378 = vunpack.c.l.b16 %v3334
        %v3379 = vunpack.c.h.b16 %v3334
        %v3380 = vunpack.c.l.b16 %v3335
        %v3381 = vunpack.c.h.b16 %v3335
        %v3382 = vunpack.c.l.b16 %v3336
        %v3383 = vunpack.c.h.b16 %v3336
        %v3384 = vunpack.c.l.b16 %v3337
        %v3385 = vunpack.c.h.b16 %v3337
        %v3386 = vpack.c.b16 %v3356, %v3354
        %v3387 = vpack.c.b16 %v3357, %v3355
        %v3388 = vpack.c.b16 %v3360, %v3358
        %v3389 = vpack.c.b16 %v3361, %v3359
        %v3390 = vpack.c.b16 %v3364, %v3362
        %v3391 = vpack.c.b16 %v3365, %v3363
        %v3392 = vpack.c.b16 %v3368, %v3366
        %v3393 = vpack.c.b16 %v3369, %v3367
        %v3394 = vpack.c.b16 %v3372, %v3370
        %v3395 = vpack.c.b16 %v3373, %v3371
        %v3396 = vpack.c.b16 %v3376, %v3374
        %v3397 = vpack.c.b16 %v3377, %v3375
        %v3398 = vpack.c.b16 %v3380, %v3378
        %v3399 = vpack.c.b16 %v3381, %v3379
        %v3400 = vpack.c.b16 %v3384, %v3382
        %v3401 = vpack.c.b16 %v3385, %v3383
        %3418 = vmatprep.subr.bf16.mxu0 %v3387
        %3419 = vmatpush1.bf16.msra.mxu0 %v3386
        %3420 = vmatprep.subr.bf16.mxu0 %v3389
        %3421 = vmatpush1.bf16.msra.mxu0 %v3388
        %3422 = vmatprep.subr.bf16.mxu0 %v3391
        %3423 = vmatpush1.bf16.msra.mxu0 %v3390
        %3424 = vmatprep.subr.bf16.mxu0 %v3393
        %3425 = vmatpush1.bf16.msra.mxu0 %v3392
        %3426 = vmatprep.subr.bf16.mxu0 %v3395
        %3427 = vmatpush1.bf16.msra.mxu0 %v3394
        %3428 = vmatprep.subr.bf16.mxu0 %v3397
        %3429 = vmatpush1.bf16.msra.mxu0 %v3396
        %3430 = vmatprep.subr.bf16.mxu0 %v3399
        %3431 = vmatpush1.bf16.msra.mxu0 %v3398
        %3432 = vmatprep.subr.bf16.mxu0 %v3401
        %3433 = vmatpush1.bf16.msra.mxu0 %v3400
        %3434 = vmatprep.subr.bf16.mxu0 0
        %3435 = vmatpush1.bf16.msra.mxu0 0
        %3436 = vmatprep.subr.bf16.mxu0 0
        %3437 = vmatpush1.bf16.msra.mxu0 0
        %3438 = vmatprep.subr.bf16.mxu0 0
        %3439 = vmatpush1.bf16.msra.mxu0 0
        %3440 = vmatprep.subr.bf16.mxu0 0
        %3441 = vmatpush1.bf16.msra.mxu0 0
        %3442 = vmatprep.subr.bf16.mxu0 0
        %3443 = vmatpush1.bf16.msra.mxu0 0
        %3444 = vmatprep.subr.bf16.mxu0 0
        %3445 = vmatpush1.bf16.msra.mxu0 0
        %3446 = vmatprep.subr.bf16.mxu0 0
        %3447 = vmatpush1.bf16.msra.mxu0 0
        %3448 = vmatprep.subr.bf16.mxu0 0
        %3449 = vmatpush1.bf16.msra.mxu0 0
        %3450 = vmatprep.mubr.bf16.mxu0 0
        %3451 = vmatmul.mubr.bf16.gmra.mrb[0].mxu0 %v2028
        %v3452 = vpop.f32.mrb[0].mxu0
        %v3453 = vadd.f32 0.0, %v3452
        %v3454 = vpop.f32.mrb[0].mxu0
        %v3455 = vadd.f32 0.0, %v3454
        %v3456 = vpop.f32.mrb[0].mxu0
        %v3457 = vadd.f32 0.0, %v3456
        %v3458 = vpop.f32.mrb[0].mxu0
        %v3459 = vadd.f32 0.0, %v3458
        %3460 = vmatprep.mubr.bf16.mxu0 0
        %3461 = vmatmul.mubr.bf16.gmra.mrb[0].mxu0 %v2029
        %v3462 = vpop.f32.mrb[0].mxu0
        %v3463 = vadd.f32 0.0, %v3462
        %v3464 = vpop.f32.mrb[0].mxu0
        %v3465 = vadd.f32 0.0, %v3464
        %v3466 = vpop.f32.mrb[0].mxu0
        %v3467 = vadd.f32 0.0, %v3466
        %v3468 = vpop.f32.mrb[0].mxu0
        %v3469 = vadd.f32 0.0, %v3468
        %3470 = vmatprep.mubr.bf16.mxu0 0
        %3471 = vmatmul.mubr.bf16.gmra.mrb[0].mxu0 %v2030
        %v3472 = vpop.f32.mrb[0].mxu0
        %v3473 = vadd.f32 0.0, %v3472
        %v3474 = vpop.f32.mrb[0].mxu0
        %v3475 = vadd.f32 0.0, %v3474
        %v3476 = vpop.f32.mrb[0].mxu0
        %v3477 = vadd.f32 0.0, %v3476
        %v3478 = vpop.f32.mrb[0].mxu0
        %v3479 = vadd.f32 0.0, %v3478
        %3480 = vmatprep.mubr.bf16.mxu0 0
        %3481 = vmatmul.mubr.bf16.gmra.mrb[0].mxu0 %v2031
        %v3482 = vpop.f32.mrb[0].mxu0
        %v3483 = vadd.f32 0.0, %v3482
        %v3484 = vpop.f32.mrb[0].mxu0
        %v3485 = vadd.f32 0.0, %v3484
        %v3486 = vpop.f32.mrb[0].mxu0
        %v3487 = vadd.f32 0.0, %v3486
        %v3488 = vpop.f32.mrb[0].mxu0
        %v3489 = vadd.f32 0.0, %v3488
        %3490 = vmatprep.mubr.bf16.mxu0 0
        %3491 = vmatmul.mubr.bf16.gmra.mrb[0].mxu0 %v2032
        %v3492 = vpop.f32.mrb[0].mxu0
        %v3493 = vadd.f32 0.0, %v3492
        %v3494 = vpop.f32.mrb[0].mxu0
        %v3495 = vadd.f32 0.0, %v3494
        %v3496 = vpop.f32.mrb[0].mxu0
        %v3497 = vadd.f32 0.0, %v3496
        %v3498 = vpop.f32.mrb[0].mxu0
        %v3499 = vadd.f32 0.0, %v3498
        %3500 = vmatprep.mubr.bf16.mxu0 0
        %3501 = vmatmul.mubr.bf16.gmra.mrb[0].mxu0 %v2033
        %v3502 = vpop.f32.mrb[0].mxu0
        %v3503 = vadd.f32 0.0, %v3502
        %v3504 = vpop.f32.mrb[0].mxu0
        %v3505 = vadd.f32 0.0, %v3504
        %v3506 = vpop.f32.mrb[0].mxu0
        %v3507 = vadd.f32 0.0, %v3506
        %v3508 = vpop.f32.mrb[0].mxu0
        %v3509 = vadd.f32 0.0, %v3508
        %3510 = vmatprep.mubr.bf16.mxu0 0
        %3511 = vmatmul.mubr.bf16.gmra.mrb[0].mxu0 %v2034
        %v3512 = vpop.f32.mrb[0].mxu0
        %v3513 = vadd.f32 0.0, %v3512
        %v3514 = vpop.f32.mrb[0].mxu0
        %v3515 = vadd.f32 0.0, %v3514
        %v3516 = vpop.f32.mrb[0].mxu0
        %v3517 = vadd.f32 0.0, %v3516
        %v3518 = vpop.f32.mrb[0].mxu0
        %v3519 = vadd.f32 0.0, %v3518
        %3520 = vmatprep.mubr.bf16.mxu0 0
        %3521 = vmatmul.mubr.bf16.gmra.mrb[0].mxu0 %v2035
        %v3522 = vpop.f32.mrb[0].mxu0
        %v3523 = vadd.f32 0.0, %v3522
        %v3524 = vpop.f32.mrb[0].mxu0
        %v3525 = vadd.f32 0.0, %v3524
        %v3526 = vpop.f32.mrb[0].mxu0
        %v3527 = vadd.f32 0.0, %v3526
        %v3528 = vpop.f32.mrb[0].mxu0
        %v3529 = vadd.f32 0.0, %v3528
        %3530 = vmatprep.mubr.bf16.mxu0 0
        %3531 = vmatmul.mubr.bf16.gmra.mrb[0].mxu0 %v2036
        %v3532 = vpop.f32.mrb[0].mxu0
        %v3533 = vadd.f32 0.0, %v3532
        %v3534 = vpop.f32.mrb[0].mxu0
        %v3535 = vadd.f32 0.0, %v3534
        %v3536 = vpop.f32.mrb[0].mxu0
        %v3537 = vadd.f32 0.0, %v3536
        %v3538 = vpop.f32.mrb[0].mxu0
        %v3539 = vadd.f32 0.0, %v3538
        %3540 = vmatprep.mubr.bf16.mxu0 0
        %3541 = vmatmul.mubr.bf16.gmra.mrb[0].mxu0 %v2037
        %v3542 = vpop.f32.mrb[0].mxu0
        %v3543 = vadd.f32 0.0, %v3542
        %v3544 = vpop.f32.mrb[0].mxu0
        %v3545 = vadd.f32 0.0, %v3544
        %v3546 = vpop.f32.mrb[0].mxu0
        %v3547 = vadd.f32 0.0, %v3546
        %v3548 = vpop.f32.mrb[0].mxu0
        %v3549 = vadd.f32 0.0, %v3548
        %3550 = vmatprep.mubr.bf16.mxu0 0
        %3551 = vmatmul.mubr.bf16.gmra.mrb[0].mxu0 %v2038
        %v3552 = vpop.f32.mrb[0].mxu0
        %v3553 = vadd.f32 0.0, %v3552
        %v3554 = vpop.f32.mrb[0].mxu0
        %v3555 = vadd.f32 0.0, %v3554
        %v3556 = vpop.f32.mrb[0].mxu0
        %v3557 = vadd.f32 0.0, %v3556
        %v3558 = vpop.f32.mrb[0].mxu0
        %v3559 = vadd.f32 0.0, %v3558
        %3560 = vmatprep.mubr.bf16.mxu0 0
        %3561 = vmatmul.mubr.bf16.gmra.mrb[0].mxu0 %v2039
        %v3562 = vpop.f32.mrb[0].mxu0
        %v3563 = vadd.f32 0.0, %v3562
        %v3564 = vpop.f32.mrb[0].mxu0
        %v3565 = vadd.f32 0.0, %v3564
        %v3566 = vpop.f32.mrb[0].mxu0
        %v3567 = vadd.f32 0.0, %v3566
        %v3568 = vpop.f32.mrb[0].mxu0
        %v3569 = vadd.f32 0.0, %v3568
        %3570 = vmatprep.mubr.bf16.mxu0 0
        %3571 = vmatmul.mubr.bf16.gmra.mrb[0].mxu0 %v2040
        %v3572 = vpop.f32.mrb[0].mxu0
        %v3573 = vadd.f32 0.0, %v3572
        %v3574 = vpop.f32.mrb[0].mxu0
        %v3575 = vadd.f32 0.0, %v3574
        %v3576 = vpop.f32.mrb[0].mxu0
        %v3577 = vadd.f32 0.0, %v3576
        %v3578 = vpop.f32.mrb[0].mxu0
        %v3579 = vadd.f32 0.0, %v3578
        %3580 = vmatprep.mubr.bf16.mxu0 0
        %3581 = vmatmul.mubr.bf16.gmra.mrb[0].mxu0 %v2041
        %v3582 = vpop.f32.mrb[0].mxu0
        %v3583 = vadd.f32 0.0, %v3582
        %v3584 = vpop.f32.mrb[0].mxu0
        %v3585 = vadd.f32 0.0, %v3584
        %v3586 = vpop.f32.mrb[0].mxu0
        %v3587 = vadd.f32 0.0, %v3586
        %v3588 = vpop.f32.mrb[0].mxu0
        %v3589 = vadd.f32 0.0, %v3588
        %3590 = vmatprep.mubr.bf16.mxu0 0
        %3591 = vmatmul.mubr.bf16.gmra.mrb[0].mxu0 %v2042
        %v3592 = vpop.f32.mrb[0].mxu0
        %v3593 = vadd.f32 0.0, %v3592
        %v3594 = vpop.f32.mrb[0].mxu0
        %v3595 = vadd.f32 0.0, %v3594
        %v3596 = vpop.f32.mrb[0].mxu0
        %v3597 = vadd.f32 0.0, %v3596
        %v3598 = vpop.f32.mrb[0].mxu0
        %v3599 = vadd.f32 0.0, %v3598
        %3600 = vmatprep.mubr.bf16.mxu0 0
        %3601 = vmatmul.mubr.bf16.gmra.mrb[0].mxu0 %v2043
        %v3602 = vpop.f32.mrb[0].mxu0
        %v3603 = vadd.f32 0.0, %v3602
        %v3604 = vpop.f32.mrb[0].mxu0
        %v3605 = vadd.f32 0.0, %v3604
        %v3606 = vpop.f32.mrb[0].mxu0
        %v3607 = vadd.f32 0.0, %v3606
        %v3608 = vpop.f32.mrb[0].mxu0
        %v3609 = vadd.f32 0.0, %v3608
        %3610 = vmatprep.mubr.bf16.mxu0 0
        %3611 = vmatmul.mubr.bf16.gmra.mrb[0].mxu0 %v2044
        %v3612 = vpop.f32.mrb[0].mxu0
        %v3613 = vadd.f32 0.0, %v3612
        %v3614 = vpop.f32.mrb[0].mxu0
        %v3615 = vadd.f32 0.0, %v3614
        %v3616 = vpop.f32.mrb[0].mxu0
        %v3617 = vadd.f32 0.0, %v3616
        %v3618 = vpop.f32.mrb[0].mxu0
        %v3619 = vadd.f32 0.0, %v3618
        %3620 = vmatprep.mubr.bf16.mxu0 0
        %3621 = vmatmul.mubr.bf16.gmra.mrb[0].mxu0 %v2045
        %v3622 = vpop.f32.mrb[0].mxu0
        %v3623 = vadd.f32 0.0, %v3622
        %v3624 = vpop.f32.mrb[0].mxu0
        %v3625 = vadd.f32 0.0, %v3624
        %v3626 = vpop.f32.mrb[0].mxu0
        %v3627 = vadd.f32 0.0, %v3626
        %v3628 = vpop.f32.mrb[0].mxu0
        %v3629 = vadd.f32 0.0, %v3628
        %3630 = vmatprep.mubr.bf16.mxu0 0
        %3631 = vmatmul.mubr.bf16.gmra.mrb[0].mxu0 %v2046
        %v3632 = vpop.f32.mrb[0].mxu0
        %v3633 = vadd.f32 0.0, %v3632
        %v3634 = vpop.f32.mrb[0].mxu0
        %v3635 = vadd.f32 0.0, %v3634
        %v3636 = vpop.f32.mrb[0].mxu0
        %v3637 = vadd.f32 0.0, %v3636
        %v3638 = vpop.f32.mrb[0].mxu0
        %v3639 = vadd.f32 0.0, %v3638
        %3640 = vmatprep.mubr.bf16.mxu0 0
        %3641 = vmatmul.mubr.bf16.gmra.mrb[0].mxu0 %v2047
        %v3642 = vpop.f32.mrb[0].mxu0
        %v3643 = vadd.f32 0.0, %v3642
        %v3644 = vpop.f32.mrb[0].mxu0
        %v3645 = vadd.f32 0.0, %v3644
        %v3646 = vpop.f32.mrb[0].mxu0
        %v3647 = vadd.f32 0.0, %v3646
        %v3648 = vpop.f32.mrb[0].mxu0
        %v3649 = vadd.f32 0.0, %v3648
        %3650 = vmatprep.mubr.bf16.mxu0 0
        %3651 = vmatmul.mubr.bf16.gmra.mrb[0].mxu0 %v2048
        %v3652 = vpop.f32.mrb[0].mxu0
        %v3653 = vadd.f32 0.0, %v3652
        %v3654 = vpop.f32.mrb[0].mxu0
        %v3655 = vadd.f32 0.0, %v3654
        %v3656 = vpop.f32.mrb[0].mxu0
        %v3657 = vadd.f32 0.0, %v3656
        %v3658 = vpop.f32.mrb[0].mxu0
        %v3659 = vadd.f32 0.0, %v3658
        %3660 = vmatprep.mubr.bf16.mxu0 0
        %3661 = vmatmul.mubr.bf16.gmra.mrb[0].mxu0 %v2049
        %v3662 = vpop.f32.mrb[0].mxu0
        %v3663 = vadd.f32 0.0, %v3662
        %v3664 = vpop.f32.mrb[0].mxu0
        %v3665 = vadd.f32 0.0, %v3664
        %v3666 = vpop.f32.mrb[0].mxu0
        %v3667 = vadd.f32 0.0, %v3666
        %v3668 = vpop.f32.mrb[0].mxu0
        %v3669 = vadd.f32 0.0, %v3668
        %3670 = vmatprep.mubr.bf16.mxu0 0
        %3671 = vmatmul.mubr.bf16.gmra.mrb[0].mxu0 %v2050
        %v3672 = vpop.f32.mrb[0].mxu0
        %v3673 = vadd.f32 0.0, %v3672
        %v3674 = vpop.f32.mrb[0].mxu0
        %v3675 = vadd.f32 0.0, %v3674
        %v3676 = vpop.f32.mrb[0].mxu0
        %v3677 = vadd.f32 0.0, %v3676
        %v3678 = vpop.f32.mrb[0].mxu0
        %v3679 = vadd.f32 0.0, %v3678
        %3680 = vmatprep.mubr.bf16.mxu0 0
        %3681 = vmatmul.mubr.bf16.gmra.mrb[0].mxu0 %v2051
        %v3682 = vpop.f32.mrb[0].mxu0
        %v3683 = vadd.f32 0.0, %v3682
        %v3684 = vpop.f32.mrb[0].mxu0
        %v3685 = vadd.f32 0.0, %v3684
        %v3686 = vpop.f32.mrb[0].mxu0
        %v3687 = vadd.f32 0.0, %v3686
        %v3688 = vpop.f32.mrb[0].mxu0
        %v3689 = vadd.f32 0.0, %v3688
        %3690 = vmatprep.mubr.bf16.mxu0 0
        %3691 = vmatmul.mubr.bf16.gmra.mrb[0].mxu0 %v2052
        %v3692 = vpop.f32.mrb[0].mxu0
        %v3693 = vadd.f32 0.0, %v3692
        %v3694 = vpop.f32.mrb[0].mxu0
        %v3695 = vadd.f32 0.0, %v3694
        %v3696 = vpop.f32.mrb[0].mxu0
        %v3697 = vadd.f32 0.0, %v3696
        %v3698 = vpop.f32.mrb[0].mxu0
        %v3699 = vadd.f32 0.0, %v3698
        %3700 = vmatprep.mubr.bf16.mxu0 0
        %3701 = vmatmul.mubr.bf16.gmra.mrb[0].mxu0 %v2053
        %v3702 = vpop.f32.mrb[0].mxu0
        %v3703 = vadd.f32 0.0, %v3702
        %v3704 = vpop.f32.mrb[0].mxu0
        %v3705 = vadd.f32 0.0, %v3704
        %v3706 = vpop.f32.mrb[0].mxu0
        %v3707 = vadd.f32 0.0, %v3706
        %v3708 = vpop.f32.mrb[0].mxu0
        %v3709 = vadd.f32 0.0, %v3708
        %3710 = vmatprep.mubr.bf16.mxu0 0
        %3711 = vmatmul.mubr.bf16.gmra.mrb[0].mxu0 %v2054
        %v3712 = vpop.f32.mrb[0].mxu0
        %v3713 = vadd.f32 0.0, %v3712
        %v3714 = vpop.f32.mrb[0].mxu0
        %v3715 = vadd.f32 0.0, %v3714
        %v3716 = vpop.f32.mrb[0].mxu0
        %v3717 = vadd.f32 0.0, %v3716
        %v3718 = vpop.f32.mrb[0].mxu0
        %v3719 = vadd.f32 0.0, %v3718
        %3720 = vmatprep.mubr.bf16.mxu0 0
        %3721 = vmatmul.mubr.bf16.gmra.mrb[0].mxu0 %v2055
        %v3722 = vpop.f32.mrb[0].mxu0
        %v3723 = vadd.f32 0.0, %v3722
        %v3724 = vpop.f32.mrb[0].mxu0
        %v3725 = vadd.f32 0.0, %v3724
        %v3726 = vpop.f32.mrb[0].mxu0
        %v3727 = vadd.f32 0.0, %v3726
        %v3728 = vpop.f32.mrb[0].mxu0
        %v3729 = vadd.f32 0.0, %v3728
        %3730 = vmatprep.mubr.bf16.mxu0 0
        %3731 = vmatmul.mubr.bf16.gmra.mrb[0].mxu0 %v2056
        %v3732 = vpop.f32.mrb[0].mxu0
        %v3733 = vadd.f32 0.0, %v3732
        %v3734 = vpop.f32.mrb[0].mxu0
        %v3735 = vadd.f32 0.0, %v3734
        %v3736 = vpop.f32.mrb[0].mxu0
        %v3737 = vadd.f32 0.0, %v3736
        %v3738 = vpop.f32.mrb[0].mxu0
        %v3739 = vadd.f32 0.0, %v3738
        %3740 = vmatprep.mubr.bf16.mxu0 0
        %3741 = vmatmul.mubr.bf16.gmra.mrb[0].mxu0 %v2057
        %v3742 = vpop.f32.mrb[0].mxu0
        %v3743 = vadd.f32 0.0, %v3742
        %v3744 = vpop.f32.mrb[0].mxu0
        %v3745 = vadd.f32 0.0, %v3744
        %v3746 = vpop.f32.mrb[0].mxu0
        %v3747 = vadd.f32 0.0, %v3746
        %v3748 = vpop.f32.mrb[0].mxu0
        %v3749 = vadd.f32 0.0, %v3748
        %3750 = vmatprep.mubr.bf16.mxu0 0
        %3751 = vmatmul.mubr.bf16.gmra.mrb[0].mxu0 %v2058
        %v3752 = vpop.f32.mrb[0].mxu0
        %v3753 = vadd.f32 0.0, %v3752
        %v3754 = vpop.f32.mrb[0].mxu0
        %v3755 = vadd.f32 0.0, %v3754
        %v3756 = vpop.f32.mrb[0].mxu0
        %v3757 = vadd.f32 0.0, %v3756
        %v3758 = vpop.f32.mrb[0].mxu0
        %v3759 = vadd.f32 0.0, %v3758
        %3760 = vmatprep.mubr.bf16.mxu0 0
        %3761 = vmatmul.mubr.bf16.gmra.mrb[0].mxu0 %v2059
        %v3762 = vpop.f32.mrb[0].mxu0
        %v3763 = vadd.f32 0.0, %v3762
        %v3764 = vpop.f32.mrb[0].mxu0
        %v3765 = vadd.f32 0.0, %v3764
        %v3766 = vpop.f32.mrb[0].mxu0
        %v3767 = vadd.f32 0.0, %v3766
        %v3768 = vpop.f32.mrb[0].mxu0
        %v3769 = vadd.f32 0.0, %v3768
        %3770 = vdwg.mxu0
        %v3771 = vmax.f32 %v3453, %v3457
        %v3772 = vmax.f32 %v3771, %v3463
        %v3773 = vmax.f32 %v3772, %v3467
        %v3774 = vmax.f32 %v3773, %v3473
        %v3775 = vmax.f32 %v3774, %v3477
        %v3776 = vmax.f32 %v3775, %v3483
        %v3777 = vmax.f32 %v3776, %v3487
        %v3778 = vmax.f32 %v3777, %v3493
        %v3779 = vmax.f32 %v3778, %v3497
        %v3780 = vmax.f32 %v3779, %v3503
        %v3781 = vmax.f32 %v3780, %v3507
        %v3782 = vmax.f32 %v3781, %v3513
        %v3783 = vmax.f32 %v3782, %v3517
        %v3784 = vmax.f32 %v3783, %v3523
        %v3785 = vmax.f32 %v3784, %v3527
        %v3786 = vmax.f32 %v3785, %v3533
        %v3787 = vmax.f32 %v3786, %v3537
        %v3788 = vmax.f32 %v3787, %v3543
        %v3789 = vmax.f32 %v3788, %v3547
        %v3790 = vmax.f32 %v3789, %v3553
        %v3791 = vmax.f32 %v3790, %v3557
        %v3792 = vmax.f32 %v3791, %v3563
        %v3793 = vmax.f32 %v3792, %v3567
        %v3794 = vmax.f32 %v3793, %v3573
        %v3795 = vmax.f32 %v3794, %v3577
        %v3796 = vmax.f32 %v3795, %v3583
        %v3797 = vmax.f32 %v3796, %v3587
        %v3798 = vmax.f32 %v3797, %v3593
        %v3799 = vmax.f32 %v3798, %v3597
        %v3800 = vmax.f32 %v3799, %v3603
        %v3801 = vmax.f32 %v3800, %v3607
        %v3802 = vrot.slane %v3801, 4
        %v3803 = vmax.f32 %v3801, %v3802
        %v3804 = vrot.slane %v3803, 2
        %v3805 = vmax.f32 %v3803, %v3804
        %v3806 = vrot.slane %v3805, 1
        %v3807 = vmax.f32 %v3805, %v3806
        %v3808 = vmax.f32 %v3455, %v3459
        %v3809 = vmax.f32 %v3808, %v3465
        %v3810 = vmax.f32 %v3809, %v3469
        %v3811 = vmax.f32 %v3810, %v3475
        %v3812 = vmax.f32 %v3811, %v3479
        %v3813 = vmax.f32 %v3812, %v3485
        %v3814 = vmax.f32 %v3813, %v3489
        %v3815 = vmax.f32 %v3814, %v3495
        %v3816 = vmax.f32 %v3815, %v3499
        %v3817 = vmax.f32 %v3816, %v3505
        %v3818 = vmax.f32 %v3817, %v3509
        %v3819 = vmax.f32 %v3818, %v3515
        %v3820 = vmax.f32 %v3819, %v3519
        %v3821 = vmax.f32 %v3820, %v3525
        %v3822 = vmax.f32 %v3821, %v3529
        %v3823 = vmax.f32 %v3822, %v3535
        %v3824 = vmax.f32 %v3823, %v3539
        %v3825 = vmax.f32 %v3824, %v3545
        %v3826 = vmax.f32 %v3825, %v3549
        %v3827 = vmax.f32 %v3826, %v3555
        %v3828 = vmax.f32 %v3827, %v3559
        %v3829 = vmax.f32 %v3828, %v3565
        %v3830 = vmax.f32 %v3829, %v3569
        %v3831 = vmax.f32 %v3830, %v3575
        %v3832 = vmax.f32 %v3831, %v3579
        %v3833 = vmax.f32 %v3832, %v3585
        %v3834 = vmax.f32 %v3833, %v3589
        %v3835 = vmax.f32 %v3834, %v3595
        %v3836 = vmax.f32 %v3835, %v3599
        %v3837 = vmax.f32 %v3836, %v3605
        %v3838 = vmax.f32 %v3837, %v3609
        %v3839 = vrot.slane %v3838, 4
        %v3840 = vmax.f32 %v3838, %v3839
        %v3841 = vrot.slane %v3840, 2
        %v3842 = vmax.f32 %v3840, %v3841
        %v3843 = vrot.slane %v3842, 1
        %v3844 = vmax.f32 %v3842, %v3843
        %v3845 = vmax.f32 %v3613, %v3617
        %v3846 = vmax.f32 %v3845, %v3623
        %v3847 = vmax.f32 %v3846, %v3627
        %v3848 = vmax.f32 %v3847, %v3633
        %v3849 = vmax.f32 %v3848, %v3637
        %v3850 = vmax.f32 %v3849, %v3643
        %v3851 = vmax.f32 %v3850, %v3647
        %v3852 = vmax.f32 %v3851, %v3653
        %v3853 = vmax.f32 %v3852, %v3657
        %v3854 = vmax.f32 %v3853, %v3663
        %v3855 = vmax.f32 %v3854, %v3667
        %v3856 = vmax.f32 %v3855, %v3673
        %v3857 = vmax.f32 %v3856, %v3677
        %v3858 = vmax.f32 %v3857, %v3683
        %v3859 = vmax.f32 %v3858, %v3687
        %v3860 = vmax.f32 %v3859, %v3693
        %v3861 = vmax.f32 %v3860, %v3697
        %v3862 = vmax.f32 %v3861, %v3703
        %v3863 = vmax.f32 %v3862, %v3707
        %v3864 = vmax.f32 %v3863, %v3713
        %v3865 = vmax.f32 %v3864, %v3717
        %v3866 = vmax.f32 %v3865, %v3723
        %v3867 = vmax.f32 %v3866, %v3727
        %v3868 = vmax.f32 %v3867, %v3733
        %v3869 = vmax.f32 %v3868, %v3737
        %v3870 = vmax.f32 %v3869, %v3743
        %v3871 = vmax.f32 %v3870, %v3747
        %v3872 = vmax.f32 %v3871, %v3753
        %v3873 = vmax.f32 %v3872, %v3757
        %v3874 = vmax.f32 %v3873, %v3763
        %v3875 = vmax.f32 %v3874, %v3767
        %v3876 = vrot.slane %v3875, 4
        %v3877 = vmax.f32 %v3875, %v3876
        %v3878 = vrot.slane %v3877, 2
        %v3879 = vmax.f32 %v3877, %v3878
        %v3880 = vrot.slane %v3879, 1
        %v3881 = vmax.f32 %v3879, %v3880
        %v3882 = vmax.f32 %v3615, %v3619
        %v3883 = vmax.f32 %v3882, %v3625
        %v3884 = vmax.f32 %v3883, %v3629
        %v3885 = vmax.f32 %v3884, %v3635
        %v3886 = vmax.f32 %v3885, %v3639
        %v3887 = vmax.f32 %v3886, %v3645
        %v3888 = vmax.f32 %v3887, %v3649
        %v3889 = vmax.f32 %v3888, %v3655
        %v3890 = vmax.f32 %v3889, %v3659
        %v3891 = vmax.f32 %v3890, %v3665
        %v3892 = vmax.f32 %v3891, %v3669
        %v3893 = vmax.f32 %v3892, %v3675
        %v3894 = vmax.f32 %v3893, %v3679
        %v3895 = vmax.f32 %v3894, %v3685
        %v3896 = vmax.f32 %v3895, %v3689
        %v3897 = vmax.f32 %v3896, %v3695
        %v3898 = vmax.f32 %v3897, %v3699
        %v3899 = vmax.f32 %v3898, %v3705
        %v3900 = vmax.f32 %v3899, %v3709
        %v3901 = vmax.f32 %v3900, %v3715
        %v3902 = vmax.f32 %v3901, %v3719
        %v3903 = vmax.f32 %v3902, %v3725
        %v3904 = vmax.f32 %v3903, %v3729
        %v3905 = vmax.f32 %v3904, %v3735
        %v3906 = vmax.f32 %v3905, %v3739
        %v3907 = vmax.f32 %v3906, %v3745
        %v3908 = vmax.f32 %v3907, %v3749
        %v3909 = vmax.f32 %v3908, %v3755
        %v3910 = vmax.f32 %v3909, %v3759
        %v3911 = vmax.f32 %v3910, %v3765
        %v3912 = vmax.f32 %v3911, %v3769
        %v3913 = vrot.slane %v3912, 4
        %v3914 = vmax.f32 %v3912, %v3913
        %v3915 = vrot.slane %v3914, 2
        %v3916 = vmax.f32 %v3914, %v3915
        %v3917 = vrot.slane %v3916, 1
        %v3918 = vmax.f32 %v3916, %v3917
        %v3919 = vld [vmem:[#allocation2 + $0x8] sm:$0xf]
        %v3924 = vcombine.low %v3807, %v3844
        %v3926 = vunpack.c.l.s4 1983009808
        %v3927 = vunpack.c.0.s8 %v3926
        %v3928 = vlaneseq
        %v3929 = vshrl.u32 %v3928, 7
        %v3930 = vsub.s32 %v3927, %v3929
        %v3931 = vrot.slane %v3924, %v3930
        %v3932 = vcombine.low %v3881, %v3918
        %v3934 = vunpack.c.l.s4 1983009808
        %v3935 = vunpack.c.0.s8 %v3934
        %v3936 = vlaneseq
        %v3937 = vshrl.u32 %v3936, 7
        %v3938 = vsub.s32 %v3935, %v3937
        %v3939 = vrot.slane %v3932, %v3938
        %v3940 = vsel %vm2678, %v3931, %v3931
        %v3941 = vsel %vm2680, %v3931, %v3940
        %v3942 = vrot.slane %v3939, 7
        %v3943 = vsel %vm2683, %v3942, %v3941
        %v3944 = vsel %vm2685, %v3942, %v3943
        %v3945 = vsel %vm2687, %v3942, %v3944
        %v3946 = vsel %vm2689, %v3942, %v3945
        %v3948 = vmax.f32 %v3919, %v3946
        %3949 = vst [vmem:[#allocation2 + $0x8] sm:$0xf] %v3948
        %v3950 = vld [vmem:[%s5 + $0x18] sm:$0xff]
        %v3951 = vld [vmem:[%s5 + $0x38] sm:$0xff]
        %v3952 = vld [vmem:[%s5 + $0x58] sm:$0xff]
        %v3953 = vld [vmem:[%s5 + $0x78] sm:$0xff]
        %v3954 = vld [vmem:[%s5 + $0x98] sm:$0xff]
        %v3955 = vld [vmem:[%s5 + $0xb8] sm:$0xff]
        %v3956 = vld [vmem:[%s5 + $0xd8] sm:$0xff]
        %v3957 = vld [vmem:[%s5 + $0xf8] sm:$0xff]
        %v3958 = vld [vmem:[%s5 + $0x118] sm:$0xff]
        %v3959 = vld [vmem:[%s5 + $0x138] sm:$0xff]
        %v3960 = vld [vmem:[%s5 + $0x158] sm:$0xff]
        %v3961 = vld [vmem:[%s5 + $0x178] sm:$0xff]
        %v3962 = vld [vmem:[%s5 + $0x198] sm:$0xff]
        %v3963 = vld [vmem:[%s5 + $0x1b8] sm:$0xff]
        %v3964 = vld [vmem:[%s5 + $0x1d8] sm:$0xff]
        %v3965 = vld [vmem:[%s5 + $0x1f8] sm:$0xff]
        %v3982 = vunpack.c.l.b16 %v3950
        %v3983 = vunpack.c.h.b16 %v3950
        %v3984 = vunpack.c.l.b16 %v3951
        %v3985 = vunpack.c.h.b16 %v3951
        %v3986 = vunpack.c.l.b16 %v3952
        %v3987 = vunpack.c.h.b16 %v3952
        %v3988 = vunpack.c.l.b16 %v3953
        %v3989 = vunpack.c.h.b16 %v3953
        %v3990 = vunpack.c.l.b16 %v3954
        %v3991 = vunpack.c.h.b16 %v3954
        %v3992 = vunpack.c.l.b16 %v3955
        %v3993 = vunpack.c.h.b16 %v3955
        %v3994 = vunpack.c.l.b16 %v3956
        %v3995 = vunpack.c.h.b16 %v3956
        %v3996 = vunpack.c.l.b16 %v3957
        %v3997 = vunpack.c.h.b16 %v3957
        %v3998 = vunpack.c.l.b16 %v3958
        %v3999 = vunpack.c.h.b16 %v3958
        %v4000 = vunpack.c.l.b16 %v3959
        %v4001 = vunpack.c.h.b16 %v3959
        %v4002 = vunpack.c.l.b16 %v3960
        %v4003 = vunpack.c.h.b16 %v3960
        %v4004 = vunpack.c.l.b16 %v3961
        %v4005 = vunpack.c.h.b16 %v3961
        %v4006 = vunpack.c.l.b16 %v3962
        %v4007 = vunpack.c.h.b16 %v3962
        %v4008 = vunpack.c.l.b16 %v3963
        %v4009 = vunpack.c.h.b16 %v3963
        %v4010 = vunpack.c.l.b16 %v3964
        %v4011 = vunpack.c.h.b16 %v3964
        %v4012 = vunpack.c.l.b16 %v3965
        %v4013 = vunpack.c.h.b16 %v3965
        %v4014 = vpack.c.b16 %v3984, %v3982
        %v4015 = vpack.c.b16 %v3985, %v3983
        %v4016 = vpack.c.b16 %v3988, %v3986
        %v4017 = vpack.c.b16 %v3989, %v3987
        %v4018 = vpack.c.b16 %v3992, %v3990
        %v4019 = vpack.c.b16 %v3993, %v3991
        %v4020 = vpack.c.b16 %v3996, %v3994
        %v4021 = vpack.c.b16 %v3997, %v3995
        %v4022 = vpack.c.b16 %v4000, %v3998
        %v4023 = vpack.c.b16 %v4001, %v3999
        %v4024 = vpack.c.b16 %v4004, %v4002
        %v4025 = vpack.c.b16 %v4005, %v4003
        %v4026 = vpack.c.b16 %v4008, %v4006
        %v4027 = vpack.c.b16 %v4009, %v4007
        %v4028 = vpack.c.b16 %v4012, %v4010
        %v4029 = vpack.c.b16 %v4013, %v4011
        %4046 = vmatprep.subr.bf16.mxu0 %v4015
        %4047 = vmatpush1.bf16.msra.mxu0 %v4014
        %4048 = vmatprep.subr.bf16.mxu0 %v4017
        %4049 = vmatpush1.bf16.msra.mxu0 %v4016
        %4050 = vmatprep.subr.bf16.mxu0 %v4019
        %4051 = vmatpush1.bf16.msra.mxu0 %v4018
        %4052 = vmatprep.subr.bf16.mxu0 %v4021
        %4053 = vmatpush1.bf16.msra.mxu0 %v4020
        %4054 = vmatprep.subr.bf16.mxu0 %v4023
        %4055 = vmatpush1.bf16.msra.mxu0 %v4022
        %4056 = vmatprep.subr.bf16.mxu0 %v4025
        %4057 = vmatpush1.bf16.msra.mxu0 %v4024
        %4058 = vmatprep.subr.bf16.mxu0 %v4027
        %4059 = vmatpush1.bf16.msra.mxu0 %v4026
        %4060 = vmatprep.subr.bf16.mxu0 %v4029
        %4061 = vmatpush1.bf16.msra.mxu0 %v4028
        %4062 = vmatprep.subr.bf16.mxu0 0
        %4063 = vmatpush1.bf16.msra.mxu0 0
        %4064 = vmatprep.subr.bf16.mxu0 0
        %4065 = vmatpush1.bf16.msra.mxu0 0
        %4066 = vmatprep.subr.bf16.mxu0 0
        %4067 = vmatpush1.bf16.msra.mxu0 0
        %4068 = vmatprep.subr.bf16.mxu0 0
        %4069 = vmatpush1.bf16.msra.mxu0 0
        %4070 = vmatprep.subr.bf16.mxu0 0
        %4071 = vmatpush1.bf16.msra.mxu0 0
        %4072 = vmatprep.subr.bf16.mxu0 0
        %4073 = vmatpush1.bf16.msra.mxu0 0
        %4074 = vmatprep.subr.bf16.mxu0 0
        %4075 = vmatpush1.bf16.msra.mxu0 0
        %4076 = vmatprep.subr.bf16.mxu0 0
        %4077 = vmatpush1.bf16.msra.mxu0 0
        %4078 = vmatprep.mubr.bf16.mxu0 0
        %4079 = vmatmul.mubr.bf16.gmra.mrb[0].mxu0 %v2028
        %v4080 = vpop.f32.mrb[0].mxu0
        %v4081 = vadd.f32 0.0, %v4080
        %v4082 = vpop.f32.mrb[0].mxu0
        %v4083 = vadd.f32 0.0, %v4082
        %v4084 = vpop.f32.mrb[0].mxu0
        %v4085 = vadd.f32 0.0, %v4084
        %v4086 = vpop.f32.mrb[0].mxu0
        %v4087 = vadd.f32 0.0, %v4086
        %4088 = vmatprep.mubr.bf16.mxu0 0
        %4089 = vmatmul.mubr.bf16.gmra.mrb[0].mxu0 %v2029
        %v4090 = vpop.f32.mrb[0].mxu0
        %v4091 = vadd.f32 0.0, %v4090
        %v4092 = vpop.f32.mrb[0].mxu0
        %v4093 = vadd.f32 0.0, %v4092
        %v4094 = vpop.f32.mrb[0].mxu0
        %v4095 = vadd.f32 0.0, %v4094
        %v4096 = vpop.f32.mrb[0].mxu0
        %v4097 = vadd.f32 0.0, %v4096
        %4098 = vmatprep.mubr.bf16.mxu0 0
        %4099 = vmatmul.mubr.bf16.gmra.mrb[0].mxu0 %v2030
        %v4100 = vpop.f32.mrb[0].mxu0
        %v4101 = vadd.f32 0.0, %v4100
        %v4102 = vpop.f32.mrb[0].mxu0
        %v4103 = vadd.f32 0.0, %v4102
        %v4104 = vpop.f32.mrb[0].mxu0
        %v4105 = vadd.f32 0.0, %v4104
        %v4106 = vpop.f32.mrb[0].mxu0
        %v4107 = vadd.f32 0.0, %v4106
        %4108 = vmatprep.mubr.bf16.mxu0 0
        %4109 = vmatmul.mubr.bf16.gmra.mrb[0].mxu0 %v2031
        %v4110 = vpop.f32.mrb[0].mxu0
        %v4111 = vadd.f32 0.0, %v4110
        %v4112 = vpop.f32.mrb[0].mxu0
        %v4113 = vadd.f32 0.0, %v4112
        %v4114 = vpop.f32.mrb[0].mxu0
        %v4115 = vadd.f32 0.0, %v4114
        %v4116 = vpop.f32.mrb[0].mxu0
        %v4117 = vadd.f32 0.0, %v4116
        %4118 = vmatprep.mubr.bf16.mxu0 0
        %4119 = vmatmul.mubr.bf16.gmra.mrb[0].mxu0 %v2032
        %v4120 = vpop.f32.mrb[0].mxu0
        %v4121 = vadd.f32 0.0, %v4120
        %v4122 = vpop.f32.mrb[0].mxu0
        %v4123 = vadd.f32 0.0, %v4122
        %v4124 = vpop.f32.mrb[0].mxu0
        %v4125 = vadd.f32 0.0, %v4124
        %v4126 = vpop.f32.mrb[0].mxu0
        %v4127 = vadd.f32 0.0, %v4126
        %4128 = vmatprep.mubr.bf16.mxu0 0
        %4129 = vmatmul.mubr.bf16.gmra.mrb[0].mxu0 %v2033
        %v4130 = vpop.f32.mrb[0].mxu0
        %v4131 = vadd.f32 0.0, %v4130
        %v4132 = vpop.f32.mrb[0].mxu0
        %v4133 = vadd.f32 0.0, %v4132
        %v4134 = vpop.f32.mrb[0].mxu0
        %v4135 = vadd.f32 0.0, %v4134
        %v4136 = vpop.f32.mrb[0].mxu0
        %v4137 = vadd.f32 0.0, %v4136
        %4138 = vmatprep.mubr.bf16.mxu0 0
        %4139 = vmatmul.mubr.bf16.gmra.mrb[0].mxu0 %v2034
        %v4140 = vpop.f32.mrb[0].mxu0
        %v4141 = vadd.f32 0.0, %v4140
        %v4142 = vpop.f32.mrb[0].mxu0
        %v4143 = vadd.f32 0.0, %v4142
        %v4144 = vpop.f32.mrb[0].mxu0
        %v4145 = vadd.f32 0.0, %v4144
        %v4146 = vpop.f32.mrb[0].mxu0
        %v4147 = vadd.f32 0.0, %v4146
        %4148 = vmatprep.mubr.bf16.mxu0 0
        %4149 = vmatmul.mubr.bf16.gmra.mrb[0].mxu0 %v2035
        %v4150 = vpop.f32.mrb[0].mxu0
        %v4151 = vadd.f32 0.0, %v4150
        %v4152 = vpop.f32.mrb[0].mxu0
        %v4153 = vadd.f32 0.0, %v4152
        %v4154 = vpop.f32.mrb[0].mxu0
        %v4155 = vadd.f32 0.0, %v4154
        %v4156 = vpop.f32.mrb[0].mxu0
        %v4157 = vadd.f32 0.0, %v4156
        %4158 = vmatprep.mubr.bf16.mxu0 0
        %4159 = vmatmul.mubr.bf16.gmra.mrb[0].mxu0 %v2036
        %v4160 = vpop.f32.mrb[0].mxu0
        %v4161 = vadd.f32 0.0, %v4160
        %v4162 = vpop.f32.mrb[0].mxu0
        %v4163 = vadd.f32 0.0, %v4162
        %v4164 = vpop.f32.mrb[0].mxu0
        %v4165 = vadd.f32 0.0, %v4164
        %v4166 = vpop.f32.mrb[0].mxu0
        %v4167 = vadd.f32 0.0, %v4166
        %4168 = vmatprep.mubr.bf16.mxu0 0
        %4169 = vmatmul.mubr.bf16.gmra.mrb[0].mxu0 %v2037
        %v4170 = vpop.f32.mrb[0].mxu0
        %v4171 = vadd.f32 0.0, %v4170
        %v4172 = vpop.f32.mrb[0].mxu0
        %v4173 = vadd.f32 0.0, %v4172
        %v4174 = vpop.f32.mrb[0].mxu0
        %v4175 = vadd.f32 0.0, %v4174
        %v4176 = vpop.f32.mrb[0].mxu0
        %v4177 = vadd.f32 0.0, %v4176
        %4178 = vmatprep.mubr.bf16.mxu0 0
        %4179 = vmatmul.mubr.bf16.gmra.mrb[0].mxu0 %v2038
        %v4180 = vpop.f32.mrb[0].mxu0
        %v4181 = vadd.f32 0.0, %v4180
        %v4182 = vpop.f32.mrb[0].mxu0
        %v4183 = vadd.f32 0.0, %v4182
        %v4184 = vpop.f32.mrb[0].mxu0
        %v4185 = vadd.f32 0.0, %v4184
        %v4186 = vpop.f32.mrb[0].mxu0
        %v4187 = vadd.f32 0.0, %v4186
        %4188 = vmatprep.mubr.bf16.mxu0 0
        %4189 = vmatmul.mubr.bf16.gmra.mrb[0].mxu0 %v2039
        %v4190 = vpop.f32.mrb[0].mxu0
        %v4191 = vadd.f32 0.0, %v4190
        %v4192 = vpop.f32.mrb[0].mxu0
        %v4193 = vadd.f32 0.0, %v4192
        %v4194 = vpop.f32.mrb[0].mxu0
        %v4195 = vadd.f32 0.0, %v4194
        %v4196 = vpop.f32.mrb[0].mxu0
        %v4197 = vadd.f32 0.0, %v4196
        %4198 = vmatprep.mubr.bf16.mxu0 0
        %4199 = vmatmul.mubr.bf16.gmra.mrb[0].mxu0 %v2040
        %v4200 = vpop.f32.mrb[0].mxu0
        %v4201 = vadd.f32 0.0, %v4200
        %v4202 = vpop.f32.mrb[0].mxu0
        %v4203 = vadd.f32 0.0, %v4202
        %v4204 = vpop.f32.mrb[0].mxu0
        %v4205 = vadd.f32 0.0, %v4204
        %v4206 = vpop.f32.mrb[0].mxu0
        %v4207 = vadd.f32 0.0, %v4206
        %4208 = vmatprep.mubr.bf16.mxu0 0
        %4209 = vmatmul.mubr.bf16.gmra.mrb[0].mxu0 %v2041
        %v4210 = vpop.f32.mrb[0].mxu0
        %v4211 = vadd.f32 0.0, %v4210
        %v4212 = vpop.f32.mrb[0].mxu0
        %v4213 = vadd.f32 0.0, %v4212
        %v4214 = vpop.f32.mrb[0].mxu0
        %v4215 = vadd.f32 0.0, %v4214
        %v4216 = vpop.f32.mrb[0].mxu0
        %v4217 = vadd.f32 0.0, %v4216
        %4218 = vmatprep.mubr.bf16.mxu0 0
        %4219 = vmatmul.mubr.bf16.gmra.mrb[0].mxu0 %v2042
        %v4220 = vpop.f32.mrb[0].mxu0
        %v4221 = vadd.f32 0.0, %v4220
        %v4222 = vpop.f32.mrb[0].mxu0
        %v4223 = vadd.f32 0.0, %v4222
        %v4224 = vpop.f32.mrb[0].mxu0
        %v4225 = vadd.f32 0.0, %v4224
        %v4226 = vpop.f32.mrb[0].mxu0
        %v4227 = vadd.f32 0.0, %v4226
        %4228 = vmatprep.mubr.bf16.mxu0 0
        %4229 = vmatmul.mubr.bf16.gmra.mrb[0].mxu0 %v2043
        %v4230 = vpop.f32.mrb[0].mxu0
        %v4231 = vadd.f32 0.0, %v4230
        %v4232 = vpop.f32.mrb[0].mxu0
        %v4233 = vadd.f32 0.0, %v4232
        %v4234 = vpop.f32.mrb[0].mxu0
        %v4235 = vadd.f32 0.0, %v4234
        %v4236 = vpop.f32.mrb[0].mxu0
        %v4237 = vadd.f32 0.0, %v4236
        %4238 = vmatprep.mubr.bf16.mxu0 0
        %4239 = vmatmul.mubr.bf16.gmra.mrb[0].mxu0 %v2044
        %v4240 = vpop.f32.mrb[0].mxu0
        %v4241 = vadd.f32 0.0, %v4240
        %v4242 = vpop.f32.mrb[0].mxu0
        %v4243 = vadd.f32 0.0, %v4242
        %v4244 = vpop.f32.mrb[0].mxu0
        %v4245 = vadd.f32 0.0, %v4244
        %v4246 = vpop.f32.mrb[0].mxu0
        %v4247 = vadd.f32 0.0, %v4246
        %4248 = vmatprep.mubr.bf16.mxu0 0
        %4249 = vmatmul.mubr.bf16.gmra.mrb[0].mxu0 %v2045
        %v4250 = vpop.f32.mrb[0].mxu0
        %v4251 = vadd.f32 0.0, %v4250
        %v4252 = vpop.f32.mrb[0].mxu0
        %v4253 = vadd.f32 0.0, %v4252
        %v4254 = vpop.f32.mrb[0].mxu0
        %v4255 = vadd.f32 0.0, %v4254
        %v4256 = vpop.f32.mrb[0].mxu0
        %v4257 = vadd.f32 0.0, %v4256
        %4258 = vmatprep.mubr.bf16.mxu0 0
        %4259 = vmatmul.mubr.bf16.gmra.mrb[0].mxu0 %v2046
        %v4260 = vpop.f32.mrb[0].mxu0
        %v4261 = vadd.f32 0.0, %v4260
        %v4262 = vpop.f32.mrb[0].mxu0
        %v4263 = vadd.f32 0.0, %v4262
        %v4264 = vpop.f32.mrb[0].mxu0
        %v4265 = vadd.f32 0.0, %v4264
        %v4266 = vpop.f32.mrb[0].mxu0
        %v4267 = vadd.f32 0.0, %v4266
        %4268 = vmatprep.mubr.bf16.mxu0 0
        %4269 = vmatmul.mubr.bf16.gmra.mrb[0].mxu0 %v2047
        %v4270 = vpop.f32.mrb[0].mxu0
        %v4271 = vadd.f32 0.0, %v4270
        %v4272 = vpop.f32.mrb[0].mxu0
        %v4273 = vadd.f32 0.0, %v4272
        %v4274 = vpop.f32.mrb[0].mxu0
        %v4275 = vadd.f32 0.0, %v4274
        %v4276 = vpop.f32.mrb[0].mxu0
        %v4277 = vadd.f32 0.0, %v4276
        %4278 = vmatprep.mubr.bf16.mxu0 0
        %4279 = vmatmul.mubr.bf16.gmra.mrb[0].mxu0 %v2048
        %v4280 = vpop.f32.mrb[0].mxu0
        %v4281 = vadd.f32 0.0, %v4280
        %v4282 = vpop.f32.mrb[0].mxu0
        %v4283 = vadd.f32 0.0, %v4282
        %v4284 = vpop.f32.mrb[0].mxu0
        %v4285 = vadd.f32 0.0, %v4284
        %v4286 = vpop.f32.mrb[0].mxu0
        %v4287 = vadd.f32 0.0, %v4286
        %4288 = vmatprep.mubr.bf16.mxu0 0
        %4289 = vmatmul.mubr.bf16.gmra.mrb[0].mxu0 %v2049
        %v4290 = vpop.f32.mrb[0].mxu0
        %v4291 = vadd.f32 0.0, %v4290
        %v4292 = vpop.f32.mrb[0].mxu0
        %v4293 = vadd.f32 0.0, %v4292
        %v4294 = vpop.f32.mrb[0].mxu0
        %v4295 = vadd.f32 0.0, %v4294
        %v4296 = vpop.f32.mrb[0].mxu0
        %v4297 = vadd.f32 0.0, %v4296
        %4298 = vmatprep.mubr.bf16.mxu0 0
        %4299 = vmatmul.mubr.bf16.gmra.mrb[0].mxu0 %v2050
        %v4300 = vpop.f32.mrb[0].mxu0
        %v4301 = vadd.f32 0.0, %v4300
        %v4302 = vpop.f32.mrb[0].mxu0
        %v4303 = vadd.f32 0.0, %v4302
        %v4304 = vpop.f32.mrb[0].mxu0
        %v4305 = vadd.f32 0.0, %v4304
        %v4306 = vpop.f32.mrb[0].mxu0
        %v4307 = vadd.f32 0.0, %v4306
        %4308 = vmatprep.mubr.bf16.mxu0 0
        %4309 = vmatmul.mubr.bf16.gmra.mrb[0].mxu0 %v2051
        %v4310 = vpop.f32.mrb[0].mxu0
        %v4311 = vadd.f32 0.0, %v4310
        %v4312 = vpop.f32.mrb[0].mxu0
        %v4313 = vadd.f32 0.0, %v4312
        %v4314 = vpop.f32.mrb[0].mxu0
        %v4315 = vadd.f32 0.0, %v4314
        %v4316 = vpop.f32.mrb[0].mxu0
        %v4317 = vadd.f32 0.0, %v4316
        %4318 = vmatprep.mubr.bf16.mxu0 0
        %4319 = vmatmul.mubr.bf16.gmra.mrb[0].mxu0 %v2052
        %v4320 = vpop.f32.mrb[0].mxu0
        %v4321 = vadd.f32 0.0, %v4320
        %v4322 = vpop.f32.mrb[0].mxu0
        %v4323 = vadd.f32 0.0, %v4322
        %v4324 = vpop.f32.mrb[0].mxu0
        %v4325 = vadd.f32 0.0, %v4324
        %v4326 = vpop.f32.mrb[0].mxu0
        %v4327 = vadd.f32 0.0, %v4326
        %4328 = vmatprep.mubr.bf16.mxu0 0
        %4329 = vmatmul.mubr.bf16.gmra.mrb[0].mxu0 %v2053
        %v4330 = vpop.f32.mrb[0].mxu0
        %v4331 = vadd.f32 0.0, %v4330
        %v4332 = vpop.f32.mrb[0].mxu0
        %v4333 = vadd.f32 0.0, %v4332
        %v4334 = vpop.f32.mrb[0].mxu0
        %v4335 = vadd.f32 0.0, %v4334
        %v4336 = vpop.f32.mrb[0].mxu0
        %v4337 = vadd.f32 0.0, %v4336
        %4338 = vmatprep.mubr.bf16.mxu0 0
        %4339 = vmatmul.mubr.bf16.gmra.mrb[0].mxu0 %v2054
        %v4340 = vpop.f32.mrb[0].mxu0
        %v4341 = vadd.f32 0.0, %v4340
        %v4342 = vpop.f32.mrb[0].mxu0
        %v4343 = vadd.f32 0.0, %v4342
        %v4344 = vpop.f32.mrb[0].mxu0
        %v4345 = vadd.f32 0.0, %v4344
        %v4346 = vpop.f32.mrb[0].mxu0
        %v4347 = vadd.f32 0.0, %v4346
        %4348 = vmatprep.mubr.bf16.mxu0 0
        %4349 = vmatmul.mubr.bf16.gmra.mrb[0].mxu0 %v2055
        %v4350 = vpop.f32.mrb[0].mxu0
        %v4351 = vadd.f32 0.0, %v4350
        %v4352 = vpop.f32.mrb[0].mxu0
        %v4353 = vadd.f32 0.0, %v4352
        %v4354 = vpop.f32.mrb[0].mxu0
        %v4355 = vadd.f32 0.0, %v4354
        %v4356 = vpop.f32.mrb[0].mxu0
        %v4357 = vadd.f32 0.0, %v4356
        %4358 = vmatprep.mubr.bf16.mxu0 0
        %4359 = vmatmul.mubr.bf16.gmra.mrb[0].mxu0 %v2056
        %v4360 = vpop.f32.mrb[0].mxu0
        %v4361 = vadd.f32 0.0, %v4360
        %v4362 = vpop.f32.mrb[0].mxu0
        %v4363 = vadd.f32 0.0, %v4362
        %v4364 = vpop.f32.mrb[0].mxu0
        %v4365 = vadd.f32 0.0, %v4364
        %v4366 = vpop.f32.mrb[0].mxu0
        %v4367 = vadd.f32 0.0, %v4366
        %4368 = vmatprep.mubr.bf16.mxu0 0
        %4369 = vmatmul.mubr.bf16.gmra.mrb[0].mxu0 %v2057
        %v4370 = vpop.f32.mrb[0].mxu0
        %v4371 = vadd.f32 0.0, %v4370
        %v4372 = vpop.f32.mrb[0].mxu0
        %v4373 = vadd.f32 0.0, %v4372
        %v4374 = vpop.f32.mrb[0].mxu0
        %v4375 = vadd.f32 0.0, %v4374
        %v4376 = vpop.f32.mrb[0].mxu0
        %v4377 = vadd.f32 0.0, %v4376
        %4378 = vmatprep.mubr.bf16.mxu0 0
        %4379 = vmatmul.mubr.bf16.gmra.mrb[0].mxu0 %v2058
        %v4380 = vpop.f32.mrb[0].mxu0
        %v4381 = vadd.f32 0.0, %v4380
        %v4382 = vpop.f32.mrb[0].mxu0
        %v4383 = vadd.f32 0.0, %v4382
        %v4384 = vpop.f32.mrb[0].mxu0
        %v4385 = vadd.f32 0.0, %v4384
        %v4386 = vpop.f32.mrb[0].mxu0
        %v4387 = vadd.f32 0.0, %v4386
        %4388 = vmatprep.mubr.bf16.mxu0 0
        %4389 = vmatmul.mubr.bf16.gmra.mrb[0].mxu0 %v2059
        %v4390 = vpop.f32.mrb[0].mxu0
        %v4391 = vadd.f32 0.0, %v4390
        %v4392 = vpop.f32.mrb[0].mxu0
        %v4393 = vadd.f32 0.0, %v4392
        %v4394 = vpop.f32.mrb[0].mxu0
        %v4395 = vadd.f32 0.0, %v4394
        %v4396 = vpop.f32.mrb[0].mxu0
        %v4397 = vadd.f32 0.0, %v4396
        %4398 = vdwg.mxu0
        %v4399 = vmax.f32 %v4081, %v4085
        %v4400 = vmax.f32 %v4399, %v4091
        %v4401 = vmax.f32 %v4400, %v4095
        %v4402 = vmax.f32 %v4401, %v4101
        %v4403 = vmax.f32 %v4402, %v4105
        %v4404 = vmax.f32 %v4403, %v4111
        %v4405 = vmax.f32 %v4404, %v4115
        %v4406 = vmax.f32 %v4405, %v4121
        %v4407 = vmax.f32 %v4406, %v4125
        %v4408 = vmax.f32 %v4407, %v4131
        %v4409 = vmax.f32 %v4408, %v4135
        %v4410 = vmax.f32 %v4409, %v4141
        %v4411 = vmax.f32 %v4410, %v4145
        %v4412 = vmax.f32 %v4411, %v4151
        %v4413 = vmax.f32 %v4412, %v4155
        %v4414 = vmax.f32 %v4413, %v4161
        %v4415 = vmax.f32 %v4414, %v4165
        %v4416 = vmax.f32 %v4415, %v4171
        %v4417 = vmax.f32 %v4416, %v4175
        %v4418 = vmax.f32 %v4417, %v4181
        %v4419 = vmax.f32 %v4418, %v4185
        %v4420 = vmax.f32 %v4419, %v4191
        %v4421 = vmax.f32 %v4420, %v4195
        %v4422 = vmax.f32 %v4421, %v4201
        %v4423 = vmax.f32 %v4422, %v4205
        %v4424 = vmax.f32 %v4423, %v4211
        %v4425 = vmax.f32 %v4424, %v4215
        %v4426 = vmax.f32 %v4425, %v4221
        %v4427 = vmax.f32 %v4426, %v4225
        %v4428 = vmax.f32 %v4427, %v4231
        %v4429 = vmax.f32 %v4428, %v4235
        %v4430 = vrot.slane %v4429, 4
        %v4431 = vmax.f32 %v4429, %v4430
        %v4432 = vrot.slane %v4431, 2
        %v4433 = vmax.f32 %v4431, %v4432
        %v4434 = vrot.slane %v4433, 1
        %v4435 = vmax.f32 %v4433, %v4434
        %v4436 = vmax.f32 %v4083, %v4087
        %v4437 = vmax.f32 %v4436, %v4093
        %v4438 = vmax.f32 %v4437, %v4097
        %v4439 = vmax.f32 %v4438, %v4103
        %v4440 = vmax.f32 %v4439, %v4107
        %v4441 = vmax.f32 %v4440, %v4113
        %v4442 = vmax.f32 %v4441, %v4117
        %v4443 = vmax.f32 %v4442, %v4123
        %v4444 = vmax.f32 %v4443, %v4127
        %v4445 = vmax.f32 %v4444, %v4133
        %v4446 = vmax.f32 %v4445, %v4137
        %v4447 = vmax.f32 %v4446, %v4143
        %v4448 = vmax.f32 %v4447, %v4147
        %v4449 = vmax.f32 %v4448, %v4153
        %v4450 = vmax.f32 %v4449, %v4157
        %v4451 = vmax.f32 %v4450, %v4163
        %v4452 = vmax.f32 %v4451, %v4167
        %v4453 = vmax.f32 %v4452, %v4173
        %v4454 = vmax.f32 %v4453, %v4177
        %v4455 = vmax.f32 %v4454, %v4183
        %v4456 = vmax.f32 %v4455, %v4187
        %v4457 = vmax.f32 %v4456, %v4193
        %v4458 = vmax.f32 %v4457, %v4197
        %v4459 = vmax.f32 %v4458, %v4203
        %v4460 = vmax.f32 %v4459, %v4207
        %v4461 = vmax.f32 %v4460, %v4213
        %v4462 = vmax.f32 %v4461, %v4217
        %v4463 = vmax.f32 %v4462, %v4223
        %v4464 = vmax.f32 %v4463, %v4227
        %v4465 = vmax.f32 %v4464, %v4233
        %v4466 = vmax.f32 %v4465, %v4237
        %v4467 = vrot.slane %v4466, 4
        %v4468 = vmax.f32 %v4466, %v4467
        %v4469 = vrot.slane %v4468, 2
        %v4470 = vmax.f32 %v4468, %v4469
        %v4471 = vrot.slane %v4470, 1
        %v4472 = vmax.f32 %v4470, %v4471
        %v4473 = vmax.f32 %v4241, %v4245
        %v4474 = vmax.f32 %v4473, %v4251
        %v4475 = vmax.f32 %v4474, %v4255
        %v4476 = vmax.f32 %v4475, %v4261
        %v4477 = vmax.f32 %v4476, %v4265
        %v4478 = vmax.f32 %v4477, %v4271
        %v4479 = vmax.f32 %v4478, %v4275
        %v4480 = vmax.f32 %v4479, %v4281
        %v4481 = vmax.f32 %v4480, %v4285
        %v4482 = vmax.f32 %v4481, %v4291
        %v4483 = vmax.f32 %v4482, %v4295
        %v4484 = vmax.f32 %v4483, %v4301
        %v4485 = vmax.f32 %v4484, %v4305
        %v4486 = vmax.f32 %v4485, %v4311
        %v4487 = vmax.f32 %v4486, %v4315
        %v4488 = vmax.f32 %v4487, %v4321
        %v4489 = vmax.f32 %v4488, %v4325
        %v4490 = vmax.f32 %v4489, %v4331
        %v4491 = vmax.f32 %v4490, %v4335
        %v4492 = vmax.f32 %v4491, %v4341
        %v4493 = vmax.f32 %v4492, %v4345
        %v4494 = vmax.f32 %v4493, %v4351
        %v4495 = vmax.f32 %v4494, %v4355
        %v4496 = vmax.f32 %v4495, %v4361
        %v4497 = vmax.f32 %v4496, %v4365
        %v4498 = vmax.f32 %v4497, %v4371
        %v4499 = vmax.f32 %v4498, %v4375
        %v4500 = vmax.f32 %v4499, %v4381
        %v4501 = vmax.f32 %v4500, %v4385
        %v4502 = vmax.f32 %v4501, %v4391
        %v4503 = vmax.f32 %v4502, %v4395
        %v4504 = vrot.slane %v4503, 4
        %v4505 = vmax.f32 %v4503, %v4504
        %v4506 = vrot.slane %v4505, 2
        %v4507 = vmax.f32 %v4505, %v4506
        %v4508 = vrot.slane %v4507, 1
        %v4509 = vmax.f32 %v4507, %v4508
        %v4510 = vmax.f32 %v4243, %v4247
        %v4511 = vmax.f32 %v4510, %v4253
        %v4512 = vmax.f32 %v4511, %v4257
        %v4513 = vmax.f32 %v4512, %v4263
        %v4514 = vmax.f32 %v4513, %v4267
        %v4515 = vmax.f32 %v4514, %v4273
        %v4516 = vmax.f32 %v4515, %v4277
        %v4517 = vmax.f32 %v4516, %v4283
        %v4518 = vmax.f32 %v4517, %v4287
        %v4519 = vmax.f32 %v4518, %v4293
        %v4520 = vmax.f32 %v4519, %v4297
        %v4521 = vmax.f32 %v4520, %v4303
        %v4522 = vmax.f32 %v4521, %v4307
        %v4523 = vmax.f32 %v4522, %v4313
        %v4524 = vmax.f32 %v4523, %v4317
        %v4525 = vmax.f32 %v4524, %v4323
        %v4526 = vmax.f32 %v4525, %v4327
        %v4527 = vmax.f32 %v4526, %v4333
        %v4528 = vmax.f32 %v4527, %v4337
        %v4529 = vmax.f32 %v4528, %v4343
        %v4530 = vmax.f32 %v4529, %v4347
        %v4531 = vmax.f32 %v4530, %v4353
        %v4532 = vmax.f32 %v4531, %v4357
        %v4533 = vmax.f32 %v4532, %v4363
        %v4534 = vmax.f32 %v4533, %v4367
        %v4535 = vmax.f32 %v4534, %v4373
        %v4536 = vmax.f32 %v4535, %v4377
        %v4537 = vmax.f32 %v4536, %v4383
        %v4538 = vmax.f32 %v4537, %v4387
        %v4539 = vmax.f32 %v4538, %v4393
        %v4540 = vmax.f32 %v4539, %v4397
        %v4541 = vrot.slane %v4540, 4
        %v4542 = vmax.f32 %v4540, %v4541
        %v4543 = vrot.slane %v4542, 2
        %v4544 = vmax.f32 %v4542, %v4543
        %v4545 = vrot.slane %v4544, 1
        %v4546 = vmax.f32 %v4544, %v4545
        %v4547 = vld [vmem:[#allocation2 + $0xc] sm:$0xf]
        %v4552 = vcombine.low %v4435, %v4472
        %v4554 = vunpack.c.l.s4 1983009808
        %v4555 = vunpack.c.0.s8 %v4554
        %v4556 = vlaneseq
        %v4557 = vshrl.u32 %v4556, 7
        %v4558 = vsub.s32 %v4555, %v4557
        %v4559 = vrot.slane %v4552, %v4558
        %v4560 = vcombine.low %v4509, %v4546
        %v4562 = vunpack.c.l.s4 1983009808
        %v4563 = vunpack.c.0.s8 %v4562
        %v4564 = vlaneseq
        %v4565 = vshrl.u32 %v4564, 7
        %v4566 = vsub.s32 %v4563, %v4565
        %v4567 = vrot.slane %v4560, %v4566
        %v4568 = vsel %vm2678, %v4559, %v4559
        %v4569 = vsel %vm2680, %v4559, %v4568
        %v4570 = vrot.slane %v4567, 7
        %v4571 = vsel %vm2683, %v4570, %v4569
        %v4572 = vsel %vm2685, %v4570, %v4571
        %v4573 = vsel %vm2687, %v4570, %v4572
        %v4574 = vsel %vm2689, %v4570, %v4573
        %v4576 = vmax.f32 %v4547, %v4574
        %4577 = vst [vmem:[#allocation2 + $0xc] sm:$0xf] %v4576
        %p4578 = scmp.eq.s32.totalorder %s33, 1
        // Predicated region
        $region138: #{tpu_custom_call.1} parent=108 // pred_check
          %p4579 = pneg %p4578
        $region139: #{tpu_custom_call.1} parent=108 // pred_check_branch
          %4581 = sbr.rel (%p4579) target = $region141
        $region140: #{tpu_custom_call.1} parent=108 // pred_region
          %v4582 = vld [vmem:[#allocation2] sm:$0xff]
          %v4583 = vld [vmem:[#allocation2 + $0x8] sm:$0xff]
          %v4584 = vld [vmem:[%s6] sm:$0xff]
          %v4586 = vlaneseq
          %v4587 = vshrl.u32 %v4586, 7
          %v4588 = vsub.s32 0, %v4587
          %v4589 = vrot.slane %v4584, %v4588
          %v4590 = vlaneseq
          %v4591 = vshrl.u32 %v4590, 7
          %v4592 = vsub.s32 1, %v4591
          %v4593 = vrot.slane %v4584, %v4592
          %v4594 = vlaneseq
          %v4595 = vshrl.u32 %v4594, 7
          %v4596 = vsub.s32 2, %v4595
          %v4597 = vrot.slane %v4584, %v4596
          %v4598 = vlaneseq
          %v4599 = vshrl.u32 %v4598, 7
          %v4600 = vsub.s32 3, %v4599
          %v4601 = vrot.slane %v4584, %v4600
          %v4602 = vlaneseq
          %v4603 = vshrl.u32 %v4602, 7
          %v4604 = vsub.s32 4, %v4603
          %v4605 = vrot.slane %v4584, %v4604
          %v4606 = vlaneseq
          %v4607 = vshrl.u32 %v4606, 7
          %v4608 = vsub.s32 5, %v4607
          %v4609 = vrot.slane %v4584, %v4608
          %v4610 = vlaneseq
          %v4611 = vshrl.u32 %v4610, 7
          %v4612 = vsub.s32 6, %v4611
          %v4613 = vrot.slane %v4584, %v4612
          %v4614 = vlaneseq
          %v4615 = vshrl.u32 %v4614, 7
          %v4616 = vsub.s32 7, %v4615
          %v4617 = vrot.slane %v4584, %v4616
          %v4618 = vcombine.low %v4589, %v4593
          %v4619 = vcombine.low %v4597, %v4601
          %v4621 = vunpack.c.l.s4 1983009808
          %v4622 = vunpack.c.0.s8 %v4621
          %v4623 = vlaneseq
          %v4624 = vshrl.u32 %v4623, 7
          %v4625 = vsub.s32 %v4622, %v4624
          %v4626 = vrot.slane %v4618, %v4625
          %v4628 = vunpack.c.l.s4 1983009808
          %v4629 = vunpack.c.0.s8 %v4628
          %v4630 = vlaneseq
          %v4631 = vshrl.u32 %v4630, 7
          %v4632 = vsub.s32 %v4629, %v4631
          %v4633 = vrot.slane %v4619, %v4632
          %v4634 = vcombine.low %v4626, %v4633
          %v4635 = vcombine.low %v4605, %v4609
          %v4636 = vcombine.low %v4613, %v4617
          %v4638 = vunpack.c.l.s4 1983009808
          %v4639 = vunpack.c.0.s8 %v4638
          %v4640 = vlaneseq
          %v4641 = vshrl.u32 %v4640, 7
          %v4642 = vsub.s32 %v4639, %v4641
          %v4643 = vrot.slane %v4635, %v4642
          %v4645 = vunpack.c.l.s4 1983009808
          %v4646 = vunpack.c.0.s8 %v4645
          %v4647 = vlaneseq
          %v4648 = vshrl.u32 %v4647, 7
          %v4649 = vsub.s32 %v4646, %v4648
          %v4650 = vrot.slane %v4636, %v4649
          %v4651 = vcombine.low %v4643, %v4650
          %v4654 = vadd.f32 %v4582, %v4634
          %v4655 = vadd.f32 %v4583, %v4651
          %v4656 = vmax.f32 %v4654, 0.0
          %v4657 = vmax.f32 %v4655, 0.0
          %v4660 = vcombine.high %v4656, %v4656
          %v4662 = vunpack.c.l.s4 1983009808
          %v4663 = vunpack.c.0.s8 %v4662
          %v4664 = vlaneseq
          %v4665 = vshrl.u32 %v4664, 7
          %v4666 = vsub.s32 %v4663, %v4665
          %v4667 = vrot.slane %v4656, %v4666
          %v4669 = vunpack.c.l.s4 1983009808
          %v4670 = vunpack.c.0.s8 %v4669
          %v4671 = vlaneseq
          %v4672 = vshrl.u32 %v4671, 7
          %v4673 = vsub.s32 %v4670, %v4672
          %v4674 = vrot.slane %v4660, %v4673
          %v4675 = vcombine.high %v4667, %v4667
          %v4676 = vcombine.high %v4674, %v4674
          %v4677 = vcombine.high %v4657, %v4657
          %v4679 = vunpack.c.l.s4 1983009808
          %v4680 = vunpack.c.0.s8 %v4679
          %v4681 = vlaneseq
          %v4682 = vshrl.u32 %v4681, 7
          %v4683 = vsub.s32 %v4680, %v4682
          %v4684 = vrot.slane %v4657, %v4683
          %v4686 = vunpack.c.l.s4 1983009808
          %v4687 = vunpack.c.0.s8 %v4686
          %v4688 = vlaneseq
          %v4689 = vshrl.u32 %v4688, 7
          %v4690 = vsub.s32 %v4687, %v4689
          %v4691 = vrot.slane %v4677, %v4690
          %v4692 = vcombine.high %v4684, %v4684
          %v4693 = vcombine.high %v4691, %v4691
          %v4702 = vpack.c.bf16 %v4667, %v4667
          %v4703 = vpack.c.bf16 %v4675, %v4675
          %v4704 = vpack.c.bf16 %v4674, %v4674
          %v4705 = vpack.c.bf16 %v4676, %v4676
          %v4706 = vpack.c.bf16 %v4684, %v4684
          %v4707 = vpack.c.bf16 %v4692, %v4692
          %v4708 = vpack.c.bf16 %v4691, %v4691
          %v4709 = vpack.c.bf16 %v4693, %v4693
          %v4710 = vld [vmem:[#allocation9] sm:$0xff]
          %v4711 = vld [vmem:[#allocation9 + $0x8] sm:$0xff]
          %v4712 = vld [vmem:[#allocation9 + $0x10] sm:$0xff]
          %v4713 = vld [vmem:[#allocation9 + $0x18] sm:$0xff]
          %v4714 = vld [vmem:[#allocation9 + $0x20] sm:$0xff]
          %v4715 = vld [vmem:[#allocation9 + $0x28] sm:$0xff]
          %v4716 = vld [vmem:[#allocation9 + $0x30] sm:$0xff]
          %v4717 = vld [vmem:[#allocation9 + $0x38] sm:$0xff]
          %v4718 = vld [vmem:[#allocation9 + $0x40] sm:$0xff]
          %v4719 = vld [vmem:[#allocation9 + $0x48] sm:$0xff]
          %v4720 = vld [vmem:[#allocation9 + $0x50] sm:$0xff]
          %v4721 = vld [vmem:[#allocation9 + $0x58] sm:$0xff]
          %v4722 = vld [vmem:[#allocation9 + $0x60] sm:$0xff]
          %v4723 = vld [vmem:[#allocation9 + $0x68] sm:$0xff]
          %v4724 = vld [vmem:[#allocation9 + $0x70] sm:$0xff]
          %v4725 = vld [vmem:[#allocation9 + $0x78] sm:$0xff]
          %v4726 = vld [vmem:[#allocation9 + $0x80] sm:$0xff]
          %v4727 = vld [vmem:[#allocation9 + $0x88] sm:$0xff]
          %v4728 = vld [vmem:[#allocation9 + $0x90] sm:$0xff]
          %v4729 = vld [vmem:[#allocation9 + $0x98] sm:$0xff]
          %v4730 = vld [vmem:[#allocation9 + $0xa0] sm:$0xff]
          %v4731 = vld [vmem:[#allocation9 + $0xa8] sm:$0xff]
          %v4732 = vld [vmem:[#allocation9 + $0xb0] sm:$0xff]
          %v4733 = vld [vmem:[#allocation9 + $0xb8] sm:$0xff]
          %v4734 = vld [vmem:[#allocation9 + $0xc0] sm:$0xff]
          %v4735 = vld [vmem:[#allocation9 + $0xc8] sm:$0xff]
          %v4736 = vld [vmem:[#allocation9 + $0xd0] sm:$0xff]
          %v4737 = vld [vmem:[#allocation9 + $0xd8] sm:$0xff]
          %v4738 = vld [vmem:[#allocation9 + $0xe0] sm:$0xff]
          %v4739 = vld [vmem:[#allocation9 + $0xe8] sm:$0xff]
          %v4740 = vld [vmem:[#allocation9 + $0xf0] sm:$0xff]
          %v4741 = vld [vmem:[#allocation9 + $0xf8] sm:$0xff]
          %v4742 = vld [vmem:[#allocation9 + $0x100] sm:$0xff]
          %v4743 = vld [vmem:[#allocation9 + $0x108] sm:$0xff]
          %v4744 = vld [vmem:[#allocation9 + $0x110] sm:$0xff]
          %v4745 = vld [vmem:[#allocation9 + $0x118] sm:$0xff]
          %v4746 = vld [vmem:[#allocation9 + $0x120] sm:$0xff]
          %v4747 = vld [vmem:[#allocation9 + $0x128] sm:$0xff]
          %v4748 = vld [vmem:[#allocation9 + $0x130] sm:$0xff]
          %v4749 = vld [vmem:[#allocation9 + $0x138] sm:$0xff]
          %v4750 = vld [vmem:[#allocation9 + $0x140] sm:$0xff]
          %v4751 = vld [vmem:[#allocation9 + $0x148] sm:$0xff]
          %v4752 = vld [vmem:[#allocation9 + $0x150] sm:$0xff]
          %v4753 = vld [vmem:[#allocation9 + $0x158] sm:$0xff]
          %v4754 = vld [vmem:[#allocation9 + $0x160] sm:$0xff]
          %v4755 = vld [vmem:[#allocation9 + $0x168] sm:$0xff]
          %v4756 = vld [vmem:[#allocation9 + $0x170] sm:$0xff]
          %v4757 = vld [vmem:[#allocation9 + $0x178] sm:$0xff]
          %v4758 = vld [vmem:[#allocation9 + $0x180] sm:$0xff]
          %v4759 = vld [vmem:[#allocation9 + $0x188] sm:$0xff]
          %v4760 = vld [vmem:[#allocation9 + $0x190] sm:$0xff]
          %v4761 = vld [vmem:[#allocation9 + $0x198] sm:$0xff]
          %v4762 = vld [vmem:[#allocation9 + $0x1a0] sm:$0xff]
          %v4763 = vld [vmem:[#allocation9 + $0x1a8] sm:$0xff]
          %v4764 = vld [vmem:[#allocation9 + $0x1b0] sm:$0xff]
          %v4765 = vld [vmem:[#allocation9 + $0x1b8] sm:$0xff]
          %v4766 = vld [vmem:[#allocation9 + $0x1c0] sm:$0xff]
          %v4767 = vld [vmem:[#allocation9 + $0x1c8] sm:$0xff]
          %v4768 = vld [vmem:[#allocation9 + $0x1d0] sm:$0xff]
          %v4769 = vld [vmem:[#allocation9 + $0x1d8] sm:$0xff]
          %v4770 = vld [vmem:[#allocation9 + $0x1e0] sm:$0xff]
          %v4771 = vld [vmem:[#allocation9 + $0x1e8] sm:$0xff]
          %v4772 = vld [vmem:[#allocation9 + $0x1f0] sm:$0xff]
          %v4773 = vld [vmem:[#allocation9 + $0x1f8] sm:$0xff]
          %v4774 = vld [vmem:[#allocation9 + $0x200] sm:$0xff]
          %v4775 = vld [vmem:[#allocation9 + $0x208] sm:$0xff]
          %v4776 = vld [vmem:[#allocation9 + $0x210] sm:$0xff]
          %v4777 = vld [vmem:[#allocation9 + $0x218] sm:$0xff]
          %v4778 = vld [vmem:[#allocation9 + $0x220] sm:$0xff]
          %v4779 = vld [vmem:[#allocation9 + $0x228] sm:$0xff]
          %v4780 = vld [vmem:[#allocation9 + $0x230] sm:$0xff]
          %v4781 = vld [vmem:[#allocation9 + $0x238] sm:$0xff]
          %v4782 = vld [vmem:[#allocation9 + $0x240] sm:$0xff]
          %v4783 = vld [vmem:[#allocation9 + $0x248] sm:$0xff]
          %v4784 = vld [vmem:[#allocation9 + $0x250] sm:$0xff]
          %v4785 = vld [vmem:[#allocation9 + $0x258] sm:$0xff]
          %v4786 = vld [vmem:[#allocation9 + $0x260] sm:$0xff]
          %v4787 = vld [vmem:[#allocation9 + $0x268] sm:$0xff]
          %v4788 = vld [vmem:[#allocation9 + $0x270] sm:$0xff]
          %v4789 = vld [vmem:[#allocation9 + $0x278] sm:$0xff]
          %v4790 = vld [vmem:[#allocation9 + $0x280] sm:$0xff]
          %v4791 = vld [vmem:[#allocation9 + $0x288] sm:$0xff]
          %v4792 = vld [vmem:[#allocation9 + $0x290] sm:$0xff]
          %v4793 = vld [vmem:[#allocation9 + $0x298] sm:$0xff]
          %v4794 = vld [vmem:[#allocation9 + $0x2a0] sm:$0xff]
          %v4795 = vld [vmem:[#allocation9 + $0x2a8] sm:$0xff]
          %v4796 = vld [vmem:[#allocation9 + $0x2b0] sm:$0xff]
          %v4797 = vld [vmem:[#allocation9 + $0x2b8] sm:$0xff]
          %v4798 = vld [vmem:[#allocation9 + $0x2c0] sm:$0xff]
          %v4799 = vld [vmem:[#allocation9 + $0x2c8] sm:$0xff]
          %v4800 = vld [vmem:[#allocation9 + $0x2d0] sm:$0xff]
          %v4801 = vld [vmem:[#allocation9 + $0x2d8] sm:$0xff]
          %v4802 = vld [vmem:[#allocation9 + $0x2e0] sm:$0xff]
          %v4803 = vld [vmem:[#allocation9 + $0x2e8] sm:$0xff]
          %v4804 = vld [vmem:[#allocation9 + $0x2f0] sm:$0xff]
          %v4805 = vld [vmem:[#allocation9 + $0x2f8] sm:$0xff]
          %v4806 = vld [vmem:[#allocation9 + $0x300] sm:$0xff]
          %v4807 = vld [vmem:[#allocation9 + $0x308] sm:$0xff]
          %v4808 = vld [vmem:[#allocation9 + $0x310] sm:$0xff]
          %v4809 = vld [vmem:[#allocation9 + $0x318] sm:$0xff]
          %v4810 = vld [vmem:[#allocation9 + $0x320] sm:$0xff]
          %v4811 = vld [vmem:[#allocation9 + $0x328] sm:$0xff]
          %v4812 = vld [vmem:[#allocation9 + $0x330] sm:$0xff]
          %v4813 = vld [vmem:[#allocation9 + $0x338] sm:$0xff]
          %v4814 = vld [vmem:[#allocation9 + $0x340] sm:$0xff]
          %v4815 = vld [vmem:[#allocation9 + $0x348] sm:$0xff]
          %v4816 = vld [vmem:[#allocation9 + $0x350] sm:$0xff]
          %v4817 = vld [vmem:[#allocation9 + $0x358] sm:$0xff]
          %v4818 = vld [vmem:[#allocation9 + $0x360] sm:$0xff]
          %v4819 = vld [vmem:[#allocation9 + $0x368] sm:$0xff]
          %v4820 = vld [vmem:[#allocation9 + $0x370] sm:$0xff]
          %v4821 = vld [vmem:[#allocation9 + $0x378] sm:$0xff]
          %v4822 = vld [vmem:[#allocation9 + $0x380] sm:$0xff]
          %v4823 = vld [vmem:[#allocation9 + $0x388] sm:$0xff]
          %v4824 = vld [vmem:[#allocation9 + $0x390] sm:$0xff]
          %v4825 = vld [vmem:[#allocation9 + $0x398] sm:$0xff]
          %v4826 = vld [vmem:[#allocation9 + $0x3a0] sm:$0xff]
          %v4827 = vld [vmem:[#allocation9 + $0x3a8] sm:$0xff]
          %v4828 = vld [vmem:[#allocation9 + $0x3b0] sm:$0xff]
          %v4829 = vld [vmem:[#allocation9 + $0x3b8] sm:$0xff]
          %v4830 = vld [vmem:[#allocation9 + $0x3c0] sm:$0xff]
          %v4831 = vld [vmem:[#allocation9 + $0x3c8] sm:$0xff]
          %v4832 = vld [vmem:[#allocation9 + $0x3d0] sm:$0xff]
          %v4833 = vld [vmem:[#allocation9 + $0x3d8] sm:$0xff]
          %v4834 = vld [vmem:[#allocation9 + $0x3e0] sm:$0xff]
          %v4835 = vld [vmem:[#allocation9 + $0x3e8] sm:$0xff]
          %v4836 = vld [vmem:[#allocation9 + $0x3f0] sm:$0xff]
          %v4837 = vld [vmem:[#allocation9 + $0x3f8] sm:$0xff]
          %v4838 = vld [vmem:[#allocation9 + $0x400] sm:$0xff]
          %v4839 = vld [vmem:[#allocation9 + $0x408] sm:$0xff]
          %v4840 = vld [vmem:[#allocation9 + $0x410] sm:$0xff]
          %v4841 = vld [vmem:[#allocation9 + $0x418] sm:$0xff]
          %v4842 = vld [vmem:[#allocation9 + $0x420] sm:$0xff]
          %v4843 = vld [vmem:[#allocation9 + $0x428] sm:$0xff]
          %v4844 = vld [vmem:[#allocation9 + $0x430] sm:$0xff]
          %v4845 = vld [vmem:[#allocation9 + $0x438] sm:$0xff]
          %v4846 = vld [vmem:[#allocation9 + $0x440] sm:$0xff]
          %v4847 = vld [vmem:[#allocation9 + $0x448] sm:$0xff]
          %v4848 = vld [vmem:[#allocation9 + $0x450] sm:$0xff]
          %v4849 = vld [vmem:[#allocation9 + $0x458] sm:$0xff]
          %v4850 = vld [vmem:[#allocation9 + $0x460] sm:$0xff]
          %v4851 = vld [vmem:[#allocation9 + $0x468] sm:$0xff]
          %v4852 = vld [vmem:[#allocation9 + $0x470] sm:$0xff]
          %v4853 = vld [vmem:[#allocation9 + $0x478] sm:$0xff]
          %v4854 = vld [vmem:[#allocation9 + $0x480] sm:$0xff]
          %v4855 = vld [vmem:[#allocation9 + $0x488] sm:$0xff]
          %v4856 = vld [vmem:[#allocation9 + $0x490] sm:$0xff]
          %v4857 = vld [vmem:[#allocation9 + $0x498] sm:$0xff]
          %v4858 = vld [vmem:[#allocation9 + $0x4a0] sm:$0xff]
          %v4859 = vld [vmem:[#allocation9 + $0x4a8] sm:$0xff]
          %v4860 = vld [vmem:[#allocation9 + $0x4b0] sm:$0xff]
          %v4861 = vld [vmem:[#allocation9 + $0x4b8] sm:$0xff]
          %v4862 = vld [vmem:[#allocation9 + $0x4c0] sm:$0xff]
          %v4863 = vld [vmem:[#allocation9 + $0x4c8] sm:$0xff]
          %v4864 = vld [vmem:[#allocation9 + $0x4d0] sm:$0xff]
          %v4865 = vld [vmem:[#allocation9 + $0x4d8] sm:$0xff]
          %v4866 = vld [vmem:[#allocation9 + $0x4e0] sm:$0xff]
          %v4867 = vld [vmem:[#allocation9 + $0x4e8] sm:$0xff]
          %v4868 = vld [vmem:[#allocation9 + $0x4f0] sm:$0xff]
          %v4869 = vld [vmem:[#allocation9 + $0x4f8] sm:$0xff]
          %v4870 = vld [vmem:[#allocation9 + $0x500] sm:$0xff]
          %v4871 = vld [vmem:[#allocation9 + $0x508] sm:$0xff]
          %v4872 = vld [vmem:[#allocation9 + $0x510] sm:$0xff]
          %v4873 = vld [vmem:[#allocation9 + $0x518] sm:$0xff]
          %v4874 = vld [vmem:[#allocation9 + $0x520] sm:$0xff]
          %v4875 = vld [vmem:[#allocation9 + $0x528] sm:$0xff]
          %v4876 = vld [vmem:[#allocation9 + $0x530] sm:$0xff]
          %v4877 = vld [vmem:[#allocation9 + $0x538] sm:$0xff]
          %v4878 = vld [vmem:[#allocation9 + $0x540] sm:$0xff]
          %v4879 = vld [vmem:[#allocation9 + $0x548] sm:$0xff]
          %v4880 = vld [vmem:[#allocation9 + $0x550] sm:$0xff]
          %v4881 = vld [vmem:[#allocation9 + $0x558] sm:$0xff]
          %v4882 = vld [vmem:[#allocation9 + $0x560] sm:$0xff]
          %v4883 = vld [vmem:[#allocation9 + $0x568] sm:$0xff]
          %v4884 = vld [vmem:[#allocation9 + $0x570] sm:$0xff]
          %v4885 = vld [vmem:[#allocation9 + $0x578] sm:$0xff]
          %v4886 = vld [vmem:[#allocation9 + $0x580] sm:$0xff]
          %v4887 = vld [vmem:[#allocation9 + $0x588] sm:$0xff]
          %v4888 = vld [vmem:[#allocation9 + $0x590] sm:$0xff]
          %v4889 = vld [vmem:[#allocation9 + $0x598] sm:$0xff]
          %v4890 = vld [vmem:[#allocation9 + $0x5a0] sm:$0xff]
          %v4891 = vld [vmem:[#allocation9 + $0x5a8] sm:$0xff]
          %v4892 = vld [vmem:[#allocation9 + $0x5b0] sm:$0xff]
          %v4893 = vld [vmem:[#allocation9 + $0x5b8] sm:$0xff]
          %v4894 = vld [vmem:[#allocation9 + $0x5c0] sm:$0xff]
          %v4895 = vld [vmem:[#allocation9 + $0x5c8] sm:$0xff]
          %v4896 = vld [vmem:[#allocation9 + $0x5d0] sm:$0xff]
          %v4897 = vld [vmem:[#allocation9 + $0x5d8] sm:$0xff]
          %v4898 = vld [vmem:[#allocation9 + $0x5e0] sm:$0xff]
          %v4899 = vld [vmem:[#allocation9 + $0x5e8] sm:$0xff]
          %v4900 = vld [vmem:[#allocation9 + $0x5f0] sm:$0xff]
          %v4901 = vld [vmem:[#allocation9 + $0x5f8] sm:$0xff]
          %v4902 = vld [vmem:[#allocation9 + $0x600] sm:$0xff]
          %v4903 = vld [vmem:[#allocation9 + $0x608] sm:$0xff]
          %v4904 = vld [vmem:[#allocation9 + $0x610] sm:$0xff]
          %v4905 = vld [vmem:[#allocation9 + $0x618] sm:$0xff]
          %v4906 = vld [vmem:[#allocation9 + $0x620] sm:$0xff]
          %v4907 = vld [vmem:[#allocation9 + $0x628] sm:$0xff]
          %v4908 = vld [vmem:[#allocation9 + $0x630] sm:$0xff]
          %v4909 = vld [vmem:[#allocation9 + $0x638] sm:$0xff]
          %v4910 = vld [vmem:[#allocation9 + $0x640] sm:$0xff]
          %v4911 = vld [vmem:[#allocation9 + $0x648] sm:$0xff]
          %v4912 = vld [vmem:[#allocation9 + $0x650] sm:$0xff]
          %v4913 = vld [vmem:[#allocation9 + $0x658] sm:$0xff]
          %v4914 = vld [vmem:[#allocation9 + $0x660] sm:$0xff]
          %v4915 = vld [vmem:[#allocation9 + $0x668] sm:$0xff]
          %v4916 = vld [vmem:[#allocation9 + $0x670] sm:$0xff]
          %v4917 = vld [vmem:[#allocation9 + $0x678] sm:$0xff]
          %v4918 = vld [vmem:[#allocation9 + $0x680] sm:$0xff]
          %v4919 = vld [vmem:[#allocation9 + $0x688] sm:$0xff]
          %v4920 = vld [vmem:[#allocation9 + $0x690] sm:$0xff]
          %v4921 = vld [vmem:[#allocation9 + $0x698] sm:$0xff]
          %v4922 = vld [vmem:[#allocation9 + $0x6a0] sm:$0xff]
          %v4923 = vld [vmem:[#allocation9 + $0x6a8] sm:$0xff]
          %v4924 = vld [vmem:[#allocation9 + $0x6b0] sm:$0xff]
          %v4925 = vld [vmem:[#allocation9 + $0x6b8] sm:$0xff]
          %v4926 = vld [vmem:[#allocation9 + $0x6c0] sm:$0xff]
          %v4927 = vld [vmem:[#allocation9 + $0x6c8] sm:$0xff]
          %v4928 = vld [vmem:[#allocation9 + $0x6d0] sm:$0xff]
          %v4929 = vld [vmem:[#allocation9 + $0x6d8] sm:$0xff]
          %v4930 = vld [vmem:[#allocation9 + $0x6e0] sm:$0xff]
          %v4931 = vld [vmem:[#allocation9 + $0x6e8] sm:$0xff]
          %v4932 = vld [vmem:[#allocation9 + $0x6f0] sm:$0xff]
          %v4933 = vld [vmem:[#allocation9 + $0x6f8] sm:$0xff]
          %v4934 = vld [vmem:[#allocation9 + $0x700] sm:$0xff]
          %v4935 = vld [vmem:[#allocation9 + $0x708] sm:$0xff]
          %v4936 = vld [vmem:[#allocation9 + $0x710] sm:$0xff]
          %v4937 = vld [vmem:[#allocation9 + $0x718] sm:$0xff]
          %v4938 = vld [vmem:[#allocation9 + $0x720] sm:$0xff]
          %v4939 = vld [vmem:[#allocation9 + $0x728] sm:$0xff]
          %v4940 = vld [vmem:[#allocation9 + $0x730] sm:$0xff]
          %v4941 = vld [vmem:[#allocation9 + $0x738] sm:$0xff]
          %v4942 = vld [vmem:[#allocation9 + $0x740] sm:$0xff]
          %v4943 = vld [vmem:[#allocation9 + $0x748] sm:$0xff]
          %v4944 = vld [vmem:[#allocation9 + $0x750] sm:$0xff]
          %v4945 = vld [vmem:[#allocation9 + $0x758] sm:$0xff]
          %v4946 = vld [vmem:[#allocation9 + $0x760] sm:$0xff]
          %v4947 = vld [vmem:[#allocation9 + $0x768] sm:$0xff]
          %v4948 = vld [vmem:[#allocation9 + $0x770] sm:$0xff]
          %v4949 = vld [vmem:[#allocation9 + $0x778] sm:$0xff]
          %v4950 = vld [vmem:[#allocation9 + $0x780] sm:$0xff]
          %v4951 = vld [vmem:[#allocation9 + $0x788] sm:$0xff]
          %v4952 = vld [vmem:[#allocation9 + $0x790] sm:$0xff]
          %v4953 = vld [vmem:[#allocation9 + $0x798] sm:$0xff]
          %v4954 = vld [vmem:[#allocation9 + $0x7a0] sm:$0xff]
          %v4955 = vld [vmem:[#allocation9 + $0x7a8] sm:$0xff]
          %v4956 = vld [vmem:[#allocation9 + $0x7b0] sm:$0xff]
          %v4957 = vld [vmem:[#allocation9 + $0x7b8] sm:$0xff]
          %v4958 = vld [vmem:[#allocation9 + $0x7c0] sm:$0xff]
          %v4959 = vld [vmem:[#allocation9 + $0x7c8] sm:$0xff]
          %v4960 = vld [vmem:[#allocation9 + $0x7d0] sm:$0xff]
          %v4961 = vld [vmem:[#allocation9 + $0x7d8] sm:$0xff]
          %v4962 = vld [vmem:[#allocation9 + $0x7e0] sm:$0xff]
          %v4963 = vld [vmem:[#allocation9 + $0x7e8] sm:$0xff]
          %v4964 = vld [vmem:[#allocation9 + $0x7f0] sm:$0xff]
          %v4965 = vld [vmem:[#allocation9 + $0x7f8] sm:$0xff]
          %v4966 = vld [vmem:[%s8] sm:$0xf]
          %v4968 = vlaneseq
          %v4969 = vshrl.u32 %v4968, 7
          %v4970 = vsub.s32 0, %v4969
          %v4971 = vrot.slane %v4966, %v4970
          %v4972 = vlaneseq
          %v4973 = vshrl.u32 %v4972, 7
          %v4974 = vsub.s32 1, %v4973
          %v4975 = vrot.slane %v4966, %v4974
          %v4976 = vlaneseq
          %v4977 = vshrl.u32 %v4976, 7
          %v4978 = vsub.s32 2, %v4977
          %v4979 = vrot.slane %v4966, %v4978
          %v4980 = vlaneseq
          %v4981 = vshrl.u32 %v4980, 7
          %v4982 = vsub.s32 3, %v4981
          %v4983 = vrot.slane %v4966, %v4982
          %v5244 = vunpack.c.l.b16 %v4710
          %v5245 = vunpack.c.h.b16 %v4710
          %v5246 = vunpack.c.l.b16 %v4711
          %v5247 = vunpack.c.h.b16 %v4711
          %v5248 = vunpack.c.l.b16 %v4712
          %v5249 = vunpack.c.h.b16 %v4712
          %v5250 = vunpack.c.l.b16 %v4713
          %v5251 = vunpack.c.h.b16 %v4713
          %v5252 = vunpack.c.l.b16 %v4714
          %v5253 = vunpack.c.h.b16 %v4714
          %v5254 = vunpack.c.l.b16 %v4715
          %v5255 = vunpack.c.h.b16 %v4715
          %v5256 = vunpack.c.l.b16 %v4716
          %v5257 = vunpack.c.h.b16 %v4716
          %v5258 = vunpack.c.l.b16 %v4717
          %v5259 = vunpack.c.h.b16 %v4717
          %v5260 = vunpack.c.l.b16 %v4718
          %v5261 = vunpack.c.h.b16 %v4718
          %v5262 = vunpack.c.l.b16 %v4719
          %v5263 = vunpack.c.h.b16 %v4719
          %v5264 = vunpack.c.l.b16 %v4720
          %v5265 = vunpack.c.h.b16 %v4720
          %v5266 = vunpack.c.l.b16 %v4721
          %v5267 = vunpack.c.h.b16 %v4721
          %v5268 = vunpack.c.l.b16 %v4722
          %v5269 = vunpack.c.h.b16 %v4722
          %v5270 = vunpack.c.l.b16 %v4723
          %v5271 = vunpack.c.h.b16 %v4723
          %v5272 = vunpack.c.l.b16 %v4724
          %v5273 = vunpack.c.h.b16 %v4724
          %v5274 = vunpack.c.l.b16 %v4725
          %v5275 = vunpack.c.h.b16 %v4725
          %v5276 = vunpack.c.l.b16 %v4726
          %v5277 = vunpack.c.h.b16 %v4726
          %v5278 = vunpack.c.l.b16 %v4727
          %v5279 = vunpack.c.h.b16 %v4727
          %v5280 = vunpack.c.l.b16 %v4728
          %v5281 = vunpack.c.h.b16 %v4728
          %v5282 = vunpack.c.l.b16 %v4729
          %v5283 = vunpack.c.h.b16 %v4729
          %v5284 = vunpack.c.l.b16 %v4730
          %v5285 = vunpack.c.h.b16 %v4730
          %v5286 = vunpack.c.l.b16 %v4731
          %v5287 = vunpack.c.h.b16 %v4731
          %v5288 = vunpack.c.l.b16 %v4732
          %v5289 = vunpack.c.h.b16 %v4732
          %v5290 = vunpack.c.l.b16 %v4733
          %v5291 = vunpack.c.h.b16 %v4733
          %v5292 = vunpack.c.l.b16 %v4734
          %v5293 = vunpack.c.h.b16 %v4734
          %v5294 = vunpack.c.l.b16 %v4735
          %v5295 = vunpack.c.h.b16 %v4735
          %v5296 = vunpack.c.l.b16 %v4736
          %v5297 = vunpack.c.h.b16 %v4736
          %v5298 = vunpack.c.l.b16 %v4737
          %v5299 = vunpack.c.h.b16 %v4737
          %v5300 = vunpack.c.l.b16 %v4738
          %v5301 = vunpack.c.h.b16 %v4738
          %v5302 = vunpack.c.l.b16 %v4739
          %v5303 = vunpack.c.h.b16 %v4739
          %v5304 = vunpack.c.l.b16 %v4740
          %v5305 = vunpack.c.h.b16 %v4740
          %v5306 = vunpack.c.l.b16 %v4741
          %v5307 = vunpack.c.h.b16 %v4741
          %v5308 = vunpack.c.l.b16 %v4742
          %v5309 = vunpack.c.h.b16 %v4742
          %v5310 = vunpack.c.l.b16 %v4743
          %v5311 = vunpack.c.h.b16 %v4743
          %v5312 = vunpack.c.l.b16 %v4744
          %v5313 = vunpack.c.h.b16 %v4744
          %v5314 = vunpack.c.l.b16 %v4745
          %v5315 = vunpack.c.h.b16 %v4745
          %v5316 = vunpack.c.l.b16 %v4746
          %v5317 = vunpack.c.h.b16 %v4746
          %v5318 = vunpack.c.l.b16 %v4747
          %v5319 = vunpack.c.h.b16 %v4747
          %v5320 = vunpack.c.l.b16 %v4748
          %v5321 = vunpack.c.h.b16 %v4748
          %v5322 = vunpack.c.l.b16 %v4749
          %v5323 = vunpack.c.h.b16 %v4749
          %v5324 = vunpack.c.l.b16 %v4750
          %v5325 = vunpack.c.h.b16 %v4750
          %v5326 = vunpack.c.l.b16 %v4751
          %v5327 = vunpack.c.h.b16 %v4751
          %v5328 = vunpack.c.l.b16 %v4752
          %v5329 = vunpack.c.h.b16 %v4752
          %v5330 = vunpack.c.l.b16 %v4753
          %v5331 = vunpack.c.h.b16 %v4753
          %v5332 = vunpack.c.l.b16 %v4754
          %v5333 = vunpack.c.h.b16 %v4754
          %v5334 = vunpack.c.l.b16 %v4755
          %v5335 = vunpack.c.h.b16 %v4755
          %v5336 = vunpack.c.l.b16 %v4756
          %v5337 = vunpack.c.h.b16 %v4756
          %v5338 = vunpack.c.l.b16 %v4757
          %v5339 = vunpack.c.h.b16 %v4757
          %v5340 = vunpack.c.l.b16 %v4758
          %v5341 = vunpack.c.h.b16 %v4758
          %v5342 = vunpack.c.l.b16 %v4759
          %v5343 = vunpack.c.h.b16 %v4759
          %v5344 = vunpack.c.l.b16 %v4760
          %v5345 = vunpack.c.h.b16 %v4760
          %v5346 = vunpack.c.l.b16 %v4761
          %v5347 = vunpack.c.h.b16 %v4761
          %v5348 = vunpack.c.l.b16 %v4762
          %v5349 = vunpack.c.h.b16 %v4762
          %v5350 = vunpack.c.l.b16 %v4763
          %v5351 = vunpack.c.h.b16 %v4763
          %v5352 = vunpack.c.l.b16 %v4764
          %v5353 = vunpack.c.h.b16 %v4764
          %v5354 = vunpack.c.l.b16 %v4765
          %v5355 = vunpack.c.h.b16 %v4765
          %v5356 = vunpack.c.l.b16 %v4766
          %v5357 = vunpack.c.h.b16 %v4766
          %v5358 = vunpack.c.l.b16 %v4767
          %v5359 = vunpack.c.h.b16 %v4767
          %v5360 = vunpack.c.l.b16 %v4768
          %v5361 = vunpack.c.h.b16 %v4768
          %v5362 = vunpack.c.l.b16 %v4769
          %v5363 = vunpack.c.h.b16 %v4769
          %v5364 = vunpack.c.l.b16 %v4770
          %v5365 = vunpack.c.h.b16 %v4770
          %v5366 = vunpack.c.l.b16 %v4771
          %v5367 = vunpack.c.h.b16 %v4771
          %v5368 = vunpack.c.l.b16 %v4772
          %v5369 = vunpack.c.h.b16 %v4772
          %v5370 = vunpack.c.l.b16 %v4773
          %v5371 = vunpack.c.h.b16 %v4773
          %v5372 = vunpack.c.l.b16 %v4774
          %v5373 = vunpack.c.h.b16 %v4774
          %v5374 = vunpack.c.l.b16 %v4775
          %v5375 = vunpack.c.h.b16 %v4775
          %v5376 = vunpack.c.l.b16 %v4776
          %v5377 = vunpack.c.h.b16 %v4776
          %v5378 = vunpack.c.l.b16 %v4777
          %v5379 = vunpack.c.h.b16 %v4777
          %v5380 = vunpack.c.l.b16 %v4778
          %v5381 = vunpack.c.h.b16 %v4778
          %v5382 = vunpack.c.l.b16 %v4779
          %v5383 = vunpack.c.h.b16 %v4779
          %v5384 = vunpack.c.l.b16 %v4780
          %v5385 = vunpack.c.h.b16 %v4780
          %v5386 = vunpack.c.l.b16 %v4781
          %v5387 = vunpack.c.h.b16 %v4781
          %v5388 = vunpack.c.l.b16 %v4782
          %v5389 = vunpack.c.h.b16 %v4782
          %v5390 = vunpack.c.l.b16 %v4783
          %v5391 = vunpack.c.h.b16 %v4783
          %v5392 = vunpack.c.l.b16 %v4784
          %v5393 = vunpack.c.h.b16 %v4784
          %v5394 = vunpack.c.l.b16 %v4785
          %v5395 = vunpack.c.h.b16 %v4785
          %v5396 = vunpack.c.l.b16 %v4786
          %v5397 = vunpack.c.h.b16 %v4786
          %v5398 = vunpack.c.l.b16 %v4787
          %v5399 = vunpack.c.h.b16 %v4787
          %v5400 = vunpack.c.l.b16 %v4788
          %v5401 = vunpack.c.h.b16 %v4788
          %v5402 = vunpack.c.l.b16 %v4789
          %v5403 = vunpack.c.h.b16 %v4789
          %v5404 = vunpack.c.l.b16 %v4790
          %v5405 = vunpack.c.h.b16 %v4790
          %v5406 = vunpack.c.l.b16 %v4791
          %v5407 = vunpack.c.h.b16 %v4791
          %v5408 = vunpack.c.l.b16 %v4792
          %v5409 = vunpack.c.h.b16 %v4792
          %v5410 = vunpack.c.l.b16 %v4793
          %v5411 = vunpack.c.h.b16 %v4793
          %v5412 = vunpack.c.l.b16 %v4794
          %v5413 = vunpack.c.h.b16 %v4794
          %v5414 = vunpack.c.l.b16 %v4795
          %v5415 = vunpack.c.h.b16 %v4795
          %v5416 = vunpack.c.l.b16 %v4796
          %v5417 = vunpack.c.h.b16 %v4796
          %v5418 = vunpack.c.l.b16 %v4797
          %v5419 = vunpack.c.h.b16 %v4797
          %v5420 = vunpack.c.l.b16 %v4798
          %v5421 = vunpack.c.h.b16 %v4798
          %v5422 = vunpack.c.l.b16 %v4799
          %v5423 = vunpack.c.h.b16 %v4799
          %v5424 = vunpack.c.l.b16 %v4800
          %v5425 = vunpack.c.h.b16 %v4800
          %v5426 = vunpack.c.l.b16 %v4801
          %v5427 = vunpack.c.h.b16 %v4801
          %v5428 = vunpack.c.l.b16 %v4802
          %v5429 = vunpack.c.h.b16 %v4802
          %v5430 = vunpack.c.l.b16 %v4803
          %v5431 = vunpack.c.h.b16 %v4803
          %v5432 = vunpack.c.l.b16 %v4804
          %v5433 = vunpack.c.h.b16 %v4804
          %v5434 = vunpack.c.l.b16 %v4805
          %v5435 = vunpack.c.h.b16 %v4805
          %v5436 = vunpack.c.l.b16 %v4806
          %v5437 = vunpack.c.h.b16 %v4806
          %v5438 = vunpack.c.l.b16 %v4807
          %v5439 = vunpack.c.h.b16 %v4807
          %v5440 = vunpack.c.l.b16 %v4808
          %v5441 = vunpack.c.h.b16 %v4808
          %v5442 = vunpack.c.l.b16 %v4809
          %v5443 = vunpack.c.h.b16 %v4809
          %v5444 = vunpack.c.l.b16 %v4810
          %v5445 = vunpack.c.h.b16 %v4810
          %v5446 = vunpack.c.l.b16 %v4811
          %v5447 = vunpack.c.h.b16 %v4811
          %v5448 = vunpack.c.l.b16 %v4812
          %v5449 = vunpack.c.h.b16 %v4812
          %v5450 = vunpack.c.l.b16 %v4813
          %v5451 = vunpack.c.h.b16 %v4813
          %v5452 = vunpack.c.l.b16 %v4814
          %v5453 = vunpack.c.h.b16 %v4814
          %v5454 = vunpack.c.l.b16 %v4815
          %v5455 = vunpack.c.h.b16 %v4815
          %v5456 = vunpack.c.l.b16 %v4816
          %v5457 = vunpack.c.h.b16 %v4816
          %v5458 = vunpack.c.l.b16 %v4817
          %v5459 = vunpack.c.h.b16 %v4817
          %v5460 = vunpack.c.l.b16 %v4818
          %v5461 = vunpack.c.h.b16 %v4818
          %v5462 = vunpack.c.l.b16 %v4819
          %v5463 = vunpack.c.h.b16 %v4819
          %v5464 = vunpack.c.l.b16 %v4820
          %v5465 = vunpack.c.h.b16 %v4820
          %v5466 = vunpack.c.l.b16 %v4821
          %v5467 = vunpack.c.h.b16 %v4821
          %v5468 = vunpack.c.l.b16 %v4822
          %v5469 = vunpack.c.h.b16 %v4822
          %v5470 = vunpack.c.l.b16 %v4823
          %v5471 = vunpack.c.h.b16 %v4823
          %v5472 = vunpack.c.l.b16 %v4824
          %v5473 = vunpack.c.h.b16 %v4824
          %v5474 = vunpack.c.l.b16 %v4825
          %v5475 = vunpack.c.h.b16 %v4825
          %v5476 = vunpack.c.l.b16 %v4826
          %v5477 = vunpack.c.h.b16 %v4826
          %v5478 = vunpack.c.l.b16 %v4827
          %v5479 = vunpack.c.h.b16 %v4827
          %v5480 = vunpack.c.l.b16 %v4828
          %v5481 = vunpack.c.h.b16 %v4828
          %v5482 = vunpack.c.l.b16 %v4829
          %v5483 = vunpack.c.h.b16 %v4829
          %v5484 = vunpack.c.l.b16 %v4830
          %v5485 = vunpack.c.h.b16 %v4830
          %v5486 = vunpack.c.l.b16 %v4831
          %v5487 = vunpack.c.h.b16 %v4831
          %v5488 = vunpack.c.l.b16 %v4832
          %v5489 = vunpack.c.h.b16 %v4832
          %v5490 = vunpack.c.l.b16 %v4833
          %v5491 = vunpack.c.h.b16 %v4833
          %v5492 = vunpack.c.l.b16 %v4834
          %v5493 = vunpack.c.h.b16 %v4834
          %v5494 = vunpack.c.l.b16 %v4835
          %v5495 = vunpack.c.h.b16 %v4835
          %v5496 = vunpack.c.l.b16 %v4836
          %v5497 = vunpack.c.h.b16 %v4836
          %v5498 = vunpack.c.l.b16 %v4837
          %v5499 = vunpack.c.h.b16 %v4837
          %v5500 = vunpack.c.l.b16 %v4838
          %v5501 = vunpack.c.h.b16 %v4838
          %v5502 = vunpack.c.l.b16 %v4839
          %v5503 = vunpack.c.h.b16 %v4839
          %v5504 = vunpack.c.l.b16 %v4840
          %v5505 = vunpack.c.h.b16 %v4840
          %v5506 = vunpack.c.l.b16 %v4841
          %v5507 = vunpack.c.h.b16 %v4841
          %v5508 = vunpack.c.l.b16 %v4842
          %v5509 = vunpack.c.h.b16 %v4842
          %v5510 = vunpack.c.l.b16 %v4843
          %v5511 = vunpack.c.h.b16 %v4843
          %v5512 = vunpack.c.l.b16 %v4844
          %v5513 = vunpack.c.h.b16 %v4844
          %v5514 = vunpack.c.l.b16 %v4845
          %v5515 = vunpack.c.h.b16 %v4845
          %v5516 = vunpack.c.l.b16 %v4846
          %v5517 = vunpack.c.h.b16 %v4846
          %v5518 = vunpack.c.l.b16 %v4847
          %v5519 = vunpack.c.h.b16 %v4847
          %v5520 = vunpack.c.l.b16 %v4848
          %v5521 = vunpack.c.h.b16 %v4848
          %v5522 = vunpack.c.l.b16 %v4849
          %v5523 = vunpack.c.h.b16 %v4849
          %v5524 = vunpack.c.l.b16 %v4850
          %v5525 = vunpack.c.h.b16 %v4850
          %v5526 = vunpack.c.l.b16 %v4851
          %v5527 = vunpack.c.h.b16 %v4851
          %v5528 = vunpack.c.l.b16 %v4852
          %v5529 = vunpack.c.h.b16 %v4852
          %v5530 = vunpack.c.l.b16 %v4853
          %v5531 = vunpack.c.h.b16 %v4853
          %v5532 = vunpack.c.l.b16 %v4854
          %v5533 = vunpack.c.h.b16 %v4854
          %v5534 = vunpack.c.l.b16 %v4855
          %v5535 = vunpack.c.h.b16 %v4855
          %v5536 = vunpack.c.l.b16 %v4856
          %v5537 = vunpack.c.h.b16 %v4856
          %v5538 = vunpack.c.l.b16 %v4857
          %v5539 = vunpack.c.h.b16 %v4857
          %v5540 = vunpack.c.l.b16 %v4858
          %v5541 = vunpack.c.h.b16 %v4858
          %v5542 = vunpack.c.l.b16 %v4859
          %v5543 = vunpack.c.h.b16 %v4859
          %v5544 = vunpack.c.l.b16 %v4860
          %v5545 = vunpack.c.h.b16 %v4860
          %v5546 = vunpack.c.l.b16 %v4861
          %v5547 = vunpack.c.h.b16 %v4861
          %v5548 = vunpack.c.l.b16 %v4862
          %v5549 = vunpack.c.h.b16 %v4862
          %v5550 = vunpack.c.l.b16 %v4863
          %v5551 = vunpack.c.h.b16 %v4863
          %v5552 = vunpack.c.l.b16 %v4864
          %v5553 = vunpack.c.h.b16 %v4864
          %v5554 = vunpack.c.l.b16 %v4865
          %v5555 = vunpack.c.h.b16 %v4865
          %v5556 = vunpack.c.l.b16 %v4866
          %v5557 = vunpack.c.h.b16 %v4866
          %v5558 = vunpack.c.l.b16 %v4867
          %v5559 = vunpack.c.h.b16 %v4867
          %v5560 = vunpack.c.l.b16 %v4868
          %v5561 = vunpack.c.h.b16 %v4868
          %v5562 = vunpack.c.l.b16 %v4869
          %v5563 = vunpack.c.h.b16 %v4869
          %v5564 = vunpack.c.l.b16 %v4870
          %v5565 = vunpack.c.h.b16 %v4870
          %v5566 = vunpack.c.l.b16 %v4871
          %v5567 = vunpack.c.h.b16 %v4871
          %v5568 = vunpack.c.l.b16 %v4872
          %v5569 = vunpack.c.h.b16 %v4872
          %v5570 = vunpack.c.l.b16 %v4873
          %v5571 = vunpack.c.h.b16 %v4873
          %v5572 = vunpack.c.l.b16 %v4874
          %v5573 = vunpack.c.h.b16 %v4874
          %v5574 = vunpack.c.l.b16 %v4875
          %v5575 = vunpack.c.h.b16 %v4875
          %v5576 = vunpack.c.l.b16 %v4876
          %v5577 = vunpack.c.h.b16 %v4876
          %v5578 = vunpack.c.l.b16 %v4877
          %v5579 = vunpack.c.h.b16 %v4877
          %v5580 = vunpack.c.l.b16 %v4878
          %v5581 = vunpack.c.h.b16 %v4878
          %v5582 = vunpack.c.l.b16 %v4879
          %v5583 = vunpack.c.h.b16 %v4879
          %v5584 = vunpack.c.l.b16 %v4880
          %v5585 = vunpack.c.h.b16 %v4880
          %v5586 = vunpack.c.l.b16 %v4881
          %v5587 = vunpack.c.h.b16 %v4881
          %v5588 = vunpack.c.l.b16 %v4882
          %v5589 = vunpack.c.h.b16 %v4882
          %v5590 = vunpack.c.l.b16 %v4883
          %v5591 = vunpack.c.h.b16 %v4883
          %v5592 = vunpack.c.l.b16 %v4884
          %v5593 = vunpack.c.h.b16 %v4884
          %v5594 = vunpack.c.l.b16 %v4885
          %v5595 = vunpack.c.h.b16 %v4885
          %v5596 = vunpack.c.l.b16 %v4886
          %v5597 = vunpack.c.h.b16 %v4886
          %v5598 = vunpack.c.l.b16 %v4887
          %v5599 = vunpack.c.h.b16 %v4887
          %v5600 = vunpack.c.l.b16 %v4888
          %v5601 = vunpack.c.h.b16 %v4888
          %v5602 = vunpack.c.l.b16 %v4889
          %v5603 = vunpack.c.h.b16 %v4889
          %v5604 = vunpack.c.l.b16 %v4890
          %v5605 = vunpack.c.h.b16 %v4890
          %v5606 = vunpack.c.l.b16 %v4891
          %v5607 = vunpack.c.h.b16 %v4891
          %v5608 = vunpack.c.l.b16 %v4892
          %v5609 = vunpack.c.h.b16 %v4892
          %v5610 = vunpack.c.l.b16 %v4893
          %v5611 = vunpack.c.h.b16 %v4893
          %v5612 = vunpack.c.l.b16 %v4894
          %v5613 = vunpack.c.h.b16 %v4894
          %v5614 = vunpack.c.l.b16 %v4895
          %v5615 = vunpack.c.h.b16 %v4895
          %v5616 = vunpack.c.l.b16 %v4896
          %v5617 = vunpack.c.h.b16 %v4896
          %v5618 = vunpack.c.l.b16 %v4897
          %v5619 = vunpack.c.h.b16 %v4897
          %v5620 = vunpack.c.l.b16 %v4898
          %v5621 = vunpack.c.h.b16 %v4898
          %v5622 = vunpack.c.l.b16 %v4899
          %v5623 = vunpack.c.h.b16 %v4899
          %v5624 = vunpack.c.l.b16 %v4900
          %v5625 = vunpack.c.h.b16 %v4900
          %v5626 = vunpack.c.l.b16 %v4901
          %v5627 = vunpack.c.h.b16 %v4901
          %v5628 = vunpack.c.l.b16 %v4902
          %v5629 = vunpack.c.h.b16 %v4902
          %v5630 = vunpack.c.l.b16 %v4903
          %v5631 = vunpack.c.h.b16 %v4903
          %v5632 = vunpack.c.l.b16 %v4904
          %v5633 = vunpack.c.h.b16 %v4904
          %v5634 = vunpack.c.l.b16 %v4905
          %v5635 = vunpack.c.h.b16 %v4905
          %v5636 = vunpack.c.l.b16 %v4906
          %v5637 = vunpack.c.h.b16 %v4906
          %v5638 = vunpack.c.l.b16 %v4907
          %v5639 = vunpack.c.h.b16 %v4907
          %v5640 = vunpack.c.l.b16 %v4908
          %v5641 = vunpack.c.h.b16 %v4908
          %v5642 = vunpack.c.l.b16 %v4909
          %v5643 = vunpack.c.h.b16 %v4909
          %v5644 = vunpack.c.l.b16 %v4910
          %v5645 = vunpack.c.h.b16 %v4910
          %v5646 = vunpack.c.l.b16 %v4911
          %v5647 = vunpack.c.h.b16 %v4911
          %v5648 = vunpack.c.l.b16 %v4912
          %v5649 = vunpack.c.h.b16 %v4912
          %v5650 = vunpack.c.l.b16 %v4913
          %v5651 = vunpack.c.h.b16 %v4913
          %v5652 = vunpack.c.l.b16 %v4914
          %v5653 = vunpack.c.h.b16 %v4914
          %v5654 = vunpack.c.l.b16 %v4915
          %v5655 = vunpack.c.h.b16 %v4915
          %v5656 = vunpack.c.l.b16 %v4916
          %v5657 = vunpack.c.h.b16 %v4916
          %v5658 = vunpack.c.l.b16 %v4917
          %v5659 = vunpack.c.h.b16 %v4917
          %v5660 = vunpack.c.l.b16 %v4918
          %v5661 = vunpack.c.h.b16 %v4918
          %v5662 = vunpack.c.l.b16 %v4919
          %v5663 = vunpack.c.h.b16 %v4919
          %v5664 = vunpack.c.l.b16 %v4920
          %v5665 = vunpack.c.h.b16 %v4920
          %v5666 = vunpack.c.l.b16 %v4921
          %v5667 = vunpack.c.h.b16 %v4921
          %v5668 = vunpack.c.l.b16 %v4922
          %v5669 = vunpack.c.h.b16 %v4922
          %v5670 = vunpack.c.l.b16 %v4923
          %v5671 = vunpack.c.h.b16 %v4923
          %v5672 = vunpack.c.l.b16 %v4924
          %v5673 = vunpack.c.h.b16 %v4924
          %v5674 = vunpack.c.l.b16 %v4925
          %v5675 = vunpack.c.h.b16 %v4925
          %v5676 = vunpack.c.l.b16 %v4926
          %v5677 = vunpack.c.h.b16 %v4926
          %v5678 = vunpack.c.l.b16 %v4927
          %v5679 = vunpack.c.h.b16 %v4927
          %v5680 = vunpack.c.l.b16 %v4928
          %v5681 = vunpack.c.h.b16 %v4928
          %v5682 = vunpack.c.l.b16 %v4929
          %v5683 = vunpack.c.h.b16 %v4929
          %v5684 = vunpack.c.l.b16 %v4930
          %v5685 = vunpack.c.h.b16 %v4930
          %v5686 = vunpack.c.l.b16 %v4931
          %v5687 = vunpack.c.h.b16 %v4931
          %v5688 = vunpack.c.l.b16 %v4932
          %v5689 = vunpack.c.h.b16 %v4932
          %v5690 = vunpack.c.l.b16 %v4933
          %v5691 = vunpack.c.h.b16 %v4933
          %v5692 = vunpack.c.l.b16 %v4934
          %v5693 = vunpack.c.h.b16 %v4934
          %v5694 = vunpack.c.l.b16 %v4935
          %v5695 = vunpack.c.h.b16 %v4935
          %v5696 = vunpack.c.l.b16 %v4936
          %v5697 = vunpack.c.h.b16 %v4936
          %v5698 = vunpack.c.l.b16 %v4937
          %v5699 = vunpack.c.h.b16 %v4937
          %v5700 = vunpack.c.l.b16 %v4938
          %v5701 = vunpack.c.h.b16 %v4938
          %v5702 = vunpack.c.l.b16 %v4939
          %v5703 = vunpack.c.h.b16 %v4939
          %v5704 = vunpack.c.l.b16 %v4940
          %v5705 = vunpack.c.h.b16 %v4940
          %v5706 = vunpack.c.l.b16 %v4941
          %v5707 = vunpack.c.h.b16 %v4941
          %v5708 = vunpack.c.l.b16 %v4942
          %v5709 = vunpack.c.h.b16 %v4942
          %v5710 = vunpack.c.l.b16 %v4943
          %v5711 = vunpack.c.h.b16 %v4943
          %v5712 = vunpack.c.l.b16 %v4944
          %v5713 = vunpack.c.h.b16 %v4944
          %v5714 = vunpack.c.l.b16 %v4945
          %v5715 = vunpack.c.h.b16 %v4945
          %v5716 = vunpack.c.l.b16 %v4946
          %v5717 = vunpack.c.h.b16 %v4946
          %v5718 = vunpack.c.l.b16 %v4947
          %v5719 = vunpack.c.h.b16 %v4947
          %v5720 = vunpack.c.l.b16 %v4948
          %v5721 = vunpack.c.h.b16 %v4948
          %v5722 = vunpack.c.l.b16 %v4949
          %v5723 = vunpack.c.h.b16 %v4949
          %v5724 = vunpack.c.l.b16 %v4950
          %v5725 = vunpack.c.h.b16 %v4950
          %v5726 = vunpack.c.l.b16 %v4951
          %v5727 = vunpack.c.h.b16 %v4951
          %v5728 = vunpack.c.l.b16 %v4952
          %v5729 = vunpack.c.h.b16 %v4952
          %v5730 = vunpack.c.l.b16 %v4953
          %v5731 = vunpack.c.h.b16 %v4953
          %v5732 = vunpack.c.l.b16 %v4954
          %v5733 = vunpack.c.h.b16 %v4954
          %v5734 = vunpack.c.l.b16 %v4955
          %v5735 = vunpack.c.h.b16 %v4955
          %v5736 = vunpack.c.l.b16 %v4956
          %v5737 = vunpack.c.h.b16 %v4956
          %v5738 = vunpack.c.l.b16 %v4957
          %v5739 = vunpack.c.h.b16 %v4957
          %v5740 = vunpack.c.l.b16 %v4958
          %v5741 = vunpack.c.h.b16 %v4958
          %v5742 = vunpack.c.l.b16 %v4959
          %v5743 = vunpack.c.h.b16 %v4959
          %v5744 = vunpack.c.l.b16 %v4960
          %v5745 = vunpack.c.h.b16 %v4960
          %v5746 = vunpack.c.l.b16 %v4961
          %v5747 = vunpack.c.h.b16 %v4961
          %v5748 = vunpack.c.l.b16 %v4962
          %v5749 = vunpack.c.h.b16 %v4962
          %v5750 = vunpack.c.l.b16 %v4963
          %v5751 = vunpack.c.h.b16 %v4963
          %v5752 = vunpack.c.l.b16 %v4964
          %v5753 = vunpack.c.h.b16 %v4964
          %v5754 = vunpack.c.l.b16 %v4965
          %v5755 = vunpack.c.h.b16 %v4965
          %v5756 = vpack.c.b16 %v5248, %v5244
          %v5757 = vpack.c.b16 %v5249, %v5245
          %v5758 = vpack.c.b16 %v5250, %v5246
          %v5759 = vpack.c.b16 %v5251, %v5247
          %v5760 = vpack.c.b16 %v5256, %v5252
          %v5761 = vpack.c.b16 %v5257, %v5253
          %v5762 = vpack.c.b16 %v5258, %v5254
          %v5763 = vpack.c.b16 %v5259, %v5255
          %v5764 = vpack.c.b16 %v5264, %v5260
          %v5765 = vpack.c.b16 %v5265, %v5261
          %v5766 = vpack.c.b16 %v5266, %v5262
          %v5767 = vpack.c.b16 %v5267, %v5263
          %v5768 = vpack.c.b16 %v5272, %v5268
          %v5769 = vpack.c.b16 %v5273, %v5269
          %v5770 = vpack.c.b16 %v5274, %v5270
          %v5771 = vpack.c.b16 %v5275, %v5271
          %v5772 = vpack.c.b16 %v5280, %v5276
          %v5773 = vpack.c.b16 %v5281, %v5277
          %v5774 = vpack.c.b16 %v5282, %v5278
          %v5775 = vpack.c.b16 %v5283, %v5279
          %v5776 = vpack.c.b16 %v5288, %v5284
          %v5777 = vpack.c.b16 %v5289, %v5285
          %v5778 = vpack.c.b16 %v5290, %v5286
          %v5779 = vpack.c.b16 %v5291, %v5287
          %v5780 = vpack.c.b16 %v5296, %v5292
          %v5781 = vpack.c.b16 %v5297, %v5293
          %v5782 = vpack.c.b16 %v5298, %v5294
          %v5783 = vpack.c.b16 %v5299, %v5295
          %v5784 = vpack.c.b16 %v5304, %v5300
          %v5785 = vpack.c.b16 %v5305, %v5301
          %v5786 = vpack.c.b16 %v5306, %v5302
          %v5787 = vpack.c.b16 %v5307, %v5303
          %v5788 = vpack.c.b16 %v5312, %v5308
          %v5789 = vpack.c.b16 %v5313, %v5309
          %v5790 = vpack.c.b16 %v5314, %v5310
          %v5791 = vpack.c.b16 %v5315, %v5311
          %v5792 = vpack.c.b16 %v5320, %v5316
          %v5793 = vpack.c.b16 %v5321, %v5317
          %v5794 = vpack.c.b16 %v5322, %v5318
          %v5795 = vpack.c.b16 %v5323, %v5319
          %v5796 = vpack.c.b16 %v5328, %v5324
          %v5797 = vpack.c.b16 %v5329, %v5325
          %v5798 = vpack.c.b16 %v5330, %v5326
          %v5799 = vpack.c.b16 %v5331, %v5327
          %v5800 = vpack.c.b16 %v5336, %v5332
          %v5801 = vpack.c.b16 %v5337, %v5333
          %v5802 = vpack.c.b16 %v5338, %v5334
          %v5803 = vpack.c.b16 %v5339, %v5335
          %v5804 = vpack.c.b16 %v5344, %v5340
          %v5805 = vpack.c.b16 %v5345, %v5341
          %v5806 = vpack.c.b16 %v5346, %v5342
          %v5807 = vpack.c.b16 %v5347, %v5343
          %v5808 = vpack.c.b16 %v5352, %v5348
          %v5809 = vpack.c.b16 %v5353, %v5349
          %v5810 = vpack.c.b16 %v5354, %v5350
          %v5811 = vpack.c.b16 %v5355, %v5351
          %v5812 = vpack.c.b16 %v5360, %v5356
          %v5813 = vpack.c.b16 %v5361, %v5357
          %v5814 = vpack.c.b16 %v5362, %v5358
          %v5815 = vpack.c.b16 %v5363, %v5359
          %v5816 = vpack.c.b16 %v5368, %v5364
          %v5817 = vpack.c.b16 %v5369, %v5365
          %v5818 = vpack.c.b16 %v5370, %v5366
          %v5819 = vpack.c.b16 %v5371, %v5367
          %v5820 = vpack.c.b16 %v5376, %v5372
          %v5821 = vpack.c.b16 %v5377, %v5373
          %v5822 = vpack.c.b16 %v5378, %v5374
          %v5823 = vpack.c.b16 %v5379, %v5375
          %v5824 = vpack.c.b16 %v5384, %v5380
          %v5825 = vpack.c.b16 %v5385, %v5381
          %v5826 = vpack.c.b16 %v5386, %v5382
          %v5827 = vpack.c.b16 %v5387, %v5383
          %v5828 = vpack.c.b16 %v5392, %v5388
          %v5829 = vpack.c.b16 %v5393, %v5389
          %v5830 = vpack.c.b16 %v5394, %v5390
          %v5831 = vpack.c.b16 %v5395, %v5391
          %v5832 = vpack.c.b16 %v5400, %v5396
          %v5833 = vpack.c.b16 %v5401, %v5397
          %v5834 = vpack.c.b16 %v5402, %v5398
          %v5835 = vpack.c.b16 %v5403, %v5399
          %v5836 = vpack.c.b16 %v5408, %v5404
          %v5837 = vpack.c.b16 %v5409, %v5405
          %v5838 = vpack.c.b16 %v5410, %v5406
          %v5839 = vpack.c.b16 %v5411, %v5407
          %v5840 = vpack.c.b16 %v5416, %v5412
          %v5841 = vpack.c.b16 %v5417, %v5413
          %v5842 = vpack.c.b16 %v5418, %v5414
          %v5843 = vpack.c.b16 %v5419, %v5415
          %v5844 = vpack.c.b16 %v5424, %v5420
          %v5845 = vpack.c.b16 %v5425, %v5421
          %v5846 = vpack.c.b16 %v5426, %v5422
          %v5847 = vpack.c.b16 %v5427, %v5423
          %v5848 = vpack.c.b16 %v5432, %v5428
          %v5849 = vpack.c.b16 %v5433, %v5429
          %v5850 = vpack.c.b16 %v5434, %v5430
          %v5851 = vpack.c.b16 %v5435, %v5431
          %v5852 = vpack.c.b16 %v5440, %v5436
          %v5853 = vpack.c.b16 %v5441, %v5437
          %v5854 = vpack.c.b16 %v5442, %v5438
          %v5855 = vpack.c.b16 %v5443, %v5439
          %v5856 = vpack.c.b16 %v5448, %v5444
          %v5857 = vpack.c.b16 %v5449, %v5445
          %v5858 = vpack.c.b16 %v5450, %v5446
          %v5859 = vpack.c.b16 %v5451, %v5447
          %v5860 = vpack.c.b16 %v5456, %v5452
          %v5861 = vpack.c.b16 %v5457, %v5453
          %v5862 = vpack.c.b16 %v5458, %v5454
          %v5863 = vpack.c.b16 %v5459, %v5455
          %v5864 = vpack.c.b16 %v5464, %v5460
          %v5865 = vpack.c.b16 %v5465, %v5461
          %v5866 = vpack.c.b16 %v5466, %v5462
          %v5867 = vpack.c.b16 %v5467, %v5463
          %v5868 = vpack.c.b16 %v5472, %v5468
          %v5869 = vpack.c.b16 %v5473, %v5469
          %v5870 = vpack.c.b16 %v5474, %v5470
          %v5871 = vpack.c.b16 %v5475, %v5471
          %v5872 = vpack.c.b16 %v5480, %v5476
          %v5873 = vpack.c.b16 %v5481, %v5477
          %v5874 = vpack.c.b16 %v5482, %v5478
          %v5875 = vpack.c.b16 %v5483, %v5479
          %v5876 = vpack.c.b16 %v5488, %v5484
          %v5877 = vpack.c.b16 %v5489, %v5485
          %v5878 = vpack.c.b16 %v5490, %v5486
          %v5879 = vpack.c.b16 %v5491, %v5487
          %v5880 = vpack.c.b16 %v5496, %v5492
          %v5881 = vpack.c.b16 %v5497, %v5493
          %v5882 = vpack.c.b16 %v5498, %v5494
          %v5883 = vpack.c.b16 %v5499, %v5495
          %v5884 = vpack.c.b16 %v5504, %v5500
          %v5885 = vpack.c.b16 %v5505, %v5501
          %v5886 = vpack.c.b16 %v5506, %v5502
          %v5887 = vpack.c.b16 %v5507, %v5503
          %v5888 = vpack.c.b16 %v5512, %v5508
          %v5889 = vpack.c.b16 %v5513, %v5509
          %v5890 = vpack.c.b16 %v5514, %v5510
          %v5891 = vpack.c.b16 %v5515, %v5511
          %v5892 = vpack.c.b16 %v5520, %v5516
          %v5893 = vpack.c.b16 %v5521, %v5517
          %v5894 = vpack.c.b16 %v5522, %v5518
          %v5895 = vpack.c.b16 %v5523, %v5519
          %v5896 = vpack.c.b16 %v5528, %v5524
          %v5897 = vpack.c.b16 %v5529, %v5525
          %v5898 = vpack.c.b16 %v5530, %v5526
          %v5899 = vpack.c.b16 %v5531, %v5527
          %v5900 = vpack.c.b16 %v5536, %v5532
          %v5901 = vpack.c.b16 %v5537, %v5533
          %v5902 = vpack.c.b16 %v5538, %v5534
          %v5903 = vpack.c.b16 %v5539, %v5535
          %v5904 = vpack.c.b16 %v5544, %v5540
          %v5905 = vpack.c.b16 %v5545, %v5541
          %v5906 = vpack.c.b16 %v5546, %v5542
          %v5907 = vpack.c.b16 %v5547, %v5543
          %v5908 = vpack.c.b16 %v5552, %v5548
          %v5909 = vpack.c.b16 %v5553, %v5549
          %v5910 = vpack.c.b16 %v5554, %v5550
          %v5911 = vpack.c.b16 %v5555, %v5551
          %v5912 = vpack.c.b16 %v5560, %v5556
          %v5913 = vpack.c.b16 %v5561, %v5557
          %v5914 = vpack.c.b16 %v5562, %v5558
          %v5915 = vpack.c.b16 %v5563, %v5559
          %v5916 = vpack.c.b16 %v5568, %v5564
          %v5917 = vpack.c.b16 %v5569, %v5565
          %v5918 = vpack.c.b16 %v5570, %v5566
          %v5919 = vpack.c.b16 %v5571, %v5567
          %v5920 = vpack.c.b16 %v5576, %v5572
          %v5921 = vpack.c.b16 %v5577, %v5573
          %v5922 = vpack.c.b16 %v5578, %v5574
          %v5923 = vpack.c.b16 %v5579, %v5575
          %v5924 = vpack.c.b16 %v5584, %v5580
          %v5925 = vpack.c.b16 %v5585, %v5581
          %v5926 = vpack.c.b16 %v5586, %v5582
          %v5927 = vpack.c.b16 %v5587, %v5583
          %v5928 = vpack.c.b16 %v5592, %v5588
          %v5929 = vpack.c.b16 %v5593, %v5589
          %v5930 = vpack.c.b16 %v5594, %v5590
          %v5931 = vpack.c.b16 %v5595, %v5591
          %v5932 = vpack.c.b16 %v5600, %v5596
          %v5933 = vpack.c.b16 %v5601, %v5597
          %v5934 = vpack.c.b16 %v5602, %v5598
          %v5935 = vpack.c.b16 %v5603, %v5599
          %v5936 = vpack.c.b16 %v5608, %v5604
          %v5937 = vpack.c.b16 %v5609, %v5605
          %v5938 = vpack.c.b16 %v5610, %v5606
          %v5939 = vpack.c.b16 %v5611, %v5607
          %v5940 = vpack.c.b16 %v5616, %v5612
          %v5941 = vpack.c.b16 %v5617, %v5613
          %v5942 = vpack.c.b16 %v5618, %v5614
          %v5943 = vpack.c.b16 %v5619, %v5615
          %v5944 = vpack.c.b16 %v5624, %v5620
          %v5945 = vpack.c.b16 %v5625, %v5621
          %v5946 = vpack.c.b16 %v5626, %v5622
          %v5947 = vpack.c.b16 %v5627, %v5623
          %v5948 = vpack.c.b16 %v5632, %v5628
          %v5949 = vpack.c.b16 %v5633, %v5629
          %v5950 = vpack.c.b16 %v5634, %v5630
          %v5951 = vpack.c.b16 %v5635, %v5631
          %v5952 = vpack.c.b16 %v5640, %v5636
          %v5953 = vpack.c.b16 %v5641, %v5637
          %v5954 = vpack.c.b16 %v5642, %v5638
          %v5955 = vpack.c.b16 %v5643, %v5639
          %v5956 = vpack.c.b16 %v5648, %v5644
          %v5957 = vpack.c.b16 %v5649, %v5645
          %v5958 = vpack.c.b16 %v5650, %v5646
          %v5959 = vpack.c.b16 %v5651, %v5647
          %v5960 = vpack.c.b16 %v5656, %v5652
          %v5961 = vpack.c.b16 %v5657, %v5653
          %v5962 = vpack.c.b16 %v5658, %v5654
          %v5963 = vpack.c.b16 %v5659, %v5655
          %v5964 = vpack.c.b16 %v5664, %v5660
          %v5965 = vpack.c.b16 %v5665, %v5661
          %v5966 = vpack.c.b16 %v5666, %v5662
          %v5967 = vpack.c.b16 %v5667, %v5663
          %v5968 = vpack.c.b16 %v5672, %v5668
          %v5969 = vpack.c.b16 %v5673, %v5669
          %v5970 = vpack.c.b16 %v5674, %v5670
          %v5971 = vpack.c.b16 %v5675, %v5671
          %v5972 = vpack.c.b16 %v5680, %v5676
          %v5973 = vpack.c.b16 %v5681, %v5677
          %v5974 = vpack.c.b16 %v5682, %v5678
          %v5975 = vpack.c.b16 %v5683, %v5679
          %v5976 = vpack.c.b16 %v5688, %v5684
          %v5977 = vpack.c.b16 %v5689, %v5685
          %v5978 = vpack.c.b16 %v5690, %v5686
          %v5979 = vpack.c.b16 %v5691, %v5687
          %v5980 = vpack.c.b16 %v5696, %v5692
          %v5981 = vpack.c.b16 %v5697, %v5693
          %v5982 = vpack.c.b16 %v5698, %v5694
          %v5983 = vpack.c.b16 %v5699, %v5695
          %v5984 = vpack.c.b16 %v5704, %v5700
          %v5985 = vpack.c.b16 %v5705, %v5701
          %v5986 = vpack.c.b16 %v5706, %v5702
          %v5987 = vpack.c.b16 %v5707, %v5703
          %v5988 = vpack.c.b16 %v5712, %v5708
          %v5989 = vpack.c.b16 %v5713, %v5709
          %v5990 = vpack.c.b16 %v5714, %v5710
          %v5991 = vpack.c.b16 %v5715, %v5711
          %v5992 = vpack.c.b16 %v5720, %v5716
          %v5993 = vpack.c.b16 %v5721, %v5717
          %v5994 = vpack.c.b16 %v5722, %v5718
          %v5995 = vpack.c.b16 %v5723, %v5719
          %v5996 = vpack.c.b16 %v5728, %v5724
          %v5997 = vpack.c.b16 %v5729, %v5725
          %v5998 = vpack.c.b16 %v5730, %v5726
          %v5999 = vpack.c.b16 %v5731, %v5727
          %v6000 = vpack.c.b16 %v5736, %v5732
          %v6001 = vpack.c.b16 %v5737, %v5733
          %v6002 = vpack.c.b16 %v5738, %v5734
          %v6003 = vpack.c.b16 %v5739, %v5735
          %v6004 = vpack.c.b16 %v5744, %v5740
          %v6005 = vpack.c.b16 %v5745, %v5741
          %v6006 = vpack.c.b16 %v5746, %v5742
          %v6007 = vpack.c.b16 %v5747, %v5743
          %v6008 = vpack.c.b16 %v5752, %v5748
          %v6009 = vpack.c.b16 %v5753, %v5749
          %v6010 = vpack.c.b16 %v5754, %v5750
          %v6011 = vpack.c.b16 %v5755, %v5751
          %6268 = vmatprep.subr.bf16.mxu0 %v5757
          %6269 = vmatpush1.bf16.msra.mxu0 %v5756
          %6270 = vmatprep.subr.bf16.mxu0 %v5761
          %6271 = vmatpush1.bf16.msra.mxu0 %v5760
          %6272 = vmatprep.subr.bf16.mxu0 %v5765
          %6273 = vmatpush1.bf16.msra.mxu0 %v5764
          %6274 = vmatprep.subr.bf16.mxu0 %v5769
          %6275 = vmatpush1.bf16.msra.mxu0 %v5768
          %6276 = vmatprep.subr.bf16.mxu0 %v5773
          %6277 = vmatpush1.bf16.msra.mxu0 %v5772
          %6278 = vmatprep.subr.bf16.mxu0 %v5777
          %6279 = vmatpush1.bf16.msra.mxu0 %v5776
          %6280 = vmatprep.subr.bf16.mxu0 %v5781
          %6281 = vmatpush1.bf16.msra.mxu0 %v5780
          %6282 = vmatprep.subr.bf16.mxu0 %v5785
          %6283 = vmatpush1.bf16.msra.mxu0 %v5784
          %6284 = vmatprep.subr.bf16.mxu0 %v5789
          %6285 = vmatpush1.bf16.msra.mxu0 %v5788
          %6286 = vmatprep.subr.bf16.mxu0 %v5793
          %6287 = vmatpush1.bf16.msra.mxu0 %v5792
          %6288 = vmatprep.subr.bf16.mxu0 %v5797
          %6289 = vmatpush1.bf16.msra.mxu0 %v5796
          %6290 = vmatprep.subr.bf16.mxu0 %v5801
          %6291 = vmatpush1.bf16.msra.mxu0 %v5800
          %6292 = vmatprep.subr.bf16.mxu0 %v5805
          %6293 = vmatpush1.bf16.msra.mxu0 %v5804
          %6294 = vmatprep.subr.bf16.mxu0 %v5809
          %6295 = vmatpush1.bf16.msra.mxu0 %v5808
          %6296 = vmatprep.subr.bf16.mxu0 %v5813
          %6297 = vmatpush1.bf16.msra.mxu0 %v5812
          %6298 = vmatprep.subr.bf16.mxu0 %v5817
          %6299 = vmatpush1.bf16.msra.mxu0 %v5816
          %6300 = vmatprep.mubr.bf16.mxu0 %v4703
          %6301 = vmatmul.mubr.bf16.gmra.mrb[0].mxu0 %v4702
          %v6302 = vpop.f32.mrb[0].mxu0
          %v6303 = vadd.f32 %v4971, %v6302
          %v6304 = vpop.f32.mrb[0].mxu0
          %v6305 = vadd.f32 %v4975, %v6304
          %v6306 = vpop.f32.mrb[0].mxu0
          %v6307 = vpop.f32.mrb[0].mxu0
          %6308 = vdwg.mxu0
          %6309 = vmatprep.subr.bf16.mxu0 %v5821
          %6310 = vmatpush1.bf16.msra.mxu0 %v5820
          %6311 = vmatprep.subr.bf16.mxu0 %v5825
          %6312 = vmatpush1.bf16.msra.mxu0 %v5824
          %6313 = vmatprep.subr.bf16.mxu0 %v5829
          %6314 = vmatpush1.bf16.msra.mxu0 %v5828
          %6315 = vmatprep.subr.bf16.mxu0 %v5833
          %6316 = vmatpush1.bf16.msra.mxu0 %v5832
          %6317 = vmatprep.subr.bf16.mxu0 %v5837
          %6318 = vmatpush1.bf16.msra.mxu0 %v5836
          %6319 = vmatprep.subr.bf16.mxu0 %v5841
          %6320 = vmatpush1.bf16.msra.mxu0 %v5840
          %6321 = vmatprep.subr.bf16.mxu0 %v5845
          %6322 = vmatpush1.bf16.msra.mxu0 %v5844
          %6323 = vmatprep.subr.bf16.mxu0 %v5849
          %6324 = vmatpush1.bf16.msra.mxu0 %v5848
          %6325 = vmatprep.subr.bf16.mxu0 %v5853
          %6326 = vmatpush1.bf16.msra.mxu0 %v5852
          %6327 = vmatprep.subr.bf16.mxu0 %v5857
          %6328 = vmatpush1.bf16.msra.mxu0 %v5856
          %6329 = vmatprep.subr.bf16.mxu0 %v5861
          %6330 = vmatpush1.bf16.msra.mxu0 %v5860
          %6331 = vmatprep.subr.bf16.mxu0 %v5865
          %6332 = vmatpush1.bf16.msra.mxu0 %v5864
          %6333 = vmatprep.subr.bf16.mxu0 %v5869
          %6334 = vmatpush1.bf16.msra.mxu0 %v5868
          %6335 = vmatprep.subr.bf16.mxu0 %v5873
          %6336 = vmatpush1.bf16.msra.mxu0 %v5872
          %6337 = vmatprep.subr.bf16.mxu0 %v5877
          %6338 = vmatpush1.bf16.msra.mxu0 %v5876
          %6339 = vmatprep.subr.bf16.mxu0 %v5881
          %6340 = vmatpush1.bf16.msra.mxu0 %v5880
          %6341 = vmatprep.mubr.bf16.mxu0 %v4705
          %6342 = vmatmul.mubr.bf16.gmra.mrb[0].mxu0 %v4704
          %v6343 = vpop.f32.mrb[0].mxu0
          %v6344 = vadd.f32 %v6303, %v6343
          %v6345 = vpop.f32.mrb[0].mxu0
          %v6346 = vadd.f32 %v6305, %v6345
          %v6347 = vpop.f32.mrb[0].mxu0
          %v6348 = vpop.f32.mrb[0].mxu0
          %6349 = vdwg.mxu0
          %6350 = vmatprep.subr.bf16.mxu0 %v5885
          %6351 = vmatpush1.bf16.msra.mxu0 %v5884
          %6352 = vmatprep.subr.bf16.mxu0 %v5889
          %6353 = vmatpush1.bf16.msra.mxu0 %v5888
          %6354 = vmatprep.subr.bf16.mxu0 %v5893
          %6355 = vmatpush1.bf16.msra.mxu0 %v5892
          %6356 = vmatprep.subr.bf16.mxu0 %v5897
          %6357 = vmatpush1.bf16.msra.mxu0 %v5896
          %6358 = vmatprep.subr.bf16.mxu0 %v5901
          %6359 = vmatpush1.bf16.msra.mxu0 %v5900
          %6360 = vmatprep.subr.bf16.mxu0 %v5905
          %6361 = vmatpush1.bf16.msra.mxu0 %v5904
          %6362 = vmatprep.subr.bf16.mxu0 %v5909
          %6363 = vmatpush1.bf16.msra.mxu0 %v5908
          %6364 = vmatprep.subr.bf16.mxu0 %v5913
          %6365 = vmatpush1.bf16.msra.mxu0 %v5912
          %6366 = vmatprep.subr.bf16.mxu0 %v5917
          %6367 = vmatpush1.bf16.msra.mxu0 %v5916
          %6368 = vmatprep.subr.bf16.mxu0 %v5921
          %6369 = vmatpush1.bf16.msra.mxu0 %v5920
          %6370 = vmatprep.subr.bf16.mxu0 %v5925
          %6371 = vmatpush1.bf16.msra.mxu0 %v5924
          %6372 = vmatprep.subr.bf16.mxu0 %v5929
          %6373 = vmatpush1.bf16.msra.mxu0 %v5928
          %6374 = vmatprep.subr.bf16.mxu0 %v5933
          %6375 = vmatpush1.bf16.msra.mxu0 %v5932
          %6376 = vmatprep.subr.bf16.mxu0 %v5937
          %6377 = vmatpush1.bf16.msra.mxu0 %v5936
          %6378 = vmatprep.subr.bf16.mxu0 %v5941
          %6379 = vmatpush1.bf16.msra.mxu0 %v5940
          %6380 = vmatprep.subr.bf16.mxu0 %v5945
          %6381 = vmatpush1.bf16.msra.mxu0 %v5944
          %6382 = vmatprep.mubr.bf16.mxu0 %v4707
          %6383 = vmatmul.mubr.bf16.gmra.mrb[0].mxu0 %v4706
          %v6384 = vpop.f32.mrb[0].mxu0
          %v6385 = vadd.f32 %v6344, %v6384
          %v6386 = vpop.f32.mrb[0].mxu0
          %v6387 = vadd.f32 %v6346, %v6386
          %v6388 = vpop.f32.mrb[0].mxu0
          %v6389 = vpop.f32.mrb[0].mxu0
          %6390 = vdwg.mxu0
          %6391 = vmatprep.subr.bf16.mxu0 %v5949
          %6392 = vmatpush1.bf16.msra.mxu0 %v5948
          %6393 = vmatprep.subr.bf16.mxu0 %v5953
          %6394 = vmatpush1.bf16.msra.mxu0 %v5952
          %6395 = vmatprep.subr.bf16.mxu0 %v5957
          %6396 = vmatpush1.bf16.msra.mxu0 %v5956
          %6397 = vmatprep.subr.bf16.mxu0 %v5961
          %6398 = vmatpush1.bf16.msra.mxu0 %v5960
          %6399 = vmatprep.subr.bf16.mxu0 %v5965
          %6400 = vmatpush1.bf16.msra.mxu0 %v5964
          %6401 = vmatprep.subr.bf16.mxu0 %v5969
          %6402 = vmatpush1.bf16.msra.mxu0 %v5968
          %6403 = vmatprep.subr.bf16.mxu0 %v5973
          %6404 = vmatpush1.bf16.msra.mxu0 %v5972
          %6405 = vmatprep.subr.bf16.mxu0 %v5977
          %6406 = vmatpush1.bf16.msra.mxu0 %v5976
          %6407 = vmatprep.subr.bf16.mxu0 %v5981
          %6408 = vmatpush1.bf16.msra.mxu0 %v5980
          %6409 = vmatprep.subr.bf16.mxu0 %v5985
          %6410 = vmatpush1.bf16.msra.mxu0 %v5984
          %6411 = vmatprep.subr.bf16.mxu0 %v5989
          %6412 = vmatpush1.bf16.msra.mxu0 %v5988
          %6413 = vmatprep.subr.bf16.mxu0 %v5993
          %6414 = vmatpush1.bf16.msra.mxu0 %v5992
          %6415 = vmatprep.subr.bf16.mxu0 %v5997
          %6416 = vmatpush1.bf16.msra.mxu0 %v5996
          %6417 = vmatprep.subr.bf16.mxu0 %v6001
          %6418 = vmatpush1.bf16.msra.mxu0 %v6000
          %6419 = vmatprep.subr.bf16.mxu0 %v6005
          %6420 = vmatpush1.bf16.msra.mxu0 %v6004
          %6421 = vmatprep.subr.bf16.mxu0 %v6009
          %6422 = vmatpush1.bf16.msra.mxu0 %v6008
          %6423 = vmatprep.mubr.bf16.mxu0 %v4709
          %6424 = vmatmul.mubr.bf16.gmra.mrb[0].mxu0 %v4708
          %v6425 = vpop.f32.mrb[0].mxu0
          %v6426 = vadd.f32 %v6385, %v6425
          %v6427 = vpop.f32.mrb[0].mxu0
          %v6428 = vadd.f32 %v6387, %v6427
          %v6429 = vpop.f32.mrb[0].mxu0
          %v6430 = vpop.f32.mrb[0].mxu0
          %6431 = vdwg.mxu0
          %6432 = vmatprep.subr.bf16.mxu0 %v5759
          %6433 = vmatpush1.bf16.msra.mxu0 %v5758
          %6434 = vmatprep.subr.bf16.mxu0 %v5763
          %6435 = vmatpush1.bf16.msra.mxu0 %v5762
          %6436 = vmatprep.subr.bf16.mxu0 %v5767
          %6437 = vmatpush1.bf16.msra.mxu0 %v5766
          %6438 = vmatprep.subr.bf16.mxu0 %v5771
          %6439 = vmatpush1.bf16.msra.mxu0 %v5770
          %6440 = vmatprep.subr.bf16.mxu0 %v5775
          %6441 = vmatpush1.bf16.msra.mxu0 %v5774
          %6442 = vmatprep.subr.bf16.mxu0 %v5779
          %6443 = vmatpush1.bf16.msra.mxu0 %v5778
          %6444 = vmatprep.subr.bf16.mxu0 %v5783
          %6445 = vmatpush1.bf16.msra.mxu0 %v5782
          %6446 = vmatprep.subr.bf16.mxu0 %v5787
          %6447 = vmatpush1.bf16.msra.mxu0 %v5786
          %6448 = vmatprep.subr.bf16.mxu0 %v5791
          %6449 = vmatpush1.bf16.msra.mxu0 %v5790
          %6450 = vmatprep.subr.bf16.mxu0 %v5795
          %6451 = vmatpush1.bf16.msra.mxu0 %v5794
          %6452 = vmatprep.subr.bf16.mxu0 %v5799
          %6453 = vmatpush1.bf16.msra.mxu0 %v5798
          %6454 = vmatprep.subr.bf16.mxu0 %v5803
          %6455 = vmatpush1.bf16.msra.mxu0 %v5802
          %6456 = vmatprep.subr.bf16.mxu0 %v5807
          %6457 = vmatpush1.bf16.msra.mxu0 %v5806
          %6458 = vmatprep.subr.bf16.mxu0 %v5811
          %6459 = vmatpush1.bf16.msra.mxu0 %v5810
          %6460 = vmatprep.subr.bf16.mxu0 %v5815
          %6461 = vmatpush1.bf16.msra.mxu0 %v5814
          %6462 = vmatprep.subr.bf16.mxu0 %v5819
          %6463 = vmatpush1.bf16.msra.mxu0 %v5818
          %6464 = vmatprep.mubr.bf16.mxu0 %v4703
          %6465 = vmatmul.mubr.bf16.gmra.mrb[0].mxu0 %v4702
          %v6466 = vpop.f32.mrb[0].mxu0
          %v6467 = vadd.f32 %v4979, %v6466
          %v6468 = vpop.f32.mrb[0].mxu0
          %v6469 = vadd.f32 %v4983, %v6468
          %v6470 = vpop.f32.mrb[0].mxu0
          %v6471 = vpop.f32.mrb[0].mxu0
          %6472 = vdwg.mxu0
          %6473 = vmatprep.subr.bf16.mxu0 %v5823
          %6474 = vmatpush1.bf16.msra.mxu0 %v5822
          %6475 = vmatprep.subr.bf16.mxu0 %v5827
          %6476 = vmatpush1.bf16.msra.mxu0 %v5826
          %6477 = vmatprep.subr.bf16.mxu0 %v5831
          %6478 = vmatpush1.bf16.msra.mxu0 %v5830
          %6479 = vmatprep.subr.bf16.mxu0 %v5835
          %6480 = vmatpush1.bf16.msra.mxu0 %v5834
          %6481 = vmatprep.subr.bf16.mxu0 %v5839
          %6482 = vmatpush1.bf16.msra.mxu0 %v5838
          %6483 = vmatprep.subr.bf16.mxu0 %v5843
          %6484 = vmatpush1.bf16.msra.mxu0 %v5842
          %6485 = vmatprep.subr.bf16.mxu0 %v5847
          %6486 = vmatpush1.bf16.msra.mxu0 %v5846
          %6487 = vmatprep.subr.bf16.mxu0 %v5851
          %6488 = vmatpush1.bf16.msra.mxu0 %v5850
          %6489 = vmatprep.subr.bf16.mxu0 %v5855
          %6490 = vmatpush1.bf16.msra.mxu0 %v5854
          %6491 = vmatprep.subr.bf16.mxu0 %v5859
          %6492 = vmatpush1.bf16.msra.mxu0 %v5858
          %6493 = vmatprep.subr.bf16.mxu0 %v5863
          %6494 = vmatpush1.bf16.msra.mxu0 %v5862
          %6495 = vmatprep.subr.bf16.mxu0 %v5867
          %6496 = vmatpush1.bf16.msra.mxu0 %v5866
          %6497 = vmatprep.subr.bf16.mxu0 %v5871
          %6498 = vmatpush1.bf16.msra.mxu0 %v5870
          %6499 = vmatprep.subr.bf16.mxu0 %v5875
          %6500 = vmatpush1.bf16.msra.mxu0 %v5874
          %6501 = vmatprep.subr.bf16.mxu0 %v5879
          %6502 = vmatpush1.bf16.msra.mxu0 %v5878
          %6503 = vmatprep.subr.bf16.mxu0 %v5883
          %6504 = vmatpush1.bf16.msra.mxu0 %v5882
          %6505 = vmatprep.mubr.bf16.mxu0 %v4705
          %6506 = vmatmul.mubr.bf16.gmra.mrb[0].mxu0 %v4704
          %v6507 = vpop.f32.mrb[0].mxu0
          %v6508 = vadd.f32 %v6467, %v6507
          %v6509 = vpop.f32.mrb[0].mxu0
          %v6510 = vadd.f32 %v6469, %v6509
          %v6511 = vpop.f32.mrb[0].mxu0
          %v6512 = vpop.f32.mrb[0].mxu0
          %6513 = vdwg.mxu0
          %6514 = vmatprep.subr.bf16.mxu0 %v5887
          %6515 = vmatpush1.bf16.msra.mxu0 %v5886
          %6516 = vmatprep.subr.bf16.mxu0 %v5891
          %6517 = vmatpush1.bf16.msra.mxu0 %v5890
          %6518 = vmatprep.subr.bf16.mxu0 %v5895
          %6519 = vmatpush1.bf16.msra.mxu0 %v5894
          %6520 = vmatprep.subr.bf16.mxu0 %v5899
          %6521 = vmatpush1.bf16.msra.mxu0 %v5898
          %6522 = vmatprep.subr.bf16.mxu0 %v5903
          %6523 = vmatpush1.bf16.msra.mxu0 %v5902
          %6524 = vmatprep.subr.bf16.mxu0 %v5907
          %6525 = vmatpush1.bf16.msra.mxu0 %v5906
          %6526 = vmatprep.subr.bf16.mxu0 %v5911
          %6527 = vmatpush1.bf16.msra.mxu0 %v5910
          %6528 = vmatprep.subr.bf16.mxu0 %v5915
          %6529 = vmatpush1.bf16.msra.mxu0 %v5914
          %6530 = vmatprep.subr.bf16.mxu0 %v5919
          %6531 = vmatpush1.bf16.msra.mxu0 %v5918
          %6532 = vmatprep.subr.bf16.mxu0 %v5923
          %6533 = vmatpush1.bf16.msra.mxu0 %v5922
          %6534 = vmatprep.subr.bf16.mxu0 %v5927
          %6535 = vmatpush1.bf16.msra.mxu0 %v5926
          %6536 = vmatprep.subr.bf16.mxu0 %v5931
          %6537 = vmatpush1.bf16.msra.mxu0 %v5930
          %6538 = vmatprep.subr.bf16.mxu0 %v5935
          %6539 = vmatpush1.bf16.msra.mxu0 %v5934
          %6540 = vmatprep.subr.bf16.mxu0 %v5939
          %6541 = vmatpush1.bf16.msra.mxu0 %v5938
          %6542 = vmatprep.subr.bf16.mxu0 %v5943
          %6543 = vmatpush1.bf16.msra.mxu0 %v5942
          %6544 = vmatprep.subr.bf16.mxu0 %v5947
          %6545 = vmatpush1.bf16.msra.mxu0 %v5946
          %6546 = vmatprep.mubr.bf16.mxu0 %v4707
          %6547 = vmatmul.mubr.bf16.gmra.mrb[0].mxu0 %v4706
          %v6548 = vpop.f32.mrb[0].mxu0
          %v6549 = vadd.f32 %v6508, %v6548
          %v6550 = vpop.f32.mrb[0].mxu0
          %v6551 = vadd.f32 %v6510, %v6550
          %v6552 = vpop.f32.mrb[0].mxu0
          %v6553 = vpop.f32.mrb[0].mxu0
          %6554 = vdwg.mxu0
          %6555 = vmatprep.subr.bf16.mxu0 %v5951
          %6556 = vmatpush1.bf16.msra.mxu0 %v5950
          %6557 = vmatprep.subr.bf16.mxu0 %v5955
          %6558 = vmatpush1.bf16.msra.mxu0 %v5954
          %6559 = vmatprep.subr.bf16.mxu0 %v5959
          %6560 = vmatpush1.bf16.msra.mxu0 %v5958
          %6561 = vmatprep.subr.bf16.mxu0 %v5963
          %6562 = vmatpush1.bf16.msra.mxu0 %v5962
          %6563 = vmatprep.subr.bf16.mxu0 %v5967
          %6564 = vmatpush1.bf16.msra.mxu0 %v5966
          %6565 = vmatprep.subr.bf16.mxu0 %v5971
          %6566 = vmatpush1.bf16.msra.mxu0 %v5970
          %6567 = vmatprep.subr.bf16.mxu0 %v5975
          %6568 = vmatpush1.bf16.msra.mxu0 %v5974
          %6569 = vmatprep.subr.bf16.mxu0 %v5979
          %6570 = vmatpush1.bf16.msra.mxu0 %v5978
          %6571 = vmatprep.subr.bf16.mxu0 %v5983
          %6572 = vmatpush1.bf16.msra.mxu0 %v5982
          %6573 = vmatprep.subr.bf16.mxu0 %v5987
          %6574 = vmatpush1.bf16.msra.mxu0 %v5986
          %6575 = vmatprep.subr.bf16.mxu0 %v5991
          %6576 = vmatpush1.bf16.msra.mxu0 %v5990
          %6577 = vmatprep.subr.bf16.mxu0 %v5995
          %6578 = vmatpush1.bf16.msra.mxu0 %v5994
          %6579 = vmatprep.subr.bf16.mxu0 %v5999
          %6580 = vmatpush1.bf16.msra.mxu0 %v5998
          %6581 = vmatprep.subr.bf16.mxu0 %v6003
          %6582 = vmatpush1.bf16.msra.mxu0 %v6002
          %6583 = vmatprep.subr.bf16.mxu0 %v6007
          %6584 = vmatpush1.bf16.msra.mxu0 %v6006
          %6585 = vmatprep.subr.bf16.mxu0 %v6011
          %6586 = vmatpush1.bf16.msra.mxu0 %v6010
          %6587 = vmatprep.mubr.bf16.mxu0 %v4709
          %6588 = vmatmul.mubr.bf16.gmra.mrb[0].mxu0 %v4708
          %v6589 = vpop.f32.mrb[0].mxu0
          %v6590 = vadd.f32 %v6549, %v6589
          %v6591 = vpop.f32.mrb[0].mxu0
          %v6592 = vadd.f32 %v6551, %v6591
          %v6593 = vpop.f32.mrb[0].mxu0
          %v6594 = vpop.f32.mrb[0].mxu0
          %6595 = vdwg.mxu0
          %v6596 = vmax.f32 %v6426, 0.0
          %v6597 = vmax.f32 %v6428, 0.0
          %v6598 = vmax.f32 %v6590, 0.0
          %v6599 = vmax.f32 %v6592, 0.0
          %v6600 = vpack.c.bf16 %v6596, %v6596
          %v6601 = vpack.c.bf16 %v6597, %v6597
          %v6602 = vpack.c.bf16 %v6598, %v6598
          %v6603 = vpack.c.bf16 %v6599, %v6599
          %v6604 = vld [vmem:[#allocation10] sm:$0xff]
          %v6605 = vld [vmem:[#allocation10 + $0x8] sm:$0xff]
          %v6606 = vld [vmem:[#allocation10 + $0x10] sm:$0xff]
          %v6607 = vld [vmem:[#allocation10 + $0x18] sm:$0xff]
          %v6608 = vld [vmem:[#allocation10 + $0x20] sm:$0xff]
          %v6609 = vld [vmem:[#allocation10 + $0x28] sm:$0xff]
          %v6610 = vld [vmem:[#allocation10 + $0x30] sm:$0xff]
          %v6611 = vld [vmem:[#allocation10 + $0x38] sm:$0xff]
          %v6612 = vld [vmem:[#allocation10 + $0x40] sm:$0xff]
          %v6613 = vld [vmem:[#allocation10 + $0x48] sm:$0xff]
          %v6614 = vld [vmem:[#allocation10 + $0x50] sm:$0xff]
          %v6615 = vld [vmem:[#allocation10 + $0x58] sm:$0xff]
          %v6616 = vld [vmem:[#allocation10 + $0x60] sm:$0xff]
          %v6617 = vld [vmem:[#allocation10 + $0x68] sm:$0xff]
          %v6618 = vld [vmem:[#allocation10 + $0x70] sm:$0xff]
          %v6619 = vld [vmem:[#allocation10 + $0x78] sm:$0xff]
          %v6620 = vld [vmem:[#allocation10 + $0x80] sm:$0xff]
          %v6621 = vld [vmem:[#allocation10 + $0x88] sm:$0xff]
          %v6622 = vld [vmem:[#allocation10 + $0x90] sm:$0xff]
          %v6623 = vld [vmem:[#allocation10 + $0x98] sm:$0xff]
          %v6624 = vld [vmem:[#allocation10 + $0xa0] sm:$0xff]
          %v6625 = vld [vmem:[#allocation10 + $0xa8] sm:$0xff]
          %v6626 = vld [vmem:[#allocation10 + $0xb0] sm:$0xff]
          %v6627 = vld [vmem:[#allocation10 + $0xb8] sm:$0xff]
          %v6628 = vld [vmem:[#allocation10 + $0xc0] sm:$0xff]
          %v6629 = vld [vmem:[#allocation10 + $0xc8] sm:$0xff]
          %v6630 = vld [vmem:[#allocation10 + $0xd0] sm:$0xff]
          %v6631 = vld [vmem:[#allocation10 + $0xd8] sm:$0xff]
          %v6632 = vld [vmem:[#allocation10 + $0xe0] sm:$0xff]
          %v6633 = vld [vmem:[#allocation10 + $0xe8] sm:$0xff]
          %v6634 = vld [vmem:[#allocation10 + $0xf0] sm:$0xff]
          %v6635 = vld [vmem:[#allocation10 + $0xf8] sm:$0xff]
          %v6636 = vld [vmem:[#allocation10 + $0x100] sm:$0xff]
          %v6637 = vld [vmem:[#allocation10 + $0x108] sm:$0xff]
          %v6638 = vld [vmem:[#allocation10 + $0x110] sm:$0xff]
          %v6639 = vld [vmem:[#allocation10 + $0x118] sm:$0xff]
          %v6640 = vld [vmem:[#allocation10 + $0x120] sm:$0xff]
          %v6641 = vld [vmem:[#allocation10 + $0x128] sm:$0xff]
          %v6642 = vld [vmem:[#allocation10 + $0x130] sm:$0xff]
          %v6643 = vld [vmem:[#allocation10 + $0x138] sm:$0xff]
          %v6644 = vld [vmem:[#allocation10 + $0x140] sm:$0xff]
          %v6645 = vld [vmem:[#allocation10 + $0x148] sm:$0xff]
          %v6646 = vld [vmem:[#allocation10 + $0x150] sm:$0xff]
          %v6647 = vld [vmem:[#allocation10 + $0x158] sm:$0xff]
          %v6648 = vld [vmem:[#allocation10 + $0x160] sm:$0xff]
          %v6649 = vld [vmem:[#allocation10 + $0x168] sm:$0xff]
          %v6650 = vld [vmem:[#allocation10 + $0x170] sm:$0xff]
          %v6651 = vld [vmem:[#allocation10 + $0x178] sm:$0xff]
          %v6652 = vld [vmem:[#allocation10 + $0x180] sm:$0xff]
          %v6653 = vld [vmem:[#allocation10 + $0x188] sm:$0xff]
          %v6654 = vld [vmem:[#allocation10 + $0x190] sm:$0xff]
          %v6655 = vld [vmem:[#allocation10 + $0x198] sm:$0xff]
          %v6656 = vld [vmem:[#allocation10 + $0x1a0] sm:$0xff]
          %v6657 = vld [vmem:[#allocation10 + $0x1a8] sm:$0xff]
          %v6658 = vld [vmem:[#allocation10 + $0x1b0] sm:$0xff]
          %v6659 = vld [vmem:[#allocation10 + $0x1b8] sm:$0xff]
          %v6660 = vld [vmem:[#allocation10 + $0x1c0] sm:$0xff]
          %v6661 = vld [vmem:[#allocation10 + $0x1c8] sm:$0xff]
          %v6662 = vld [vmem:[#allocation10 + $0x1d0] sm:$0xff]
          %v6663 = vld [vmem:[#allocation10 + $0x1d8] sm:$0xff]
          %v6664 = vld [vmem:[#allocation10 + $0x1e0] sm:$0xff]
          %v6665 = vld [vmem:[#allocation10 + $0x1e8] sm:$0xff]
          %v6666 = vld [vmem:[#allocation10 + $0x1f0] sm:$0xff]
          %v6667 = vld [vmem:[#allocation10 + $0x1f8] sm:$0xff]
          %v6668 = vld [vmem:[%s10] sm:$0x3]
          %v6670 = vlaneseq
          %v6671 = vshrl.u32 %v6670, 7
          %v6672 = vsub.s32 0, %v6671
          %v6673 = vrot.slane %v6668, %v6672
          %v6674 = vlaneseq
          %v6675 = vshrl.u32 %v6674, 7
          %v6676 = vsub.s32 1, %v6675
          %v6677 = vrot.slane %v6668, %v6676
          %v6744 = vunpack.c.l.b16 %v6604
          %v6745 = vunpack.c.h.b16 %v6604
          %v6746 = vunpack.c.l.b16 %v6605
          %v6747 = vunpack.c.h.b16 %v6605
          %v6748 = vunpack.c.l.b16 %v6606
          %v6749 = vunpack.c.h.b16 %v6606
          %v6750 = vunpack.c.l.b16 %v6607
          %v6751 = vunpack.c.h.b16 %v6607
          %v6752 = vunpack.c.l.b16 %v6608
          %v6753 = vunpack.c.h.b16 %v6608
          %v6754 = vunpack.c.l.b16 %v6609
          %v6755 = vunpack.c.h.b16 %v6609
          %v6756 = vunpack.c.l.b16 %v6610
          %v6757 = vunpack.c.h.b16 %v6610
          %v6758 = vunpack.c.l.b16 %v6611
          %v6759 = vunpack.c.h.b16 %v6611
          %v6760 = vunpack.c.l.b16 %v6612
          %v6761 = vunpack.c.h.b16 %v6612
          %v6762 = vunpack.c.l.b16 %v6613
          %v6763 = vunpack.c.h.b16 %v6613
          %v6764 = vunpack.c.l.b16 %v6614
          %v6765 = vunpack.c.h.b16 %v6614
          %v6766 = vunpack.c.l.b16 %v6615
          %v6767 = vunpack.c.h.b16 %v6615
          %v6768 = vunpack.c.l.b16 %v6616
          %v6769 = vunpack.c.h.b16 %v6616
          %v6770 = vunpack.c.l.b16 %v6617
          %v6771 = vunpack.c.h.b16 %v6617
          %v6772 = vunpack.c.l.b16 %v6618
          %v6773 = vunpack.c.h.b16 %v6618
          %v6774 = vunpack.c.l.b16 %v6619
          %v6775 = vunpack.c.h.b16 %v6619
          %v6776 = vunpack.c.l.b16 %v6620
          %v6777 = vunpack.c.h.b16 %v6620
          %v6778 = vunpack.c.l.b16 %v6621
          %v6779 = vunpack.c.h.b16 %v6621
          %v6780 = vunpack.c.l.b16 %v6622
          %v6781 = vunpack.c.h.b16 %v6622
          %v6782 = vunpack.c.l.b16 %v6623
          %v6783 = vunpack.c.h.b16 %v6623
          %v6784 = vunpack.c.l.b16 %v6624
          %v6785 = vunpack.c.h.b16 %v6624
          %v6786 = vunpack.c.l.b16 %v6625
          %v6787 = vunpack.c.h.b16 %v6625
          %v6788 = vunpack.c.l.b16 %v6626
          %v6789 = vunpack.c.h.b16 %v6626
          %v6790 = vunpack.c.l.b16 %v6627
          %v6791 = vunpack.c.h.b16 %v6627
          %v6792 = vunpack.c.l.b16 %v6628
          %v6793 = vunpack.c.h.b16 %v6628
          %v6794 = vunpack.c.l.b16 %v6629
          %v6795 = vunpack.c.h.b16 %v6629
          %v6796 = vunpack.c.l.b16 %v6630
          %v6797 = vunpack.c.h.b16 %v6630
          %v6798 = vunpack.c.l.b16 %v6631
          %v6799 = vunpack.c.h.b16 %v6631
          %v6800 = vunpack.c.l.b16 %v6632
          %v6801 = vunpack.c.h.b16 %v6632
          %v6802 = vunpack.c.l.b16 %v6633
          %v6803 = vunpack.c.h.b16 %v6633
          %v6804 = vunpack.c.l.b16 %v6634
          %v6805 = vunpack.c.h.b16 %v6634
          %v6806 = vunpack.c.l.b16 %v6635
          %v6807 = vunpack.c.h.b16 %v6635
          %v6808 = vunpack.c.l.b16 %v6636
          %v6809 = vunpack.c.h.b16 %v6636
          %v6810 = vunpack.c.l.b16 %v6637
          %v6811 = vunpack.c.h.b16 %v6637
          %v6812 = vunpack.c.l.b16 %v6638
          %v6813 = vunpack.c.h.b16 %v6638
          %v6814 = vunpack.c.l.b16 %v6639
          %v6815 = vunpack.c.h.b16 %v6639
          %v6816 = vunpack.c.l.b16 %v6640
          %v6817 = vunpack.c.h.b16 %v6640
          %v6818 = vunpack.c.l.b16 %v6641
          %v6819 = vunpack.c.h.b16 %v6641
          %v6820 = vunpack.c.l.b16 %v6642
          %v6821 = vunpack.c.h.b16 %v6642
          %v6822 = vunpack.c.l.b16 %v6643
          %v6823 = vunpack.c.h.b16 %v6643
          %v6824 = vunpack.c.l.b16 %v6644
          %v6825 = vunpack.c.h.b16 %v6644
          %v6826 = vunpack.c.l.b16 %v6645
          %v6827 = vunpack.c.h.b16 %v6645
          %v6828 = vunpack.c.l.b16 %v6646
          %v6829 = vunpack.c.h.b16 %v6646
          %v6830 = vunpack.c.l.b16 %v6647
          %v6831 = vunpack.c.h.b16 %v6647
          %v6832 = vunpack.c.l.b16 %v6648
          %v6833 = vunpack.c.h.b16 %v6648
          %v6834 = vunpack.c.l.b16 %v6649
          %v6835 = vunpack.c.h.b16 %v6649
          %v6836 = vunpack.c.l.b16 %v6650
          %v6837 = vunpack.c.h.b16 %v6650
          %v6838 = vunpack.c.l.b16 %v6651
          %v6839 = vunpack.c.h.b16 %v6651
          %v6840 = vunpack.c.l.b16 %v6652
          %v6841 = vunpack.c.h.b16 %v6652
          %v6842 = vunpack.c.l.b16 %v6653
          %v6843 = vunpack.c.h.b16 %v6653
          %v6844 = vunpack.c.l.b16 %v6654
          %v6845 = vunpack.c.h.b16 %v6654
          %v6846 = vunpack.c.l.b16 %v6655
          %v6847 = vunpack.c.h.b16 %v6655
          %v6848 = vunpack.c.l.b16 %v6656
          %v6849 = vunpack.c.h.b16 %v6656
          %v6850 = vunpack.c.l.b16 %v6657
          %v6851 = vunpack.c.h.b16 %v6657
          %v6852 = vunpack.c.l.b16 %v6658
          %v6853 = vunpack.c.h.b16 %v6658
          %v6854 = vunpack.c.l.b16 %v6659
          %v6855 = vunpack.c.h.b16 %v6659
          %v6856 = vunpack.c.l.b16 %v6660
          %v6857 = vunpack.c.h.b16 %v6660
          %v6858 = vunpack.c.l.b16 %v6661
          %v6859 = vunpack.c.h.b16 %v6661
          %v6860 = vunpack.c.l.b16 %v6662
          %v6861 = vunpack.c.h.b16 %v6662
          %v6862 = vunpack.c.l.b16 %v6663
          %v6863 = vunpack.c.h.b16 %v6663
          %v6864 = vunpack.c.l.b16 %v6664
          %v6865 = vunpack.c.h.b16 %v6664
          %v6866 = vunpack.c.l.b16 %v6665
          %v6867 = vunpack.c.h.b16 %v6665
          %v6868 = vunpack.c.l.b16 %v6666
          %v6869 = vunpack.c.h.b16 %v6666
          %v6870 = vunpack.c.l.b16 %v6667
          %v6871 = vunpack.c.h.b16 %v6667
          %v6872 = vpack.c.b16 %v6746, %v6744
          %v6873 = vpack.c.b16 %v6747, %v6745
          %v6874 = vpack.c.b16 %v6750, %v6748
          %v6875 = vpack.c.b16 %v6751, %v6749
          %v6876 = vpack.c.b16 %v6754, %v6752
          %v6877 = vpack.c.b16 %v6755, %v6753
          %v6878 = vpack.c.b16 %v6758, %v6756
          %v6879 = vpack.c.b16 %v6759, %v6757
          %v6880 = vpack.c.b16 %v6762, %v6760
          %v6881 = vpack.c.b16 %v6763, %v6761
          %v6882 = vpack.c.b16 %v6766, %v6764
          %v6883 = vpack.c.b16 %v6767, %v6765
          %v6884 = vpack.c.b16 %v6770, %v6768
          %v6885 = vpack.c.b16 %v6771, %v6769
          %v6886 = vpack.c.b16 %v6774, %v6772
          %v6887 = vpack.c.b16 %v6775, %v6773
          %v6888 = vpack.c.b16 %v6778, %v6776
          %v6889 = vpack.c.b16 %v6779, %v6777
          %v6890 = vpack.c.b16 %v6782, %v6780
          %v6891 = vpack.c.b16 %v6783, %v6781
          %v6892 = vpack.c.b16 %v6786, %v6784
          %v6893 = vpack.c.b16 %v6787, %v6785
          %v6894 = vpack.c.b16 %v6790, %v6788
          %v6895 = vpack.c.b16 %v6791, %v6789
          %v6896 = vpack.c.b16 %v6794, %v6792
          %v6897 = vpack.c.b16 %v6795, %v6793
          %v6898 = vpack.c.b16 %v6798, %v6796
          %v6899 = vpack.c.b16 %v6799, %v6797
          %v6900 = vpack.c.b16 %v6802, %v6800
          %v6901 = vpack.c.b16 %v6803, %v6801
          %v6902 = vpack.c.b16 %v6806, %v6804
          %v6903 = vpack.c.b16 %v6807, %v6805
          %v6904 = vpack.c.b16 %v6810, %v6808
          %v6905 = vpack.c.b16 %v6811, %v6809
          %v6906 = vpack.c.b16 %v6814, %v6812
          %v6907 = vpack.c.b16 %v6815, %v6813
          %v6908 = vpack.c.b16 %v6818, %v6816
          %v6909 = vpack.c.b16 %v6819, %v6817
          %v6910 = vpack.c.b16 %v6822, %v6820
          %v6911 = vpack.c.b16 %v6823, %v6821
          %v6912 = vpack.c.b16 %v6826, %v6824
          %v6913 = vpack.c.b16 %v6827, %v6825
          %v6914 = vpack.c.b16 %v6830, %v6828
          %v6915 = vpack.c.b16 %v6831, %v6829
          %v6916 = vpack.c.b16 %v6834, %v6832
          %v6917 = vpack.c.b16 %v6835, %v6833
          %v6918 = vpack.c.b16 %v6838, %v6836
          %v6919 = vpack.c.b16 %v6839, %v6837
          %v6920 = vpack.c.b16 %v6842, %v6840
          %v6921 = vpack.c.b16 %v6843, %v6841
          %v6922 = vpack.c.b16 %v6846, %v6844
          %v6923 = vpack.c.b16 %v6847, %v6845
          %v6924 = vpack.c.b16 %v6850, %v6848
          %v6925 = vpack.c.b16 %v6851, %v6849
          %v6926 = vpack.c.b16 %v6854, %v6852
          %v6927 = vpack.c.b16 %v6855, %v6853
          %v6928 = vpack.c.b16 %v6858, %v6856
          %v6929 = vpack.c.b16 %v6859, %v6857
          %v6930 = vpack.c.b16 %v6862, %v6860
          %v6931 = vpack.c.b16 %v6863, %v6861
          %v6932 = vpack.c.b16 %v6866, %v6864
          %v6933 = vpack.c.b16 %v6867, %v6865
          %v6934 = vpack.c.b16 %v6870, %v6868
          %v6935 = vpack.c.b16 %v6871, %v6869
          %7000 = vmatprep.subr.bf16.mxu0 %v6873
          %7001 = vmatpush1.bf16.msra.mxu0 %v6872
          %7002 = vmatprep.subr.bf16.mxu0 %v6875
          %7003 = vmatpush1.bf16.msra.mxu0 %v6874
          %7004 = vmatprep.subr.bf16.mxu0 %v6877
          %7005 = vmatpush1.bf16.msra.mxu0 %v6876
          %7006 = vmatprep.subr.bf16.mxu0 %v6879
          %7007 = vmatpush1.bf16.msra.mxu0 %v6878
          %7008 = vmatprep.subr.bf16.mxu0 %v6881
          %7009 = vmatpush1.bf16.msra.mxu0 %v6880
          %7010 = vmatprep.subr.bf16.mxu0 %v6883
          %7011 = vmatpush1.bf16.msra.mxu0 %v6882
          %7012 = vmatprep.subr.bf16.mxu0 %v6885
          %7013 = vmatpush1.bf16.msra.mxu0 %v6884
          %7014 = vmatprep.subr.bf16.mxu0 %v6887
          %7015 = vmatpush1.bf16.msra.mxu0 %v6886
          %7016 = vmatprep.subr.bf16.mxu0 %v6889
          %7017 = vmatpush1.bf16.msra.mxu0 %v6888
          %7018 = vmatprep.subr.bf16.mxu0 %v6891
          %7019 = vmatpush1.bf16.msra.mxu0 %v6890
          %7020 = vmatprep.subr.bf16.mxu0 %v6893
          %7021 = vmatpush1.bf16.msra.mxu0 %v6892
          %7022 = vmatprep.subr.bf16.mxu0 %v6895
          %7023 = vmatpush1.bf16.msra.mxu0 %v6894
          %7024 = vmatprep.subr.bf16.mxu0 %v6897
          %7025 = vmatpush1.bf16.msra.mxu0 %v6896
          %7026 = vmatprep.subr.bf16.mxu0 %v6899
          %7027 = vmatpush1.bf16.msra.mxu0 %v6898
          %7028 = vmatprep.subr.bf16.mxu0 %v6901
          %7029 = vmatpush1.bf16.msra.mxu0 %v6900
          %7030 = vmatprep.subr.bf16.mxu0 %v6903
          %7031 = vmatpush1.bf16.msra.mxu0 %v6902
          %7032 = vmatprep.mubr.bf16.mxu0 %v6601
          %7033 = vmatmul.mubr.bf16.gmra.mrb[0].mxu0 %v6600
          %v7034 = vpop.f32.mrb[0].mxu0
          %v7035 = vadd.f32 %v6673, %v7034
          %v7036 = vpop.f32.mrb[0].mxu0
          %v7037 = vadd.f32 %v6677, %v7036
          %v7038 = vpop.f32.mrb[0].mxu0
          %v7039 = vpop.f32.mrb[0].mxu0
          %7040 = vdwg.mxu0
          %7041 = vmatprep.subr.bf16.mxu0 %v6905
          %7042 = vmatpush1.bf16.msra.mxu0 %v6904
          %7043 = vmatprep.subr.bf16.mxu0 %v6907
          %7044 = vmatpush1.bf16.msra.mxu0 %v6906
          %7045 = vmatprep.subr.bf16.mxu0 %v6909
          %7046 = vmatpush1.bf16.msra.mxu0 %v6908
          %7047 = vmatprep.subr.bf16.mxu0 %v6911
          %7048 = vmatpush1.bf16.msra.mxu0 %v6910
          %7049 = vmatprep.subr.bf16.mxu0 %v6913
          %7050 = vmatpush1.bf16.msra.mxu0 %v6912
          %7051 = vmatprep.subr.bf16.mxu0 %v6915
          %7052 = vmatpush1.bf16.msra.mxu0 %v6914
          %7053 = vmatprep.subr.bf16.mxu0 %v6917
          %7054 = vmatpush1.bf16.msra.mxu0 %v6916
          %7055 = vmatprep.subr.bf16.mxu0 %v6919
          %7056 = vmatpush1.bf16.msra.mxu0 %v6918
          %7057 = vmatprep.subr.bf16.mxu0 %v6921
          %7058 = vmatpush1.bf16.msra.mxu0 %v6920
          %7059 = vmatprep.subr.bf16.mxu0 %v6923
          %7060 = vmatpush1.bf16.msra.mxu0 %v6922
          %7061 = vmatprep.subr.bf16.mxu0 %v6925
          %7062 = vmatpush1.bf16.msra.mxu0 %v6924
          %7063 = vmatprep.subr.bf16.mxu0 %v6927
          %7064 = vmatpush1.bf16.msra.mxu0 %v6926
          %7065 = vmatprep.subr.bf16.mxu0 %v6929
          %7066 = vmatpush1.bf16.msra.mxu0 %v6928
          %7067 = vmatprep.subr.bf16.mxu0 %v6931
          %7068 = vmatpush1.bf16.msra.mxu0 %v6930
          %7069 = vmatprep.subr.bf16.mxu0 %v6933
          %7070 = vmatpush1.bf16.msra.mxu0 %v6932
          %7071 = vmatprep.subr.bf16.mxu0 %v6935
          %7072 = vmatpush1.bf16.msra.mxu0 %v6934
          %7073 = vmatprep.mubr.bf16.mxu0 %v6603
          %7074 = vmatmul.mubr.bf16.gmra.mrb[0].mxu0 %v6602
          %v7075 = vpop.f32.mrb[0].mxu0
          %v7076 = vadd.f32 %v7035, %v7075
          %v7077 = vpop.f32.mrb[0].mxu0
          %v7078 = vadd.f32 %v7037, %v7077
          %v7079 = vpop.f32.mrb[0].mxu0
          %v7080 = vpop.f32.mrb[0].mxu0
          %7081 = vdwg.mxu0
          %v7082 = vmax.f32 %v7076, 0.0
          %v7083 = vmax.f32 %v7078, 0.0
          %v7084 = vpack.c.bf16 %v7082, %v7082
          %v7085 = vpack.c.bf16 %v7083, %v7083
          %v7086 = vld [vmem:[#allocation12] sm:$0xf]
          %v7087 = vld [vmem:[#allocation12 + $0x4] sm:$0xf]
          %v7088 = vld [vmem:[#allocation12 + $0x8] sm:$0xf]
          %v7089 = vld [vmem:[#allocation12 + $0xc] sm:$0xf]
          %v7090 = vld [vmem:[#allocation12 + $0x10] sm:$0xf]
          %v7091 = vld [vmem:[#allocation12 + $0x14] sm:$0xf]
          %v7092 = vld [vmem:[#allocation12 + $0x18] sm:$0xf]
          %v7093 = vld [vmem:[#allocation12 + $0x1c] sm:$0xf]
          %v7094 = vld [vmem:[#allocation12 + $0x20] sm:$0xf]
          %v7095 = vld [vmem:[#allocation12 + $0x24] sm:$0xf]
          %v7096 = vld [vmem:[#allocation12 + $0x28] sm:$0xf]
          %v7097 = vld [vmem:[#allocation12 + $0x2c] sm:$0xf]
          %v7098 = vld [vmem:[#allocation12 + $0x30] sm:$0xf]
          %v7099 = vld [vmem:[#allocation12 + $0x34] sm:$0xf]
          %v7100 = vld [vmem:[#allocation12 + $0x38] sm:$0xf]
          %v7101 = vld [vmem:[#allocation12 + $0x3c] sm:$0xf]
          %v7102 = vld [vmem:[#allocation12 + $0x40] sm:$0xf]
          %v7103 = vld [vmem:[#allocation12 + $0x44] sm:$0xf]
          %v7104 = vld [vmem:[#allocation12 + $0x48] sm:$0xf]
          %v7105 = vld [vmem:[#allocation12 + $0x4c] sm:$0xf]
          %v7106 = vld [vmem:[#allocation12 + $0x50] sm:$0xf]
          %v7107 = vld [vmem:[#allocation12 + $0x54] sm:$0xf]
          %v7108 = vld [vmem:[#allocation12 + $0x58] sm:$0xf]
          %v7109 = vld [vmem:[#allocation12 + $0x5c] sm:$0xf]
          %v7110 = vld [vmem:[#allocation12 + $0x60] sm:$0xf]
          %v7111 = vld [vmem:[#allocation12 + $0x64] sm:$0xf]
          %v7112 = vld [vmem:[#allocation12 + $0x68] sm:$0xf]
          %v7113 = vld [vmem:[#allocation12 + $0x6c] sm:$0xf]
          %v7114 = vld [vmem:[#allocation12 + $0x70] sm:$0xf]
          %v7115 = vld [vmem:[#allocation12 + $0x74] sm:$0xf]
          %v7116 = vld [vmem:[#allocation12 + $0x78] sm:$0xf]
          %v7117 = vld [vmem:[#allocation12 + $0x7c] sm:$0xf]
          %v7118 = vld [vmem:[%s12] sm:$0x1]
          %v7120 = vlaneseq
          %v7121 = vshrl.u32 %v7120, 7
          %v7122 = vsub.s32 0, %v7121
          %v7123 = vrot.slane %v7118, %v7122
          %v7157 = vunpack.c.l.b16 %v7086
          %v7158 = vunpack.c.l.b16 %v7087
          %v7159 = vunpack.c.l.b16 %v7088
          %v7160 = vunpack.c.l.b16 %v7089
          %v7161 = vunpack.c.l.b16 %v7090
          %v7162 = vunpack.c.l.b16 %v7091
          %v7163 = vunpack.c.l.b16 %v7092
          %v7164 = vunpack.c.l.b16 %v7093
          %v7165 = vunpack.c.l.b16 %v7094
          %v7166 = vunpack.c.l.b16 %v7095
          %v7167 = vunpack.c.l.b16 %v7096
          %v7168 = vunpack.c.l.b16 %v7097
          %v7169 = vunpack.c.l.b16 %v7098
          %v7170 = vunpack.c.l.b16 %v7099
          %v7171 = vunpack.c.l.b16 %v7100
          %v7172 = vunpack.c.l.b16 %v7101
          %v7173 = vunpack.c.l.b16 %v7102
          %v7174 = vunpack.c.l.b16 %v7103
          %v7175 = vunpack.c.l.b16 %v7104
          %v7176 = vunpack.c.l.b16 %v7105
          %v7177 = vunpack.c.l.b16 %v7106
          %v7178 = vunpack.c.l.b16 %v7107
          %v7179 = vunpack.c.l.b16 %v7108
          %v7180 = vunpack.c.l.b16 %v7109
          %v7181 = vunpack.c.l.b16 %v7110
          %v7182 = vunpack.c.l.b16 %v7111
          %v7183 = vunpack.c.l.b16 %v7112
          %v7184 = vunpack.c.l.b16 %v7113
          %v7185 = vunpack.c.l.b16 %v7114
          %v7186 = vunpack.c.l.b16 %v7115
          %v7187 = vunpack.c.l.b16 %v7116
          %v7188 = vunpack.c.l.b16 %v7117
          %v7189 = vpack.c.b16 %v7158, %v7157
          %v7190 = vpack.c.b16 %v7160, %v7159
          %v7191 = vpack.c.b16 %v7162, %v7161
          %v7192 = vpack.c.b16 %v7164, %v7163
          %v7193 = vpack.c.b16 %v7166, %v7165
          %v7194 = vpack.c.b16 %v7168, %v7167
          %v7195 = vpack.c.b16 %v7170, %v7169
          %v7196 = vpack.c.b16 %v7172, %v7171
          %v7197 = vpack.c.b16 %v7174, %v7173
          %v7198 = vpack.c.b16 %v7176, %v7175
          %v7199 = vpack.c.b16 %v7178, %v7177
          %v7200 = vpack.c.b16 %v7180, %v7179
          %v7201 = vpack.c.b16 %v7182, %v7181
          %v7202 = vpack.c.b16 %v7184, %v7183
          %v7203 = vpack.c.b16 %v7186, %v7185
          %v7204 = vpack.c.b16 %v7188, %v7187
          %7221 = vmatprep.subr.bf16.mxu0 0
          %7222 = vmatpush1.bf16.msra.mxu0 %v7189
          %7223 = vmatprep.subr.bf16.mxu0 0
          %7224 = vmatpush1.bf16.msra.mxu0 %v7190
          %7225 = vmatprep.subr.bf16.mxu0 0
          %7226 = vmatpush1.bf16.msra.mxu0 %v7191
          %7227 = vmatprep.subr.bf16.mxu0 0
          %7228 = vmatpush1.bf16.msra.mxu0 %v7192
          %7229 = vmatprep.subr.bf16.mxu0 0
          %7230 = vmatpush1.bf16.msra.mxu0 %v7193
          %7231 = vmatprep.subr.bf16.mxu0 0
          %7232 = vmatpush1.bf16.msra.mxu0 %v7194
          %7233 = vmatprep.subr.bf16.mxu0 0
          %7234 = vmatpush1.bf16.msra.mxu0 %v7195
          %7235 = vmatprep.subr.bf16.mxu0 0
          %7236 = vmatpush1.bf16.msra.mxu0 %v7196
          %7237 = vmatprep.subr.bf16.mxu0 0
          %7238 = vmatpush1.bf16.msra.mxu0 %v7197
          %7239 = vmatprep.subr.bf16.mxu0 0
          %7240 = vmatpush1.bf16.msra.mxu0 %v7198
          %7241 = vmatprep.subr.bf16.mxu0 0
          %7242 = vmatpush1.bf16.msra.mxu0 %v7199
          %7243 = vmatprep.subr.bf16.mxu0 0
          %7244 = vmatpush1.bf16.msra.mxu0 %v7200
          %7245 = vmatprep.subr.bf16.mxu0 0
          %7246 = vmatpush1.bf16.msra.mxu0 %v7201
          %7247 = vmatprep.subr.bf16.mxu0 0
          %7248 = vmatpush1.bf16.msra.mxu0 %v7202
          %7249 = vmatprep.subr.bf16.mxu0 0
          %7250 = vmatpush1.bf16.msra.mxu0 %v7203
          %7251 = vmatprep.subr.bf16.mxu0 0
          %7252 = vmatpush1.bf16.msra.mxu0 %v7204
          %7253 = vmatprep.mubr.bf16.mxu0 %v7085
          %7254 = vmatmul.mubr.bf16.gmra.mrb[0].mxu0 %v7084
          %v7255 = vpop.f32.mrb[0].mxu0
          %v7256 = vadd.f32 %v7123, %v7255
          %v7257 = vpop.f32.mrb[0].mxu0
          %v7258 = vpop.f32.mrb[0].mxu0
          %v7259 = vpop.f32.mrb[0].mxu0
          %7260 = vdwg.mxu0
          %7261 = vst [vmem:[#allocation13] sm:$0x3] %v7256
        $region141: #{tpu_custom_call.1} parent=108 // pred_fallthru
          _
        // Predicated region
        $region142: #{tpu_custom_call.1} parent=108 // pred_check
          %p7262 = pneg %p338
        $region143: #{tpu_custom_call.1} parent=108 // pred_check_branch
          %7264 = sbr.rel (%p7262) target = $region145
        $region144: #{tpu_custom_call.1} parent=108 // pred_region
          %s7266 = ssub.s32 32, 32
          %7267 = vsyncadd [#allocation6], %s7266
          %s7268 = smul.addr %s32, 32
          %s7269 = scalar_lea.hbm %s13, %s7268
          %s7271 = sshll.u32 [#allocation13], 4
          %s7272 = int_to_ptr.vmem [resolvable:$true] %s7271
          %7274 = dma.vmem_to_hbm [thread:$0]  %s7272, 32, %s7269, [#allocation6]
        $region145: #{tpu_custom_call.1} parent=108 // pred_fallthru
          _
        // Predicated region
        $region146: #{tpu_custom_call.1} parent=108 // pred_check
          %p7275 = pneg %p338
        $region147: #{tpu_custom_call.1} parent=108 // pred_check_branch
          %7277 = sbr.rel (%p7275) target = $region149
        $region148: #{tpu_custom_call.1} parent=108 // pred_region
          %7278 = dma.done [#allocation6], 32
        $region149: #{tpu_custom_call.1} parent=108 // pred_fallthru
          _
      $region109: #{tpu_custom_call.1} parent=5 // pred_fallthru
        _
      %p7279 = scmp.le.s32.totalorder 2, %s23
      // Predicated region
      $region150: #{tpu_custom_call.1} parent=5 // pred_check
        %p7280 = pneg %p7279
      $region151: #{tpu_custom_call.1} parent=5 // pred_check_branch
        %7282 = sbr.rel (%p7280) target = $region153
      $region152: #{tpu_custom_call.1} parent=5 // pred_region
        %s7283 = ssub.s32 %s23, 2
      $region153: #{tpu_custom_call.1} parent=5 // pred_fallthru
        _
    $region6: #{tpu_custom_call.1} parent=1 // loop_footer
      %s27 = sadd.s32 1, %s23
    $region7: #{tpu_custom_call.1} parent=1 // loop_footer_branch
      %22 = sbr.rel target = $region3
    $region8: #{tpu_custom_call.1} parent=1 // loop_exit
      _
    %7284 = vsyncpa [#allocation5], 1
    %s7285 = scalar_lea.sflag [#allocation5], 1
    %7286 = vsyncpa %s7285, 1
    %7287 = vsyncpa [#allocation8], 1
    %7288 = vsyncpa [#allocation11], 1
    %7289 = vsyncpa [#allocation6], 1
    %s7290 = scalar_lea.sflag [#allocation6], 1
    %7291 = vsyncpa %s7290, 1

</llo_original>
